<compile_context>
chip_gen: v7x
topology: tpu7x:2x2x1
jax: 0.10.0
libtpu: 0.0.40
codegen_flags: <defaults>
</compile_context>

<pallas_src>
import functools
import numpy as np

import jax
import jax.numpy as jnp
from jax import lax
from jax.experimental import pallas as pl
from jax.experimental.pallas import tpu as pltpu


# ---------------------------------------------------------------------------
# Globals / small helpers
# ---------------------------------------------------------------------------
def _round_up(x, m):
    return ((x + m - 1) // m) * m


def _vmem_limit_bytes():
    cap = 64 * 1024 * 1024                      # conservative default (v7x)
    try:
        info = pltpu.get_tpu_info()
        cap = int(getattr(info, "vmem_capacity_bytes", cap))
    except Exception:
        pass
    return int(min(100 * 1024 * 1024, (cap * 3) // 4))


_VMEM_LIMIT = _vmem_limit_bytes()
_PALLAS_MIN_ROWS = 128        # below this a pallas_call is pure launch overhead


def _largest_divisor(n, candidates):
    for c in candidates:
        if n % c == 0:
            return c
    return 1


# ---------------------------------------------------------------------------
# Pallas kernel 1: fused (M,K)@(K,N) + bias + optional ReLU  (bf16 in, f32 acc)
# ---------------------------------------------------------------------------
def _mm_bias_act_kernel(a_ref, b_ref, bias_ref, o_ref, *, relu):
    acc = jnp.dot(a_ref[...], b_ref[...], preferred_element_type=jnp.float32)
    acc = acc + bias_ref[...]
    if relu:
        acc = jnp.maximum(acc, 0.0)
    o_ref[...] = acc.astype(o_ref.dtype)


def pallas_matmul(a, b, bias=None, relu=False, out_dtype=jnp.float32):
    """out = relu?(a @ b + bias).  a:(M,K), b:(K,N), bias:(N,) f32.

    bf16 operands, f32 MXU accumulation.  The output keeps its true lane width
    (no 128-pad/slice HBM round trip) and the M axis is a ragged cdiv grid so
    `a` is never copied/padded in HBM.
    """
    M, K = a.shape
    K2, N = b.shape
    assert K == K2
    a = a.astype(jnp.bfloat16)
    b = b.astype(jnp.bfloat16)
    if bias is None:
        bias2d = jnp.zeros((1, N), jnp.float32)
    else:
        bias2d = jnp.asarray(bias, jnp.float32).reshape(1, N)

    # >=2 row tiles whenever possible (keeps both v7x TensorCores busy); 512-row
    # cap keeps us near the HBM roofline and comfortably inside VMEM at this
    # network's K/N.
    if M >= 1024:
        TM = 512
    else:
        TM = max(8, _round_up((M + 1) // 2, 8))
    grid_m = pl.cdiv(M, TM)

    return pl.pallas_call(
        functools.partial(_mm_bias_act_kernel, relu=relu),
        out_shape=jax.ShapeDtypeStruct((M, N), out_dtype),
        grid_spec=pltpu.PrefetchScalarGridSpec(
            num_scalar_prefetch=0,
            grid=(grid_m,),
            in_specs=[
                pl.BlockSpec((TM, K), lambda i: (i, 0)),
                pl.BlockSpec((K, N), lambda i: (0, 0)),
                pl.BlockSpec((1, N), lambda i: (0, 0)),
            ],
            out_specs=pl.BlockSpec((TM, N), lambda i: (i, 0)),
        ),
        compiler_params=pltpu.CompilerParams(
            dimension_semantics=("parallel",),
            vmem_limit_bytes=_VMEM_LIMIT,
        ),
    )(a, b, bias2d)


# ---------------------------------------------------------------------------
# Pallas kernel 2: implicit-GEMM stride-1 kxk conv (+bias, +ReLU)
#   grid = (B, Ho/TH, kh); the kh row-tap axis is the reduction ("arbitrary"),
#   the kw column taps are static slices inside the kernel.
# ---------------------------------------------------------------------------
def _conv_ig_kernel(x_ref, w_ref, b_ref, o_ref, acc_ref, *,
                    kh, kw, dil, th, wo, relu):
    # x_ref : (Hp, Wp, Cin)  full padded image of one batch (DMA'd once/batch)
    # w_ref : (kh*kw, Cin, Cout)  whole weight (DMA'd once)
    # b_ref : (1, 1, Cout) f32
    # o_ref : (TH, Wo, Cout)
    # acc   : (TH, Wo, Cout) f32, accumulates over the kh row-tap grid axis
    i = pl.program_id(2)                               # row tap, last axis

    @pl.when(i == 0)
    def _init():
        acc_ref[...] = jnp.zeros_like(acc_ref)

    h0 = pl.program_id(1) * th
    w_taps = [w_ref[i * kw + j] for j in range(kw)]    # (Cin, Cout) each
    for r in range(th):                                # static unrolled rows
        acc = None
        for j in range(kw):                            # static column taps
            win = x_ref[h0 + r + i * dil, j * dil:j * dil + wo, :]   # (Wo, Cin)
            d = jnp.dot(win, w_taps[j], preferred_element_type=jnp.float32)
            acc = d if acc is None else acc + d
        acc_ref[r] += acc

    @pl.when(i == kh - 1)
    def _finalize():
        out = acc_ref[...] + b_ref[...]
        if relu:
            out = jnp.maximum(out, 0.0)
        o_ref[...] = out.astype(o_ref.dtype)


def conv_implicit_gemm(x, w, b, *, dilation, padding, relu, out_dtype):
    """Stride-1 kxk conv as implicit GEMM: no patch matrix in HBM."""
    kh, kw, cin, cout = w.shape
    Bn, H, W, _ = x.shape
    Ho = H + 2 * padding - dilation * (kh - 1)
    Wo = W + 2 * padding - dilation * (kw - 1)
    xp = x
    if padding:
        xp = jnp.pad(x, ((0, 0), (padding, padding), (padding, padding), (0, 0)))
    Hp, Wp = H + 2 * padding, W + 2 * padding
    wk = w.reshape(kh * kw, cin, cout).astype(jnp.bfloat16)
    bias3d = jnp.asarray(b, jnp.float32).reshape(1, 1, cout)

    # TODO(synk): at production sizes Ho is rarely divisible -> add a clamped
    # ragged last H-tile, and tile H with an explicit halo instead of holding
    # the full per-batch image once maps exceed a few MiB of VMEM.
    TH = _largest_divisor(Ho, (8, 4, 2))
    grid = (Bn, Ho // TH, kh)

    kern = functools.partial(_conv_ig_kernel, kh=kh, kw=kw, dil=dilation,
                             th=TH, wo=Wo, relu=relu)
    return pl.pallas_call(
        kern,
        out_shape=jax.ShapeDtypeStruct((Bn, Ho, Wo, cout), out_dtype),
        grid_spec=pltpu.PrefetchScalarGridSpec(
            num_scalar_prefetch=0,
            grid=grid,
            in_specs=[
                pl.BlockSpec((None, Hp, Wp, cin), lambda bi, h, t: (bi, 0, 0, 0)),
                pl.BlockSpec((kh * kw, cin, cout), lambda bi, h, t: (0, 0, 0)),
                pl.BlockSpec((1, 1, cout), lambda bi, h, t: (0, 0, 0)),
            ],
            out_specs=pl.BlockSpec((None, TH, Wo, cout),
                                   lambda bi, h, t: (bi, h, 0, 0)),
            scratch_shapes=[pltpu.VMEM((TH, Wo, cout), jnp.float32)],
        ),
        compiler_params=pltpu.CompilerParams(
            dimension_semantics=("parallel", "parallel", "arbitrary"),
            vmem_limit_bytes=_VMEM_LIMIT,
        ),
    )(xp, wk, bias3d)


# ---------------------------------------------------------------------------
# Pallas kernel 3: fused align_corners=True bilinear resize
#   out[h, wo*C+c] = (Mh @ X @ (Mw (x) I_C)^T)[h, wo*C+c]
# ---------------------------------------------------------------------------
def _resize_kernel(mh_ref, kron_ref, x_ref, o_ref):
    xf = x_ref[...].astype(jnp.float32)
    t = jnp.dot(mh_ref[...], xf, preferred_element_type=jnp.float32)
    o = jnp.dot(t, kron_ref[...], preferred_element_type=jnp.float32)
    o_ref[...] = o.astype(o_ref.dtype)


def _interp_matrix_np(in_size, out_size):
    """Row-stochastic bilinear interpolation matrix, align_corners=True."""
    if out_size == 1:
        src = np.zeros((1,), np.float64)
    else:
        src = np.arange(out_size, dtype=np.float64) * (in_size - 1) / (out_size - 1)
    lo = np.clip(np.floor(src).astype(np.int64), 0, in_size - 1)
    hi = np.clip(lo + 1, 0, in_size - 1)
    w_hi = (src - lo).astype(np.float32)
    w_lo = 1.0 - w_hi
    M = np.zeros((out_size, in_size), np.float32)
    M[np.arange(out_size), lo] += w_lo
    M[np.arange(out_size), hi] += w_hi
    return M


def _pick_row_tile(Ho):
    for t in (32, 16, 8):
        if Ho % t == 0 and Ho // t >= 2:
            return t
    return Ho


def bilinear_resize(x, Ho, Wo, out_dtype=None):
    """F.interpolate(mode='bilinear', align_corners=True), fused, f32 weights."""
    Bn, H, W, C = x.shape
    out_dtype = out_dtype or x.dtype
    if (H, W) == (Ho, Wo):
        return x.astype(out_dtype)

    Mh_np = _interp_matrix_np(H, Ho)                    # (Ho, H)
    Mw_np = _interp_matrix_np(W, Wo)                    # (Wo, W)

    # TODO(synk): replace the Kronecker operand with a separable in-kernel width
    # contraction for large maps (kron scales as W*Wo*C^2); this fallback still
    # pays XLA transposes around two matmuls.
    if W * C * Wo * C > (4 << 20):
        Mh = jnp.asarray(Mh_np)
        Mw = jnp.asarray(Mw_np)
        t = pallas_matmul(Mh, x.transpose(1, 0, 2, 3).reshape(H, Bn * W * C),
                          out_dtype=jnp.float32)
        t = t.reshape(Ho, Bn, W, C).transpose(1, 0, 2, 3)
        t2 = pallas_matmul(Mw, t.transpose(2, 0, 1, 3).reshape(W, Bn * Ho * C),
                           out_dtype=jnp.float32)
        return t2.reshape(Wo, Bn, Ho, C).transpose(1, 2, 0, 3).astype(out_dtype)

    Mh = jnp.asarray(Mh_np, jnp.float32)                                # (Ho, H)
    kron = jnp.asarray(np.kron(Mw_np, np.eye(C, dtype=np.float32)).T,
                       jnp.float32)                                     # (W*C, Wo*C)
    x2 = x.reshape(Bn, H, W * C)
    THo = _pick_row_tile(Ho)

    out = pl.pallas_call(
        _resize_kernel,
        out_shape=jax.ShapeDtypeStruct((Bn, Ho, Wo * C), out_dtype),
        grid_spec=pltpu.PrefetchScalarGridSpec(
            num_scalar_prefetch=0,
            grid=(Bn, Ho // THo),
            in_specs=[
                pl.BlockSpec((THo, H), lambda b, i: (i, 0)),
                pl.BlockSpec((W * C, Wo * C), lambda b, i: (0, 0)),
                pl.BlockSpec((None, H, W * C), lambda b, i: (b, 0, 0)),
            ],
            out_specs=pl.BlockSpec((None, THo, Wo * C), lambda b, i: (b, i, 0)),
        ),
        compiler_params=pltpu.CompilerParams(
            dimension_semantics=("parallel", "parallel"),
            vmem_limit_bytes=_VMEM_LIMIT,
        ),
    )(Mh, kron, x2)
    return out.reshape(Bn, Ho, Wo, C)


# ---------------------------------------------------------------------------
# Conv / BN plumbing
# ---------------------------------------------------------------------------
def _im2col(x, kh, kw, stride, dilation, padding):
    """x: (B,H,W,C) bf16 -> (B*Ho*Wo, kh*kw*C), (Ho, Wo).  (stride>1 path only)"""
    Bn, H, W, C = x.shape
    Ho = (H + 2 * padding - dilation * (kh - 1) - 1) // stride + 1
    Wo = (W + 2 * padding - dilation * (kw - 1) - 1) // stride + 1
    xp = jnp.pad(x, ((0, 0), (padding, padding), (padding, padding), (0, 0)))
    patches = []
    for i in range(kh):
        for j in range(kw):
            hi = i * dilation
            wj = j * dilation
            patches.append(xp[:, hi:hi + stride * (Ho - 1) + 1:stride,
                               wj:wj + stride * (Wo - 1) + 1:stride, :])
    cols = jnp.concatenate(patches, axis=-1)
    return cols.reshape(Bn * Ho * Wo, kh * kw * C), (Ho, Wo)


def _fold_bn(w, b, bn, eps=1e-5):
    """Fold eval-mode BatchNorm (gamma,beta,mean,var) into conv weight/bias."""
    gamma, beta, mean, var = bn
    scale = gamma / jnp.sqrt(var + eps)
    return w * scale, (b - mean) * scale + beta


def _conv_xla(x, w, b, stride, dilation, padding, relu, out_dtype):
    """Tiny layers (few output rows): a Pallas launch is pure overhead."""
    out = lax.conv_general_dilated(
        x.astype(jnp.bfloat16), w.astype(jnp.bfloat16),
        window_strides=(stride, stride),
        padding=[(padding, padding), (padding, padding)],
        rhs_dilation=(dilation, dilation),
        dimension_numbers=("NHWC", "HWIO", "NHWC"),
        preferred_element_type=jnp.float32)
    out = out + jnp.asarray(b, jnp.float32)
    if relu:
        out = jnp.maximum(out, 0.0)
    return out.astype(out_dtype)


def conv2d(x, w, b, *, stride=1, dilation=1, padding=0, bn=None, relu=False,
           out_dtype=jnp.bfloat16):
    """NHWC conv (+folded BN)(+ReLU), routed to the best lowering."""
    if bn is not None:
        w, b = _fold_bn(w, b, bn)
    kh, kw, cin, cout = w.shape
    Bn, H, W, _ = x.shape
    Ho = (H + 2 * padding - dilation * (kh - 1) - 1) // stride + 1
    Wo = (W + 2 * padding - dilation * (kw - 1) - 1) // stride + 1

    if Bn * Ho * Wo < _PALLAS_MIN_ROWS:
        return _conv_xla(x, w, b, stride, dilation, padding, relu, out_dtype)

    if kh == 1 and kw == 1 and stride == 1 and padding == 0:
        out = pallas_matmul(x.reshape(Bn * H * W, cin), w.reshape(cin, cout),
                            bias=b, relu=relu, out_dtype=out_dtype)
        return out.reshape(Bn, Ho, Wo, cout)

    if stride == 1:
        return conv_implicit_gemm(x, w, b, dilation=dilation, padding=padding,
                                  relu=relu, out_dtype=out_dtype)

    # TODO(synk): strided (backbone) convs still im2col in XLA; switch to the
    # implicit-GEMM kernel via 2x2 space-to-depth to kill this expansion too.
    cols, (Ho, Wo) = _im2col(x, kh, kw, stride, dilation, padding)
    out = pallas_matmul(cols, w.reshape(kh * kw * cin, cout), bias=b,
                        relu=relu, out_dtype=out_dtype)
    return out.reshape(Bn, Ho, Wo, cout)


# ---------------------------------------------------------------------------
# Deterministic parameter construction (synthetic weights, no checkpoint load)
# ---------------------------------------------------------------------------
NUM_CLASSES = 19
C_STEM, C_LOW, C_MID, C_HIGH = 16, 24, 32, 64
C_ASPP, C_RED = 64, 48


def _init_conv(key, kh, kw, cin, cout):
    k1, k2 = jax.random.split(key)
    w = jax.random.normal(k1, (kh, kw, cin, cout), jnp.float32) / np.sqrt(kh * kw * cin)
    b = 0.01 * jax.random.normal(k2, (cout,), jnp.float32)
    return w, b


def _init_bn(key, c):
    k1, k2, k3, k4 = jax.random.split(key, 4)
    gamma = 1.0 + 0.1 * jax.random.normal(k1, (c,), jnp.float32)
    beta = 0.1 * jax.random.normal(k2, (c,), jnp.float32)
    mean = 0.1 * jax.random.normal(k3, (c,), jnp.float32)
    var = 1.0 + 0.1 * jax.random.uniform(k4, (c,), jnp.float32)
    return (gamma, beta, mean, var)


def build_params(key):
    keys = iter(jax.random.split(key, 64))
    p = {}

    def conv_block(name, k, cin, cout):
        w, b = _init_conv(next(keys), k, k, cin, cout)
        p[name] = {"w": w, "b": b, "bn": _init_bn(next(keys), cout)}

    # TODO(synk): full pretrained MobileNetV2 (inverted residual) backbone is
    # approximated by a 4-stage conv-BN-ReLU stem with the same stride structure
    # (low-level features at stride 4, high-level at stride 16).
    conv_block("bb1", 3, 3, C_STEM)            # stride 2
    conv_block("bb2", 3, C_STEM, C_LOW)        # stride 4  -> low_level_feat
    conv_block("bb3", 3, C_LOW, C_MID)         # stride 8
    conv_block("bb4", 3, C_MID, C_HIGH)        # stride 16 -> x
    # ASPP, output_stride=16 -> dilations [1, 6, 12, 18]
    conv_block("aspp1", 1, C_HIGH, C_ASPP)
    conv_block("aspp2", 3, C_HIGH, C_ASPP)
    conv_block("aspp3", 3, C_HIGH, C_ASPP)
    conv_block("aspp4", 3, C_HIGH, C_ASPP)
    conv_block("aspp_pool", 1, C_HIGH, C_ASPP)
    conv_block("aspp_proj", 1, 5 * C_ASPP, C_ASPP)
    # Decoder
    conv_block("dec_low", 1, C_LOW, C_RED)
    conv_block("dec1", 3, C_ASPP + C_RED, C_ASPP)
    conv_block("dec2", 3, C_ASPP, C_ASPP)
    w, b = _init_conv(next(keys), 1, 1, C_ASPP, NUM_CLASSES)
    p["dec_cls"] = {"w": w, "b": b}
    return p


# ---------------------------------------------------------------------------
# DeepLab forward (eval mode: BN uses running stats, dropout is identity)
# ---------------------------------------------------------------------------
def deeplab_forward(params, x_nchw):
    x = jnp.transpose(x_nchw, (0, 2, 3, 1)).astype(jnp.bfloat16)  # NCHW -> NHWC bf16
    Bn, H, W, _ = x.shape

    def cbr(name, t, **kw):
        pr = params[name]
        return conv2d(t, pr["w"], pr["b"], bn=pr["bn"], relu=True, **kw)

    # ---- backbone ----
    t = cbr("bb1", x, stride=2, padding=1)
    low_level_feat = cbr("bb2", t, stride=2, padding=1)           # stride 4
    t = cbr("bb3", low_level_feat, stride=2, padding=1)
    hx = cbr("bb4", t, stride=2, padding=1)                       # stride 16

    # ---- ASPP branches ----
    a1 = cbr("aspp1", hx)
    a2 = cbr("aspp2", hx, dilation=6, padding=6)
    a3 = cbr("aspp3", hx, dilation=12, padding=12)
    a4 = cbr("aspp4", hx, dilation=18, padding=18)

    # Image-pool branch folded into the projection's per-batch bias: the
    # 1x1 -> HxW align_corners upsample of a pooled map is spatially constant.
    pr_pool = params["aspp_pool"]
    wpl, bpl = _fold_bn(pr_pool["w"], pr_pool["b"], pr_pool["bn"])
    pooled = jnp.mean(hx.astype(jnp.float32), axis=(1, 2))            # (B, C_HIGH)
    gp_vec = jnp.maximum(pooled @ wpl.reshape(C_HIGH, C_ASPP) + bpl, 0.0)

    pr_proj = params["aspp_proj"]
    wpj, bpj = _fold_bn(pr_proj["w"], pr_proj["b"], pr_proj["bn"])
    gp_bias = gp_vec @ wpj.reshape(5 * C_ASPP, C_ASPP)[4 * C_ASPP:, :]  # (B, C_ASPP)

    cat = jnp.concatenate([a1, a2, a3, a4], axis=-1)
    z = conv2d(cat, wpj[:, :, :4 * C_ASPP, :], bpj, relu=False)        # no ReLU yet
    asp = jnp.maximum(z.astype(jnp.float32) + gp_bias[:, None, None, :], 0.0
                      ).astype(jnp.bfloat16)
    # Dropout(0.5) -> identity in eval mode.

    # ---- decoder ----
    lowr = cbr("dec_low", low_level_feat)
    up = bilinear_resize(asp, low_level_feat.shape[1], low_level_feat.shape[2],
                         out_dtype=jnp.bfloat16)
    d = cbr("dec1", jnp.concatenate([up, lowr], axis=-1), padding=1)
    d = cbr("dec2", d, padding=1)                                 # Dropouts -> identity
    logits = conv2d(d, params["dec_cls"]["w"], params["dec_cls"]["b"],
                    out_dtype=jnp.float32)

    # ---- final bilinear upsample to input resolution (align_corners=True) ----
    out = bilinear_resize(logits, H, W, out_dtype=jnp.float32)
    return jnp.transpose(out, (0, 3, 1, 2))                       # back to NCHW


# ---------------------------------------------------------------------------
if __name__ == "__main__":
    key = jax.random.PRNGKey(0)
    pkey, xkey = jax.random.split(key)
    params = build_params(pkey)
    x = jax.random.normal(xkey, (2, 3, 32, 32), jnp.float32)      # NCHW input

    fwd = jax.jit(functools.partial(deeplab_forward, params))
    out = jax.block_until_ready(fwd(x))

    assert out.shape == (2, NUM_CLASSES, 32, 32), out.shape
    assert bool(jnp.all(jnp.isfinite(out)))
    print("KERNEL_OK")
</pallas_src>

<mosaic_0001>
module attributes {stable_mosaic.version = 11 : i64} {
  func.func @_mm_bias_act_kernel(%arg0: i32, %arg1: memref<256x27xbf16, #tpu.memory_space<vmem>>, %arg2: memref<27x16xbf16, #tpu.memory_space<vmem>>, %arg3: memref<1x16xf32, #tpu.memory_space<vmem>>, %arg4: memref<256x16xbf16, #tpu.memory_space<vmem>>) attributes {dimension_semantics = [#tpu.dimension_semantics<parallel>], iteration_bounds = array<i64: 2>, scalar_prefetch = 0 : i64, scratch_operands = 0 : i64, tpu.core_type = #tpu.core_type<tc>, window_params = [{transform_indices = @transform_0, window_bounds = array<i64: 256, 27>}, {pipeline_mode = #tpu.pipeline_mode<synchronous>, transform_indices = @transform_1, window_bounds = array<i64: 27, 16>}, {pipeline_mode = #tpu.pipeline_mode<synchronous>, transform_indices = @transform_2, window_bounds = array<i64: 1, 16>}, {transform_indices = @transform_3, window_bounds = array<i64: 256, 16>}]} {
    %c0 = arith.constant 0 : index
    %c0_0 = arith.constant 0 : index
    %0 = vector.load %arg1[%c0, %c0_0] : memref<256x27xbf16, #tpu.memory_space<vmem>>, vector<256x27xbf16>
    %c0_1 = arith.constant 0 : index
    %c0_2 = arith.constant 0 : index
    %1 = vector.load %arg2[%c0_1, %c0_2] : memref<27x16xbf16, #tpu.memory_space<vmem>>, vector<27x16xbf16>
    %cst = arith.constant dense<0.000000e+00> : vector<256x16xf32>
    %2 = tpu.matmul %0, %1, %cst {dimension_numbers = #tpu.dot_dimension_numbers<[1], [0], [0], [1], [0, 0, 1, 1], [], []>} : vector<256x27xbf16>, vector<27x16xbf16>, vector<256x16xf32> -> vector<256x16xf32>
    %c0_3 = arith.constant 0 : index
    %c0_4 = arith.constant 0 : index
    %3 = vector.load %arg3[%c0_3, %c0_4] : memref<1x16xf32, #tpu.memory_space<vmem>>, vector<1x16xf32>
    %4 = vector.broadcast %3 : vector<1x16xf32> to vector<256x16xf32>
    %5 = arith.addf %2, %4 : vector<256x16xf32>
    %cst_5 = arith.constant 0.000000e+00 : f32
    %6 = vector.broadcast %cst_5 : f32 to vector<256x16xf32>
    %7 = arith.maximumf %5, %6 : vector<256x16xf32>
    %8 = arith.truncf %7 : vector<256x16xf32> to vector<256x16xbf16>
    %c0_6 = arith.constant 0 : index
    %c0_7 = arith.constant 0 : index
    %9 = vector.load %arg4[%c0_6, %c0_7] : memref<256x16xbf16, #tpu.memory_space<vmem>>, vector<256x16xbf16>
    tpu.vector_store %arg4[%c0_6, %c0_7], %8 {strides = array<i32>} : memref<256x16xbf16, #tpu.memory_space<vmem>>, vector<256x16xbf16>,
    return
  }
  func.func @transform_0(%arg0: i32) -> (i32, i32) {
    %c0_i32 = arith.constant 0 : i32
    %c0_i32_0 = arith.constant 0 : i32
    return %arg0, %c0_i32 : i32, i32
  }
  func.func @transform_1(%arg0: i32) -> (i32, i32) {
    %c0_i32 = arith.constant 0 : i32
    %c0_i32_0 = arith.constant 0 : i32
    %c0_i32_1 = arith.constant 0 : i32
    return %c0_i32, %c0_i32_0 : i32, i32
  }
  func.func @transform_2(%arg0: i32) -> (i32, i32) {
    %c0_i32 = arith.constant 0 : i32
    %c0_i32_0 = arith.constant 0 : i32
    %c0_i32_1 = arith.constant 0 : i32
    return %c0_i32, %c0_i32_0 : i32, i32
  }
  func.func @transform_3(%arg0: i32) -> (i32, i32) {
    %c0_i32 = arith.constant 0 : i32
    %c0_i32_0 = arith.constant 0 : i32
    return %arg0, %c0_i32 : i32, i32
  }
}

module attributes {stable_mosaic.version = 11 : i64} {
  func.func @_mm_bias_act_kernel(%arg0: i32, %arg1: memref<64x144xbf16, #tpu.memory_space<vmem>>, %arg2: memref<144x24xbf16, #tpu.memory_space<vmem>>, %arg3: memref<1x24xf32, #tpu.memory_space<vmem>>, %arg4: memref<64x24xbf16, #tpu.memory_space<vmem>>) attributes {dimension_semantics = [#tpu.dimension_semantics<parallel>], iteration_bounds = array<i64: 2>, scalar_prefetch = 0 : i64, scratch_operands = 0 : i64, tpu.core_type = #tpu.core_type<tc>, window_params = [{transform_indices = @transform_0, window_bounds = array<i64: 64, 144>}, {pipeline_mode = #tpu.pipeline_mode<synchronous>, transform_indices = @transform_1, window_bounds = array<i64: 144, 24>}, {pipeline_mode = #tpu.pipeline_mode<synchronous>, transform_indices = @transform_2, window_bounds = array<i64: 1, 24>}, {transform_indices = @transform_3, window_bounds = array<i64: 64, 24>}]} {
    %c0 = arith.constant 0 : index
    %c0_0 = arith.constant 0 : index
    %0 = vector.load %arg1[%c0, %c0_0] : memref<64x144xbf16, #tpu.memory_space<vmem>>, vector<64x144xbf16>
    %c0_1 = arith.constant 0 : index
    %c0_2 = arith.constant 0 : index
    %1 = vector.load %arg2[%c0_1, %c0_2] : memref<144x24xbf16, #tpu.memory_space<vmem>>, vector<144x24xbf16>
    %cst = arith.constant dense<0.000000e+00> : vector<64x24xf32>
    %2 = tpu.matmul %0, %1, %cst {dimension_numbers = #tpu.dot_dimension_numbers<[1], [0], [0], [1], [0, 0, 1, 1], [], []>} : vector<64x144xbf16>, vector<144x24xbf16>, vector<64x24xf32> -> vector<64x24xf32>
    %c0_3 = arith.constant 0 : index
    %c0_4 = arith.constant 0 : index
    %3 = vector.load %arg3[%c0_3, %c0_4] : memref<1x24xf32, #tpu.memory_space<vmem>>, vector<1x24xf32>
    %4 = vector.broadcast %3 : vector<1x24xf32> to vector<64x24xf32>
    %5 = arith.addf %2, %4 : vector<64x24xf32>
    %cst_5 = arith.constant 0.000000e+00 : f32
    %6 = vector.broadcast %cst_5 : f32 to vector<64x24xf32>
    %7 = arith.maximumf %5, %6 : vector<64x24xf32>
    %8 = arith.truncf %7 : vector<64x24xf32> to vector<64x24xbf16>
    %c0_6 = arith.constant 0 : index
    %c0_7 = arith.constant 0 : index
    %9 = vector.load %arg4[%c0_6, %c0_7] : memref<64x24xbf16, #tpu.memory_space<vmem>>, vector<64x24xbf16>
    tpu.vector_store %arg4[%c0_6, %c0_7], %8 {strides = array<i32>} : memref<64x24xbf16, #tpu.memory_space<vmem>>, vector<64x24xbf16>,
    return
  }
  func.func @transform_0(%arg0: i32) -> (i32, i32) {
    %c0_i32 = arith.constant 0 : i32
    %c0_i32_0 = arith.constant 0 : i32
    return %arg0, %c0_i32 : i32, i32
  }
  func.func @transform_1(%arg0: i32) -> (i32, i32) {
    %c0_i32 = arith.constant 0 : i32
    %c0_i32_0 = arith.constant 0 : i32
    %c0_i32_1 = arith.constant 0 : i32
    return %c0_i32, %c0_i32_0 : i32, i32
  }
  func.func @transform_2(%arg0: i32) -> (i32, i32) {
    %c0_i32 = arith.constant 0 : i32
    %c0_i32_0 = arith.constant 0 : i32
    %c0_i32_1 = arith.constant 0 : i32
    return %c0_i32, %c0_i32_0 : i32, i32
  }
  func.func @transform_3(%arg0: i32) -> (i32, i32) {
    %c0_i32 = arith.constant 0 : i32
    %c0_i32_0 = arith.constant 0 : i32
    return %arg0, %c0_i32 : i32, i32
  }
}

module attributes {stable_mosaic.version = 11 : i64} {
  func.func @_resize_kernel(%arg0: i32, %arg1: i32, %arg2: memref<8x2xf32, #tpu.memory_space<vmem>>, %arg3: memref<128x512xf32, #tpu.memory_space<vmem>>, %arg4: memref<1x2x128xbf16, #tpu.memory_space<vmem>>, %arg5: memref<1x8x512xbf16, #tpu.memory_space<vmem>>) attributes {dimension_semantics = [#tpu.dimension_semantics<parallel>, #tpu.dimension_semantics<parallel>], iteration_bounds = array<i64: 2, 1>, scalar_prefetch = 0 : i64, scratch_operands = 0 : i64, tpu.core_type = #tpu.core_type<tc>, window_params = [{transform_indices = @transform_0, window_bounds = array<i64: 8, 2>}, {pipeline_mode = #tpu.pipeline_mode<synchronous>, transform_indices = @transform_1, window_bounds = array<i64: 128, 512>}, {transform_indices = @transform_2, window_bounds = array<i64: 1, 2, 128>}, {transform_indices = @transform_3, window_bounds = array<i64: 1, 8, 512>}]} {
    %c0 = arith.constant 0 : index
    %c0_0 = arith.constant 0 : index
    %c0_1 = arith.constant 0 : index
    %0 = vector.load %arg4[%c0, %c0_0, %c0_1] : memref<1x2x128xbf16, #tpu.memory_space<vmem>>, vector<1x2x128xbf16>
    %1 = vector.shape_cast %0 : vector<1x2x128xbf16> to vector<2x128xbf16>
    %2 = arith.extf %1 : vector<2x128xbf16> to vector<2x128xf32>
    %c0_2 = arith.constant 0 : index
    %c0_3 = arith.constant 0 : index
    %3 = vector.load %arg2[%c0_2, %c0_3] : memref<8x2xf32, #tpu.memory_space<vmem>>, vector<8x2xf32>
    %cst = arith.constant dense<0.000000e+00> : vector<8x128xf32>
    %4 = tpu.matmul %3, %2, %cst {dimension_numbers = #tpu.dot_dimension_numbers<[1], [0], [0], [1], [0, 0, 1, 1], [], []>} : vector<8x2xf32>, vector<2x128xf32>, vector<8x128xf32> -> vector<8x128xf32>
    %c0_4 = arith.constant 0 : index
    %c0_5 = arith.constant 0 : index
    %5 = vector.load %arg3[%c0_4, %c0_5] : memref<128x512xf32, #tpu.memory_space<vmem>>, vector<128x512xf32>
    %cst_6 = arith.constant dense<0.000000e+00> : vector<8x512xf32>
    %6 = tpu.matmul %4, %5, %cst_6 {dimension_numbers = #tpu.dot_dimension_numbers<[1], [0], [0], [1], [0, 0, 1, 1], [], []>} : vector<8x128xf32>, vector<128x512xf32>, vector<8x512xf32> -> vector<8x512xf32>
    %7 = arith.truncf %6 : vector<8x512xf32> to vector<8x512xbf16>
    %c0_7 = arith.constant 0 : index
    %c0_8 = arith.constant 0 : index
    %c0_9 = arith.constant 0 : index
    %8 = vector.load %arg5[%c0_7, %c0_8, %c0_9] : memref<1x8x512xbf16, #tpu.memory_space<vmem>>, vector<1x8x512xbf16>
    %9 = vector.shape_cast %8 : vector<1x8x512xbf16> to vector<8x512xbf16>
    %10 = vector.shape_cast %7 : vector<8x512xbf16> to vector<1x8x512xbf16>
    tpu.vector_store %arg5[%c0_7, %c0_8, %c0_9], %10 {strides = array<i32>} : memref<1x8x512xbf16, #tpu.memory_space<vmem>>, vector<1x8x512xbf16>,
    return
  }
  func.func @transform_0(%arg0: i32, %arg1: i32) -> (i32, i32) {
    %c0_i32 = arith.constant 0 : i32
    %c0_i32_0 = arith.constant 0 : i32
    return %arg1, %c0_i32 : i32, i32
  }
  func.func @transform_1(%arg0: i32, %arg1: i32) -> (i32, i32) {
    %c0_i32 = arith.constant 0 : i32
    %c0_i32_0 = arith.constant 0 : i32
    %c0_i32_1 = arith.constant 0 : i32
    return %c0_i32, %c0_i32_0 : i32, i32
  }
  func.func @transform_2(%arg0: i32, %arg1: i32) -> (i32, i32, i32) {
    %c0_i32 = arith.constant 0 : i32
    %c0_i32_0 = arith.constant 0 : i32
    %c0_i32_1 = arith.constant 0 : i32
    return %arg0, %c0_i32, %c0_i32_0 : i32, i32, i32
  }
  func.func @transform_3(%arg0: i32, %arg1: i32) -> (i32, i32, i32) {
    %c0_i32 = arith.constant 0 : i32
    %c0_i32_0 = arith.constant 0 : i32
    return %arg0, %arg1, %c0_i32 : i32, i32, i32
  }
}

module attributes {stable_mosaic.version = 11 : i64} {
  func.func @_conv_ig_kernel(%arg0: i32, %arg1: i32, %arg2: i32, %arg3: memref<1x10x10x112xbf16, #tpu.memory_space<vmem>>, %arg4: memref<9x112x64xbf16, #tpu.memory_space<vmem>>, %arg5: memref<1x1x64xf32, #tpu.memory_space<vmem>>, %arg6: memref<1x8x8x64xbf16, #tpu.memory_space<vmem>>, %arg7: memref<8x8x64xf32, #tpu.memory_space<vmem>>) attributes {dimension_semantics = [#tpu.dimension_semantics<parallel>, #tpu.dimension_semantics<parallel>, #tpu.dimension_semantics<arbitrary>], iteration_bounds = array<i64: 2, 1, 3>, scalar_prefetch = 0 : i64, scratch_operands = 1 : i64, tpu.core_type = #tpu.core_type<tc>, window_params = [{transform_indices = @transform_0, window_bounds = array<i64: 1, 10, 10, 112>}, {pipeline_mode = #tpu.pipeline_mode<synchronous>, transform_indices = @transform_1, window_bounds = array<i64: 9, 112, 64>}, {pipeline_mode = #tpu.pipeline_mode<synchronous>, transform_indices = @transform_2, window_bounds = array<i64: 1, 1, 64>}, {transform_indices = @transform_3, window_bounds = array<i64: 1, 8, 8, 64>}]} {
    %c0_i32 = arith.constant 0 : i32
    %0 = arith.cmpi eq, %arg2, %c0_i32 : i32
    %1 = arith.extui %0 : i1 to i32
    %c0_i32_0 = arith.constant 0 : i32
    %2 = arith.cmpi ne, %1, %c0_i32_0 : i32
    scf.if %2 {
      %cst_191 = arith.constant 0.000000e+00 : f32
      %254 = vector.broadcast %cst_191 : f32 to vector<8x8x64xf32>
      %c0_192 = arith.constant 0 : index
      %c0_193 = arith.constant 0 : index
      %c0_194 = arith.constant 0 : index
      %255 = vector.load %arg7[%c0_192, %c0_193, %c0_194] : memref<8x8x64xf32, #tpu.memory_space<vmem>>, vector<8x8x64xf32>
      tpu.vector_store %arg7[%c0_192, %c0_193, %c0_194], %254 {strides = array<i32>} : memref<8x8x64xf32, #tpu.memory_space<vmem>>, vector<8x8x64xf32>,
    } else {
    }
    %c8_i32 = arith.constant 8 : i32
    %3 = arith.muli %arg1, %c8_i32 : i32
    %c3_i32 = arith.constant 3 : i32
    %4 = arith.muli %arg2, %c3_i32 : i32
    %c0_i32_1 = arith.constant 0 : i32
    %5 = arith.addi %4, %c0_i32_1 : i32
    %6 = arith.index_cast %5 : i32 to index
    %c0 = arith.constant 0 : index
    %c0_2 = arith.constant 0 : index
    %7 = vector.load %arg4[%6, %c0, %c0_2] : memref<9x112x64xbf16, #tpu.memory_space<vmem>>, vector<1x112x64xbf16>
    %8 = vector.shape_cast %7 : vector<1x112x64xbf16> to vector<112x64xbf16>
    %c3_i32_3 = arith.constant 3 : i32
    %9 = arith.muli %arg2, %c3_i32_3 : i32
    %c1_i32 = arith.constant 1 : i32
    %10 = arith.addi %9, %c1_i32 : i32
    %11 = arith.index_cast %10 : i32 to index
    %c0_4 = arith.constant 0 : index
    %c0_5 = arith.constant 0 : index
    %12 = vector.load %arg4[%11, %c0_4, %c0_5] : memref<9x112x64xbf16, #tpu.memory_space<vmem>>, vector<1x112x64xbf16>
    %13 = vector.shape_cast %12 : vector<1x112x64xbf16> to vector<112x64xbf16>
    %c3_i32_6 = arith.constant 3 : i32
    %14 = arith.muli %arg2, %c3_i32_6 : i32
    %c2_i32 = arith.constant 2 : i32
    %15 = arith.addi %14, %c2_i32 : i32
    %16 = arith.index_cast %15 : i32 to index
    %c0_7 = arith.constant 0 : index
    %c0_8 = arith.constant 0 : index
    %17 = vector.load %arg4[%16, %c0_7, %c0_8] : memref<9x112x64xbf16, #tpu.memory_space<vmem>>, vector<1x112x64xbf16>
    %18 = vector.shape_cast %17 : vector<1x112x64xbf16> to vector<112x64xbf16>
    %c0_i32_9 = arith.constant 0 : i32
    %19 = arith.addi %3, %c0_i32_9 : i32
    %c1_i32_10 = arith.constant 1 : i32
    %20 = arith.muli %arg2, %c1_i32_10 : i32
    %21 = arith.addi %19, %20 : i32
    %c0_11 = arith.constant 0 : index
    %22 = arith.index_cast %21 : i32 to index
    %c0_12 = arith.constant 0 : index
    %c0_13 = arith.constant 0 : index
    %23 = vector.load %arg3[%c0_11, %22, %c0_12, %c0_13] : memref<1x10x10x112xbf16, #tpu.memory_space<vmem>>, vector<1x1x8x112xbf16>
    %24 = vector.shape_cast %23 : vector<1x1x8x112xbf16> to vector<8x112xbf16>
    %cst = arith.constant dense<0.000000e+00> : vector<8x64xf32>
    %25 = tpu.matmul %24, %8, %cst {dimension_numbers = #tpu.dot_dimension_numbers<[1], [0], [0], [1], [0, 0, 1, 1], [], []>} : vector<8x112xbf16>, vector<112x64xbf16>, vector<8x64xf32> -> vector<8x64xf32>
    %c0_i32_14 = arith.constant 0 : i32
    %26 = arith.addi %3, %c0_i32_14 : i32
    %c1_i32_15 = arith.constant 1 : i32
    %27 = arith.muli %arg2, %c1_i32_15 : i32
    %28 = arith.addi %26, %27 : i32
    %c0_16 = arith.constant 0 : index
    %29 = arith.index_cast %28 : i32 to index
    %c1 = arith.constant 1 : index
    %c0_17 = arith.constant 0 : index
    %30 = vector.load %arg3[%c0_16, %29, %c1, %c0_17] : memref<1x10x10x112xbf16, #tpu.memory_space<vmem>>, vector<1x1x8x112xbf16>
    %31 = vector.shape_cast %30 : vector<1x1x8x112xbf16> to vector<8x112xbf16>
    %cst_18 = arith.constant dense<0.000000e+00> : vector<8x64xf32>
    %32 = tpu.matmul %31, %13, %cst_18 {dimension_numbers = #tpu.dot_dimension_numbers<[1], [0], [0], [1], [0, 0, 1, 1], [], []>} : vector<8x112xbf16>, vector<112x64xbf16>, vector<8x64xf32> -> vector<8x64xf32>
    %33 = arith.addf %25, %32 : vector<8x64xf32>
    %c0_i32_19 = arith.constant 0 : i32
    %34 = arith.addi %3, %c0_i32_19 : i32
    %c1_i32_20 = arith.constant 1 : i32
    %35 = arith.muli %arg2, %c1_i32_20 : i32
    %36 = arith.addi %34, %35 : i32
    %c0_21 = arith.constant 0 : index
    %37 = arith.index_cast %36 : i32 to index
    %c2 = arith.constant 2 : index
    %c0_22 = arith.constant 0 : index
    %38 = vector.load %arg3[%c0_21, %37, %c2, %c0_22] : memref<1x10x10x112xbf16, #tpu.memory_space<vmem>>, vector<1x1x8x112xbf16>
    %39 = vector.shape_cast %38 : vector<1x1x8x112xbf16> to vector<8x112xbf16>
    %cst_23 = arith.constant dense<0.000000e+00> : vector<8x64xf32>
    %40 = tpu.matmul %39, %18, %cst_23 {dimension_numbers = #tpu.dot_dimension_numbers<[1], [0], [0], [1], [0, 0, 1, 1], [], []>} : vector<8x112xbf16>, vector<112x64xbf16>, vector<8x64xf32> -> vector<8x64xf32>
    %41 = arith.addf %33, %40 : vector<8x64xf32>
    %c0_24 = arith.constant 0 : index
    %c0_25 = arith.constant 0 : index
    %c0_26 = arith.constant 0 : index
    %42 = vector.load %arg7[%c0_24, %c0_25, %c0_26] : memref<8x8x64xf32, #tpu.memory_space<vmem>>, vector<1x8x64xf32>
    %43 = vector.shape_cast %42 : vector<1x8x64xf32> to vector<8x64xf32>
    %44 = arith.addf %43, %41 : vector<8x64xf32>
    %c0_27 = arith.constant 0 : index
    %c0_28 = arith.constant 0 : index
    %c0_29 = arith.constant 0 : index
    %45 = vector.load %arg7[%c0_27, %c0_28, %c0_29] : memref<8x8x64xf32, #tpu.memory_space<vmem>>, vector<1x8x64xf32>
    %46 = vector.shape_cast %45 : vector<1x8x64xf32> to vector<8x64xf32>
    %47 = vector.shape_cast %44 : vector<8x64xf32> to vector<1x8x64xf32>
    tpu.vector_store %arg7[%c0_27, %c0_28, %c0_29], %47 {strides = array<i32>} : memref<8x8x64xf32, #tpu.memory_space<vmem>>, vector<1x8x64xf32>,
    %c1_i32_30 = arith.constant 1 : i32
    %48 = arith.addi %3, %c1_i32_30 : i32
    %c1_i32_31 = arith.constant 1 : i32
    %49 = arith.muli %arg2, %c1_i32_31 : i32
    %50 = arith.addi %48, %49 : i32
    %c0_32 = arith.constant 0 : index
    %51 = arith.index_cast %50 : i32 to index
    %c0_33 = arith.constant 0 : index
    %c0_34 = arith.constant 0 : index
    %52 = vector.load %arg3[%c0_32, %51, %c0_33, %c0_34] : memref<1x10x10x112xbf16, #tpu.memory_space<vmem>>, vector<1x1x8x112xbf16>
    %53 = vector.shape_cast %52 : vector<1x1x8x112xbf16> to vector<8x112xbf16>
    %cst_35 = arith.constant dense<0.000000e+00> : vector<8x64xf32>
    %54 = tpu.matmul %53, %8, %cst_35 {dimension_numbers = #tpu.dot_dimension_numbers<[1], [0], [0], [1], [0, 0, 1, 1], [], []>} : vector<8x112xbf16>, vector<112x64xbf16>, vector<8x64xf32> -> vector<8x64xf32>
    %c1_i32_36 = arith.constant 1 : i32
    %55 = arith.addi %3, %c1_i32_36 : i32
    %c1_i32_37 = arith.constant 1 : i32
    %56 = arith.muli %arg2, %c1_i32_37 : i32
    %57 = arith.addi %55, %56 : i32
    %c0_38 = arith.constant 0 : index
    %58 = arith.index_cast %57 : i32 to index
    %c1_39 = arith.constant 1 : index
    %c0_40 = arith.constant 0 : index
    %59 = vector.load %arg3[%c0_38, %58, %c1_39, %c0_40] : memref<1x10x10x112xbf16, #tpu.memory_space<vmem>>, vector<1x1x8x112xbf16>
    %60 = vector.shape_cast %59 : vector<1x1x8x112xbf16> to vector<8x112xbf16>
    %cst_41 = arith.constant dense<0.000000e+00> : vector<8x64xf32>
    %61 = tpu.matmul %60, %13, %cst_41 {dimension_numbers = #tpu.dot_dimension_numbers<[1], [0], [0], [1], [0, 0, 1, 1], [], []>} : vector<8x112xbf16>, vector<112x64xbf16>, vector<8x64xf32> -> vector<8x64xf32>
    %62 = arith.addf %54, %61 : vector<8x64xf32>
    %c1_i32_42 = arith.constant 1 : i32
    %63 = arith.addi %3, %c1_i32_42 : i32
    %c1_i32_43 = arith.constant 1 : i32
    %64 = arith.muli %arg2, %c1_i32_43 : i32
    %65 = arith.addi %63, %64 : i32
    %c0_44 = arith.constant 0 : index
    %66 = arith.index_cast %65 : i32 to index
    %c2_45 = arith.constant 2 : index
    %c0_46 = arith.constant 0 : index
    %67 = vector.load %arg3[%c0_44, %66, %c2_45, %c0_46] : memref<1x10x10x112xbf16, #tpu.memory_space<vmem>>, vector<1x1x8x112xbf16>
    %68 = vector.shape_cast %67 : vector<1x1x8x112xbf16> to vector<8x112xbf16>
    %cst_47 = arith.constant dense<0.000000e+00> : vector<8x64xf32>
    %69 = tpu.matmul %68, %18, %cst_47 {dimension_numbers = #tpu.dot_dimension_numbers<[1], [0], [0], [1], [0, 0, 1, 1], [], []>} : vector<8x112xbf16>, vector<112x64xbf16>, vector<8x64xf32> -> vector<8x64xf32>
    %70 = arith.addf %62, %69 : vector<8x64xf32>
    %c1_48 = arith.constant 1 : index
    %c0_49 = arith.constant 0 : index
    %c0_50 = arith.constant 0 : index
    %71 = vector.load %arg7[%c1_48, %c0_49, %c0_50] : memref<8x8x64xf32, #tpu.memory_space<vmem>>, vector<1x8x64xf32>
    %72 = vector.shape_cast %71 : vector<1x8x64xf32> to vector<8x64xf32>
    %73 = arith.addf %72, %70 : vector<8x64xf32>
    %c1_51 = arith.constant 1 : index
    %c0_52 = arith.constant 0 : index
    %c0_53 = arith.constant 0 : index
    %74 = vector.load %arg7[%c1_51, %c0_52, %c0_53] : memref<8x8x64xf32, #tpu.memory_space<vmem>>, vector<1x8x64xf32>
    %75 = vector.shape_cast %74 : vector<1x8x64xf32> to vector<8x64xf32>
    %76 = vector.shape_cast %73 : vector<8x64xf32> to vector<1x8x64xf32>
    tpu.vector_store %arg7[%c1_51, %c0_52, %c0_53], %76 {strides = array<i32>} : memref<8x8x64xf32, #tpu.memory_space<vmem>>, vector<1x8x64xf32>,
    %c2_i32_54 = arith.constant 2 : i32
    %77 = arith.addi %3, %c2_i32_54 : i32
    %c1_i32_55 = arith.constant 1 : i32
    %78 = arith.muli %arg2, %c1_i32_55 : i32
    %79 = arith.addi %77, %78 : i32
    %c0_56 = arith.constant 0 : index
    %80 = arith.index_cast %79 : i32 to index
    %c0_57 = arith.constant 0 : index
    %c0_58 = arith.constant 0 : index
    %81 = vector.load %arg3[%c0_56, %80, %c0_57, %c0_58] : memref<1x10x10x112xbf16, #tpu.memory_space<vmem>>, vector<1x1x8x112xbf16>
    %82 = vector.shape_cast %81 : vector<1x1x8x112xbf16> to vector<8x112xbf16>
    %cst_59 = arith.constant dense<0.000000e+00> : vector<8x64xf32>
    %83 = tpu.matmul %82, %8, %cst_59 {dimension_numbers = #tpu.dot_dimension_numbers<[1], [0], [0], [1], [0, 0, 1, 1], [], []>} : vector<8x112xbf16>, vector<112x64xbf16>, vector<8x64xf32> -> vector<8x64xf32>
    %c2_i32_60 = arith.constant 2 : i32
    %84 = arith.addi %3, %c2_i32_60 : i32
    %c1_i32_61 = arith.constant 1 : i32
    %85 = arith.muli %arg2, %c1_i32_61 : i32
    %86 = arith.addi %84, %85 : i32
    %c0_62 = arith.constant 0 : index
    %87 = arith.index_cast %86 : i32 to index
    %c1_63 = arith.constant 1 : index
    %c0_64 = arith.constant 0 : index
    %88 = vector.load %arg3[%c0_62, %87, %c1_63, %c0_64] : memref<1x10x10x112xbf16, #tpu.memory_space<vmem>>, vector<1x1x8x112xbf16>
    %89 = vector.shape_cast %88 : vector<1x1x8x112xbf16> to vector<8x112xbf16>
    %cst_65 = arith.constant dense<0.000000e+00> : vector<8x64xf32>
    %90 = tpu.matmul %89, %13, %cst_65 {dimension_numbers = #tpu.dot_dimension_numbers<[1], [0], [0], [1], [0, 0, 1, 1], [], []>} : vector<8x112xbf16>, vector<112x64xbf16>, vector<8x64xf32> -> vector<8x64xf32>
    %91 = arith.addf %83, %90 : vector<8x64xf32>
    %c2_i32_66 = arith.constant 2 : i32
    %92 = arith.addi %3, %c2_i32_66 : i32
    %c1_i32_67 = arith.constant 1 : i32
    %93 = arith.muli %arg2, %c1_i32_67 : i32
    %94 = arith.addi %92, %93 : i32
    %c0_68 = arith.constant 0 : index
    %95 = arith.index_cast %94 : i32 to index
    %c2_69 = arith.constant 2 : index
    %c0_70 = arith.constant 0 : index
    %96 = vector.load %arg3[%c0_68, %95, %c2_69, %c0_70] : memref<1x10x10x112xbf16, #tpu.memory_space<vmem>>, vector<1x1x8x112xbf16>
    %97 = vector.shape_cast %96 : vector<1x1x8x112xbf16> to vector<8x112xbf16>
    %cst_71 = arith.constant dense<0.000000e+00> : vector<8x64xf32>
    %98 = tpu.matmul %97, %18, %cst_71 {dimension_numbers = #tpu.dot_dimension_numbers<[1], [0], [0], [1], [0, 0, 1, 1], [], []>} : vector<8x112xbf16>, vector<112x64xbf16>, vector<8x64xf32> -> vector<8x64xf32>
    %99 = arith.addf %91, %98 : vector<8x64xf32>
    %c2_72 = arith.constant 2 : index
    %c0_73 = arith.constant 0 : index
    %c0_74 = arith.constant 0 : index
    %100 = vector.load %arg7[%c2_72, %c0_73, %c0_74] : memref<8x8x64xf32, #tpu.memory_space<vmem>>, vector<1x8x64xf32>
    %101 = vector.shape_cast %100 : vector<1x8x64xf32> to vector<8x64xf32>
    %102 = arith.addf %101, %99 : vector<8x64xf32>
    %c2_75 = arith.constant 2 : index
    %c0_76 = arith.constant 0 : index
    %c0_77 = arith.constant 0 : index
    %103 = vector.load %arg7[%c2_75, %c0_76, %c0_77] : memref<8x8x64xf32, #tpu.memory_space<vmem>>, vector<1x8x64xf32>
    %104 = vector.shape_cast %103 : vector<1x8x64xf32> to vector<8x64xf32>
    %105 = vector.shape_cast %102 : vector<8x64xf32> to vector<1x8x64xf32>
    tpu.vector_store %arg7[%c2_75, %c0_76, %c0_77], %105 {strides = array<i32>} : memref<8x8x64xf32, #tpu.memory_space<vmem>>, vector<1x8x64xf32>,
    %c3_i32_78 = arith.constant 3 : i32
    %106 = arith.addi %3, %c3_i32_78 : i32
    %c1_i32_79 = arith.constant 1 : i32
    %107 = arith.muli %arg2, %c1_i32_79 : i32
    %108 = arith.addi %106, %107 : i32
    %c0_80 = arith.constant 0 : index
    %109 = arith.index_cast %108 : i32 to index
    %c0_81 = arith.constant 0 : index
    %c0_82 = arith.constant 0 : index
    %110 = vector.load %arg3[%c0_80, %109, %c0_81, %c0_82] : memref<1x10x10x112xbf16, #tpu.memory_space<vmem>>, vector<1x1x8x112xbf16>
    %111 = vector.shape_cast %110 : vector<1x1x8x112xbf16> to vector<8x112xbf16>
    %cst_83 = arith.constant dense<0.000000e+00> : vector<8x64xf32>
    %112 = tpu.matmul %111, %8, %cst_83 {dimension_numbers = #tpu.dot_dimension_numbers<[1], [0], [0], [1], [0, 0, 1, 1], [], []>} : vector<8x112xbf16>, vector<112x64xbf16>, vector<8x64xf32> -> vector<8x64xf32>
    %c3_i32_84 = arith.constant 3 : i32
    %113 = arith.addi %3, %c3_i32_84 : i32
    %c1_i32_85 = arith.constant 1 : i32
    %114 = arith.muli %arg2, %c1_i32_85 : i32
    %115 = arith.addi %113, %114 : i32
    %c0_86 = arith.constant 0 : index
    %116 = arith.index_cast %115 : i32 to index
    %c1_87 = arith.constant 1 : index
    %c0_88 = arith.constant 0 : index
    %117 = vector.load %arg3[%c0_86, %116, %c1_87, %c0_88] : memref<1x10x10x112xbf16, #tpu.memory_space<vmem>>, vector<1x1x8x112xbf16>
    %118 = vector.shape_cast %117 : vector<1x1x8x112xbf16> to vector<8x112xbf16>
    %cst_89 = arith.constant dense<0.000000e+00> : vector<8x64xf32>
    %119 = tpu.matmul %118, %13, %cst_89 {dimension_numbers = #tpu.dot_dimension_numbers<[1], [0], [0], [1], [0, 0, 1, 1], [], []>} : vector<8x112xbf16>, vector<112x64xbf16>, vector<8x64xf32> -> vector<8x64xf32>
    %120 = arith.addf %112, %119 : vector<8x64xf32>
    %c3_i32_90 = arith.constant 3 : i32
    %121 = arith.addi %3, %c3_i32_90 : i32
    %c1_i32_91 = arith.constant 1 : i32
    %122 = arith.muli %arg2, %c1_i32_91 : i32
    %123 = arith.addi %121, %122 : i32
    %c0_92 = arith.constant 0 : index
    %124 = arith.index_cast %123 : i32 to index
    %c2_93 = arith.constant 2 : index
    %c0_94 = arith.constant 0 : index
    %125 = vector.load %arg3[%c0_92, %124, %c2_93, %c0_94] : memref<1x10x10x112xbf16, #tpu.memory_space<vmem>>, vector<1x1x8x112xbf16>
    %126 = vector.shape_cast %125 : vector<1x1x8x112xbf16> to vector<8x112xbf16>
    %cst_95 = arith.constant dense<0.000000e+00> : vector<8x64xf32>
    %127 = tpu.matmul %126, %18, %cst_95 {dimension_numbers = #tpu.dot_dimension_numbers<[1], [0], [0], [1], [0, 0, 1, 1], [], []>} : vector<8x112xbf16>, vector<112x64xbf16>, vector<8x64xf32> -> vector<8x64xf32>
    %128 = arith.addf %120, %127 : vector<8x64xf32>
    %c3 = arith.constant 3 : index
    %c0_96 = arith.constant 0 : index
    %c0_97 = arith.constant 0 : index
    %129 = vector.load %arg7[%c3, %c0_96, %c0_97] : memref<8x8x64xf32, #tpu.memory_space<vmem>>, vector<1x8x64xf32>
    %130 = vector.shape_cast %129 : vector<1x8x64xf32> to vector<8x64xf32>
    %131 = arith.addf %130, %128 : vector<8x64xf32>
    %c3_98 = arith.constant 3 : index
    %c0_99 = arith.constant 0 : index
    %c0_100 = arith.constant 0 : index
    %132 = vector.load %arg7[%c3_98, %c0_99, %c0_100] : memref<8x8x64xf32, #tpu.memory_space<vmem>>, vector<1x8x64xf32>
    %133 = vector.shape_cast %132 : vector<1x8x64xf32> to vector<8x64xf32>
    %134 = vector.shape_cast %131 : vector<8x64xf32> to vector<1x8x64xf32>
    tpu.vector_store %arg7[%c3_98, %c0_99, %c0_100], %134 {strides = array<i32>} : memref<8x8x64xf32, #tpu.memory_space<vmem>>, vector<1x8x64xf32>,
    %c4_i32 = arith.constant 4 : i32
    %135 = arith.addi %3, %c4_i32 : i32
    %c1_i32_101 = arith.constant 1 : i32
    %136 = arith.muli %arg2, %c1_i32_101 : i32
    %137 = arith.addi %135, %136 : i32
    %c0_102 = arith.constant 0 : index
    %138 = arith.index_cast %137 : i32 to index
    %c0_103 = arith.constant 0 : index
    %c0_104 = arith.constant 0 : index
    %139 = vector.load %arg3[%c0_102, %138, %c0_103, %c0_104] : memref<1x10x10x112xbf16, #tpu.memory_space<vmem>>, vector<1x1x8x112xbf16>
    %140 = vector.shape_cast %139 : vector<1x1x8x112xbf16> to vector<8x112xbf16>
    %cst_105 = arith.constant dense<0.000000e+00> : vector<8x64xf32>
    %141 = tpu.matmul %140, %8, %cst_105 {dimension_numbers = #tpu.dot_dimension_numbers<[1], [0], [0], [1], [0, 0, 1, 1], [], []>} : vector<8x112xbf16>, vector<112x64xbf16>, vector<8x64xf32> -> vector<8x64xf32>
    %c4_i32_106 = arith.constant 4 : i32
    %142 = arith.addi %3, %c4_i32_106 : i32
    %c1_i32_107 = arith.constant 1 : i32
    %143 = arith.muli %arg2, %c1_i32_107 : i32
    %144 = arith.addi %142, %143 : i32
    %c0_108 = arith.constant 0 : index
    %145 = arith.index_cast %144 : i32 to index
    %c1_109 = arith.constant 1 : index
    %c0_110 = arith.constant 0 : index
    %146 = vector.load %arg3[%c0_108, %145, %c1_109, %c0_110] : memref<1x10x10x112xbf16, #tpu.memory_space<vmem>>, vector<1x1x8x112xbf16>
    %147 = vector.shape_cast %146 : vector<1x1x8x112xbf16> to vector<8x112xbf16>
    %cst_111 = arith.constant dense<0.000000e+00> : vector<8x64xf32>
    %148 = tpu.matmul %147, %13, %cst_111 {dimension_numbers = #tpu.dot_dimension_numbers<[1], [0], [0], [1], [0, 0, 1, 1], [], []>} : vector<8x112xbf16>, vector<112x64xbf16>, vector<8x64xf32> -> vector<8x64xf32>
    %149 = arith.addf %141, %148 : vector<8x64xf32>
    %c4_i32_112 = arith.constant 4 : i32
    %150 = arith.addi %3, %c4_i32_112 : i32
    %c1_i32_113 = arith.constant 1 : i32
    %151 = arith.muli %arg2, %c1_i32_113 : i32
    %152 = arith.addi %150, %151 : i32
    %c0_114 = arith.constant 0 : index
    %153 = arith.index_cast %152 : i32 to index
    %c2_115 = arith.constant 2 : index
    %c0_116 = arith.constant 0 : index
    %154 = vector.load %arg3[%c0_114, %153, %c2_115, %c0_116] : memref<1x10x10x112xbf16, #tpu.memory_space<vmem>>, vector<1x1x8x112xbf16>
    %155 = vector.shape_cast %154 : vector<1x1x8x112xbf16> to vector<8x112xbf16>
    %cst_117 = arith.constant dense<0.000000e+00> : vector<8x64xf32>
    %156 = tpu.matmul %155, %18, %cst_117 {dimension_numbers = #tpu.dot_dimension_numbers<[1], [0], [0], [1], [0, 0, 1, 1], [], []>} : vector<8x112xbf16>, vector<112x64xbf16>, vector<8x64xf32> -> vector<8x64xf32>
    %157 = arith.addf %149, %156 : vector<8x64xf32>
    %c4 = arith.constant 4 : index
    %c0_118 = arith.constant 0 : index
    %c0_119 = arith.constant 0 : index
    %158 = vector.load %arg7[%c4, %c0_118, %c0_119] : memref<8x8x64xf32, #tpu.memory_space<vmem>>, vector<1x8x64xf32>
    %159 = vector.shape_cast %158 : vector<1x8x64xf32> to vector<8x64xf32>
    %160 = arith.addf %159, %157 : vector<8x64xf32>
    %c4_120 = arith.constant 4 : index
    %c0_121 = arith.constant 0 : index
    %c0_122 = arith.constant 0 : index
    %161 = vector.load %arg7[%c4_120, %c0_121, %c0_122] : memref<8x8x64xf32, #tpu.memory_space<vmem>>, vector<1x8x64xf32>
    %162 = vector.shape_cast %161 : vector<1x8x64xf32> to vector<8x64xf32>
    %163 = vector.shape_cast %160 : vector<8x64xf32> to vector<1x8x64xf32>
    tpu.vector_store %arg7[%c4_120, %c0_121, %c0_122], %163 {strides = array<i32>} : memref<8x8x64xf32, #tpu.memory_space<vmem>>, vector<1x8x64xf32>,
    %c5_i32 = arith.constant 5 : i32
    %164 = arith.addi %3, %c5_i32 : i32
    %c1_i32_123 = arith.constant 1 : i32
    %165 = arith.muli %arg2, %c1_i32_123 : i32
    %166 = arith.addi %164, %165 : i32
    %c0_124 = arith.constant 0 : index
    %167 = arith.index_cast %166 : i32 to index
    %c0_125 = arith.constant 0 : index
    %c0_126 = arith.constant 0 : index
    %168 = vector.load %arg3[%c0_124, %167, %c0_125, %c0_126] : memref<1x10x10x112xbf16, #tpu.memory_space<vmem>>, vector<1x1x8x112xbf16>
    %169 = vector.shape_cast %168 : vector<1x1x8x112xbf16> to vector<8x112xbf16>
    %cst_127 = arith.constant dense<0.000000e+00> : vector<8x64xf32>
    %170 = tpu.matmul %169, %8, %cst_127 {dimension_numbers = #tpu.dot_dimension_numbers<[1], [0], [0], [1], [0, 0, 1, 1], [], []>} : vector<8x112xbf16>, vector<112x64xbf16>, vector<8x64xf32> -> vector<8x64xf32>
    %c5_i32_128 = arith.constant 5 : i32
    %171 = arith.addi %3, %c5_i32_128 : i32
    %c1_i32_129 = arith.constant 1 : i32
    %172 = arith.muli %arg2, %c1_i32_129 : i32
    %173 = arith.addi %171, %172 : i32
    %c0_130 = arith.constant 0 : index
    %174 = arith.index_cast %173 : i32 to index
    %c1_131 = arith.constant 1 : index
    %c0_132 = arith.constant 0 : index
    %175 = vector.load %arg3[%c0_130, %174, %c1_131, %c0_132] : memref<1x10x10x112xbf16, #tpu.memory_space<vmem>>, vector<1x1x8x112xbf16>
    %176 = vector.shape_cast %175 : vector<1x1x8x112xbf16> to vector<8x112xbf16>
    %cst_133 = arith.constant dense<0.000000e+00> : vector<8x64xf32>
    %177 = tpu.matmul %176, %13, %cst_133 {dimension_numbers = #tpu.dot_dimension_numbers<[1], [0], [0], [1], [0, 0, 1, 1], [], []>} : vector<8x112xbf16>, vector<112x64xbf16>, vector<8x64xf32> -> vector<8x64xf32>
    %178 = arith.addf %170, %177 : vector<8x64xf32>
    %c5_i32_134 = arith.constant 5 : i32
    %179 = arith.addi %3, %c5_i32_134 : i32
    %c1_i32_135 = arith.constant 1 : i32
    %180 = arith.muli %arg2, %c1_i32_135 : i32
    %181 = arith.addi %179, %180 : i32
    %c0_136 = arith.constant 0 : index
    %182 = arith.index_cast %181 : i32 to index
    %c2_137 = arith.constant 2 : index
    %c0_138 = arith.constant 0 : index
    %183 = vector.load %arg3[%c0_136, %182, %c2_137, %c0_138] : memref<1x10x10x112xbf16, #tpu.memory_space<vmem>>, vector<1x1x8x112xbf16>
    %184 = vector.shape_cast %183 : vector<1x1x8x112xbf16> to vector<8x112xbf16>
    %cst_139 = arith.constant dense<0.000000e+00> : vector<8x64xf32>
    %185 = tpu.matmul %184, %18, %cst_139 {dimension_numbers = #tpu.dot_dimension_numbers<[1], [0], [0], [1], [0, 0, 1, 1], [], []>} : vector<8x112xbf16>, vector<112x64xbf16>, vector<8x64xf32> -> vector<8x64xf32>
    %186 = arith.addf %178, %185 : vector<8x64xf32>
    %c5 = arith.constant 5 : index
    %c0_140 = arith.constant 0 : index
    %c0_141 = arith.constant 0 : index
    %187 = vector.load %arg7[%c5, %c0_140, %c0_141] : memref<8x8x64xf32, #tpu.memory_space<vmem>>, vector<1x8x64xf32>
    %188 = vector.shape_cast %187 : vector<1x8x64xf32> to vector<8x64xf32>
    %189 = arith.addf %188, %186 : vector<8x64xf32>
    %c5_142 = arith.constant 5 : index
    %c0_143 = arith.constant 0 : index
    %c0_144 = arith.constant 0 : index
    %190 = vector.load %arg7[%c5_142, %c0_143, %c0_144] : memref<8x8x64xf32, #tpu.memory_space<vmem>>, vector<1x8x64xf32>
    %191 = vector.shape_cast %190 : vector<1x8x64xf32> to vector<8x64xf32>
    %192 = vector.shape_cast %189 : vector<8x64xf32> to vector<1x8x64xf32>
    tpu.vector_store %arg7[%c5_142, %c0_143, %c0_144], %192 {strides = array<i32>} : memref<8x8x64xf32, #tpu.memory_space<vmem>>, vector<1x8x64xf32>,
    %c6_i32 = arith.constant 6 : i32
    %193 = arith.addi %3, %c6_i32 : i32
    %c1_i32_145 = arith.constant 1 : i32
    %194 = arith.muli %arg2, %c1_i32_145 : i32
    %195 = arith.addi %193, %194 : i32
    %c0_146 = arith.constant 0 : index
    %196 = arith.index_cast %195 : i32 to index
    %c0_147 = arith.constant 0 : index
    %c0_148 = arith.constant 0 : index
    %197 = vector.load %arg3[%c0_146, %196, %c0_147, %c0_148] : memref<1x10x10x112xbf16, #tpu.memory_space<vmem>>, vector<1x1x8x112xbf16>
    %198 = vector.shape_cast %197 : vector<1x1x8x112xbf16> to vector<8x112xbf16>
    %cst_149 = arith.constant dense<0.000000e+00> : vector<8x64xf32>
    %199 = tpu.matmul %198, %8, %cst_149 {dimension_numbers = #tpu.dot_dimension_numbers<[1], [0], [0], [1], [0, 0, 1, 1], [], []>} : vector<8x112xbf16>, vector<112x64xbf16>, vector<8x64xf32> -> vector<8x64xf32>
    %c6_i32_150 = arith.constant 6 : i32
    %200 = arith.addi %3, %c6_i32_150 : i32
    %c1_i32_151 = arith.constant 1 : i32
    %201 = arith.muli %arg2, %c1_i32_151 : i32
    %202 = arith.addi %200, %201 : i32
    %c0_152 = arith.constant 0 : index
    %203 = arith.index_cast %202 : i32 to index
    %c1_153 = arith.constant 1 : index
    %c0_154 = arith.constant 0 : index
    %204 = vector.load %arg3[%c0_152, %203, %c1_153, %c0_154] : memref<1x10x10x112xbf16, #tpu.memory_space<vmem>>, vector<1x1x8x112xbf16>
    %205 = vector.shape_cast %204 : vector<1x1x8x112xbf16> to vector<8x112xbf16>
    %cst_155 = arith.constant dense<0.000000e+00> : vector<8x64xf32>
    %206 = tpu.matmul %205, %13, %cst_155 {dimension_numbers = #tpu.dot_dimension_numbers<[1], [0], [0], [1], [0, 0, 1, 1], [], []>} : vector<8x112xbf16>, vector<112x64xbf16>, vector<8x64xf32> -> vector<8x64xf32>
    %207 = arith.addf %199, %206 : vector<8x64xf32>
    %c6_i32_156 = arith.constant 6 : i32
    %208 = arith.addi %3, %c6_i32_156 : i32
    %c1_i32_157 = arith.constant 1 : i32
    %209 = arith.muli %arg2, %c1_i32_157 : i32
    %210 = arith.addi %208, %209 : i32
    %c0_158 = arith.constant 0 : index
    %211 = arith.index_cast %210 : i32 to index
    %c2_159 = arith.constant 2 : index
    %c0_160 = arith.constant 0 : index
    %212 = vector.load %arg3[%c0_158, %211, %c2_159, %c0_160] : memref<1x10x10x112xbf16, #tpu.memory_space<vmem>>, vector<1x1x8x112xbf16>
    %213 = vector.shape_cast %212 : vector<1x1x8x112xbf16> to vector<8x112xbf16>
    %cst_161 = arith.constant dense<0.000000e+00> : vector<8x64xf32>
    %214 = tpu.matmul %213, %18, %cst_161 {dimension_numbers = #tpu.dot_dimension_numbers<[1], [0], [0], [1], [0, 0, 1, 1], [], []>} : vector<8x112xbf16>, vector<112x64xbf16>, vector<8x64xf32> -> vector<8x64xf32>
    %215 = arith.addf %207, %214 : vector<8x64xf32>
    %c6 = arith.constant 6 : index
    %c0_162 = arith.constant 0 : index
    %c0_163 = arith.constant 0 : index
    %216 = vector.load %arg7[%c6, %c0_162, %c0_163] : memref<8x8x64xf32, #tpu.memory_space<vmem>>, vector<1x8x64xf32>
    %217 = vector.shape_cast %216 : vector<1x8x64xf32> to vector<8x64xf32>
    %218 = arith.addf %217, %215 : vector<8x64xf32>
    %c6_164 = arith.constant 6 : index
    %c0_165 = arith.constant 0 : index
    %c0_166 = arith.constant 0 : index
    %219 = vector.load %arg7[%c6_164, %c0_165, %c0_166] : memref<8x8x64xf32, #tpu.memory_space<vmem>>, vector<1x8x64xf32>
    %220 = vector.shape_cast %219 : vector<1x8x64xf32> to vector<8x64xf32>
    %221 = vector.shape_cast %218 : vector<8x64xf32> to vector<1x8x64xf32>
    tpu.vector_store %arg7[%c6_164, %c0_165, %c0_166], %221 {strides = array<i32>} : memref<8x8x64xf32, #tpu.memory_space<vmem>>, vector<1x8x64xf32>,
    %c7_i32 = arith.constant 7 : i32
    %222 = arith.addi %3, %c7_i32 : i32
    %c1_i32_167 = arith.constant 1 : i32
    %223 = arith.muli %arg2, %c1_i32_167 : i32
    %224 = arith.addi %222, %223 : i32
    %c0_168 = arith.constant 0 : index
    %225 = arith.index_cast %224 : i32 to index
    %c0_169 = arith.constant 0 : index
    %c0_170 = arith.constant 0 : index
    %226 = vector.load %arg3[%c0_168, %225, %c0_169, %c0_170] : memref<1x10x10x112xbf16, #tpu.memory_space<vmem>>, vector<1x1x8x112xbf16>
    %227 = vector.shape_cast %226 : vector<1x1x8x112xbf16> to vector<8x112xbf16>
    %cst_171 = arith.constant dense<0.000000e+00> : vector<8x64xf32>
    %228 = tpu.matmul %227, %8, %cst_171 {dimension_numbers = #tpu.dot_dimension_numbers<[1], [0], [0], [1], [0, 0, 1, 1], [], []>} : vector<8x112xbf16>, vector<112x64xbf16>, vector<8x64xf32> -> vector<8x64xf32>
    %c7_i32_172 = arith.constant 7 : i32
    %229 = arith.addi %3, %c7_i32_172 : i32
    %c1_i32_173 = arith.constant 1 : i32
    %230 = arith.muli %arg2, %c1_i32_173 : i32
    %231 = arith.addi %229, %230 : i32
    %c0_174 = arith.constant 0 : index
    %232 = arith.index_cast %231 : i32 to index
    %c1_175 = arith.constant 1 : index
    %c0_176 = arith.constant 0 : index
    %233 = vector.load %arg3[%c0_174, %232, %c1_175, %c0_176] : memref<1x10x10x112xbf16, #tpu.memory_space<vmem>>, vector<1x1x8x112xbf16>
    %234 = vector.shape_cast %233 : vector<1x1x8x112xbf16> to vector<8x112xbf16>
    %cst_177 = arith.constant dense<0.000000e+00> : vector<8x64xf32>
    %235 = tpu.matmul %234, %13, %cst_177 {dimension_numbers = #tpu.dot_dimension_numbers<[1], [0], [0], [1], [0, 0, 1, 1], [], []>} : vector<8x112xbf16>, vector<112x64xbf16>, vector<8x64xf32> -> vector<8x64xf32>
    %236 = arith.addf %228, %235 : vector<8x64xf32>
    %c7_i32_178 = arith.constant 7 : i32
    %237 = arith.addi %3, %c7_i32_178 : i32
    %c1_i32_179 = arith.constant 1 : i32
    %238 = arith.muli %arg2, %c1_i32_179 : i32
    %239 = arith.addi %237, %238 : i32
    %c0_180 = arith.constant 0 : index
    %240 = arith.index_cast %239 : i32 to index
    %c2_181 = arith.constant 2 : index
    %c0_182 = arith.constant 0 : index
    %241 = vector.load %arg3[%c0_180, %240, %c2_181, %c0_182] : memref<1x10x10x112xbf16, #tpu.memory_space<vmem>>, vector<1x1x8x112xbf16>
    %242 = vector.shape_cast %241 : vector<1x1x8x112xbf16> to vector<8x112xbf16>
    %cst_183 = arith.constant dense<0.000000e+00> : vector<8x64xf32>
    %243 = tpu.matmul %242, %18, %cst_183 {dimension_numbers = #tpu.dot_dimension_numbers<[1], [0], [0], [1], [0, 0, 1, 1], [], []>} : vector<8x112xbf16>, vector<112x64xbf16>, vector<8x64xf32> -> vector<8x64xf32>
    %244 = arith.addf %236, %243 : vector<8x64xf32>
    %c7 = arith.constant 7 : index
    %c0_184 = arith.constant 0 : index
    %c0_185 = arith.constant 0 : index
    %245 = vector.load %arg7[%c7, %c0_184, %c0_185] : memref<8x8x64xf32, #tpu.memory_space<vmem>>, vector<1x8x64xf32>
    %246 = vector.shape_cast %245 : vector<1x8x64xf32> to vector<8x64xf32>
    %247 = arith.addf %246, %244 : vector<8x64xf32>
    %c7_186 = arith.constant 7 : index
    %c0_187 = arith.constant 0 : index
    %c0_188 = arith.constant 0 : index
    %248 = vector.load %arg7[%c7_186, %c0_187, %c0_188] : memref<8x8x64xf32, #tpu.memory_space<vmem>>, vector<1x8x64xf32>
    %249 = vector.shape_cast %248 : vector<1x8x64xf32> to vector<8x64xf32>
    %250 = vector.shape_cast %247 : vector<8x64xf32> to vector<1x8x64xf32>
    tpu.vector_store %arg7[%c7_186, %c0_187, %c0_188], %250 {strides = array<i32>} : memref<8x8x64xf32, #tpu.memory_space<vmem>>, vector<1x8x64xf32>,
    %c2_i32_189 = arith.constant 2 : i32
    %251 = arith.cmpi eq, %arg2, %c2_i32_189 : i32
    %252 = arith.extui %251 : i1 to i32
    %c0_i32_190 = arith.constant 0 : i32
    %253 = arith.cmpi ne, %252, %c0_i32_190 : i32
    scf.if %253 {
      %c0_191 = arith.constant 0 : index
      %c0_192 = arith.constant 0 : index
      %c0_193 = arith.constant 0 : index
      %254 = vector.load %arg7[%c0_191, %c0_192, %c0_193] : memref<8x8x64xf32, #tpu.memory_space<vmem>>, vector<8x8x64xf32>
      %c0_194 = arith.constant 0 : index
      %c0_195 = arith.constant 0 : index
      %c0_196 = arith.constant 0 : index
      %255 = vector.load %arg5[%c0_194, %c0_195, %c0_196] : memref<1x1x64xf32, #tpu.memory_space<vmem>>, vector<1x1x64xf32>
      %256 = vector.broadcast %255 : vector<1x1x64xf32> to vector<8x8x64xf32>
      %257 = arith.addf %254, %256 : vector<8x8x64xf32>
      %cst_197 = arith.constant 0.000000e+00 : f32
      %258 = vector.broadcast %cst_197 : f32 to vector<8x8x64xf32>
      %259 = arith.maximumf %257, %258 : vector<8x8x64xf32>
      %260 = arith.truncf %259 : vector<8x8x64xf32> to vector<8x8x64xbf16>
      %c0_198 = arith.constant 0 : index
      %c0_199 = arith.constant 0 : index
      %c0_200 = arith.constant 0 : index
      %c0_201 = arith.constant 0 : index
      %261 = vector.load %arg6[%c0_198, %c0_199, %c0_200, %c0_201] : memref<1x8x8x64xbf16, #tpu.memory_space<vmem>>, vector<1x8x8x64xbf16>
      %262 = vector.shape_cast %261 : vector<1x8x8x64xbf16> to vector<8x8x64xbf16>
      %263 = vector.shape_cast %260 : vector<8x8x64xbf16> to vector<1x8x8x64xbf16>
      tpu.vector_store %arg6[%c0_198, %c0_199, %c0_200, %c0_201], %263 {strides = array<i32>} : memref<1x8x8x64xbf16, #tpu.memory_space<vmem>>, vector<1x8x8x64xbf16>,
    } else {
    }
    return
  }
  func.func @transform_0(%arg0: i32, %arg1: i32, %arg2: i32) -> (i32, i32, i32, i32) {
    %c0_i32 = arith.constant 0 : i32
    %c0_i32_0 = arith.constant 0 : i32
    %c0_i32_1 = arith.constant 0 : i32
    %c0_i32_2 = arith.constant 0 : i32
    return %arg0, %c0_i32, %c0_i32_0, %c0_i32_1 : i32, i32, i32, i32
  }
  func.func @transform_1(%arg0: i32, %arg1: i32, %arg2: i32) -> (i32, i32, i32) {
    %c0_i32 = arith.constant 0 : i32
    %c0_i32_0 = arith.constant 0 : i32
    %c0_i32_1 = arith.constant 0 : i32
    %c0_i32_2 = arith.constant 0 : i32
    return %c0_i32, %c0_i32_0, %c0_i32_1 : i32, i32, i32
  }
  func.func @transform_2(%arg0: i32, %arg1: i32, %arg2: i32) -> (i32, i32, i32) {
    %c0_i32 = arith.constant 0 : i32
    %c0_i32_0 = arith.constant 0 : i32
    %c0_i32_1 = arith.constant 0 : i32
    %c0_i32_2 = arith.constant 0 : i32
    return %c0_i32, %c0_i32_0, %c0_i32_1 : i32, i32, i32
  }
  func.func @transform_3(%arg0: i32, %arg1: i32, %arg2: i32) -> (i32, i32, i32, i32) {
    %c0_i32 = arith.constant 0 : i32
    %c0_i32_0 = arith.constant 0 : i32
    %c0_i32_1 = arith.constant 0 : i32
    return %arg0, %arg1, %c0_i32, %c0_i32_0 : i32, i32, i32, i32
  }
}

module attributes {stable_mosaic.version = 11 : i64} {
  func.func @_conv_ig_kernel(%arg0: i32, %arg1: i32, %arg2: i32, %arg3: memref<1x10x10x64xbf16, #tpu.memory_space<vmem>>, %arg4: memref<9x64x64xbf16, #tpu.memory_space<vmem>>, %arg5: memref<1x1x64xf32, #tpu.memory_space<vmem>>, %arg6: memref<1x8x8x64xbf16, #tpu.memory_space<vmem>>, %arg7: memref<8x8x64xf32, #tpu.memory_space<vmem>>) attributes {dimension_semantics = [#tpu.dimension_semantics<parallel>, #tpu.dimension_semantics<parallel>, #tpu.dimension_semantics<arbitrary>], iteration_bounds = array<i64: 2, 1, 3>, scalar_prefetch = 0 : i64, scratch_operands = 1 : i64, tpu.core_type = #tpu.core_type<tc>, window_params = [{transform_indices = @transform_0, window_bounds = array<i64: 1, 10, 10, 64>}, {pipeline_mode = #tpu.pipeline_mode<synchronous>, transform_indices = @transform_1, window_bounds = array<i64: 9, 64, 64>}, {pipeline_mode = #tpu.pipeline_mode<synchronous>, transform_indices = @transform_2, window_bounds = array<i64: 1, 1, 64>}, {transform_indices = @transform_3, window_bounds = array<i64: 1, 8, 8, 64>}]} {
    %c0_i32 = arith.constant 0 : i32
    %0 = arith.cmpi eq, %arg2, %c0_i32 : i32
    %1 = arith.extui %0 : i1 to i32
    %c0_i32_0 = arith.constant 0 : i32
    %2 = arith.cmpi ne, %1, %c0_i32_0 : i32
    scf.if %2 {
      %cst_191 = arith.constant 0.000000e+00 : f32
      %254 = vector.broadcast %cst_191 : f32 to vector<8x8x64xf32>
      %c0_192 = arith.constant 0 : index
      %c0_193 = arith.constant 0 : index
      %c0_194 = arith.constant 0 : index
      %255 = vector.load %arg7[%c0_192, %c0_193, %c0_194] : memref<8x8x64xf32, #tpu.memory_space<vmem>>, vector<8x8x64xf32>
      tpu.vector_store %arg7[%c0_192, %c0_193, %c0_194], %254 {strides = array<i32>} : memref<8x8x64xf32, #tpu.memory_space<vmem>>, vector<8x8x64xf32>,
    } else {
    }
    %c8_i32 = arith.constant 8 : i32
    %3 = arith.muli %arg1, %c8_i32 : i32
    %c3_i32 = arith.constant 3 : i32
    %4 = arith.muli %arg2, %c3_i32 : i32
    %c0_i32_1 = arith.constant 0 : i32
    %5 = arith.addi %4, %c0_i32_1 : i32
    %6 = arith.index_cast %5 : i32 to index
    %c0 = arith.constant 0 : index
    %c0_2 = arith.constant 0 : index
    %7 = vector.load %arg4[%6, %c0, %c0_2] : memref<9x64x64xbf16, #tpu.memory_space<vmem>>, vector<1x64x64xbf16>
    %8 = vector.shape_cast %7 : vector<1x64x64xbf16> to vector<64x64xbf16>
    %c3_i32_3 = arith.constant 3 : i32
    %9 = arith.muli %arg2, %c3_i32_3 : i32
    %c1_i32 = arith.constant 1 : i32
    %10 = arith.addi %9, %c1_i32 : i32
    %11 = arith.index_cast %10 : i32 to index
    %c0_4 = arith.constant 0 : index
    %c0_5 = arith.constant 0 : index
    %12 = vector.load %arg4[%11, %c0_4, %c0_5] : memref<9x64x64xbf16, #tpu.memory_space<vmem>>, vector<1x64x64xbf16>
    %13 = vector.shape_cast %12 : vector<1x64x64xbf16> to vector<64x64xbf16>
    %c3_i32_6 = arith.constant 3 : i32
    %14 = arith.muli %arg2, %c3_i32_6 : i32
    %c2_i32 = arith.constant 2 : i32
    %15 = arith.addi %14, %c2_i32 : i32
    %16 = arith.index_cast %15 : i32 to index
    %c0_7 = arith.constant 0 : index
    %c0_8 = arith.constant 0 : index
    %17 = vector.load %arg4[%16, %c0_7, %c0_8] : memref<9x64x64xbf16, #tpu.memory_space<vmem>>, vector<1x64x64xbf16>
    %18 = vector.shape_cast %17 : vector<1x64x64xbf16> to vector<64x64xbf16>
    %c0_i32_9 = arith.constant 0 : i32
    %19 = arith.addi %3, %c0_i32_9 : i32
    %c1_i32_10 = arith.constant 1 : i32
    %20 = arith.muli %arg2, %c1_i32_10 : i32
    %21 = arith.addi %19, %20 : i32
    %c0_11 = arith.constant 0 : index
    %22 = arith.index_cast %21 : i32 to index
    %c0_12 = arith.constant 0 : index
    %c0_13 = arith.constant 0 : index
    %23 = vector.load %arg3[%c0_11, %22, %c0_12, %c0_13] : memref<1x10x10x64xbf16, #tpu.memory_space<vmem>>, vector<1x1x8x64xbf16>
    %24 = vector.shape_cast %23 : vector<1x1x8x64xbf16> to vector<8x64xbf16>
    %cst = arith.constant dense<0.000000e+00> : vector<8x64xf32>
    %25 = tpu.matmul %24, %8, %cst {dimension_numbers = #tpu.dot_dimension_numbers<[1], [0], [0], [1], [0, 0, 1, 1], [], []>} : vector<8x64xbf16>, vector<64x64xbf16>, vector<8x64xf32> -> vector<8x64xf32>
    %c0_i32_14 = arith.constant 0 : i32
    %26 = arith.addi %3, %c0_i32_14 : i32
    %c1_i32_15 = arith.constant 1 : i32
    %27 = arith.muli %arg2, %c1_i32_15 : i32
    %28 = arith.addi %26, %27 : i32
    %c0_16 = arith.constant 0 : index
    %29 = arith.index_cast %28 : i32 to index
    %c1 = arith.constant 1 : index
    %c0_17 = arith.constant 0 : index
    %30 = vector.load %arg3[%c0_16, %29, %c1, %c0_17] : memref<1x10x10x64xbf16, #tpu.memory_space<vmem>>, vector<1x1x8x64xbf16>
    %31 = vector.shape_cast %30 : vector<1x1x8x64xbf16> to vector<8x64xbf16>
    %cst_18 = arith.constant dense<0.000000e+00> : vector<8x64xf32>
    %32 = tpu.matmul %31, %13, %cst_18 {dimension_numbers = #tpu.dot_dimension_numbers<[1], [0], [0], [1], [0, 0, 1, 1], [], []>} : vector<8x64xbf16>, vector<64x64xbf16>, vector<8x64xf32> -> vector<8x64xf32>
    %33 = arith.addf %25, %32 : vector<8x64xf32>
    %c0_i32_19 = arith.constant 0 : i32
    %34 = arith.addi %3, %c0_i32_19 : i32
    %c1_i32_20 = arith.constant 1 : i32
    %35 = arith.muli %arg2, %c1_i32_20 : i32
    %36 = arith.addi %34, %35 : i32
    %c0_21 = arith.constant 0 : index
    %37 = arith.index_cast %36 : i32 to index
    %c2 = arith.constant 2 : index
    %c0_22 = arith.constant 0 : index
    %38 = vector.load %arg3[%c0_21, %37, %c2, %c0_22] : memref<1x10x10x64xbf16, #tpu.memory_space<vmem>>, vector<1x1x8x64xbf16>
    %39 = vector.shape_cast %38 : vector<1x1x8x64xbf16> to vector<8x64xbf16>
    %cst_23 = arith.constant dense<0.000000e+00> : vector<8x64xf32>
    %40 = tpu.matmul %39, %18, %cst_23 {dimension_numbers = #tpu.dot_dimension_numbers<[1], [0], [0], [1], [0, 0, 1, 1], [], []>} : vector<8x64xbf16>, vector<64x64xbf16>, vector<8x64xf32> -> vector<8x64xf32>
    %41 = arith.addf %33, %40 : vector<8x64xf32>
    %c0_24 = arith.constant 0 : index
    %c0_25 = arith.constant 0 : index
    %c0_26 = arith.constant 0 : index
    %42 = vector.load %arg7[%c0_24, %c0_25, %c0_26] : memref<8x8x64xf32, #tpu.memory_space<vmem>>, vector<1x8x64xf32>
    %43 = vector.shape_cast %42 : vector<1x8x64xf32> to vector<8x64xf32>
    %44 = arith.addf %43, %41 : vector<8x64xf32>
    %c0_27 = arith.constant 0 : index
    %c0_28 = arith.constant 0 : index
    %c0_29 = arith.constant 0 : index
    %45 = vector.load %arg7[%c0_27, %c0_28, %c0_29] : memref<8x8x64xf32, #tpu.memory_space<vmem>>, vector<1x8x64xf32>
    %46 = vector.shape_cast %45 : vector<1x8x64xf32> to vector<8x64xf32>
    %47 = vector.shape_cast %44 : vector<8x64xf32> to vector<1x8x64xf32>
    tpu.vector_store %arg7[%c0_27, %c0_28, %c0_29], %47 {strides = array<i32>} : memref<8x8x64xf32, #tpu.memory_space<vmem>>, vector<1x8x64xf32>,
    %c1_i32_30 = arith.constant 1 : i32
    %48 = arith.addi %3, %c1_i32_30 : i32
    %c1_i32_31 = arith.constant 1 : i32
    %49 = arith.muli %arg2, %c1_i32_31 : i32
    %50 = arith.addi %48, %49 : i32
    %c0_32 = arith.constant 0 : index
    %51 = arith.index_cast %50 : i32 to index
    %c0_33 = arith.constant 0 : index
    %c0_34 = arith.constant 0 : index
    %52 = vector.load %arg3[%c0_32, %51, %c0_33, %c0_34] : memref<1x10x10x64xbf16, #tpu.memory_space<vmem>>, vector<1x1x8x64xbf16>
    %53 = vector.shape_cast %52 : vector<1x1x8x64xbf16> to vector<8x64xbf16>
    %cst_35 = arith.constant dense<0.000000e+00> : vector<8x64xf32>
    %54 = tpu.matmul %53, %8, %cst_35 {dimension_numbers = #tpu.dot_dimension_numbers<[1], [0], [0], [1], [0, 0, 1, 1], [], []>} : vector<8x64xbf16>, vector<64x64xbf16>, vector<8x64xf32> -> vector<8x64xf32>
    %c1_i32_36 = arith.constant 1 : i32
    %55 = arith.addi %3, %c1_i32_36 : i32
    %c1_i32_37 = arith.constant 1 : i32
    %56 = arith.muli %arg2, %c1_i32_37 : i32
    %57 = arith.addi %55, %56 : i32
    %c0_38 = arith.constant 0 : index
    %58 = arith.index_cast %57 : i32 to index
    %c1_39 = arith.constant 1 : index
    %c0_40 = arith.constant 0 : index
    %59 = vector.load %arg3[%c0_38, %58, %c1_39, %c0_40] : memref<1x10x10x64xbf16, #tpu.memory_space<vmem>>, vector<1x1x8x64xbf16>
    %60 = vector.shape_cast %59 : vector<1x1x8x64xbf16> to vector<8x64xbf16>
    %cst_41 = arith.constant dense<0.000000e+00> : vector<8x64xf32>
    %61 = tpu.matmul %60, %13, %cst_41 {dimension_numbers = #tpu.dot_dimension_numbers<[1], [0], [0], [1], [0, 0, 1, 1], [], []>} : vector<8x64xbf16>, vector<64x64xbf16>, vector<8x64xf32> -> vector<8x64xf32>
    %62 = arith.addf %54, %61 : vector<8x64xf32>
    %c1_i32_42 = arith.constant 1 : i32
    %63 = arith.addi %3, %c1_i32_42 : i32
    %c1_i32_43 = arith.constant 1 : i32
    %64 = arith.muli %arg2, %c1_i32_43 : i32
    %65 = arith.addi %63, %64 : i32
    %c0_44 = arith.constant 0 : index
    %66 = arith.index_cast %65 : i32 to index
    %c2_45 = arith.constant 2 : index
    %c0_46 = arith.constant 0 : index
    %67 = vector.load %arg3[%c0_44, %66, %c2_45, %c0_46] : memref<1x10x10x64xbf16, #tpu.memory_space<vmem>>, vector<1x1x8x64xbf16>
    %68 = vector.shape_cast %67 : vector<1x1x8x64xbf16> to vector<8x64xbf16>
    %cst_47 = arith.constant dense<0.000000e+00> : vector<8x64xf32>
    %69 = tpu.matmul %68, %18, %cst_47 {dimension_numbers = #tpu.dot_dimension_numbers<[1], [0], [0], [1], [0, 0, 1, 1], [], []>} : vector<8x64xbf16>, vector<64x64xbf16>, vector<8x64xf32> -> vector<8x64xf32>
    %70 = arith.addf %62, %69 : vector<8x64xf32>
    %c1_48 = arith.constant 1 : index
    %c0_49 = arith.constant 0 : index
    %c0_50 = arith.constant 0 : index
    %71 = vector.load %arg7[%c1_48, %c0_49, %c0_50] : memref<8x8x64xf32, #tpu.memory_space<vmem>>, vector<1x8x64xf32>
    %72 = vector.shape_cast %71 : vector<1x8x64xf32> to vector<8x64xf32>
    %73 = arith.addf %72, %70 : vector<8x64xf32>
    %c1_51 = arith.constant 1 : index
    %c0_52 = arith.constant 0 : index
    %c0_53 = arith.constant 0 : index
    %74 = vector.load %arg7[%c1_51, %c0_52, %c0_53] : memref<8x8x64xf32, #tpu.memory_space<vmem>>, vector<1x8x64xf32>
    %75 = vector.shape_cast %74 : vector<1x8x64xf32> to vector<8x64xf32>
    %76 = vector.shape_cast %73 : vector<8x64xf32> to vector<1x8x64xf32>
    tpu.vector_store %arg7[%c1_51, %c0_52, %c0_53], %76 {strides = array<i32>} : memref<8x8x64xf32, #tpu.memory_space<vmem>>, vector<1x8x64xf32>,
    %c2_i32_54 = arith.constant 2 : i32
    %77 = arith.addi %3, %c2_i32_54 : i32
    %c1_i32_55 = arith.constant 1 : i32
    %78 = arith.muli %arg2, %c1_i32_55 : i32
    %79 = arith.addi %77, %78 : i32
    %c0_56 = arith.constant 0 : index
    %80 = arith.index_cast %79 : i32 to index
    %c0_57 = arith.constant 0 : index
    %c0_58 = arith.constant 0 : index
    %81 = vector.load %arg3[%c0_56, %80, %c0_57, %c0_58] : memref<1x10x10x64xbf16, #tpu.memory_space<vmem>>, vector<1x1x8x64xbf16>
    %82 = vector.shape_cast %81 : vector<1x1x8x64xbf16> to vector<8x64xbf16>
    %cst_59 = arith.constant dense<0.000000e+00> : vector<8x64xf32>
    %83 = tpu.matmul %82, %8, %cst_59 {dimension_numbers = #tpu.dot_dimension_numbers<[1], [0], [0], [1], [0, 0, 1, 1], [], []>} : vector<8x64xbf16>, vector<64x64xbf16>, vector<8x64xf32> -> vector<8x64xf32>
    %c2_i32_60 = arith.constant 2 : i32
    %84 = arith.addi %3, %c2_i32_60 : i32
    %c1_i32_61 = arith.constant 1 : i32
    %85 = arith.muli %arg2, %c1_i32_61 : i32
    %86 = arith.addi %84, %85 : i32
    %c0_62 = arith.constant 0 : index
    %87 = arith.index_cast %86 : i32 to index
    %c1_63 = arith.constant 1 : index
    %c0_64 = arith.constant 0 : index
    %88 = vector.load %arg3[%c0_62, %87, %c1_63, %c0_64] : memref<1x10x10x64xbf16, #tpu.memory_space<vmem>>, vector<1x1x8x64xbf16>
    %89 = vector.shape_cast %88 : vector<1x1x8x64xbf16> to vector<8x64xbf16>
    %cst_65 = arith.constant dense<0.000000e+00> : vector<8x64xf32>
    %90 = tpu.matmul %89, %13, %cst_65 {dimension_numbers = #tpu.dot_dimension_numbers<[1], [0], [0], [1], [0, 0, 1, 1], [], []>} : vector<8x64xbf16>, vector<64x64xbf16>, vector<8x64xf32> -> vector<8x64xf32>
    %91 = arith.addf %83, %90 : vector<8x64xf32>
    %c2_i32_66 = arith.constant 2 : i32
    %92 = arith.addi %3, %c2_i32_66 : i32
    %c1_i32_67 = arith.constant 1 : i32
    %93 = arith.muli %arg2, %c1_i32_67 : i32
    %94 = arith.addi %92, %93 : i32
    %c0_68 = arith.constant 0 : index
    %95 = arith.index_cast %94 : i32 to index
    %c2_69 = arith.constant 2 : index
    %c0_70 = arith.constant 0 : index
    %96 = vector.load %arg3[%c0_68, %95, %c2_69, %c0_70] : memref<1x10x10x64xbf16, #tpu.memory_space<vmem>>, vector<1x1x8x64xbf16>
    %97 = vector.shape_cast %96 : vector<1x1x8x64xbf16> to vector<8x64xbf16>
    %cst_71 = arith.constant dense<0.000000e+00> : vector<8x64xf32>
    %98 = tpu.matmul %97, %18, %cst_71 {dimension_numbers = #tpu.dot_dimension_numbers<[1], [0], [0], [1], [0, 0, 1, 1], [], []>} : vector<8x64xbf16>, vector<64x64xbf16>, vector<8x64xf32> -> vector<8x64xf32>
    %99 = arith.addf %91, %98 : vector<8x64xf32>
    %c2_72 = arith.constant 2 : index
    %c0_73 = arith.constant 0 : index
    %c0_74 = arith.constant 0 : index
    %100 = vector.load %arg7[%c2_72, %c0_73, %c0_74] : memref<8x8x64xf32, #tpu.memory_space<vmem>>, vector<1x8x64xf32>
    %101 = vector.shape_cast %100 : vector<1x8x64xf32> to vector<8x64xf32>
    %102 = arith.addf %101, %99 : vector<8x64xf32>
    %c2_75 = arith.constant 2 : index
    %c0_76 = arith.constant 0 : index
    %c0_77 = arith.constant 0 : index
    %103 = vector.load %arg7[%c2_75, %c0_76, %c0_77] : memref<8x8x64xf32, #tpu.memory_space<vmem>>, vector<1x8x64xf32>
    %104 = vector.shape_cast %103 : vector<1x8x64xf32> to vector<8x64xf32>
    %105 = vector.shape_cast %102 : vector<8x64xf32> to vector<1x8x64xf32>
    tpu.vector_store %arg7[%c2_75, %c0_76, %c0_77], %105 {strides = array<i32>} : memref<8x8x64xf32, #tpu.memory_space<vmem>>, vector<1x8x64xf32>,
    %c3_i32_78 = arith.constant 3 : i32
    %106 = arith.addi %3, %c3_i32_78 : i32
    %c1_i32_79 = arith.constant 1 : i32
    %107 = arith.muli %arg2, %c1_i32_79 : i32
    %108 = arith.addi %106, %107 : i32
    %c0_80 = arith.constant 0 : index
    %109 = arith.index_cast %108 : i32 to index
    %c0_81 = arith.constant 0 : index
    %c0_82 = arith.constant 0 : index
    %110 = vector.load %arg3[%c0_80, %109, %c0_81, %c0_82] : memref<1x10x10x64xbf16, #tpu.memory_space<vmem>>, vector<1x1x8x64xbf16>
    %111 = vector.shape_cast %110 : vector<1x1x8x64xbf16> to vector<8x64xbf16>
    %cst_83 = arith.constant dense<0.000000e+00> : vector<8x64xf32>
    %112 = tpu.matmul %111, %8, %cst_83 {dimension_numbers = #tpu.dot_dimension_numbers<[1], [0], [0], [1], [0, 0, 1, 1], [], []>} : vector<8x64xbf16>, vector<64x64xbf16>, vector<8x64xf32> -> vector<8x64xf32>
    %c3_i32_84 = arith.constant 3 : i32
    %113 = arith.addi %3, %c3_i32_84 : i32
    %c1_i32_85 = arith.constant 1 : i32
    %114 = arith.muli %arg2, %c1_i32_85 : i32
    %115 = arith.addi %113, %114 : i32
    %c0_86 = arith.constant 0 : index
    %116 = arith.index_cast %115 : i32 to index
    %c1_87 = arith.constant 1 : index
    %c0_88 = arith.constant 0 : index
    %117 = vector.load %arg3[%c0_86, %116, %c1_87, %c0_88] : memref<1x10x10x64xbf16, #tpu.memory_space<vmem>>, vector<1x1x8x64xbf16>
    %118 = vector.shape_cast %117 : vector<1x1x8x64xbf16> to vector<8x64xbf16>
    %cst_89 = arith.constant dense<0.000000e+00> : vector<8x64xf32>
    %119 = tpu.matmul %118, %13, %cst_89 {dimension_numbers = #tpu.dot_dimension_numbers<[1], [0], [0], [1], [0, 0, 1, 1], [], []>} : vector<8x64xbf16>, vector<64x64xbf16>, vector<8x64xf32> -> vector<8x64xf32>
    %120 = arith.addf %112, %119 : vector<8x64xf32>
    %c3_i32_90 = arith.constant 3 : i32
    %121 = arith.addi %3, %c3_i32_90 : i32
    %c1_i32_91 = arith.constant 1 : i32
    %122 = arith.muli %arg2, %c1_i32_91 : i32
    %123 = arith.addi %121, %122 : i32
    %c0_92 = arith.constant 0 : index
    %124 = arith.index_cast %123 : i32 to index
    %c2_93 = arith.constant 2 : index
    %c0_94 = arith.constant 0 : index
    %125 = vector.load %arg3[%c0_92, %124, %c2_93, %c0_94] : memref<1x10x10x64xbf16, #tpu.memory_space<vmem>>, vector<1x1x8x64xbf16>
    %126 = vector.shape_cast %125 : vector<1x1x8x64xbf16> to vector<8x64xbf16>
    %cst_95 = arith.constant dense<0.000000e+00> : vector<8x64xf32>
    %127 = tpu.matmul %126, %18, %cst_95 {dimension_numbers = #tpu.dot_dimension_numbers<[1], [0], [0], [1], [0, 0, 1, 1], [], []>} : vector<8x64xbf16>, vector<64x64xbf16>, vector<8x64xf32> -> vector<8x64xf32>
    %128 = arith.addf %120, %127 : vector<8x64xf32>
    %c3 = arith.constant 3 : index
    %c0_96 = arith.constant 0 : index
    %c0_97 = arith.constant 0 : index
    %129 = vector.load %arg7[%c3, %c0_96, %c0_97] : memref<8x8x64xf32, #tpu.memory_space<vmem>>, vector<1x8x64xf32>
    %130 = vector.shape_cast %129 : vector<1x8x64xf32> to vector<8x64xf32>
    %131 = arith.addf %130, %128 : vector<8x64xf32>
    %c3_98 = arith.constant 3 : index
    %c0_99 = arith.constant 0 : index
    %c0_100 = arith.constant 0 : index
    %132 = vector.load %arg7[%c3_98, %c0_99, %c0_100] : memref<8x8x64xf32, #tpu.memory_space<vmem>>, vector<1x8x64xf32>
    %133 = vector.shape_cast %132 : vector<1x8x64xf32> to vector<8x64xf32>
    %134 = vector.shape_cast %131 : vector<8x64xf32> to vector<1x8x64xf32>
    tpu.vector_store %arg7[%c3_98, %c0_99, %c0_100], %134 {strides = array<i32>} : memref<8x8x64xf32, #tpu.memory_space<vmem>>, vector<1x8x64xf32>,
    %c4_i32 = arith.constant 4 : i32
    %135 = arith.addi %3, %c4_i32 : i32
    %c1_i32_101 = arith.constant 1 : i32
    %136 = arith.muli %arg2, %c1_i32_101 : i32
    %137 = arith.addi %135, %136 : i32
    %c0_102 = arith.constant 0 : index
    %138 = arith.index_cast %137 : i32 to index
    %c0_103 = arith.constant 0 : index
    %c0_104 = arith.constant 0 : index
    %139 = vector.load %arg3[%c0_102, %138, %c0_103, %c0_104] : memref<1x10x10x64xbf16, #tpu.memory_space<vmem>>, vector<1x1x8x64xbf16>
    %140 = vector.shape_cast %139 : vector<1x1x8x64xbf16> to vector<8x64xbf16>
    %cst_105 = arith.constant dense<0.000000e+00> : vector<8x64xf32>
    %141 = tpu.matmul %140, %8, %cst_105 {dimension_numbers = #tpu.dot_dimension_numbers<[1], [0], [0], [1], [0, 0, 1, 1], [], []>} : vector<8x64xbf16>, vector<64x64xbf16>, vector<8x64xf32> -> vector<8x64xf32>
    %c4_i32_106 = arith.constant 4 : i32
    %142 = arith.addi %3, %c4_i32_106 : i32
    %c1_i32_107 = arith.constant 1 : i32
    %143 = arith.muli %arg2, %c1_i32_107 : i32
    %144 = arith.addi %142, %143 : i32
    %c0_108 = arith.constant 0 : index
    %145 = arith.index_cast %144 : i32 to index
    %c1_109 = arith.constant 1 : index
    %c0_110 = arith.constant 0 : index
    %146 = vector.load %arg3[%c0_108, %145, %c1_109, %c0_110] : memref<1x10x10x64xbf16, #tpu.memory_space<vmem>>, vector<1x1x8x64xbf16>
    %147 = vector.shape_cast %146 : vector<1x1x8x64xbf16> to vector<8x64xbf16>
    %cst_111 = arith.constant dense<0.000000e+00> : vector<8x64xf32>
    %148 = tpu.matmul %147, %13, %cst_111 {dimension_numbers = #tpu.dot_dimension_numbers<[1], [0], [0], [1], [0, 0, 1, 1], [], []>} : vector<8x64xbf16>, vector<64x64xbf16>, vector<8x64xf32> -> vector<8x64xf32>
    %149 = arith.addf %141, %148 : vector<8x64xf32>
    %c4_i32_112 = arith.constant 4 : i32
    %150 = arith.addi %3, %c4_i32_112 : i32
    %c1_i32_113 = arith.constant 1 : i32
    %151 = arith.muli %arg2, %c1_i32_113 : i32
    %152 = arith.addi %150, %151 : i32
    %c0_114 = arith.constant 0 : index
    %153 = arith.index_cast %152 : i32 to index
    %c2_115 = arith.constant 2 : index
    %c0_116 = arith.constant 0 : index
    %154 = vector.load %arg3[%c0_114, %153, %c2_115, %c0_116] : memref<1x10x10x64xbf16, #tpu.memory_space<vmem>>, vector<1x1x8x64xbf16>
    %155 = vector.shape_cast %154 : vector<1x1x8x64xbf16> to vector<8x64xbf16>
    %cst_117 = arith.constant dense<0.000000e+00> : vector<8x64xf32>
    %156 = tpu.matmul %155, %18, %cst_117 {dimension_numbers = #tpu.dot_dimension_numbers<[1], [0], [0], [1], [0, 0, 1, 1], [], []>} : vector<8x64xbf16>, vector<64x64xbf16>, vector<8x64xf32> -> vector<8x64xf32>
    %157 = arith.addf %149, %156 : vector<8x64xf32>
    %c4 = arith.constant 4 : index
    %c0_118 = arith.constant 0 : index
    %c0_119 = arith.constant 0 : index
    %158 = vector.load %arg7[%c4, %c0_118, %c0_119] : memref<8x8x64xf32, #tpu.memory_space<vmem>>, vector<1x8x64xf32>
    %159 = vector.shape_cast %158 : vector<1x8x64xf32> to vector<8x64xf32>
    %160 = arith.addf %159, %157 : vector<8x64xf32>
    %c4_120 = arith.constant 4 : index
    %c0_121 = arith.constant 0 : index
    %c0_122 = arith.constant 0 : index
    %161 = vector.load %arg7[%c4_120, %c0_121, %c0_122] : memref<8x8x64xf32, #tpu.memory_space<vmem>>, vector<1x8x64xf32>
    %162 = vector.shape_cast %161 : vector<1x8x64xf32> to vector<8x64xf32>
    %163 = vector.shape_cast %160 : vector<8x64xf32> to vector<1x8x64xf32>
    tpu.vector_store %arg7[%c4_120, %c0_121, %c0_122], %163 {strides = array<i32>} : memref<8x8x64xf32, #tpu.memory_space<vmem>>, vector<1x8x64xf32>,
    %c5_i32 = arith.constant 5 : i32
    %164 = arith.addi %3, %c5_i32 : i32
    %c1_i32_123 = arith.constant 1 : i32
    %165 = arith.muli %arg2, %c1_i32_123 : i32
    %166 = arith.addi %164, %165 : i32
    %c0_124 = arith.constant 0 : index
    %167 = arith.index_cast %166 : i32 to index
    %c0_125 = arith.constant 0 : index
    %c0_126 = arith.constant 0 : index
    %168 = vector.load %arg3[%c0_124, %167, %c0_125, %c0_126] : memref<1x10x10x64xbf16, #tpu.memory_space<vmem>>, vector<1x1x8x64xbf16>
    %169 = vector.shape_cast %168 : vector<1x1x8x64xbf16> to vector<8x64xbf16>
    %cst_127 = arith.constant dense<0.000000e+00> : vector<8x64xf32>
    %170 = tpu.matmul %169, %8, %cst_127 {dimension_numbers = #tpu.dot_dimension_numbers<[1], [0], [0], [1], [0, 0, 1, 1], [], []>} : vector<8x64xbf16>, vector<64x64xbf16>, vector<8x64xf32> -> vector<8x64xf32>
    %c5_i32_128 = arith.constant 5 : i32
    %171 = arith.addi %3, %c5_i32_128 : i32
    %c1_i32_129 = arith.constant 1 : i32
    %172 = arith.muli %arg2, %c1_i32_129 : i32
    %173 = arith.addi %171, %172 : i32
    %c0_130 = arith.constant 0 : index
    %174 = arith.index_cast %173 : i32 to index
    %c1_131 = arith.constant 1 : index
    %c0_132 = arith.constant 0 : index
    %175 = vector.load %arg3[%c0_130, %174, %c1_131, %c0_132] : memref<1x10x10x64xbf16, #tpu.memory_space<vmem>>, vector<1x1x8x64xbf16>
    %176 = vector.shape_cast %175 : vector<1x1x8x64xbf16> to vector<8x64xbf16>
    %cst_133 = arith.constant dense<0.000000e+00> : vector<8x64xf32>
    %177 = tpu.matmul %176, %13, %cst_133 {dimension_numbers = #tpu.dot_dimension_numbers<[1], [0], [0], [1], [0, 0, 1, 1], [], []>} : vector<8x64xbf16>, vector<64x64xbf16>, vector<8x64xf32> -> vector<8x64xf32>
    %178 = arith.addf %170, %177 : vector<8x64xf32>
    %c5_i32_134 = arith.constant 5 : i32
    %179 = arith.addi %3, %c5_i32_134 : i32
    %c1_i32_135 = arith.constant 1 : i32
    %180 = arith.muli %arg2, %c1_i32_135 : i32
    %181 = arith.addi %179, %180 : i32
    %c0_136 = arith.constant 0 : index
    %182 = arith.index_cast %181 : i32 to index
    %c2_137 = arith.constant 2 : index
    %c0_138 = arith.constant 0 : index
    %183 = vector.load %arg3[%c0_136, %182, %c2_137, %c0_138] : memref<1x10x10x64xbf16, #tpu.memory_space<vmem>>, vector<1x1x8x64xbf16>
    %184 = vector.shape_cast %183 : vector<1x1x8x64xbf16> to vector<8x64xbf16>
    %cst_139 = arith.constant dense<0.000000e+00> : vector<8x64xf32>
    %185 = tpu.matmul %184, %18, %cst_139 {dimension_numbers = #tpu.dot_dimension_numbers<[1], [0], [0], [1], [0, 0, 1, 1], [], []>} : vector<8x64xbf16>, vector<64x64xbf16>, vector<8x64xf32> -> vector<8x64xf32>
    %186 = arith.addf %178, %185 : vector<8x64xf32>
    %c5 = arith.constant 5 : index
    %c0_140 = arith.constant 0 : index
    %c0_141 = arith.constant 0 : index
    %187 = vector.load %arg7[%c5, %c0_140, %c0_141] : memref<8x8x64xf32, #tpu.memory_space<vmem>>, vector<1x8x64xf32>
    %188 = vector.shape_cast %187 : vector<1x8x64xf32> to vector<8x64xf32>
    %189 = arith.addf %188, %186 : vector<8x64xf32>
    %c5_142 = arith.constant 5 : index
    %c0_143 = arith.constant 0 : index
    %c0_144 = arith.constant 0 : index
    %190 = vector.load %arg7[%c5_142, %c0_143, %c0_144] : memref<8x8x64xf32, #tpu.memory_space<vmem>>, vector<1x8x64xf32>
    %191 = vector.shape_cast %190 : vector<1x8x64xf32> to vector<8x64xf32>
    %192 = vector.shape_cast %189 : vector<8x64xf32> to vector<1x8x64xf32>
    tpu.vector_store %arg7[%c5_142, %c0_143, %c0_144], %192 {strides = array<i32>} : memref<8x8x64xf32, #tpu.memory_space<vmem>>, vector<1x8x64xf32>,
    %c6_i32 = arith.constant 6 : i32
    %193 = arith.addi %3, %c6_i32 : i32
    %c1_i32_145 = arith.constant 1 : i32
    %194 = arith.muli %arg2, %c1_i32_145 : i32
    %195 = arith.addi %193, %194 : i32
    %c0_146 = arith.constant 0 : index
    %196 = arith.index_cast %195 : i32 to index
    %c0_147 = arith.constant 0 : index
    %c0_148 = arith.constant 0 : index
    %197 = vector.load %arg3[%c0_146, %196, %c0_147, %c0_148] : memref<1x10x10x64xbf16, #tpu.memory_space<vmem>>, vector<1x1x8x64xbf16>
    %198 = vector.shape_cast %197 : vector<1x1x8x64xbf16> to vector<8x64xbf16>
    %cst_149 = arith.constant dense<0.000000e+00> : vector<8x64xf32>
    %199 = tpu.matmul %198, %8, %cst_149 {dimension_numbers = #tpu.dot_dimension_numbers<[1], [0], [0], [1], [0, 0, 1, 1], [], []>} : vector<8x64xbf16>, vector<64x64xbf16>, vector<8x64xf32> -> vector<8x64xf32>
    %c6_i32_150 = arith.constant 6 : i32
    %200 = arith.addi %3, %c6_i32_150 : i32
    %c1_i32_151 = arith.constant 1 : i32
    %201 = arith.muli %arg2, %c1_i32_151 : i32
    %202 = arith.addi %200, %201 : i32
    %c0_152 = arith.constant 0 : index
    %203 = arith.index_cast %202 : i32 to index
    %c1_153 = arith.constant 1 : index
    %c0_154 = arith.constant 0 : index
    %204 = vector.load %arg3[%c0_152, %203, %c1_153, %c0_154] : memref<1x10x10x64xbf16, #tpu.memory_space<vmem>>, vector<1x1x8x64xbf16>
    %205 = vector.shape_cast %204 : vector<1x1x8x64xbf16> to vector<8x64xbf16>
    %cst_155 = arith.constant dense<0.000000e+00> : vector<8x64xf32>
    %206 = tpu.matmul %205, %13, %cst_155 {dimension_numbers = #tpu.dot_dimension_numbers<[1], [0], [0], [1], [0, 0, 1, 1], [], []>} : vector<8x64xbf16>, vector<64x64xbf16>, vector<8x64xf32> -> vector<8x64xf32>
    %207 = arith.addf %199, %206 : vector<8x64xf32>
    %c6_i32_156 = arith.constant 6 : i32
    %208 = arith.addi %3, %c6_i32_156 : i32
    %c1_i32_157 = arith.constant 1 : i32
    %209 = arith.muli %arg2, %c1_i32_157 : i32
    %210 = arith.addi %208, %209 : i32
    %c0_158 = arith.constant 0 : index
    %211 = arith.index_cast %210 : i32 to index
    %c2_159 = arith.constant 2 : index
    %c0_160 = arith.constant 0 : index
    %212 = vector.load %arg3[%c0_158, %211, %c2_159, %c0_160] : memref<1x10x10x64xbf16, #tpu.memory_space<vmem>>, vector<1x1x8x64xbf16>
    %213 = vector.shape_cast %212 : vector<1x1x8x64xbf16> to vector<8x64xbf16>
    %cst_161 = arith.constant dense<0.000000e+00> : vector<8x64xf32>
    %214 = tpu.matmul %213, %18, %cst_161 {dimension_numbers = #tpu.dot_dimension_numbers<[1], [0], [0], [1], [0, 0, 1, 1], [], []>} : vector<8x64xbf16>, vector<64x64xbf16>, vector<8x64xf32> -> vector<8x64xf32>
    %215 = arith.addf %207, %214 : vector<8x64xf32>
    %c6 = arith.constant 6 : index
    %c0_162 = arith.constant 0 : index
    %c0_163 = arith.constant 0 : index
    %216 = vector.load %arg7[%c6, %c0_162, %c0_163] : memref<8x8x64xf32, #tpu.memory_space<vmem>>, vector<1x8x64xf32>
    %217 = vector.shape_cast %216 : vector<1x8x64xf32> to vector<8x64xf32>
    %218 = arith.addf %217, %215 : vector<8x64xf32>
    %c6_164 = arith.constant 6 : index
    %c0_165 = arith.constant 0 : index
    %c0_166 = arith.constant 0 : index
    %219 = vector.load %arg7[%c6_164, %c0_165, %c0_166] : memref<8x8x64xf32, #tpu.memory_space<vmem>>, vector<1x8x64xf32>
    %220 = vector.shape_cast %219 : vector<1x8x64xf32> to vector<8x64xf32>
    %221 = vector.shape_cast %218 : vector<8x64xf32> to vector<1x8x64xf32>
    tpu.vector_store %arg7[%c6_164, %c0_165, %c0_166], %221 {strides = array<i32>} : memref<8x8x64xf32, #tpu.memory_space<vmem>>, vector<1x8x64xf32>,
    %c7_i32 = arith.constant 7 : i32
    %222 = arith.addi %3, %c7_i32 : i32
    %c1_i32_167 = arith.constant 1 : i32
    %223 = arith.muli %arg2, %c1_i32_167 : i32
    %224 = arith.addi %222, %223 : i32
    %c0_168 = arith.constant 0 : index
    %225 = arith.index_cast %224 : i32 to index
    %c0_169 = arith.constant 0 : index
    %c0_170 = arith.constant 0 : index
    %226 = vector.load %arg3[%c0_168, %225, %c0_169, %c0_170] : memref<1x10x10x64xbf16, #tpu.memory_space<vmem>>, vector<1x1x8x64xbf16>
    %227 = vector.shape_cast %226 : vector<1x1x8x64xbf16> to vector<8x64xbf16>
    %cst_171 = arith.constant dense<0.000000e+00> : vector<8x64xf32>
    %228 = tpu.matmul %227, %8, %cst_171 {dimension_numbers = #tpu.dot_dimension_numbers<[1], [0], [0], [1], [0, 0, 1, 1], [], []>} : vector<8x64xbf16>, vector<64x64xbf16>, vector<8x64xf32> -> vector<8x64xf32>
    %c7_i32_172 = arith.constant 7 : i32
    %229 = arith.addi %3, %c7_i32_172 : i32
    %c1_i32_173 = arith.constant 1 : i32
    %230 = arith.muli %arg2, %c1_i32_173 : i32
    %231 = arith.addi %229, %230 : i32
    %c0_174 = arith.constant 0 : index
    %232 = arith.index_cast %231 : i32 to index
    %c1_175 = arith.constant 1 : index
    %c0_176 = arith.constant 0 : index
    %233 = vector.load %arg3[%c0_174, %232, %c1_175, %c0_176] : memref<1x10x10x64xbf16, #tpu.memory_space<vmem>>, vector<1x1x8x64xbf16>
    %234 = vector.shape_cast %233 : vector<1x1x8x64xbf16> to vector<8x64xbf16>
    %cst_177 = arith.constant dense<0.000000e+00> : vector<8x64xf32>
    %235 = tpu.matmul %234, %13, %cst_177 {dimension_numbers = #tpu.dot_dimension_numbers<[1], [0], [0], [1], [0, 0, 1, 1], [], []>} : vector<8x64xbf16>, vector<64x64xbf16>, vector<8x64xf32> -> vector<8x64xf32>
    %236 = arith.addf %228, %235 : vector<8x64xf32>
    %c7_i32_178 = arith.constant 7 : i32
    %237 = arith.addi %3, %c7_i32_178 : i32
    %c1_i32_179 = arith.constant 1 : i32
    %238 = arith.muli %arg2, %c1_i32_179 : i32
    %239 = arith.addi %237, %238 : i32
    %c0_180 = arith.constant 0 : index
    %240 = arith.index_cast %239 : i32 to index
    %c2_181 = arith.constant 2 : index
    %c0_182 = arith.constant 0 : index
    %241 = vector.load %arg3[%c0_180, %240, %c2_181, %c0_182] : memref<1x10x10x64xbf16, #tpu.memory_space<vmem>>, vector<1x1x8x64xbf16>
    %242 = vector.shape_cast %241 : vector<1x1x8x64xbf16> to vector<8x64xbf16>
    %cst_183 = arith.constant dense<0.000000e+00> : vector<8x64xf32>
    %243 = tpu.matmul %242, %18, %cst_183 {dimension_numbers = #tpu.dot_dimension_numbers<[1], [0], [0], [1], [0, 0, 1, 1], [], []>} : vector<8x64xbf16>, vector<64x64xbf16>, vector<8x64xf32> -> vector<8x64xf32>
    %244 = arith.addf %236, %243 : vector<8x64xf32>
    %c7 = arith.constant 7 : index
    %c0_184 = arith.constant 0 : index
    %c0_185 = arith.constant 0 : index
    %245 = vector.load %arg7[%c7, %c0_184, %c0_185] : memref<8x8x64xf32, #tpu.memory_space<vmem>>, vector<1x8x64xf32>
    %246 = vector.shape_cast %245 : vector<1x8x64xf32> to vector<8x64xf32>
    %247 = arith.addf %246, %244 : vector<8x64xf32>
    %c7_186 = arith.constant 7 : index
    %c0_187 = arith.constant 0 : index
    %c0_188 = arith.constant 0 : index
    %248 = vector.load %arg7[%c7_186, %c0_187, %c0_188] : memref<8x8x64xf32, #tpu.memory_space<vmem>>, vector<1x8x64xf32>
    %249 = vector.shape_cast %248 : vector<1x8x64xf32> to vector<8x64xf32>
    %250 = vector.shape_cast %247 : vector<8x64xf32> to vector<1x8x64xf32>
    tpu.vector_store %arg7[%c7_186, %c0_187, %c0_188], %250 {strides = array<i32>} : memref<8x8x64xf32, #tpu.memory_space<vmem>>, vector<1x8x64xf32>,
    %c2_i32_189 = arith.constant 2 : i32
    %251 = arith.cmpi eq, %arg2, %c2_i32_189 : i32
    %252 = arith.extui %251 : i1 to i32
    %c0_i32_190 = arith.constant 0 : i32
    %253 = arith.cmpi ne, %252, %c0_i32_190 : i32
    scf.if %253 {
      %c0_191 = arith.constant 0 : index
      %c0_192 = arith.constant 0 : index
      %c0_193 = arith.constant 0 : index
      %254 = vector.load %arg7[%c0_191, %c0_192, %c0_193] : memref<8x8x64xf32, #tpu.memory_space<vmem>>, vector<8x8x64xf32>
      %c0_194 = arith.constant 0 : index
      %c0_195 = arith.constant 0 : index
      %c0_196 = arith.constant 0 : index
      %255 = vector.load %arg5[%c0_194, %c0_195, %c0_196] : memref<1x1x64xf32, #tpu.memory_space<vmem>>, vector<1x1x64xf32>
      %256 = vector.broadcast %255 : vector<1x1x64xf32> to vector<8x8x64xf32>
      %257 = arith.addf %254, %256 : vector<8x8x64xf32>
      %cst_197 = arith.constant 0.000000e+00 : f32
      %258 = vector.broadcast %cst_197 : f32 to vector<8x8x64xf32>
      %259 = arith.maximumf %257, %258 : vector<8x8x64xf32>
      %260 = arith.truncf %259 : vector<8x8x64xf32> to vector<8x8x64xbf16>
      %c0_198 = arith.constant 0 : index
      %c0_199 = arith.constant 0 : index
      %c0_200 = arith.constant 0 : index
      %c0_201 = arith.constant 0 : index
      %261 = vector.load %arg6[%c0_198, %c0_199, %c0_200, %c0_201] : memref<1x8x8x64xbf16, #tpu.memory_space<vmem>>, vector<1x8x8x64xbf16>
      %262 = vector.shape_cast %261 : vector<1x8x8x64xbf16> to vector<8x8x64xbf16>
      %263 = vector.shape_cast %260 : vector<8x8x64xbf16> to vector<1x8x8x64xbf16>
      tpu.vector_store %arg6[%c0_198, %c0_199, %c0_200, %c0_201], %263 {strides = array<i32>} : memref<1x8x8x64xbf16, #tpu.memory_space<vmem>>, vector<1x8x8x64xbf16>,
    } else {
    }
    return
  }
  func.func @transform_0(%arg0: i32, %arg1: i32, %arg2: i32) -> (i32, i32, i32, i32) {
    %c0_i32 = arith.constant 0 : i32
    %c0_i32_0 = arith.constant 0 : i32
    %c0_i32_1 = arith.constant 0 : i32
    %c0_i32_2 = arith.constant 0 : i32
    return %arg0, %c0_i32, %c0_i32_0, %c0_i32_1 : i32, i32, i32, i32
  }
  func.func @transform_1(%arg0: i32, %arg1: i32, %arg2: i32) -> (i32, i32, i32) {
    %c0_i32 = arith.constant 0 : i32
    %c0_i32_0 = arith.constant 0 : i32
    %c0_i32_1 = arith.constant 0 : i32
    %c0_i32_2 = arith.constant 0 : i32
    return %c0_i32, %c0_i32_0, %c0_i32_1 : i32, i32, i32
  }
  func.func @transform_2(%arg0: i32, %arg1: i32, %arg2: i32) -> (i32, i32, i32) {
    %c0_i32 = arith.constant 0 : i32
    %c0_i32_0 = arith.constant 0 : i32
    %c0_i32_1 = arith.constant 0 : i32
    %c0_i32_2 = arith.constant 0 : i32
    return %c0_i32, %c0_i32_0, %c0_i32_1 : i32, i32, i32
  }
  func.func @transform_3(%arg0: i32, %arg1: i32, %arg2: i32) -> (i32, i32, i32, i32) {
    %c0_i32 = arith.constant 0 : i32
    %c0_i32_0 = arith.constant 0 : i32
    %c0_i32_1 = arith.constant 0 : i32
    return %arg0, %arg1, %c0_i32, %c0_i32_0 : i32, i32, i32, i32
  }
}

module attributes {stable_mosaic.version = 11 : i64} {
  func.func @_mm_bias_act_kernel(%arg0: i32, %arg1: memref<64x24xbf16, #tpu.memory_space<vmem>>, %arg2: memref<24x48xbf16, #tpu.memory_space<vmem>>, %arg3: memref<1x48xf32, #tpu.memory_space<vmem>>, %arg4: memref<64x48xbf16, #tpu.memory_space<vmem>>) attributes {dimension_semantics = [#tpu.dimension_semantics<parallel>], iteration_bounds = array<i64: 2>, scalar_prefetch = 0 : i64, scratch_operands = 0 : i64, tpu.core_type = #tpu.core_type<tc>, window_params = [{transform_indices = @transform_0, window_bounds = array<i64: 64, 24>}, {pipeline_mode = #tpu.pipeline_mode<synchronous>, transform_indices = @transform_1, window_bounds = array<i64: 24, 48>}, {pipeline_mode = #tpu.pipeline_mode<synchronous>, transform_indices = @transform_2, window_bounds = array<i64: 1, 48>}, {transform_indices = @transform_3, window_bounds = array<i64: 64, 48>}]} {
    %c0 = arith.constant 0 : index
    %c0_0 = arith.constant 0 : index
    %0 = vector.load %arg1[%c0, %c0_0] : memref<64x24xbf16, #tpu.memory_space<vmem>>, vector<64x24xbf16>
    %c0_1 = arith.constant 0 : index
    %c0_2 = arith.constant 0 : index
    %1 = vector.load %arg2[%c0_1, %c0_2] : memref<24x48xbf16, #tpu.memory_space<vmem>>, vector<24x48xbf16>
    %cst = arith.constant dense<0.000000e+00> : vector<64x48xf32>
    %2 = tpu.matmul %0, %1, %cst {dimension_numbers = #tpu.dot_dimension_numbers<[1], [0], [0], [1], [0, 0, 1, 1], [], []>} : vector<64x24xbf16>, vector<24x48xbf16>, vector<64x48xf32> -> vector<64x48xf32>
    %c0_3 = arith.constant 0 : index
    %c0_4 = arith.constant 0 : index
    %3 = vector.load %arg3[%c0_3, %c0_4] : memref<1x48xf32, #tpu.memory_space<vmem>>, vector<1x48xf32>
    %4 = vector.broadcast %3 : vector<1x48xf32> to vector<64x48xf32>
    %5 = arith.addf %2, %4 : vector<64x48xf32>
    %cst_5 = arith.constant 0.000000e+00 : f32
    %6 = vector.broadcast %cst_5 : f32 to vector<64x48xf32>
    %7 = arith.maximumf %5, %6 : vector<64x48xf32>
    %8 = arith.truncf %7 : vector<64x48xf32> to vector<64x48xbf16>
    %c0_6 = arith.constant 0 : index
    %c0_7 = arith.constant 0 : index
    %9 = vector.load %arg4[%c0_6, %c0_7] : memref<64x48xbf16, #tpu.memory_space<vmem>>, vector<64x48xbf16>
    tpu.vector_store %arg4[%c0_6, %c0_7], %8 {strides = array<i32>} : memref<64x48xbf16, #tpu.memory_space<vmem>>, vector<64x48xbf16>,
    return
  }
  func.func @transform_0(%arg0: i32) -> (i32, i32) {
    %c0_i32 = arith.constant 0 : i32
    %c0_i32_0 = arith.constant 0 : i32
    return %arg0, %c0_i32 : i32, i32
  }
  func.func @transform_1(%arg0: i32) -> (i32, i32) {
    %c0_i32 = arith.constant 0 : i32
    %c0_i32_0 = arith.constant 0 : i32
    %c0_i32_1 = arith.constant 0 : i32
    return %c0_i32, %c0_i32_0 : i32, i32
  }
  func.func @transform_2(%arg0: i32) -> (i32, i32) {
    %c0_i32 = arith.constant 0 : i32
    %c0_i32_0 = arith.constant 0 : i32
    %c0_i32_1 = arith.constant 0 : i32
    return %c0_i32, %c0_i32_0 : i32, i32
  }
  func.func @transform_3(%arg0: i32) -> (i32, i32) {
    %c0_i32 = arith.constant 0 : i32
    %c0_i32_0 = arith.constant 0 : i32
    return %arg0, %c0_i32 : i32, i32
  }
}

module attributes {stable_mosaic.version = 11 : i64} {
  func.func @_mm_bias_act_kernel(%arg0: i32, %arg1: memref<64x64xbf16, #tpu.memory_space<vmem>>, %arg2: memref<64x19xbf16, #tpu.memory_space<vmem>>, %arg3: memref<1x19xf32, #tpu.memory_space<vmem>>, %arg4: memref<64x19xf32, #tpu.memory_space<vmem>>) attributes {dimension_semantics = [#tpu.dimension_semantics<parallel>], iteration_bounds = array<i64: 2>, scalar_prefetch = 0 : i64, scratch_operands = 0 : i64, tpu.core_type = #tpu.core_type<tc>, window_params = [{transform_indices = @transform_0, window_bounds = array<i64: 64, 64>}, {pipeline_mode = #tpu.pipeline_mode<synchronous>, transform_indices = @transform_1, window_bounds = array<i64: 64, 19>}, {pipeline_mode = #tpu.pipeline_mode<synchronous>, transform_indices = @transform_2, window_bounds = array<i64: 1, 19>}, {transform_indices = @transform_3, window_bounds = array<i64: 64, 19>}]} {
    %c0 = arith.constant 0 : index
    %c0_0 = arith.constant 0 : index
    %0 = vector.load %arg1[%c0, %c0_0] : memref<64x64xbf16, #tpu.memory_space<vmem>>, vector<64x64xbf16>
    %c0_1 = arith.constant 0 : index
    %c0_2 = arith.constant 0 : index
    %1 = vector.load %arg2[%c0_1, %c0_2] : memref<64x19xbf16, #tpu.memory_space<vmem>>, vector<64x19xbf16>
    %cst = arith.constant dense<0.000000e+00> : vector<64x19xf32>
    %2 = tpu.matmul %0, %1, %cst {dimension_numbers = #tpu.dot_dimension_numbers<[1], [0], [0], [1], [0, 0, 1, 1], [], []>} : vector<64x64xbf16>, vector<64x19xbf16>, vector<64x19xf32> -> vector<64x19xf32>
    %c0_3 = arith.constant 0 : index
    %c0_4 = arith.constant 0 : index
    %3 = vector.load %arg3[%c0_3, %c0_4] : memref<1x19xf32, #tpu.memory_space<vmem>>, vector<1x19xf32>
    %4 = vector.broadcast %3 : vector<1x19xf32> to vector<64x19xf32>
    %5 = arith.addf %2, %4 : vector<64x19xf32>
    %c0_5 = arith.constant 0 : index
    %c0_6 = arith.constant 0 : index
    %6 = vector.load %arg4[%c0_5, %c0_6] : memref<64x19xf32, #tpu.memory_space<vmem>>, vector<64x19xf32>
    tpu.vector_store %arg4[%c0_5, %c0_6], %5 {strides = array<i32>} : memref<64x19xf32, #tpu.memory_space<vmem>>, vector<64x19xf32>,
    return
  }
  func.func @transform_0(%arg0: i32) -> (i32, i32) {
    %c0_i32 = arith.constant 0 : i32
    %c0_i32_0 = arith.constant 0 : i32
    return %arg0, %c0_i32 : i32, i32
  }
  func.func @transform_1(%arg0: i32) -> (i32, i32) {
    %c0_i32 = arith.constant 0 : i32
    %c0_i32_0 = arith.constant 0 : i32
    %c0_i32_1 = arith.constant 0 : i32
    return %c0_i32, %c0_i32_0 : i32, i32
  }
  func.func @transform_2(%arg0: i32) -> (i32, i32) {
    %c0_i32 = arith.constant 0 : i32
    %c0_i32_0 = arith.constant 0 : i32
    %c0_i32_1 = arith.constant 0 : i32
    return %c0_i32, %c0_i32_0 : i32, i32
  }
  func.func @transform_3(%arg0: i32) -> (i32, i32) {
    %c0_i32 = arith.constant 0 : i32
    %c0_i32_0 = arith.constant 0 : i32
    return %arg0, %c0_i32 : i32, i32
  }
}

module attributes {stable_mosaic.version = 11 : i64} {
  func.func @_resize_kernel(%arg0: i32, %arg1: i32, %arg2: memref<16x8xf32, #tpu.memory_space<vmem>>, %arg3: memref<152x608xf32, #tpu.memory_space<vmem>>, %arg4: memref<1x8x152xf32, #tpu.memory_space<vmem>>, %arg5: memref<1x16x608xf32, #tpu.memory_space<vmem>>) attributes {dimension_semantics = [#tpu.dimension_semantics<parallel>, #tpu.dimension_semantics<parallel>], iteration_bounds = array<i64: 2, 2>, scalar_prefetch = 0 : i64, scratch_operands = 0 : i64, tpu.core_type = #tpu.core_type<tc>, window_params = [{transform_indices = @transform_0, window_bounds = array<i64: 16, 8>}, {pipeline_mode = #tpu.pipeline_mode<synchronous>, transform_indices = @transform_1, window_bounds = array<i64: 152, 608>}, {transform_indices = @transform_2, window_bounds = array<i64: 1, 8, 152>}, {transform_indices = @transform_3, window_bounds = array<i64: 1, 16, 608>}]} {
    %c0 = arith.constant 0 : index
    %c0_0 = arith.constant 0 : index
    %c0_1 = arith.constant 0 : index
    %0 = vector.load %arg4[%c0, %c0_0, %c0_1] : memref<1x8x152xf32, #tpu.memory_space<vmem>>, vector<1x8x152xf32>
    %1 = vector.shape_cast %0 : vector<1x8x152xf32> to vector<8x152xf32>
    %c0_2 = arith.constant 0 : index
    %c0_3 = arith.constant 0 : index
    %2 = vector.load %arg2[%c0_2, %c0_3] : memref<16x8xf32, #tpu.memory_space<vmem>>, vector<16x8xf32>
    %cst = arith.constant dense<0.000000e+00> : vector<16x152xf32>
    %3 = tpu.matmul %2, %1, %cst {dimension_numbers = #tpu.dot_dimension_numbers<[1], [0], [0], [1], [0, 0, 1, 1], [], []>} : vector<16x8xf32>, vector<8x152xf32>, vector<16x152xf32> -> vector<16x152xf32>
    %c0_4 = arith.constant 0 : index
    %c0_5 = arith.constant 0 : index
    %4 = vector.load %arg3[%c0_4, %c0_5] : memref<152x608xf32, #tpu.memory_space<vmem>>, vector<152x608xf32>
    %cst_6 = arith.constant dense<0.000000e+00> : vector<16x608xf32>
    %5 = tpu.matmul %3, %4, %cst_6 {dimension_numbers = #tpu.dot_dimension_numbers<[1], [0], [0], [1], [0, 0, 1, 1], [], []>} : vector<16x152xf32>, vector<152x608xf32>, vector<16x608xf32> -> vector<16x608xf32>
    %c0_7 = arith.constant 0 : index
    %c0_8 = arith.constant 0 : index
    %c0_9 = arith.constant 0 : index
    %6 = vector.load %arg5[%c0_7, %c0_8, %c0_9] : memref<1x16x608xf32, #tpu.memory_space<vmem>>, vector<1x16x608xf32>
    %7 = vector.shape_cast %6 : vector<1x16x608xf32> to vector<16x608xf32>
    %8 = vector.shape_cast %5 : vector<16x608xf32> to vector<1x16x608xf32>
    tpu.vector_store %arg5[%c0_7, %c0_8, %c0_9], %8 {strides = array<i32>} : memref<1x16x608xf32, #tpu.memory_space<vmem>>, vector<1x16x608xf32>,
    return
  }
  func.func @transform_0(%arg0: i32, %arg1: i32) -> (i32, i32) {
    %c0_i32 = arith.constant 0 : i32
    %c0_i32_0 = arith.constant 0 : i32
    return %arg1, %c0_i32 : i32, i32
  }
  func.func @transform_1(%arg0: i32, %arg1: i32) -> (i32, i32) {
    %c0_i32 = arith.constant 0 : i32
    %c0_i32_0 = arith.constant 0 : i32
    %c0_i32_1 = arith.constant 0 : i32
    return %c0_i32, %c0_i32_0 : i32, i32
  }
  func.func @transform_2(%arg0: i32, %arg1: i32) -> (i32, i32, i32) {
    %c0_i32 = arith.constant 0 : i32
    %c0_i32_0 = arith.constant 0 : i32
    %c0_i32_1 = arith.constant 0 : i32
    return %arg0, %c0_i32, %c0_i32_0 : i32, i32, i32
  }
  func.func @transform_3(%arg0: i32, %arg1: i32) -> (i32, i32, i32) {
    %c0_i32 = arith.constant 0 : i32
    %c0_i32_0 = arith.constant 0 : i32
    return %arg0, %arg1, %c0_i32 : i32, i32, i32
  }
}

</mosaic_0001>

<llo_original>
// kernel: deeplab_forward.8
$region0: #{deeplab_forward.8}
  #allocation0 [shape = 'u32[]', space=smem, size = 0x4, offset = 0x4, fixed_abs, tag = 'smem constant byte address 0x4 - core index']
  #allocation1 [shape = 'u32[144,128]{1,0:T(1,128)}', space=vmem, size = 0x12000, scoped, tag = 'internal scratch']
  %s0 = inlined_call_operand.vmem [shape: bf16[512,27], index: 0, kind: input, shape index: {}]
  %s1 = inlined_call_operand.vmem [shape: bf16[27,16], index: 1, kind: input, shape index: {}]
  %s2 = inlined_call_operand.vmem [shape: f32[1,16], index: 2, kind: input, shape index: {}]
  %s3 = inlined_call_operand.vmem [shape: bf16[512,16], index: 3, kind: output, shape index: {}]
  %s4 = sld [smem:[#allocation0]]
  $region45: #{deeplab_forward.8} parent=0
    _
  %s6 = ssub.s32 1, %s4
  %s7 = scalar_select 0, %s6, %s4
  loop: start=0, step=1, limit=4
  $region2: #{deeplab_forward.8} parent=0 // loop_pre_header
    _
  $region3: #{deeplab_forward.8} parent=0 // loop_header
    %s9 = sphi 0, %s13
    %p10 = scmp.ge.s32.totalorder %s9, 4
    %s19 = sphi 0, %s21
    %s22 = sphi 0, %s19
    %s23 = sphi 0, %s22
    %s39 = sphi 0, %s23
    %s43 = sphi 0, %s43
    %s45 = sphi 0, %s43
    %s46 = sphi 0, %s45
    %s60 = sphi 0, %s46
    %s64 = sphi 0, %s64
    %s66 = sphi 0, %s64
    %s67 = sphi 0, %s66
    %s81 = sphi 0, %s67
    %s87 = sphi 0, %s89
    %s90 = sphi 0, %s87
    %s91 = sphi 0, %s90
    %s107 = sphi 0, %s91
  $region4: #{deeplab_forward.8} parent=0 // loop_header_branch
    %12 = sbr.rel (%p10) target = $region8
  $region5: #{deeplab_forward.8} parent=0 // loop_body
    %s14 = ssub.s32 %s9, 1
    %s15 = ssub.s32 %s9, 2
    %s16 = sadd.s32 %s9, 1
    %s17 = ssub.s32 %s9, %s16
    %p18 = scmp.eq.s32.totalorder %s17, 0
    %s20 = sadd.s32 %s19, 1
    %s21 = scalar_select %p18, %s19, %s20
    %p24 = pneg %p18
    %p25 = scmp.eq.s32.totalorder %s9, 1
    %p26 = por %p24, %p25
    %p27 = scmp.ne.s32.totalorder %s19, %s22
    %p28 = scmp.eq.s32.totalorder %s9, 0
    %p29 = por %p27, %p28
    %p30 = scmp.ne.s32.totalorder %s19, %s22
    %p31 = scmp.eq.s32.totalorder %s14, 1
    %p32 = por %p30, %p31
    %p33 = scmp.ne.s32.totalorder %s22, %s23
    %p34 = scmp.eq.s32.totalorder %s14, 0
    %p35 = por %p33, %p34
    %p36 = scmp.ne.s32.totalorder %s22, %s23
    %p37 = scmp.eq.s32.totalorder %s15, 1
    %p38 = por %p36, %p37
    %p40 = scmp.ne.s32.totalorder %s23, %s39
    %p41 = scmp.eq.s32.totalorder %s15, 0
    %p42 = por %p40, %p41
    %s44 = sadd.s32 %s43, 1
    %p47 = scmp.eq.s32.totalorder %s9, 1
    %p48 = scmp.ne.s32.totalorder %s43, %s45
    %p49 = scmp.eq.s32.totalorder %s9, 0
    %p50 = por %p48, %p49
    %p51 = scmp.ne.s32.totalorder %s43, %s45
    %p52 = scmp.eq.s32.totalorder %s14, 1
    %p53 = por %p51, %p52
    %p54 = scmp.ne.s32.totalorder %s45, %s46
    %p55 = scmp.eq.s32.totalorder %s14, 0
    %p56 = por %p54, %p55
    %p57 = scmp.ne.s32.totalorder %s45, %s46
    %p58 = scmp.eq.s32.totalorder %s15, 1
    %p59 = por %p57, %p58
    %p61 = scmp.ne.s32.totalorder %s46, %s60
    %p62 = scmp.eq.s32.totalorder %s15, 0
    %p63 = por %p61, %p62
    %s65 = sadd.s32 %s64, 1
    %p68 = scmp.eq.s32.totalorder %s9, 1
    %p69 = scmp.ne.s32.totalorder %s64, %s66
    %p70 = scmp.eq.s32.totalorder %s9, 0
    %p71 = por %p69, %p70
    %p72 = scmp.ne.s32.totalorder %s64, %s66
    %p73 = scmp.eq.s32.totalorder %s14, 1
    %p74 = por %p72, %p73
    %p75 = scmp.ne.s32.totalorder %s66, %s67
    %p76 = scmp.eq.s32.totalorder %s14, 0
    %p77 = por %p75, %p76
    %p78 = scmp.ne.s32.totalorder %s66, %s67
    %p79 = scmp.eq.s32.totalorder %s15, 1
    %p80 = por %p78, %p79
    %p82 = scmp.ne.s32.totalorder %s67, %s81
    %p83 = scmp.eq.s32.totalorder %s15, 0
    %p84 = por %p82, %p83
    %s85 = ssub.s32 %s9, %s16
    %p86 = scmp.eq.s32.totalorder %s85, 0
    %s88 = sadd.s32 %s87, 1
    %s89 = scalar_select %p86, %s87, %s88
    %p92 = pneg %p86
    %p93 = scmp.eq.s32.totalorder %s9, 1
    %p94 = por %p92, %p93
    %p95 = scmp.ne.s32.totalorder %s87, %s90
    %p96 = scmp.eq.s32.totalorder %s9, 0
    %p97 = por %p95, %p96
    %p98 = scmp.ne.s32.totalorder %s87, %s90
    %p99 = scmp.eq.s32.totalorder %s14, 1
    %p100 = por %p98, %p99
    %p101 = scmp.ne.s32.totalorder %s90, %s91
    %p102 = scmp.eq.s32.totalorder %s14, 0
    %p103 = por %p101, %p102
    %p104 = scmp.ne.s32.totalorder %s90, %s91
    %p105 = scmp.eq.s32.totalorder %s15, 1
    %p106 = por %p104, %p105
    %p108 = scmp.ne.s32.totalorder %s91, %s107
    %p109 = scmp.eq.s32.totalorder %s15, 0
    %p110 = por %p108, %p109
    %p111 = scmp.le.s32.totalorder 1, %s9
    %p112 = scmp.lt.s32.totalorder %s9, 3
    %p113 = pnand %p111, %p112
    %p114 = pneg %p113
    // Predicated region
    $region9: #{deeplab_forward.8} parent=5 // pred_check
      _
    $region10: #{deeplab_forward.8} parent=5 // pred_check_branch
      %116 = sbr.rel (%p113) target = $region12
    $region11: #{deeplab_forward.8} parent=5 // pred_region
      %s117 = ssub.s32 %s9, 1
      // Predicated region
      $region13: #{deeplab_forward.8} parent=11 // pred_check
        %p118 = pneg %p56
      $region14: #{deeplab_forward.8} parent=11 // pred_check_branch
        %120 = sbr.rel (%p118) target = $region16
      $region15: #{deeplab_forward.8} parent=11 // pred_region
        _
      $region16: #{deeplab_forward.8} parent=11 // pred_fallthru
        _
      // Predicated region
      $region17: #{deeplab_forward.8} parent=11 // pred_check
        %p121 = pneg %p77
      $region18: #{deeplab_forward.8} parent=11 // pred_check_branch
        %123 = sbr.rel (%p121) target = $region20
      $region19: #{deeplab_forward.8} parent=11 // pred_region
        _
      $region20: #{deeplab_forward.8} parent=11 // pred_fallthru
        _
    $region12: #{deeplab_forward.8} parent=5 // pred_fallthru
      _
    %p124 = scmp.lt.s32.totalorder %s9, 2
    // Predicated region
    $region21: #{deeplab_forward.8} parent=5 // pred_check
      %p125 = pneg %p124
    $region22: #{deeplab_forward.8} parent=5 // pred_check_branch
      %127 = sbr.rel (%p125) target = $region24
    $region23: #{deeplab_forward.8} parent=5 // pred_region
      // Predicated region
      $region25: #{deeplab_forward.8} parent=23 // pred_check
        %p128 = pneg %p29
      $region26: #{deeplab_forward.8} parent=23 // pred_check_branch
        %130 = sbr.rel (%p128) target = $region28
      $region27: #{deeplab_forward.8} parent=23 // pred_region
        %s131 = smul.u32 32, %s9
        %p132 = scmp.lt.s32.totalorder %s131, 63
        %s133 = scalar_select %p132, %s131, 63
        %s134 = smul.addr %s133, 4
        %s135 = scalar_lea.vmem %s0, %s134
        %s136 = smul.u32 32, %s9
      $region28: #{deeplab_forward.8} parent=23 // pred_fallthru
        _
    $region24: #{deeplab_forward.8} parent=5 // pred_fallthru
      _
    %p137 = scmp.le.s32.totalorder 1, %s9
    %p138 = scmp.lt.s32.totalorder %s9, 3
    %p139 = pnand %p137, %p138
    %p140 = pneg %p139
    // Predicated region
    $region29: #{deeplab_forward.8} parent=5 // pred_check
      _
    $region30: #{deeplab_forward.8} parent=5 // pred_check_branch
      %142 = sbr.rel (%p139) target = $region32
    $region31: #{deeplab_forward.8} parent=5 // pred_region
      %s143 = ssub.s32 %s9, 1
      %s144 = smul.u32 32, %s14
      %p145 = scmp.lt.s32.totalorder %s144, 63
      %s146 = scalar_select %p145, %s144, 63
      %s147 = smul.addr %s146, 4
      %s148 = scalar_lea.vmem %s0, %s147
      %p149 = pneg %p35
      %p150 = pneg %p32
      %p151 = pneg %p56
      %p152 = pneg %p53
      %p153 = pneg %p77
      %p154 = pneg %p74
      %p155 = pneg %p103
      %p156 = pneg %p100
      %s157 = smul.u32 32, %s14
      %p158 = scmp.lt.s32.totalorder %s157, 63
      %s159 = scalar_select %p158, %s157, 63
      %s160 = smul.addr %s159, 4
      %s161 = scalar_lea.vmem %s3, %s160
      %s162 = smul.u32 32, %s14
      %p163 = scmp.lt.s32.totalorder %s162, 63
      %s164 = scalar_select %p163, %s162, 63
      %s165 = smul.addr %s164, 4
      %s166 = scalar_lea.vmem %s0, %s165
      %s167 = smul.u32 32, %s14
      %s168 = smul.u32 32, %s14
      %p169 = scmp.lt.s32.totalorder %s168, 63
      %s170 = scalar_select %p169, %s168, 63
      %s171 = smul.addr %s170, 4
      %s172 = scalar_lea.vmem %s3, %s171
      %s173 = smul.u32 32, %s14
      %v175 = vld [vmem:[%s166] sm:$0xf]
      %v176 = vld [vmem:[%s166 + $0x4] sm:$0xf]
      %v177 = vld [vmem:[%s166 + $0x8] sm:$0xf]
      %v178 = vld [vmem:[%s166 + $0xc] sm:$0xf]
      %v179 = vld [vmem:[%s166 + $0x10] sm:$0xf]
      %v180 = vld [vmem:[%s166 + $0x14] sm:$0xf]
      %v181 = vld [vmem:[%s166 + $0x18] sm:$0xf]
      %v182 = vld [vmem:[%s166 + $0x1c] sm:$0xf]
      %v183 = vld [vmem:[%s166 + $0x20] sm:$0xf]
      %v184 = vld [vmem:[%s166 + $0x24] sm:$0xf]
      %v185 = vld [vmem:[%s166 + $0x28] sm:$0xf]
      %v186 = vld [vmem:[%s166 + $0x2c] sm:$0xf]
      %v187 = vld [vmem:[%s166 + $0x30] sm:$0xf]
      %v188 = vld [vmem:[%s166 + $0x34] sm:$0xf]
      %v189 = vld [vmem:[%s166 + $0x38] sm:$0xf]
      %v190 = vld [vmem:[%s166 + $0x3c] sm:$0xf]
      %v191 = vld [vmem:[%s166 + $0x40] sm:$0xf]
      %v192 = vld [vmem:[%s166 + $0x44] sm:$0xf]
      %v193 = vld [vmem:[%s166 + $0x48] sm:$0xf]
      %v194 = vld [vmem:[%s166 + $0x4c] sm:$0xf]
      %v195 = vld [vmem:[%s166 + $0x50] sm:$0xf]
      %v196 = vld [vmem:[%s166 + $0x54] sm:$0xf]
      %v197 = vld [vmem:[%s166 + $0x58] sm:$0xf]
      %v198 = vld [vmem:[%s166 + $0x5c] sm:$0xf]
      %v199 = vld [vmem:[%s166 + $0x60] sm:$0xf]
      %v200 = vld [vmem:[%s166 + $0x64] sm:$0xf]
      %v201 = vld [vmem:[%s166 + $0x68] sm:$0xf]
      %v202 = vld [vmem:[%s166 + $0x6c] sm:$0xf]
      %v203 = vld [vmem:[%s166 + $0x70] sm:$0xf]
      %v204 = vld [vmem:[%s166 + $0x74] sm:$0xf]
      %v205 = vld [vmem:[%s166 + $0x78] sm:$0xf]
      %v206 = vld [vmem:[%s166 + $0x7c] sm:$0xf]
      %v207 = vld [vmem:[%s1] sm:$0xf]
      %v208 = vld [vmem:[%s1 + $0x4] sm:$0xf]
      %v209 = vld [vmem:[%s1 + $0x8] sm:$0xf]
      %v210 = vld [vmem:[%s1 + $0xc] sm:$0x3]
      %v211 = vld [vmem:[%s2] sm:$0x1]
      %v213 = vlaneseq
      %v214 = vshrl.u32 %v213, 7
      %v215 = vsub.s32 0, %v214
      %v216 = vrot.slane %v211, %v215
      %v250 = vunpack.c.l.b16 %v175
      %v251 = vunpack.c.l.b16 %v176
      %v252 = vunpack.c.l.b16 %v177
      %v253 = vunpack.c.l.b16 %v178
      %v254 = vunpack.c.l.b16 %v179
      %v255 = vunpack.c.l.b16 %v180
      %v256 = vunpack.c.l.b16 %v181
      %v257 = vunpack.c.l.b16 %v182
      %v258 = vunpack.c.l.b16 %v183
      %v259 = vunpack.c.l.b16 %v184
      %v260 = vunpack.c.l.b16 %v185
      %v261 = vunpack.c.l.b16 %v186
      %v262 = vunpack.c.l.b16 %v187
      %v263 = vunpack.c.l.b16 %v188
      %v264 = vunpack.c.l.b16 %v189
      %v265 = vunpack.c.l.b16 %v190
      %v266 = vunpack.c.l.b16 %v191
      %v267 = vunpack.c.l.b16 %v192
      %v268 = vunpack.c.l.b16 %v193
      %v269 = vunpack.c.l.b16 %v194
      %v270 = vunpack.c.l.b16 %v195
      %v271 = vunpack.c.l.b16 %v196
      %v272 = vunpack.c.l.b16 %v197
      %v273 = vunpack.c.l.b16 %v198
      %v274 = vunpack.c.l.b16 %v199
      %v275 = vunpack.c.l.b16 %v200
      %v276 = vunpack.c.l.b16 %v201
      %v277 = vunpack.c.l.b16 %v202
      %v278 = vunpack.c.l.b16 %v203
      %v279 = vunpack.c.l.b16 %v204
      %v280 = vunpack.c.l.b16 %v205
      %v281 = vunpack.c.l.b16 %v206
      %v282 = vpack.c.b16 %v251, %v250
      %v283 = vpack.c.b16 %v253, %v252
      %v284 = vpack.c.b16 %v255, %v254
      %v285 = vpack.c.b16 %v257, %v256
      %v286 = vpack.c.b16 %v259, %v258
      %v287 = vpack.c.b16 %v261, %v260
      %v288 = vpack.c.b16 %v263, %v262
      %v289 = vpack.c.b16 %v265, %v264
      %v290 = vpack.c.b16 %v267, %v266
      %v291 = vpack.c.b16 %v269, %v268
      %v292 = vpack.c.b16 %v271, %v270
      %v293 = vpack.c.b16 %v273, %v272
      %v294 = vpack.c.b16 %v275, %v274
      %v295 = vpack.c.b16 %v277, %v276
      %v296 = vpack.c.b16 %v279, %v278
      %v297 = vpack.c.b16 %v281, %v280
      %v302 = vunpack.c.l.b16 %v207
      %v303 = vunpack.c.l.b16 %v208
      %v304 = vunpack.c.l.b16 %v209
      %v305 = vunpack.c.l.b16 %v210
      %v306 = vpack.c.b16 %v303, %v302
      %v307 = vpack.c.b16 %v305, %v304
      %vm309 = vcmask 220160
      %v311 = vsel %vm309, %v282, 0
      %v314 = vsel %vm309, %v283, 0
      %v317 = vsel %vm309, %v284, 0
      %v320 = vsel %vm309, %v285, 0
      %v323 = vsel %vm309, %v286, 0
      %v326 = vsel %vm309, %v287, 0
      %v329 = vsel %vm309, %v288, 0
      %v332 = vsel %vm309, %v289, 0
      %v335 = vsel %vm309, %v290, 0
      %v338 = vsel %vm309, %v291, 0
      %v341 = vsel %vm309, %v292, 0
      %v344 = vsel %vm309, %v293, 0
      %v347 = vsel %vm309, %v294, 0
      %v350 = vsel %vm309, %v295, 0
      %v353 = vsel %vm309, %v296, 0
      %v356 = vsel %vm309, %v297, 0
      %vm358 = vcmask 1044480
      %vm359 = vcmask 1045504
      %v360 = vsel %vm358, 4294967295, 65535
      %v361 = vsel %vm359, %v360, 0
      %v363 = vand.u32 %v307, %v361
      %365 = vmatprep.subr.bf16.mxu0 0
      %366 = vmatpush1.bf16.msra.mxu0 %v306
      %367 = vmatprep.subr.bf16.mxu0 0
      %368 = vmatpush1.bf16.msra.mxu0 %v363
      %369 = vmatprep.subr.bf16.mxu0 0
      %370 = vmatpush1.bf16.msra.mxu0 0
      %371 = vmatprep.subr.bf16.mxu0 0
      %372 = vmatpush1.bf16.msra.mxu0 0
      %373 = vmatprep.subr.bf16.mxu0 0
      %374 = vmatpush1.bf16.msra.mxu0 0
      %375 = vmatprep.subr.bf16.mxu0 0
      %376 = vmatpush1.bf16.msra.mxu0 0
      %377 = vmatprep.subr.bf16.mxu0 0
      %378 = vmatpush1.bf16.msra.mxu0 0
      %379 = vmatprep.subr.bf16.mxu0 0
      %380 = vmatpush1.bf16.msra.mxu0 0
      %381 = vmatprep.subr.bf16.mxu0 0
      %382 = vmatpush1.bf16.msra.mxu0 0
      %383 = vmatprep.subr.bf16.mxu0 0
      %384 = vmatpush1.bf16.msra.mxu0 0
      %385 = vmatprep.subr.bf16.mxu0 0
      %386 = vmatpush1.bf16.msra.mxu0 0
      %387 = vmatprep.subr.bf16.mxu0 0
      %388 = vmatpush1.bf16.msra.mxu0 0
      %389 = vmatprep.subr.bf16.mxu0 0
      %390 = vmatpush1.bf16.msra.mxu0 0
      %391 = vmatprep.subr.bf16.mxu0 0
      %392 = vmatpush1.bf16.msra.mxu0 0
      %393 = vmatprep.subr.bf16.mxu0 0
      %394 = vmatpush1.bf16.msra.mxu0 0
      %395 = vmatprep.subr.bf16.mxu0 0
      %396 = vmatpush1.bf16.msra.mxu0 0
      %397 = vmatprep.mubr.bf16.mxu0 0
      %398 = vmatmul.mubr.bf16.gmra.mrb[0].mxu0 %v311
      %v399 = vpop.f32.mrb[0].mxu0
      %v400 = vadd.f32 %v216, %v399
      %v401 = vpop.f32.mrb[0].mxu0
      %v402 = vpop.f32.mrb[0].mxu0
      %v403 = vadd.f32 %v216, %v402
      %v404 = vpop.f32.mrb[0].mxu0
      %405 = vmatprep.mubr.bf16.mxu0 0
      %406 = vmatmul.mubr.bf16.gmra.mrb[0].mxu0 %v314
      %v407 = vpop.f32.mrb[0].mxu0
      %v408 = vadd.f32 %v216, %v407
      %v409 = vpop.f32.mrb[0].mxu0
      %v410 = vpop.f32.mrb[0].mxu0
      %v411 = vadd.f32 %v216, %v410
      %v412 = vpop.f32.mrb[0].mxu0
      %413 = vmatprep.mubr.bf16.mxu0 0
      %414 = vmatmul.mubr.bf16.gmra.mrb[0].mxu0 %v317
      %v415 = vpop.f32.mrb[0].mxu0
      %v416 = vadd.f32 %v216, %v415
      %v417 = vpop.f32.mrb[0].mxu0
      %v418 = vpop.f32.mrb[0].mxu0
      %v419 = vadd.f32 %v216, %v418
      %v420 = vpop.f32.mrb[0].mxu0
      %421 = vmatprep.mubr.bf16.mxu0 0
      %422 = vmatmul.mubr.bf16.gmra.mrb[0].mxu0 %v320
      %v423 = vpop.f32.mrb[0].mxu0
      %v424 = vadd.f32 %v216, %v423
      %v425 = vpop.f32.mrb[0].mxu0
      %v426 = vpop.f32.mrb[0].mxu0
      %v427 = vadd.f32 %v216, %v426
      %v428 = vpop.f32.mrb[0].mxu0
      %429 = vmatprep.mubr.bf16.mxu0 0
      %430 = vmatmul.mubr.bf16.gmra.mrb[0].mxu0 %v323
      %v431 = vpop.f32.mrb[0].mxu0
      %v432 = vadd.f32 %v216, %v431
      %v433 = vpop.f32.mrb[0].mxu0
      %v434 = vpop.f32.mrb[0].mxu0
      %v435 = vadd.f32 %v216, %v434
      %v436 = vpop.f32.mrb[0].mxu0
      %437 = vmatprep.mubr.bf16.mxu0 0
      %438 = vmatmul.mubr.bf16.gmra.mrb[0].mxu0 %v326
      %v439 = vpop.f32.mrb[0].mxu0
      %v440 = vadd.f32 %v216, %v439
      %v441 = vpop.f32.mrb[0].mxu0
      %v442 = vpop.f32.mrb[0].mxu0
      %v443 = vadd.f32 %v216, %v442
      %v444 = vpop.f32.mrb[0].mxu0
      %445 = vmatprep.mubr.bf16.mxu0 0
      %446 = vmatmul.mubr.bf16.gmra.mrb[0].mxu0 %v329
      %v447 = vpop.f32.mrb[0].mxu0
      %v448 = vadd.f32 %v216, %v447
      %v449 = vpop.f32.mrb[0].mxu0
      %v450 = vpop.f32.mrb[0].mxu0
      %v451 = vadd.f32 %v216, %v450
      %v452 = vpop.f32.mrb[0].mxu0
      %453 = vmatprep.mubr.bf16.mxu0 0
      %454 = vmatmul.mubr.bf16.gmra.mrb[0].mxu0 %v332
      %v455 = vpop.f32.mrb[0].mxu0
      %v456 = vadd.f32 %v216, %v455
      %v457 = vpop.f32.mrb[0].mxu0
      %v458 = vpop.f32.mrb[0].mxu0
      %v459 = vadd.f32 %v216, %v458
      %v460 = vpop.f32.mrb[0].mxu0
      %461 = vmatprep.mubr.bf16.mxu0 0
      %462 = vmatmul.mubr.bf16.gmra.mrb[0].mxu0 %v335
      %v463 = vpop.f32.mrb[0].mxu0
      %v464 = vadd.f32 %v216, %v463
      %v465 = vpop.f32.mrb[0].mxu0
      %v466 = vpop.f32.mrb[0].mxu0
      %v467 = vadd.f32 %v216, %v466
      %v468 = vpop.f32.mrb[0].mxu0
      %469 = vmatprep.mubr.bf16.mxu0 0
      %470 = vmatmul.mubr.bf16.gmra.mrb[0].mxu0 %v338
      %v471 = vpop.f32.mrb[0].mxu0
      %v472 = vadd.f32 %v216, %v471
      %v473 = vpop.f32.mrb[0].mxu0
      %v474 = vpop.f32.mrb[0].mxu0
      %v475 = vadd.f32 %v216, %v474
      %v476 = vpop.f32.mrb[0].mxu0
      %477 = vmatprep.mubr.bf16.mxu0 0
      %478 = vmatmul.mubr.bf16.gmra.mrb[0].mxu0 %v341
      %v479 = vpop.f32.mrb[0].mxu0
      %v480 = vadd.f32 %v216, %v479
      %v481 = vpop.f32.mrb[0].mxu0
      %v482 = vpop.f32.mrb[0].mxu0
      %v483 = vadd.f32 %v216, %v482
      %v484 = vpop.f32.mrb[0].mxu0
      %485 = vmatprep.mubr.bf16.mxu0 0
      %486 = vmatmul.mubr.bf16.gmra.mrb[0].mxu0 %v344
      %v487 = vpop.f32.mrb[0].mxu0
      %v488 = vadd.f32 %v216, %v487
      %v489 = vpop.f32.mrb[0].mxu0
      %v490 = vpop.f32.mrb[0].mxu0
      %v491 = vadd.f32 %v216, %v490
      %v492 = vpop.f32.mrb[0].mxu0
      %493 = vmatprep.mubr.bf16.mxu0 0
      %494 = vmatmul.mubr.bf16.gmra.mrb[0].mxu0 %v347
      %v495 = vpop.f32.mrb[0].mxu0
      %v496 = vadd.f32 %v216, %v495
      %v497 = vpop.f32.mrb[0].mxu0
      %v498 = vpop.f32.mrb[0].mxu0
      %v499 = vadd.f32 %v216, %v498
      %v500 = vpop.f32.mrb[0].mxu0
      %501 = vmatprep.mubr.bf16.mxu0 0
      %502 = vmatmul.mubr.bf16.gmra.mrb[0].mxu0 %v350
      %v503 = vpop.f32.mrb[0].mxu0
      %v504 = vadd.f32 %v216, %v503
      %v505 = vpop.f32.mrb[0].mxu0
      %v506 = vpop.f32.mrb[0].mxu0
      %v507 = vadd.f32 %v216, %v506
      %v508 = vpop.f32.mrb[0].mxu0
      %509 = vmatprep.mubr.bf16.mxu0 0
      %510 = vmatmul.mubr.bf16.gmra.mrb[0].mxu0 %v353
      %v511 = vpop.f32.mrb[0].mxu0
      %v512 = vadd.f32 %v216, %v511
      %v513 = vpop.f32.mrb[0].mxu0
      %v514 = vpop.f32.mrb[0].mxu0
      %v515 = vadd.f32 %v216, %v514
      %v516 = vpop.f32.mrb[0].mxu0
      %517 = vmatprep.mubr.bf16.mxu0 0
      %518 = vmatmul.mubr.bf16.gmra.mrb[0].mxu0 %v356
      %v519 = vpop.f32.mrb[0].mxu0
      %v520 = vadd.f32 %v216, %v519
      %v521 = vpop.f32.mrb[0].mxu0
      %v522 = vpop.f32.mrb[0].mxu0
      %v523 = vadd.f32 %v216, %v522
      %v524 = vpop.f32.mrb[0].mxu0
      %525 = vdwg.mxu0
      %v526 = vmax.f32 %v400, 0.0
      %v527 = vmax.f32 %v403, 0.0
      %v528 = vmax.f32 %v408, 0.0
      %v529 = vmax.f32 %v411, 0.0
      %v530 = vmax.f32 %v416, 0.0
      %v531 = vmax.f32 %v419, 0.0
      %v532 = vmax.f32 %v424, 0.0
      %v533 = vmax.f32 %v427, 0.0
      %v534 = vmax.f32 %v432, 0.0
      %v535 = vmax.f32 %v435, 0.0
      %v536 = vmax.f32 %v440, 0.0
      %v537 = vmax.f32 %v443, 0.0
      %v538 = vmax.f32 %v448, 0.0
      %v539 = vmax.f32 %v451, 0.0
      %v540 = vmax.f32 %v456, 0.0
      %v541 = vmax.f32 %v459, 0.0
      %v542 = vmax.f32 %v464, 0.0
      %v543 = vmax.f32 %v467, 0.0
      %v544 = vmax.f32 %v472, 0.0
      %v545 = vmax.f32 %v475, 0.0
      %v546 = vmax.f32 %v480, 0.0
      %v547 = vmax.f32 %v483, 0.0
      %v548 = vmax.f32 %v488, 0.0
      %v549 = vmax.f32 %v491, 0.0
      %v550 = vmax.f32 %v496, 0.0
      %v551 = vmax.f32 %v499, 0.0
      %v552 = vmax.f32 %v504, 0.0
      %v553 = vmax.f32 %v507, 0.0
      %v554 = vmax.f32 %v512, 0.0
      %v555 = vmax.f32 %v515, 0.0
      %v556 = vmax.f32 %v520, 0.0
      %v557 = vmax.f32 %v523, 0.0
      %v558 = vpack.c.bf16 %v527, %v526
      %v559 = vpack.c.bf16 %v529, %v528
      %v560 = vpack.c.bf16 %v531, %v530
      %v561 = vpack.c.bf16 %v533, %v532
      %v562 = vpack.c.bf16 %v535, %v534
      %v563 = vpack.c.bf16 %v537, %v536
      %v564 = vpack.c.bf16 %v539, %v538
      %v565 = vpack.c.bf16 %v541, %v540
      %v566 = vpack.c.bf16 %v543, %v542
      %v567 = vpack.c.bf16 %v545, %v544
      %v568 = vpack.c.bf16 %v547, %v546
      %v569 = vpack.c.bf16 %v549, %v548
      %v570 = vpack.c.bf16 %v551, %v550
      %v571 = vpack.c.bf16 %v553, %v552
      %v572 = vpack.c.bf16 %v555, %v554
      %v573 = vpack.c.bf16 %v557, %v556
      %v590 = vunpack.c.l.b16 %v558
      %v591 = vunpack.c.h.b16 %v558
      %v592 = vunpack.c.l.b16 %v559
      %v593 = vunpack.c.h.b16 %v559
      %v594 = vunpack.c.l.b16 %v560
      %v595 = vunpack.c.h.b16 %v560
      %v596 = vunpack.c.l.b16 %v561
      %v597 = vunpack.c.h.b16 %v561
      %v598 = vunpack.c.l.b16 %v562
      %v599 = vunpack.c.h.b16 %v562
      %v600 = vunpack.c.l.b16 %v563
      %v601 = vunpack.c.h.b16 %v563
      %v602 = vunpack.c.l.b16 %v564
      %v603 = vunpack.c.h.b16 %v564
      %v604 = vunpack.c.l.b16 %v565
      %v605 = vunpack.c.h.b16 %v565
      %v606 = vunpack.c.l.b16 %v566
      %v607 = vunpack.c.h.b16 %v566
      %v608 = vunpack.c.l.b16 %v567
      %v609 = vunpack.c.h.b16 %v567
      %v610 = vunpack.c.l.b16 %v568
      %v611 = vunpack.c.h.b16 %v568
      %v612 = vunpack.c.l.b16 %v569
      %v613 = vunpack.c.h.b16 %v569
      %v614 = vunpack.c.l.b16 %v570
      %v615 = vunpack.c.h.b16 %v570
      %v616 = vunpack.c.l.b16 %v571
      %v617 = vunpack.c.h.b16 %v571
      %v618 = vunpack.c.l.b16 %v572
      %v619 = vunpack.c.h.b16 %v572
      %v620 = vunpack.c.l.b16 %v573
      %v621 = vunpack.c.h.b16 %v573
      %v622 = vpack.c.b16 %v590, %v590
      %v623 = vpack.c.b16 %v591, %v591
      %v624 = vpack.c.b16 %v592, %v592
      %v625 = vpack.c.b16 %v593, %v593
      %v626 = vpack.c.b16 %v594, %v594
      %v627 = vpack.c.b16 %v595, %v595
      %v628 = vpack.c.b16 %v596, %v596
      %v629 = vpack.c.b16 %v597, %v597
      %v630 = vpack.c.b16 %v598, %v598
      %v631 = vpack.c.b16 %v599, %v599
      %v632 = vpack.c.b16 %v600, %v600
      %v633 = vpack.c.b16 %v601, %v601
      %v634 = vpack.c.b16 %v602, %v602
      %v635 = vpack.c.b16 %v603, %v603
      %v636 = vpack.c.b16 %v604, %v604
      %v637 = vpack.c.b16 %v605, %v605
      %v638 = vpack.c.b16 %v606, %v606
      %v639 = vpack.c.b16 %v607, %v607
      %v640 = vpack.c.b16 %v608, %v608
      %v641 = vpack.c.b16 %v609, %v609
      %v642 = vpack.c.b16 %v610, %v610
      %v643 = vpack.c.b16 %v611, %v611
      %v644 = vpack.c.b16 %v612, %v612
      %v645 = vpack.c.b16 %v613, %v613
      %v646 = vpack.c.b16 %v614, %v614
      %v647 = vpack.c.b16 %v615, %v615
      %v648 = vpack.c.b16 %v616, %v616
      %v649 = vpack.c.b16 %v617, %v617
      %v650 = vpack.c.b16 %v618, %v618
      %v651 = vpack.c.b16 %v619, %v619
      %v652 = vpack.c.b16 %v620, %v620
      %v653 = vpack.c.b16 %v621, %v621
      %vm686 = vcmask 125952
      %687 = vst.msk [vmem:[%s172] sm:$0xf] %vm686, %v622
      %688 = vst.msk [vmem:[%s172 + $0x4] sm:$0xf] %vm686, %v623
      %689 = vst.msk [vmem:[%s172 + $0x8] sm:$0xf] %vm686, %v624
      %690 = vst.msk [vmem:[%s172 + $0xc] sm:$0xf] %vm686, %v625
      %691 = vst.msk [vmem:[%s172 + $0x10] sm:$0xf] %vm686, %v626
      %692 = vst.msk [vmem:[%s172 + $0x14] sm:$0xf] %vm686, %v627
      %693 = vst.msk [vmem:[%s172 + $0x18] sm:$0xf] %vm686, %v628
      %694 = vst.msk [vmem:[%s172 + $0x1c] sm:$0xf] %vm686, %v629
      %695 = vst.msk [vmem:[%s172 + $0x20] sm:$0xf] %vm686, %v630
      %696 = vst.msk [vmem:[%s172 + $0x24] sm:$0xf] %vm686, %v631
      %697 = vst.msk [vmem:[%s172 + $0x28] sm:$0xf] %vm686, %v632
      %698 = vst.msk [vmem:[%s172 + $0x2c] sm:$0xf] %vm686, %v633
      %699 = vst.msk [vmem:[%s172 + $0x30] sm:$0xf] %vm686, %v634
      %700 = vst.msk [vmem:[%s172 + $0x34] sm:$0xf] %vm686, %v635
      %701 = vst.msk [vmem:[%s172 + $0x38] sm:$0xf] %vm686, %v636
      %702 = vst.msk [vmem:[%s172 + $0x3c] sm:$0xf] %vm686, %v637
      %703 = vst.msk [vmem:[%s172 + $0x40] sm:$0xf] %vm686, %v638
      %704 = vst.msk [vmem:[%s172 + $0x44] sm:$0xf] %vm686, %v639
      %705 = vst.msk [vmem:[%s172 + $0x48] sm:$0xf] %vm686, %v640
      %706 = vst.msk [vmem:[%s172 + $0x4c] sm:$0xf] %vm686, %v641
      %707 = vst.msk [vmem:[%s172 + $0x50] sm:$0xf] %vm686, %v642
      %708 = vst.msk [vmem:[%s172 + $0x54] sm:$0xf] %vm686, %v643
      %709 = vst.msk [vmem:[%s172 + $0x58] sm:$0xf] %vm686, %v644
      %710 = vst.msk [vmem:[%s172 + $0x5c] sm:$0xf] %vm686, %v645
      %711 = vst.msk [vmem:[%s172 + $0x60] sm:$0xf] %vm686, %v646
      %712 = vst.msk [vmem:[%s172 + $0x64] sm:$0xf] %vm686, %v647
      %713 = vst.msk [vmem:[%s172 + $0x68] sm:$0xf] %vm686, %v648
      %714 = vst.msk [vmem:[%s172 + $0x6c] sm:$0xf] %vm686, %v649
      %715 = vst.msk [vmem:[%s172 + $0x70] sm:$0xf] %vm686, %v650
      %716 = vst.msk [vmem:[%s172 + $0x74] sm:$0xf] %vm686, %v651
      %717 = vst.msk [vmem:[%s172 + $0x78] sm:$0xf] %vm686, %v652
      %718 = vst.msk [vmem:[%s172 + $0x7c] sm:$0xf] %vm686, %v653
      %s719 = smul.u32 32, %s14
      %p720 = scmp.lt.s32.totalorder %s719, 63
      %s721 = scalar_select %p720, %s719, 63
      %s722 = smul.addr %s721, 4
      %s723 = scalar_lea.vmem %s3, %s722
      // Predicated region
      $region33: #{deeplab_forward.8} parent=31 // pred_check
        %p724 = pneg %p100
      $region34: #{deeplab_forward.8} parent=31 // pred_check_branch
        %726 = sbr.rel (%p724) target = $region36
      $region35: #{deeplab_forward.8} parent=31 // pred_region
        %s727 = smul.u32 32, %s14
      $region36: #{deeplab_forward.8} parent=31 // pred_fallthru
        _
    $region32: #{deeplab_forward.8} parent=5 // pred_fallthru
      _
    %p728 = scmp.le.s32.totalorder 2, %s9
    // Predicated region
    $region37: #{deeplab_forward.8} parent=5 // pred_check
      %p729 = pneg %p728
    $region38: #{deeplab_forward.8} parent=5 // pred_check_branch
      %731 = sbr.rel (%p729) target = $region40
    $region39: #{deeplab_forward.8} parent=5 // pred_region
      %s732 = ssub.s32 %s9, 2
      // Predicated region
      $region41: #{deeplab_forward.8} parent=39 // pred_check
        %p733 = pneg %p106
      $region42: #{deeplab_forward.8} parent=39 // pred_check_branch
        %735 = sbr.rel (%p733) target = $region44
      $region43: #{deeplab_forward.8} parent=39 // pred_region
        %s736 = smul.u32 32, %s15
        %p737 = scmp.lt.s32.totalorder %s736, 63
        %s738 = scalar_select %p737, %s736, 63
        %s739 = smul.addr %s738, 4
        %s740 = scalar_lea.vmem %s3, %s739
      $region44: #{deeplab_forward.8} parent=39 // pred_fallthru
        _
    $region40: #{deeplab_forward.8} parent=5 // pred_fallthru
      _
  $region6: #{deeplab_forward.8} parent=0 // loop_footer
    %s13 = sadd.s32 1, %s9
  $region7: #{deeplab_forward.8} parent=0 // loop_footer_branch
    %8 = sbr.rel target = $region3
  $region8: #{deeplab_forward.8} parent=0 // loop_exit
    _

// kernel: deeplab_forward.9
$region0: #{deeplab_forward.9}
  #allocation0 [shape = 'u32[]', space=smem, size = 0x4, offset = 0x4, fixed_abs, tag = 'smem constant byte address 0x4 - core index']
  #allocation1 [shape = 'u32[144,128]{1,0:T(1,128)}', space=vmem, size = 0x12000, scoped, tag = 'internal scratch']
  %s0 = inlined_call_operand.vmem [shape: bf16[128,144], index: 0, kind: input, shape index: {}]
  %s1 = inlined_call_operand.vmem [shape: bf16[144,24], index: 1, kind: input, shape index: {}]
  %s2 = inlined_call_operand.vmem [shape: f32[1,24], index: 2, kind: input, shape index: {}]
  %s3 = inlined_call_operand.vmem [shape: bf16[128,24], index: 3, kind: output, shape index: {}]
  %s4 = sld [smem:[#allocation0]]
  $region45: #{deeplab_forward.9} parent=0
    _
  %s6 = ssub.s32 1, %s4
  %s7 = scalar_select 0, %s6, %s4
  loop: start=0, step=1, limit=4
  $region2: #{deeplab_forward.9} parent=0 // loop_pre_header
    _
  $region3: #{deeplab_forward.9} parent=0 // loop_header
    %s9 = sphi 0, %s13
    %p10 = scmp.ge.s32.totalorder %s9, 4
    %s19 = sphi 0, %s21
    %s22 = sphi 0, %s19
    %s23 = sphi 0, %s22
    %s39 = sphi 0, %s23
    %s43 = sphi 0, %s43
    %s45 = sphi 0, %s43
    %s46 = sphi 0, %s45
    %s60 = sphi 0, %s46
    %s64 = sphi 0, %s64
    %s66 = sphi 0, %s64
    %s67 = sphi 0, %s66
    %s81 = sphi 0, %s67
    %s87 = sphi 0, %s89
    %s90 = sphi 0, %s87
    %s91 = sphi 0, %s90
    %s107 = sphi 0, %s91
  $region4: #{deeplab_forward.9} parent=0 // loop_header_branch
    %12 = sbr.rel (%p10) target = $region8
  $region5: #{deeplab_forward.9} parent=0 // loop_body
    %s14 = ssub.s32 %s9, 1
    %s15 = ssub.s32 %s9, 2
    %s16 = sadd.s32 %s9, 1
    %s17 = ssub.s32 %s9, %s16
    %p18 = scmp.eq.s32.totalorder %s17, 0
    %s20 = sadd.s32 %s19, 1
    %s21 = scalar_select %p18, %s19, %s20
    %p24 = pneg %p18
    %p25 = scmp.eq.s32.totalorder %s9, 1
    %p26 = por %p24, %p25
    %p27 = scmp.ne.s32.totalorder %s19, %s22
    %p28 = scmp.eq.s32.totalorder %s9, 0
    %p29 = por %p27, %p28
    %p30 = scmp.ne.s32.totalorder %s19, %s22
    %p31 = scmp.eq.s32.totalorder %s14, 1
    %p32 = por %p30, %p31
    %p33 = scmp.ne.s32.totalorder %s22, %s23
    %p34 = scmp.eq.s32.totalorder %s14, 0
    %p35 = por %p33, %p34
    %p36 = scmp.ne.s32.totalorder %s22, %s23
    %p37 = scmp.eq.s32.totalorder %s15, 1
    %p38 = por %p36, %p37
    %p40 = scmp.ne.s32.totalorder %s23, %s39
    %p41 = scmp.eq.s32.totalorder %s15, 0
    %p42 = por %p40, %p41
    %s44 = sadd.s32 %s43, 1
    %p47 = scmp.eq.s32.totalorder %s9, 1
    %p48 = scmp.ne.s32.totalorder %s43, %s45
    %p49 = scmp.eq.s32.totalorder %s9, 0
    %p50 = por %p48, %p49
    %p51 = scmp.ne.s32.totalorder %s43, %s45
    %p52 = scmp.eq.s32.totalorder %s14, 1
    %p53 = por %p51, %p52
    %p54 = scmp.ne.s32.totalorder %s45, %s46
    %p55 = scmp.eq.s32.totalorder %s14, 0
    %p56 = por %p54, %p55
    %p57 = scmp.ne.s32.totalorder %s45, %s46
    %p58 = scmp.eq.s32.totalorder %s15, 1
    %p59 = por %p57, %p58
    %p61 = scmp.ne.s32.totalorder %s46, %s60
    %p62 = scmp.eq.s32.totalorder %s15, 0
    %p63 = por %p61, %p62
    %s65 = sadd.s32 %s64, 1
    %p68 = scmp.eq.s32.totalorder %s9, 1
    %p69 = scmp.ne.s32.totalorder %s64, %s66
    %p70 = scmp.eq.s32.totalorder %s9, 0
    %p71 = por %p69, %p70
    %p72 = scmp.ne.s32.totalorder %s64, %s66
    %p73 = scmp.eq.s32.totalorder %s14, 1
    %p74 = por %p72, %p73
    %p75 = scmp.ne.s32.totalorder %s66, %s67
    %p76 = scmp.eq.s32.totalorder %s14, 0
    %p77 = por %p75, %p76
    %p78 = scmp.ne.s32.totalorder %s66, %s67
    %p79 = scmp.eq.s32.totalorder %s15, 1
    %p80 = por %p78, %p79
    %p82 = scmp.ne.s32.totalorder %s67, %s81
    %p83 = scmp.eq.s32.totalorder %s15, 0
    %p84 = por %p82, %p83
    %s85 = ssub.s32 %s9, %s16
    %p86 = scmp.eq.s32.totalorder %s85, 0
    %s88 = sadd.s32 %s87, 1
    %s89 = scalar_select %p86, %s87, %s88
    %p92 = pneg %p86
    %p93 = scmp.eq.s32.totalorder %s9, 1
    %p94 = por %p92, %p93
    %p95 = scmp.ne.s32.totalorder %s87, %s90
    %p96 = scmp.eq.s32.totalorder %s9, 0
    %p97 = por %p95, %p96
    %p98 = scmp.ne.s32.totalorder %s87, %s90
    %p99 = scmp.eq.s32.totalorder %s14, 1
    %p100 = por %p98, %p99
    %p101 = scmp.ne.s32.totalorder %s90, %s91
    %p102 = scmp.eq.s32.totalorder %s14, 0
    %p103 = por %p101, %p102
    %p104 = scmp.ne.s32.totalorder %s90, %s91
    %p105 = scmp.eq.s32.totalorder %s15, 1
    %p106 = por %p104, %p105
    %p108 = scmp.ne.s32.totalorder %s91, %s107
    %p109 = scmp.eq.s32.totalorder %s15, 0
    %p110 = por %p108, %p109
    %p111 = scmp.le.s32.totalorder 1, %s9
    %p112 = scmp.lt.s32.totalorder %s9, 3
    %p113 = pnand %p111, %p112
    %p114 = pneg %p113
    // Predicated region
    $region9: #{deeplab_forward.9} parent=5 // pred_check
      _
    $region10: #{deeplab_forward.9} parent=5 // pred_check_branch
      %116 = sbr.rel (%p113) target = $region12
    $region11: #{deeplab_forward.9} parent=5 // pred_region
      %s117 = ssub.s32 %s9, 1
      // Predicated region
      $region13: #{deeplab_forward.9} parent=11 // pred_check
        %p118 = pneg %p56
      $region14: #{deeplab_forward.9} parent=11 // pred_check_branch
        %120 = sbr.rel (%p118) target = $region16
      $region15: #{deeplab_forward.9} parent=11 // pred_region
        _
      $region16: #{deeplab_forward.9} parent=11 // pred_fallthru
        _
      // Predicated region
      $region17: #{deeplab_forward.9} parent=11 // pred_check
        %p121 = pneg %p77
      $region18: #{deeplab_forward.9} parent=11 // pred_check_branch
        %123 = sbr.rel (%p121) target = $region20
      $region19: #{deeplab_forward.9} parent=11 // pred_region
        _
      $region20: #{deeplab_forward.9} parent=11 // pred_fallthru
        _
    $region12: #{deeplab_forward.9} parent=5 // pred_fallthru
      _
    %p124 = scmp.lt.s32.totalorder %s9, 2
    // Predicated region
    $region21: #{deeplab_forward.9} parent=5 // pred_check
      %p125 = pneg %p124
    $region22: #{deeplab_forward.9} parent=5 // pred_check_branch
      %127 = sbr.rel (%p125) target = $region24
    $region23: #{deeplab_forward.9} parent=5 // pred_region
      // Predicated region
      $region25: #{deeplab_forward.9} parent=23 // pred_check
        %p128 = pneg %p29
      $region26: #{deeplab_forward.9} parent=23 // pred_check_branch
        %130 = sbr.rel (%p128) target = $region28
      $region27: #{deeplab_forward.9} parent=23 // pred_region
        %s131 = smul.u32 8, %s9
        %p132 = scmp.lt.s32.totalorder %s131, 15
        %s133 = scalar_select %p132, %s131, 15
        %s134 = smul.addr %s133, 2
        %s135 = smul.addr %s134, 4
        %s136 = scalar_lea.vmem %s0, %s135
        %s137 = smul.u32 8, %s9
      $region28: #{deeplab_forward.9} parent=23 // pred_fallthru
        _
    $region24: #{deeplab_forward.9} parent=5 // pred_fallthru
      _
    %p138 = scmp.le.s32.totalorder 1, %s9
    %p139 = scmp.lt.s32.totalorder %s9, 3
    %p140 = pnand %p138, %p139
    %p141 = pneg %p140
    // Predicated region
    $region29: #{deeplab_forward.9} parent=5 // pred_check
      _
    $region30: #{deeplab_forward.9} parent=5 // pred_check_branch
      %143 = sbr.rel (%p140) target = $region32
    $region31: #{deeplab_forward.9} parent=5 // pred_region
      %s144 = ssub.s32 %s9, 1
      %s145 = smul.u32 8, %s14
      %p146 = scmp.lt.s32.totalorder %s145, 15
      %s147 = scalar_select %p146, %s145, 15
      %s148 = smul.addr %s147, 2
      %s149 = smul.addr %s148, 4
      %s150 = scalar_lea.vmem %s0, %s149
      %p151 = pneg %p35
      %p152 = pneg %p32
      %p153 = pneg %p56
      %p154 = pneg %p53
      %p155 = pneg %p77
      %p156 = pneg %p74
      %p157 = pneg %p103
      %p158 = pneg %p100
      %s159 = smul.u32 8, %s14
      %p160 = scmp.lt.s32.totalorder %s159, 15
      %s161 = scalar_select %p160, %s159, 15
      %s162 = smul.addr %s161, 4
      %s163 = scalar_lea.vmem %s3, %s162
      %s164 = smul.u32 8, %s14
      %p165 = scmp.lt.s32.totalorder %s164, 15
      %s166 = scalar_select %p165, %s164, 15
      %s167 = smul.addr %s166, 2
      %s168 = smul.addr %s167, 4
      %s169 = scalar_lea.vmem %s0, %s168
      %s170 = smul.u32 8, %s14
      %s171 = smul.u32 8, %s14
      %p172 = scmp.lt.s32.totalorder %s171, 15
      %s173 = scalar_select %p172, %s171, 15
      %s174 = smul.addr %s173, 4
      %s175 = scalar_lea.vmem %s3, %s174
      %s176 = smul.u32 8, %s14
      %v178 = vld [vmem:[%s169] sm:$0xff]
      %v179 = vld [vmem:[%s169 + $0x8] sm:$0xff]
      %v180 = vld [vmem:[%s169 + $0x10] sm:$0xff]
      %v181 = vld [vmem:[%s169 + $0x18] sm:$0xff]
      %v182 = vld [vmem:[%s169 + $0x20] sm:$0xff]
      %v183 = vld [vmem:[%s169 + $0x28] sm:$0xff]
      %v184 = vld [vmem:[%s169 + $0x30] sm:$0xff]
      %v185 = vld [vmem:[%s169 + $0x38] sm:$0xff]
      %v186 = vld [vmem:[%s1] sm:$0xf]
      %v187 = vld [vmem:[%s1 + $0x4] sm:$0xf]
      %v188 = vld [vmem:[%s1 + $0x8] sm:$0xf]
      %v189 = vld [vmem:[%s1 + $0xc] sm:$0xf]
      %v190 = vld [vmem:[%s1 + $0x10] sm:$0xf]
      %v191 = vld [vmem:[%s1 + $0x14] sm:$0xf]
      %v192 = vld [vmem:[%s1 + $0x18] sm:$0xf]
      %v193 = vld [vmem:[%s1 + $0x1c] sm:$0xf]
      %v194 = vld [vmem:[%s1 + $0x20] sm:$0xf]
      %v195 = vld [vmem:[%s1 + $0x24] sm:$0xf]
      %v196 = vld [vmem:[%s1 + $0x28] sm:$0xf]
      %v197 = vld [vmem:[%s1 + $0x2c] sm:$0xf]
      %v198 = vld [vmem:[%s1 + $0x30] sm:$0xf]
      %v199 = vld [vmem:[%s1 + $0x34] sm:$0xf]
      %v200 = vld [vmem:[%s1 + $0x38] sm:$0xf]
      %v201 = vld [vmem:[%s1 + $0x3c] sm:$0xf]
      %v202 = vld [vmem:[%s1 + $0x40] sm:$0xf]
      %v203 = vld [vmem:[%s1 + $0x44] sm:$0xf]
      %v204 = vld [vmem:[%s2] sm:$0x1]
      %v206 = vlaneseq
      %v207 = vshrl.u32 %v206, 7
      %v208 = vsub.s32 0, %v207
      %v209 = vrot.slane %v204, %v208
      %v219 = vunpack.c.l.b16 %v178
      %v220 = vunpack.c.h.b16 %v178
      %v221 = vunpack.c.l.b16 %v179
      %v222 = vunpack.c.h.b16 %v179
      %v223 = vunpack.c.l.b16 %v180
      %v224 = vunpack.c.h.b16 %v180
      %v225 = vunpack.c.l.b16 %v181
      %v226 = vunpack.c.h.b16 %v181
      %v227 = vunpack.c.l.b16 %v182
      %v228 = vunpack.c.h.b16 %v182
      %v229 = vunpack.c.l.b16 %v183
      %v230 = vunpack.c.h.b16 %v183
      %v231 = vunpack.c.l.b16 %v184
      %v232 = vunpack.c.h.b16 %v184
      %v233 = vunpack.c.l.b16 %v185
      %v234 = vunpack.c.h.b16 %v185
      %v235 = vpack.c.b16 %v221, %v219
      %v236 = vpack.c.b16 %v222, %v220
      %v237 = vpack.c.b16 %v225, %v223
      %v238 = vpack.c.b16 %v226, %v224
      %v239 = vpack.c.b16 %v229, %v227
      %v240 = vpack.c.b16 %v230, %v228
      %v241 = vpack.c.b16 %v233, %v231
      %v242 = vpack.c.b16 %v234, %v232
      %v265 = vunpack.c.l.b16 %v186
      %v266 = vunpack.c.l.b16 %v187
      %v267 = vunpack.c.l.b16 %v188
      %v268 = vunpack.c.l.b16 %v189
      %v269 = vunpack.c.l.b16 %v190
      %v270 = vunpack.c.l.b16 %v191
      %v271 = vunpack.c.l.b16 %v192
      %v272 = vunpack.c.l.b16 %v193
      %v273 = vunpack.c.l.b16 %v194
      %v274 = vunpack.c.l.b16 %v195
      %v275 = vunpack.c.l.b16 %v196
      %v276 = vunpack.c.l.b16 %v197
      %v277 = vunpack.c.l.b16 %v198
      %v278 = vunpack.c.l.b16 %v199
      %v279 = vunpack.c.l.b16 %v200
      %v280 = vunpack.c.l.b16 %v201
      %v281 = vunpack.c.l.b16 %v202
      %v282 = vunpack.c.l.b16 %v203
      %v283 = vpack.c.b16 %v266, %v265
      %v284 = vpack.c.b16 %v268, %v267
      %v285 = vpack.c.b16 %v270, %v269
      %v286 = vpack.c.b16 %v272, %v271
      %v287 = vpack.c.b16 %v274, %v273
      %v288 = vpack.c.b16 %v276, %v275
      %v289 = vpack.c.b16 %v278, %v277
      %v290 = vpack.c.b16 %v280, %v279
      %v291 = vpack.c.b16 %v282, %v281
      %vm301 = vcmask 130048
      %v303 = vsel %vm301, %v236, 0
      %v306 = vsel %vm301, %v238, 0
      %v309 = vsel %vm301, %v240, 0
      %v312 = vsel %vm301, %v242, 0
      %314 = vmatprep.subr.bf16.mxu0 0
      %315 = vmatpush1.bf16.msra.mxu0 %v283
      %316 = vmatprep.subr.bf16.mxu0 0
      %317 = vmatpush1.bf16.msra.mxu0 %v284
      %318 = vmatprep.subr.bf16.mxu0 0
      %319 = vmatpush1.bf16.msra.mxu0 %v285
      %320 = vmatprep.subr.bf16.mxu0 0
      %321 = vmatpush1.bf16.msra.mxu0 %v286
      %322 = vmatprep.subr.bf16.mxu0 0
      %323 = vmatpush1.bf16.msra.mxu0 %v287
      %324 = vmatprep.subr.bf16.mxu0 0
      %325 = vmatpush1.bf16.msra.mxu0 %v288
      %326 = vmatprep.subr.bf16.mxu0 0
      %327 = vmatpush1.bf16.msra.mxu0 %v289
      %328 = vmatprep.subr.bf16.mxu0 0
      %329 = vmatpush1.bf16.msra.mxu0 %v290
      %330 = vmatprep.subr.bf16.mxu0 0
      %331 = vmatpush1.bf16.msra.mxu0 %v291
      %332 = vmatprep.subr.bf16.mxu0 0
      %333 = vmatpush1.bf16.msra.mxu0 0
      %334 = vmatprep.subr.bf16.mxu0 0
      %335 = vmatpush1.bf16.msra.mxu0 0
      %336 = vmatprep.subr.bf16.mxu0 0
      %337 = vmatpush1.bf16.msra.mxu0 0
      %338 = vmatprep.subr.bf16.mxu0 0
      %339 = vmatpush1.bf16.msra.mxu0 0
      %340 = vmatprep.subr.bf16.mxu0 0
      %341 = vmatpush1.bf16.msra.mxu0 0
      %342 = vmatprep.subr.bf16.mxu0 0
      %343 = vmatpush1.bf16.msra.mxu0 0
      %344 = vmatprep.subr.bf16.mxu0 0
      %345 = vmatpush1.bf16.msra.mxu0 0
      %346 = vmatprep.mubr.bf16.mxu0 %v303
      %347 = vmatmul.mubr.bf16.gmra.mrb[0].mxu0 %v235
      %v348 = vpop.f32.mrb[0].mxu0
      %v349 = vadd.f32 %v209, %v348
      %v350 = vpop.f32.mrb[0].mxu0
      %v351 = vpop.f32.mrb[0].mxu0
      %v352 = vadd.f32 %v209, %v351
      %v353 = vpop.f32.mrb[0].mxu0
      %354 = vmatprep.mubr.bf16.mxu0 %v306
      %355 = vmatmul.mubr.bf16.gmra.mrb[0].mxu0 %v237
      %v356 = vpop.f32.mrb[0].mxu0
      %v357 = vadd.f32 %v209, %v356
      %v358 = vpop.f32.mrb[0].mxu0
      %v359 = vpop.f32.mrb[0].mxu0
      %v360 = vadd.f32 %v209, %v359
      %v361 = vpop.f32.mrb[0].mxu0
      %362 = vmatprep.mubr.bf16.mxu0 %v309
      %363 = vmatmul.mubr.bf16.gmra.mrb[0].mxu0 %v239
      %v364 = vpop.f32.mrb[0].mxu0
      %v365 = vadd.f32 %v209, %v364
      %v366 = vpop.f32.mrb[0].mxu0
      %v367 = vpop.f32.mrb[0].mxu0
      %v368 = vadd.f32 %v209, %v367
      %v369 = vpop.f32.mrb[0].mxu0
      %370 = vmatprep.mubr.bf16.mxu0 %v312
      %371 = vmatmul.mubr.bf16.gmra.mrb[0].mxu0 %v241
      %v372 = vpop.f32.mrb[0].mxu0
      %v373 = vadd.f32 %v209, %v372
      %v374 = vpop.f32.mrb[0].mxu0
      %v375 = vpop.f32.mrb[0].mxu0
      %v376 = vadd.f32 %v209, %v375
      %v377 = vpop.f32.mrb[0].mxu0
      %378 = vdwg.mxu0
      %v379 = vmax.f32 %v349, 0.0
      %v380 = vmax.f32 %v352, 0.0
      %v381 = vmax.f32 %v357, 0.0
      %v382 = vmax.f32 %v360, 0.0
      %v383 = vmax.f32 %v365, 0.0
      %v384 = vmax.f32 %v368, 0.0
      %v385 = vmax.f32 %v373, 0.0
      %v386 = vmax.f32 %v376, 0.0
      %v387 = vpack.c.bf16 %v380, %v379
      %v388 = vpack.c.bf16 %v382, %v381
      %v389 = vpack.c.bf16 %v384, %v383
      %v390 = vpack.c.bf16 %v386, %v385
      %v395 = vunpack.c.l.b16 %v387
      %v396 = vunpack.c.h.b16 %v387
      %v397 = vunpack.c.l.b16 %v388
      %v398 = vunpack.c.h.b16 %v388
      %v399 = vunpack.c.l.b16 %v389
      %v400 = vunpack.c.h.b16 %v389
      %v401 = vunpack.c.l.b16 %v390
      %v402 = vunpack.c.h.b16 %v390
      %v403 = vpack.c.b16 %v395, %v395
      %v404 = vpack.c.b16 %v396, %v396
      %v405 = vpack.c.b16 %v397, %v397
      %v406 = vpack.c.b16 %v398, %v398
      %v407 = vpack.c.b16 %v399, %v399
      %v408 = vpack.c.b16 %v400, %v400
      %v409 = vpack.c.b16 %v401, %v401
      %v410 = vpack.c.b16 %v402, %v402
      %vm419 = vcmask 191488
      %420 = vst.msk [vmem:[%s175] sm:$0xf] %vm419, %v403
      %421 = vst.msk [vmem:[%s175 + $0x4] sm:$0xf] %vm419, %v404
      %422 = vst.msk [vmem:[%s175 + $0x8] sm:$0xf] %vm419, %v405
      %423 = vst.msk [vmem:[%s175 + $0xc] sm:$0xf] %vm419, %v406
      %424 = vst.msk [vmem:[%s175 + $0x10] sm:$0xf] %vm419, %v407
      %425 = vst.msk [vmem:[%s175 + $0x14] sm:$0xf] %vm419, %v408
      %426 = vst.msk [vmem:[%s175 + $0x18] sm:$0xf] %vm419, %v409
      %427 = vst.msk [vmem:[%s175 + $0x1c] sm:$0xf] %vm419, %v410
      %s428 = smul.u32 8, %s14
      %p429 = scmp.lt.s32.totalorder %s428, 15
      %s430 = scalar_select %p429, %s428, 15
      %s431 = smul.addr %s430, 4
      %s432 = scalar_lea.vmem %s3, %s431
      // Predicated region
      $region33: #{deeplab_forward.9} parent=31 // pred_check
        %p433 = pneg %p100
      $region34: #{deeplab_forward.9} parent=31 // pred_check_branch
        %435 = sbr.rel (%p433) target = $region36
      $region35: #{deeplab_forward.9} parent=31 // pred_region
        %s436 = smul.u32 8, %s14
      $region36: #{deeplab_forward.9} parent=31 // pred_fallthru
        _
    $region32: #{deeplab_forward.9} parent=5 // pred_fallthru
      _
    %p437 = scmp.le.s32.totalorder 2, %s9
    // Predicated region
    $region37: #{deeplab_forward.9} parent=5 // pred_check
      %p438 = pneg %p437
    $region38: #{deeplab_forward.9} parent=5 // pred_check_branch
      %440 = sbr.rel (%p438) target = $region40
    $region39: #{deeplab_forward.9} parent=5 // pred_region
      %s441 = ssub.s32 %s9, 2
      // Predicated region
      $region41: #{deeplab_forward.9} parent=39 // pred_check
        %p442 = pneg %p106
      $region42: #{deeplab_forward.9} parent=39 // pred_check_branch
        %444 = sbr.rel (%p442) target = $region44
      $region43: #{deeplab_forward.9} parent=39 // pred_region
        %s445 = smul.u32 8, %s15
        %p446 = scmp.lt.s32.totalorder %s445, 15
        %s447 = scalar_select %p446, %s445, 15
        %s448 = smul.addr %s447, 4
        %s449 = scalar_lea.vmem %s3, %s448
      $region44: #{deeplab_forward.9} parent=39 // pred_fallthru
        _
    $region40: #{deeplab_forward.9} parent=5 // pred_fallthru
      _
  $region6: #{deeplab_forward.9} parent=0 // loop_footer
    %s13 = sadd.s32 1, %s9
  $region7: #{deeplab_forward.9} parent=0 // loop_footer_branch
    %8 = sbr.rel target = $region3
  $region8: #{deeplab_forward.9} parent=0 // loop_exit
    _

// kernel: deeplab_forward.11
$region0: #{deeplab_forward.11}
  #allocation0 [shape = 'u32[]', space=smem, size = 0x4, offset = 0x4, fixed_abs, tag = 'smem constant byte address 0x4 - core index']
  #allocation1 [shape = 'u32[144,128]{1,0:T(1,128)}', space=vmem, size = 0x12000, scoped, tag = 'internal scratch']
  %s0 = inlined_call_operand.vmem [shape: f32[8,2], index: 0, kind: input, shape index: {}]
  %s1 = inlined_call_operand.vmem [shape: f32[128,512], index: 1, kind: input, shape index: {}]
  %s2 = inlined_call_operand.vmem [shape: bf16[2,2,128], index: 2, kind: input, shape index: {}]
  %s3 = inlined_call_operand.vmem [shape: bf16[2,8,512], index: 3, kind: output, shape index: {}]
  %s4 = sld [smem:[#allocation0]]
  $region45: #{deeplab_forward.11} parent=0
    _
  %s6 = ssub.s32 1, %s4
  %s7 = scalar_select 0, %s6, %s4
  loop: start=0, step=1, limit=4
  $region2: #{deeplab_forward.11} parent=0 // loop_pre_header
    _
  $region3: #{deeplab_forward.11} parent=0 // loop_header
    %s9 = sphi 0, %s13
    %p10 = scmp.ge.s32.totalorder %s9, 4
    %s16 = sphi 0, %s28
    %s17 = sphi 0, %s24
    %s18 = sphi 0, %s16
    %s19 = sphi 0, %s17
    %s20 = sphi 0, %s18
    %s21 = sphi 0, %s19
    %s31 = sphi 0, %s33
    %s34 = sphi 0, %s31
    %s35 = sphi 0, %s34
    %s51 = sphi 0, %s35
    %s55 = sphi 0, %s55
    %s57 = sphi 0, %s55
    %s58 = sphi 0, %s57
    %s72 = sphi 0, %s58
    %s78 = sphi 0, %s80
    %s81 = sphi 0, %s78
    %s82 = sphi 0, %s81
    %s98 = sphi 0, %s82
    %s106 = sphi 0, %s108
    %s109 = sphi 0, %s106
    %s110 = sphi 0, %s109
    %s126 = sphi 0, %s110
  $region4: #{deeplab_forward.11} parent=0 // loop_header_branch
    %12 = sbr.rel (%p10) target = $region8
  $region5: #{deeplab_forward.11} parent=0 // loop_body
    %s14 = ssub.s32 %s9, 1
    %s15 = ssub.s32 %s9, 2
    %s22 = sadd.s32 1, %s17
    %p23 = scmp.ge.s32.totalorder %s22, 1
    %s24 = scalar_select %p23, 0, %s22
    %s25 = sadd.s32 1, %s16
    %s26 = scalar_select %p23, %s25, %s16
    %p27 = scmp.ge.s32.totalorder %s26, 2
    %s28 = scalar_select %p27, 0, %s26
    %s29 = ssub.s32 %s17, %s24
    %p30 = scmp.eq.s32.totalorder %s29, 0
    %s32 = sadd.s32 %s31, 1
    %s33 = scalar_select %p30, %s31, %s32
    %p36 = pneg %p30
    %p37 = scmp.eq.s32.totalorder %s9, 1
    %p38 = por %p36, %p37
    %p39 = scmp.ne.s32.totalorder %s31, %s34
    %p40 = scmp.eq.s32.totalorder %s9, 0
    %p41 = por %p39, %p40
    %p42 = scmp.ne.s32.totalorder %s31, %s34
    %p43 = scmp.eq.s32.totalorder %s14, 1
    %p44 = por %p42, %p43
    %p45 = scmp.ne.s32.totalorder %s34, %s35
    %p46 = scmp.eq.s32.totalorder %s14, 0
    %p47 = por %p45, %p46
    %p48 = scmp.ne.s32.totalorder %s34, %s35
    %p49 = scmp.eq.s32.totalorder %s15, 1
    %p50 = por %p48, %p49
    %p52 = scmp.ne.s32.totalorder %s35, %s51
    %p53 = scmp.eq.s32.totalorder %s15, 0
    %p54 = por %p52, %p53
    %s56 = sadd.s32 %s55, 1
    %p59 = scmp.eq.s32.totalorder %s9, 1
    %p60 = scmp.ne.s32.totalorder %s55, %s57
    %p61 = scmp.eq.s32.totalorder %s9, 0
    %p62 = por %p60, %p61
    %p63 = scmp.ne.s32.totalorder %s55, %s57
    %p64 = scmp.eq.s32.totalorder %s14, 1
    %p65 = por %p63, %p64
    %p66 = scmp.ne.s32.totalorder %s57, %s58
    %p67 = scmp.eq.s32.totalorder %s14, 0
    %p68 = por %p66, %p67
    %p69 = scmp.ne.s32.totalorder %s57, %s58
    %p70 = scmp.eq.s32.totalorder %s15, 1
    %p71 = por %p69, %p70
    %p73 = scmp.ne.s32.totalorder %s58, %s72
    %p74 = scmp.eq.s32.totalorder %s15, 0
    %p75 = por %p73, %p74
    %s76 = ssub.s32 %s16, %s28
    %p77 = scmp.eq.s32.totalorder %s76, 0
    %s79 = sadd.s32 %s78, 1
    %s80 = scalar_select %p77, %s78, %s79
    %p83 = pneg %p77
    %p84 = scmp.eq.s32.totalorder %s9, 1
    %p85 = por %p83, %p84
    %p86 = scmp.ne.s32.totalorder %s78, %s81
    %p87 = scmp.eq.s32.totalorder %s9, 0
    %p88 = por %p86, %p87
    %p89 = scmp.ne.s32.totalorder %s78, %s81
    %p90 = scmp.eq.s32.totalorder %s14, 1
    %p91 = por %p89, %p90
    %p92 = scmp.ne.s32.totalorder %s81, %s82
    %p93 = scmp.eq.s32.totalorder %s14, 0
    %p94 = por %p92, %p93
    %p95 = scmp.ne.s32.totalorder %s81, %s82
    %p96 = scmp.eq.s32.totalorder %s15, 1
    %p97 = por %p95, %p96
    %p99 = scmp.ne.s32.totalorder %s82, %s98
    %p100 = scmp.eq.s32.totalorder %s15, 0
    %p101 = por %p99, %p100
    %s102 = ssub.s32 %s16, %s28
    %s103 = ssub.s32 %s17, %s24
    %s104 = sor.u32 %s102, %s103
    %p105 = scmp.eq.s32.totalorder %s104, 0
    %s107 = sadd.s32 %s106, 1
    %s108 = scalar_select %p105, %s106, %s107
    %p111 = pneg %p105
    %p112 = scmp.eq.s32.totalorder %s9, 1
    %p113 = por %p111, %p112
    %p114 = scmp.ne.s32.totalorder %s106, %s109
    %p115 = scmp.eq.s32.totalorder %s9, 0
    %p116 = por %p114, %p115
    %p117 = scmp.ne.s32.totalorder %s106, %s109
    %p118 = scmp.eq.s32.totalorder %s14, 1
    %p119 = por %p117, %p118
    %p120 = scmp.ne.s32.totalorder %s109, %s110
    %p121 = scmp.eq.s32.totalorder %s14, 0
    %p122 = por %p120, %p121
    %p123 = scmp.ne.s32.totalorder %s109, %s110
    %p124 = scmp.eq.s32.totalorder %s15, 1
    %p125 = por %p123, %p124
    %p127 = scmp.ne.s32.totalorder %s110, %s126
    %p128 = scmp.eq.s32.totalorder %s15, 0
    %p129 = por %p127, %p128
    %p130 = scmp.le.s32.totalorder 1, %s9
    %p131 = scmp.lt.s32.totalorder %s9, 3
    %p132 = pnand %p130, %p131
    %p133 = pneg %p132
    // Predicated region
    $region9: #{deeplab_forward.11} parent=5 // pred_check
      _
    $region10: #{deeplab_forward.11} parent=5 // pred_check_branch
      %135 = sbr.rel (%p132) target = $region12
    $region11: #{deeplab_forward.11} parent=5 // pred_region
      %s136 = ssub.s32 %s9, 1
      // Predicated region
      $region13: #{deeplab_forward.11} parent=11 // pred_check
        %p137 = pneg %p47
      $region14: #{deeplab_forward.11} parent=11 // pred_check_branch
        %139 = sbr.rel (%p137) target = $region16
      $region15: #{deeplab_forward.11} parent=11 // pred_region
        %p140 = scmp.lt.s32.totalorder %s19, 0
        %s141 = scalar_select %p140, %s19, 0
        %s142 = smul.addr %s141, 8
        %s143 = scalar_lea.vmem %s0, %s142
      $region16: #{deeplab_forward.11} parent=11 // pred_fallthru
        _
      // Predicated region
      $region17: #{deeplab_forward.11} parent=11 // pred_check
        %p144 = pneg %p68
      $region18: #{deeplab_forward.11} parent=11 // pred_check_branch
        %146 = sbr.rel (%p144) target = $region20
      $region19: #{deeplab_forward.11} parent=11 // pred_region
        _
      $region20: #{deeplab_forward.11} parent=11 // pred_fallthru
        _
    $region12: #{deeplab_forward.11} parent=5 // pred_fallthru
      _
    %p147 = scmp.lt.s32.totalorder %s9, 2
    // Predicated region
    $region21: #{deeplab_forward.11} parent=5 // pred_check
      %p148 = pneg %p147
    $region22: #{deeplab_forward.11} parent=5 // pred_check_branch
      %150 = sbr.rel (%p148) target = $region24
    $region23: #{deeplab_forward.11} parent=5 // pred_region
      // Predicated region
      $region25: #{deeplab_forward.11} parent=23 // pred_check
        %p151 = pneg %p88
      $region26: #{deeplab_forward.11} parent=23 // pred_check_branch
        %153 = sbr.rel (%p151) target = $region28
      $region27: #{deeplab_forward.11} parent=23 // pred_region
        %p154 = scmp.lt.s32.totalorder %s16, 1
        %s155 = scalar_select %p154, %s16, 1
        %s156 = scalar_lea.vmem %s2, %s155
      $region28: #{deeplab_forward.11} parent=23 // pred_fallthru
        _
    $region24: #{deeplab_forward.11} parent=5 // pred_fallthru
      _
    %p157 = scmp.le.s32.totalorder 1, %s9
    %p158 = scmp.lt.s32.totalorder %s9, 3
    %p159 = pnand %p157, %p158
    %p160 = pneg %p159
    // Predicated region
    $region29: #{deeplab_forward.11} parent=5 // pred_check
      _
    $region30: #{deeplab_forward.11} parent=5 // pred_check_branch
      %162 = sbr.rel (%p159) target = $region32
    $region31: #{deeplab_forward.11} parent=5 // pred_region
      %s163 = ssub.s32 %s9, 1
      %p164 = scmp.lt.s32.totalorder %s19, 0
      %s165 = scalar_select %p164, %s19, 0
      %s166 = smul.addr %s165, 8
      %s167 = scalar_lea.vmem %s0, %s166
      %p168 = pneg %p47
      %p169 = pneg %p44
      %p170 = pneg %p68
      %p171 = pneg %p65
      %p172 = scmp.lt.s32.totalorder %s18, 1
      %s173 = scalar_select %p172, %s18, 1
      %s174 = scalar_lea.vmem %s2, %s173
      %p175 = pneg %p94
      %p176 = pneg %p91
      %p177 = pneg %p122
      %p178 = pneg %p119
      %p179 = scmp.lt.s32.totalorder %s18, 1
      %s180 = scalar_select %p179, %s18, 1
      %p181 = scmp.lt.s32.totalorder %s19, 0
      %s182 = scalar_select %p181, %s19, 0
      %s183 = smul.addr %s182, 4
      %s184 = smul.addr %s180, 4
      %s185 = sadd.s32 %s183, %s184
      %s186 = smul.addr %s185, 4
      %s187 = scalar_lea.vmem %s3, %s186
      %p188 = scmp.lt.s32.totalorder %s19, 0
      %s189 = scalar_select %p188, %s19, 0
      %s190 = smul.addr %s189, 8
      %s191 = scalar_lea.vmem %s0, %s190
      %p192 = scmp.lt.s32.totalorder %s18, 1
      %s193 = scalar_select %p192, %s18, 1
      %s194 = scalar_lea.vmem %s2, %s193
      %p195 = scmp.lt.s32.totalorder %s18, 1
      %s196 = scalar_select %p195, %s18, 1
      %p197 = scmp.lt.s32.totalorder %s19, 0
      %s198 = scalar_select %p197, %s19, 0
      %s199 = smul.addr %s198, 4
      %s200 = smul.addr %s196, 4
      %s201 = sadd.s32 %s199, %s200
      %s202 = smul.addr %s201, 4
      %s203 = scalar_lea.vmem %s3, %s202
      %v204 = vld [vmem:[%s194] sm:$0x1]
      %v205 = vunpack.c.l.bf16 %v204
      %v206 = vld [vmem:[%s191] sm:$0xff]
      %vm207 = vcmask 15360
      %v209 = vsel %vm207, %v206, 0
      %vm211 = vcmask 1041408
      %v213 = vsel %vm211, %v205, 0
      %215 = vmatprep.subr.mxu0 0.0
      %216 = vmatpush1.msra.mxu0 %v213
      %217 = vmatprep.subr.mxu0 0.0
      %218 = vmatpush1.msra.mxu0 0.0
      %219 = vmatprep.subr.mxu0 0.0
      %220 = vmatpush1.msra.mxu0 0.0
      %221 = vmatprep.subr.mxu0 0.0
      %222 = vmatpush1.msra.mxu0 0.0
      %223 = vmatprep.subr.mxu0 0.0
      %224 = vmatpush1.msra.mxu0 0.0
      %225 = vmatprep.subr.mxu0 0.0
      %226 = vmatpush1.msra.mxu0 0.0
      %227 = vmatprep.subr.mxu0 0.0
      %228 = vmatpush1.msra.mxu0 0.0
      %229 = vmatprep.subr.mxu0 0.0
      %230 = vmatpush1.msra.mxu0 0.0
      %231 = vmatprep.subr.mxu0 0.0
      %232 = vmatpush1.msra.mxu0 0.0
      %233 = vmatprep.subr.mxu0 0.0
      %234 = vmatpush1.msra.mxu0 0.0
      %235 = vmatprep.subr.mxu0 0.0
      %236 = vmatpush1.msra.mxu0 0.0
      %237 = vmatprep.subr.mxu0 0.0
      %238 = vmatpush1.msra.mxu0 0.0
      %239 = vmatprep.subr.mxu0 0.0
      %240 = vmatpush1.msra.mxu0 0.0
      %241 = vmatprep.subr.mxu0 0.0
      %242 = vmatpush1.msra.mxu0 0.0
      %243 = vmatprep.subr.mxu0 0.0
      %244 = vmatpush1.msra.mxu0 0.0
      %245 = vmatprep.subr.mxu0 0.0
      %246 = vmatpush1.msra.mxu0 0.0
      %247 = vmatprep.subr.mxu0 0.0
      %248 = vmatpush1.msra.mxu0 0.0
      %249 = vmatprep.subr.mxu0 0.0
      %250 = vmatpush1.msra.mxu0 0.0
      %251 = vmatprep.subr.mxu0 0.0
      %252 = vmatpush1.msra.mxu0 0.0
      %253 = vmatprep.subr.mxu0 0.0
      %254 = vmatpush1.msra.mxu0 0.0
      %255 = vmatprep.subr.mxu0 0.0
      %256 = vmatpush1.msra.mxu0 0.0
      %257 = vmatprep.subr.mxu0 0.0
      %258 = vmatpush1.msra.mxu0 0.0
      %259 = vmatprep.subr.mxu0 0.0
      %260 = vmatpush1.msra.mxu0 0.0
      %261 = vmatprep.subr.mxu0 0.0
      %262 = vmatpush1.msra.mxu0 0.0
      %263 = vmatprep.subr.mxu0 0.0
      %264 = vmatpush1.msra.mxu0 0.0
      %265 = vmatprep.subr.mxu0 0.0
      %266 = vmatpush1.msra.mxu0 0.0
      %267 = vmatprep.subr.mxu0 0.0
      %268 = vmatpush1.msra.mxu0 0.0
      %269 = vmatprep.subr.mxu0 0.0
      %270 = vmatpush1.msra.mxu0 0.0
      %271 = vmatprep.subr.mxu0 0.0
      %272 = vmatpush1.msra.mxu0 0.0
      %273 = vmatprep.subr.mxu0 0.0
      %274 = vmatpush1.msra.mxu0 0.0
      %275 = vmatprep.subr.mxu0 0.0
      %276 = vmatpush1.msra.mxu0 0.0
      %277 = vmatprep.subr.mxu0 0.0
      %278 = vmatpush1.msra.mxu0 0.0
      %279 = vmatprep.mubr.f32.mxu0 0.0
      %280 = vmatmul.mubr.f32.gmra.mrb[0].mxu0 %v209
      %v281 = vpop.f32.mrb[0].mxu0
      %v282 = vadd.f32 0.0, %v281
      %v283 = vpop.f32.mrb[0].mxu0
      %284 = vdwg.mxu0
      %v285 = vld [vmem:[%s1] sm:$0xff]
      %v286 = vld [vmem:[%s1 + $0x8] sm:$0xff]
      %v287 = vld [vmem:[%s1 + $0x10] sm:$0xff]
      %v288 = vld [vmem:[%s1 + $0x18] sm:$0xff]
      %v289 = vld [vmem:[%s1 + $0x20] sm:$0xff]
      %v290 = vld [vmem:[%s1 + $0x28] sm:$0xff]
      %v291 = vld [vmem:[%s1 + $0x30] sm:$0xff]
      %v292 = vld [vmem:[%s1 + $0x38] sm:$0xff]
      %v293 = vld [vmem:[%s1 + $0x40] sm:$0xff]
      %v294 = vld [vmem:[%s1 + $0x48] sm:$0xff]
      %v295 = vld [vmem:[%s1 + $0x50] sm:$0xff]
      %v296 = vld [vmem:[%s1 + $0x58] sm:$0xff]
      %v297 = vld [vmem:[%s1 + $0x60] sm:$0xff]
      %v298 = vld [vmem:[%s1 + $0x68] sm:$0xff]
      %v299 = vld [vmem:[%s1 + $0x70] sm:$0xff]
      %v300 = vld [vmem:[%s1 + $0x78] sm:$0xff]
      %v301 = vld [vmem:[%s1 + $0x80] sm:$0xff]
      %v302 = vld [vmem:[%s1 + $0x88] sm:$0xff]
      %v303 = vld [vmem:[%s1 + $0x90] sm:$0xff]
      %v304 = vld [vmem:[%s1 + $0x98] sm:$0xff]
      %v305 = vld [vmem:[%s1 + $0xa0] sm:$0xff]
      %v306 = vld [vmem:[%s1 + $0xa8] sm:$0xff]
      %v307 = vld [vmem:[%s1 + $0xb0] sm:$0xff]
      %v308 = vld [vmem:[%s1 + $0xb8] sm:$0xff]
      %v309 = vld [vmem:[%s1 + $0xc0] sm:$0xff]
      %v310 = vld [vmem:[%s1 + $0xc8] sm:$0xff]
      %v311 = vld [vmem:[%s1 + $0xd0] sm:$0xff]
      %v312 = vld [vmem:[%s1 + $0xd8] sm:$0xff]
      %v313 = vld [vmem:[%s1 + $0xe0] sm:$0xff]
      %v314 = vld [vmem:[%s1 + $0xe8] sm:$0xff]
      %v315 = vld [vmem:[%s1 + $0xf0] sm:$0xff]
      %v316 = vld [vmem:[%s1 + $0xf8] sm:$0xff]
      %v317 = vld [vmem:[%s1 + $0x100] sm:$0xff]
      %v318 = vld [vmem:[%s1 + $0x108] sm:$0xff]
      %v319 = vld [vmem:[%s1 + $0x110] sm:$0xff]
      %v320 = vld [vmem:[%s1 + $0x118] sm:$0xff]
      %v321 = vld [vmem:[%s1 + $0x120] sm:$0xff]
      %v322 = vld [vmem:[%s1 + $0x128] sm:$0xff]
      %v323 = vld [vmem:[%s1 + $0x130] sm:$0xff]
      %v324 = vld [vmem:[%s1 + $0x138] sm:$0xff]
      %v325 = vld [vmem:[%s1 + $0x140] sm:$0xff]
      %v326 = vld [vmem:[%s1 + $0x148] sm:$0xff]
      %v327 = vld [vmem:[%s1 + $0x150] sm:$0xff]
      %v328 = vld [vmem:[%s1 + $0x158] sm:$0xff]
      %v329 = vld [vmem:[%s1 + $0x160] sm:$0xff]
      %v330 = vld [vmem:[%s1 + $0x168] sm:$0xff]
      %v331 = vld [vmem:[%s1 + $0x170] sm:$0xff]
      %v332 = vld [vmem:[%s1 + $0x178] sm:$0xff]
      %v333 = vld [vmem:[%s1 + $0x180] sm:$0xff]
      %v334 = vld [vmem:[%s1 + $0x188] sm:$0xff]
      %v335 = vld [vmem:[%s1 + $0x190] sm:$0xff]
      %v336 = vld [vmem:[%s1 + $0x198] sm:$0xff]
      %v337 = vld [vmem:[%s1 + $0x1a0] sm:$0xff]
      %v338 = vld [vmem:[%s1 + $0x1a8] sm:$0xff]
      %v339 = vld [vmem:[%s1 + $0x1b0] sm:$0xff]
      %v340 = vld [vmem:[%s1 + $0x1b8] sm:$0xff]
      %v341 = vld [vmem:[%s1 + $0x1c0] sm:$0xff]
      %v342 = vld [vmem:[%s1 + $0x1c8] sm:$0xff]
      %v343 = vld [vmem:[%s1 + $0x1d0] sm:$0xff]
      %v344 = vld [vmem:[%s1 + $0x1d8] sm:$0xff]
      %v345 = vld [vmem:[%s1 + $0x1e0] sm:$0xff]
      %v346 = vld [vmem:[%s1 + $0x1e8] sm:$0xff]
      %v347 = vld [vmem:[%s1 + $0x1f0] sm:$0xff]
      %v348 = vld [vmem:[%s1 + $0x1f8] sm:$0xff]
      %349 = vmatprep.subr.mxu0 %v286
      %350 = vmatpush1.msra.mxu0 %v285
      %351 = vmatprep.subr.mxu0 %v290
      %352 = vmatpush1.msra.mxu0 %v289
      %353 = vmatprep.subr.mxu0 %v294
      %354 = vmatpush1.msra.mxu0 %v293
      %355 = vmatprep.subr.mxu0 %v298
      %356 = vmatpush1.msra.mxu0 %v297
      %357 = vmatprep.subr.mxu0 %v302
      %358 = vmatpush1.msra.mxu0 %v301
      %359 = vmatprep.subr.mxu0 %v306
      %360 = vmatpush1.msra.mxu0 %v305
      %361 = vmatprep.subr.mxu0 %v310
      %362 = vmatpush1.msra.mxu0 %v309
      %363 = vmatprep.subr.mxu0 %v314
      %364 = vmatpush1.msra.mxu0 %v313
      %365 = vmatprep.subr.mxu0 %v318
      %366 = vmatpush1.msra.mxu0 %v317
      %367 = vmatprep.subr.mxu0 %v322
      %368 = vmatpush1.msra.mxu0 %v321
      %369 = vmatprep.subr.mxu0 %v326
      %370 = vmatpush1.msra.mxu0 %v325
      %371 = vmatprep.subr.mxu0 %v330
      %372 = vmatpush1.msra.mxu0 %v329
      %373 = vmatprep.subr.mxu0 %v334
      %374 = vmatpush1.msra.mxu0 %v333
      %375 = vmatprep.subr.mxu0 %v338
      %376 = vmatpush1.msra.mxu0 %v337
      %377 = vmatprep.subr.mxu0 %v342
      %378 = vmatpush1.msra.mxu0 %v341
      %379 = vmatprep.subr.mxu0 %v346
      %380 = vmatpush1.msra.mxu0 %v345
      %381 = vmatprep.subr.mxu0 0.0
      %382 = vmatpush1.msra.mxu0 0.0
      %383 = vmatprep.subr.mxu0 0.0
      %384 = vmatpush1.msra.mxu0 0.0
      %385 = vmatprep.subr.mxu0 0.0
      %386 = vmatpush1.msra.mxu0 0.0
      %387 = vmatprep.subr.mxu0 0.0
      %388 = vmatpush1.msra.mxu0 0.0
      %389 = vmatprep.subr.mxu0 0.0
      %390 = vmatpush1.msra.mxu0 0.0
      %391 = vmatprep.subr.mxu0 0.0
      %392 = vmatpush1.msra.mxu0 0.0
      %393 = vmatprep.subr.mxu0 0.0
      %394 = vmatpush1.msra.mxu0 0.0
      %395 = vmatprep.subr.mxu0 0.0
      %396 = vmatpush1.msra.mxu0 0.0
      %397 = vmatprep.subr.mxu0 0.0
      %398 = vmatpush1.msra.mxu0 0.0
      %399 = vmatprep.subr.mxu0 0.0
      %400 = vmatpush1.msra.mxu0 0.0
      %401 = vmatprep.subr.mxu0 0.0
      %402 = vmatpush1.msra.mxu0 0.0
      %403 = vmatprep.subr.mxu0 0.0
      %404 = vmatpush1.msra.mxu0 0.0
      %405 = vmatprep.subr.mxu0 0.0
      %406 = vmatpush1.msra.mxu0 0.0
      %407 = vmatprep.subr.mxu0 0.0
      %408 = vmatpush1.msra.mxu0 0.0
      %409 = vmatprep.subr.mxu0 0.0
      %410 = vmatpush1.msra.mxu0 0.0
      %411 = vmatprep.subr.mxu0 0.0
      %412 = vmatpush1.msra.mxu0 0.0
      %413 = vmatprep.mubr.f32.mxu0 0.0
      %414 = vmatmul.mubr.f32.gmra.mrb[0].mxu0 %v282
      %v415 = vpop.f32.mrb[0].mxu0
      %v416 = vadd.f32 0.0, %v415
      %v417 = vpop.f32.mrb[0].mxu0
      %v418 = vadd.f32 0.0, %v417
      %419 = vdwg.mxu0
      %420 = vmatprep.subr.mxu0 %v288
      %421 = vmatpush1.msra.mxu0 %v287
      %422 = vmatprep.subr.mxu0 %v292
      %423 = vmatpush1.msra.mxu0 %v291
      %424 = vmatprep.subr.mxu0 %v296
      %425 = vmatpush1.msra.mxu0 %v295
      %426 = vmatprep.subr.mxu0 %v300
      %427 = vmatpush1.msra.mxu0 %v299
      %428 = vmatprep.subr.mxu0 %v304
      %429 = vmatpush1.msra.mxu0 %v303
      %430 = vmatprep.subr.mxu0 %v308
      %431 = vmatpush1.msra.mxu0 %v307
      %432 = vmatprep.subr.mxu0 %v312
      %433 = vmatpush1.msra.mxu0 %v311
      %434 = vmatprep.subr.mxu0 %v316
      %435 = vmatpush1.msra.mxu0 %v315
      %436 = vmatprep.subr.mxu0 %v320
      %437 = vmatpush1.msra.mxu0 %v319
      %438 = vmatprep.subr.mxu0 %v324
      %439 = vmatpush1.msra.mxu0 %v323
      %440 = vmatprep.subr.mxu0 %v328
      %441 = vmatpush1.msra.mxu0 %v327
      %442 = vmatprep.subr.mxu0 %v332
      %443 = vmatpush1.msra.mxu0 %v331
      %444 = vmatprep.subr.mxu0 %v336
      %445 = vmatpush1.msra.mxu0 %v335
      %446 = vmatprep.subr.mxu0 %v340
      %447 = vmatpush1.msra.mxu0 %v339
      %448 = vmatprep.subr.mxu0 %v344
      %449 = vmatpush1.msra.mxu0 %v343
      %450 = vmatprep.subr.mxu0 %v348
      %451 = vmatpush1.msra.mxu0 %v347
      %452 = vmatprep.subr.mxu0 0.0
      %453 = vmatpush1.msra.mxu0 0.0
      %454 = vmatprep.subr.mxu0 0.0
      %455 = vmatpush1.msra.mxu0 0.0
      %456 = vmatprep.subr.mxu0 0.0
      %457 = vmatpush1.msra.mxu0 0.0
      %458 = vmatprep.subr.mxu0 0.0
      %459 = vmatpush1.msra.mxu0 0.0
      %460 = vmatprep.subr.mxu0 0.0
      %461 = vmatpush1.msra.mxu0 0.0
      %462 = vmatprep.subr.mxu0 0.0
      %463 = vmatpush1.msra.mxu0 0.0
      %464 = vmatprep.subr.mxu0 0.0
      %465 = vmatpush1.msra.mxu0 0.0
      %466 = vmatprep.subr.mxu0 0.0
      %467 = vmatpush1.msra.mxu0 0.0
      %468 = vmatprep.subr.mxu0 0.0
      %469 = vmatpush1.msra.mxu0 0.0
      %470 = vmatprep.subr.mxu0 0.0
      %471 = vmatpush1.msra.mxu0 0.0
      %472 = vmatprep.subr.mxu0 0.0
      %473 = vmatpush1.msra.mxu0 0.0
      %474 = vmatprep.subr.mxu0 0.0
      %475 = vmatpush1.msra.mxu0 0.0
      %476 = vmatprep.subr.mxu0 0.0
      %477 = vmatpush1.msra.mxu0 0.0
      %478 = vmatprep.subr.mxu0 0.0
      %479 = vmatpush1.msra.mxu0 0.0
      %480 = vmatprep.subr.mxu0 0.0
      %481 = vmatpush1.msra.mxu0 0.0
      %482 = vmatprep.subr.mxu0 0.0
      %483 = vmatpush1.msra.mxu0 0.0
      %484 = vmatprep.mubr.f32.mxu0 0.0
      %485 = vmatmul.mubr.f32.gmra.mrb[0].mxu0 %v282
      %v486 = vpop.f32.mrb[0].mxu0
      %v487 = vadd.f32 0.0, %v486
      %v488 = vpop.f32.mrb[0].mxu0
      %v489 = vadd.f32 0.0, %v488
      %490 = vdwg.mxu0
      %v491 = vpack.c.bf16 %v416, %v416
      %v492 = vpack.c.bf16 %v418, %v418
      %v493 = vpack.c.bf16 %v487, %v487
      %v494 = vpack.c.bf16 %v489, %v489
      %v499 = vunpack.c.l.b16 %v491
      %v500 = vunpack.c.l.b16 %v492
      %v501 = vunpack.c.l.b16 %v493
      %v502 = vunpack.c.l.b16 %v494
      %v503 = vpack.c.b16 %v500, %v499
      %v504 = vpack.c.b16 %v502, %v501
      %507 = vst [vmem:[%s203] sm:$0xff] %v503
      %508 = vst [vmem:[%s203 + $0x8] sm:$0xff] %v504
      %p509 = scmp.lt.s32.totalorder %s18, 1
      %s510 = scalar_select %p509, %s18, 1
      %p511 = scmp.lt.s32.totalorder %s19, 0
      %s512 = scalar_select %p511, %s19, 0
      %s513 = smul.addr %s512, 4
      %s514 = smul.addr %s510, 4
      %s515 = sadd.s32 %s513, %s514
      %s516 = smul.addr %s515, 4
      %s517 = scalar_lea.vmem %s3, %s516
      // Predicated region
      $region33: #{deeplab_forward.11} parent=31 // pred_check
        %p518 = pneg %p119
      $region34: #{deeplab_forward.11} parent=31 // pred_check_branch
        %520 = sbr.rel (%p518) target = $region36
      $region35: #{deeplab_forward.11} parent=31 // pred_region
        _
      $region36: #{deeplab_forward.11} parent=31 // pred_fallthru
        _
    $region32: #{deeplab_forward.11} parent=5 // pred_fallthru
      _
    %p521 = scmp.le.s32.totalorder 2, %s9
    // Predicated region
    $region37: #{deeplab_forward.11} parent=5 // pred_check
      %p522 = pneg %p521
    $region38: #{deeplab_forward.11} parent=5 // pred_check_branch
      %524 = sbr.rel (%p522) target = $region40
    $region39: #{deeplab_forward.11} parent=5 // pred_region
      %s525 = ssub.s32 %s9, 2
      // Predicated region
      $region41: #{deeplab_forward.11} parent=39 // pred_check
        %p526 = pneg %p125
      $region42: #{deeplab_forward.11} parent=39 // pred_check_branch
        %528 = sbr.rel (%p526) target = $region44
      $region43: #{deeplab_forward.11} parent=39 // pred_region
        %p529 = scmp.lt.s32.totalorder %s20, 1
        %s530 = scalar_select %p529, %s20, 1
        %p531 = scmp.lt.s32.totalorder %s21, 0
        %s532 = scalar_select %p531, %s21, 0
        %s533 = smul.addr %s532, 4
        %s534 = smul.addr %s530, 4
        %s535 = sadd.s32 %s533, %s534
        %s536 = smul.addr %s535, 4
        %s537 = scalar_lea.vmem %s3, %s536
      $region44: #{deeplab_forward.11} parent=39 // pred_fallthru
        _
    $region40: #{deeplab_forward.11} parent=5 // pred_fallthru
      _
  $region6: #{deeplab_forward.11} parent=0 // loop_footer
    %s13 = sadd.s32 1, %s9
  $region7: #{deeplab_forward.11} parent=0 // loop_footer_branch
    %8 = sbr.rel target = $region3
  $region8: #{deeplab_forward.11} parent=0 // loop_exit
    _

// kernel: deeplab_forward.10
$region0: #{deeplab_forward.10}
  #allocation0 [shape = 'u32[]', space=smem, size = 0x4, offset = 0x4, fixed_abs, tag = 'smem constant byte address 0x4 - core index']
  #allocation1 [shape = 'u32[144,128]{1,0:T(1,128)}', space=vmem, size = 0x12000, scoped, tag = 'internal scratch']
  %s0 = inlined_call_operand.vmem [shape: bf16[128,24], index: 0, kind: input, shape index: {}]
  %s1 = inlined_call_operand.vmem [shape: bf16[24,48], index: 1, kind: input, shape index: {}]
  %s2 = inlined_call_operand.vmem [shape: f32[1,48], index: 2, kind: input, shape index: {}]
  %s3 = inlined_call_operand.vmem [shape: bf16[128,48], index: 3, kind: output, shape index: {}]
  %s4 = sld [smem:[#allocation0]]
  $region45: #{deeplab_forward.10} parent=0
    _
  %s6 = ssub.s32 1, %s4
  %s7 = scalar_select 0, %s6, %s4
  loop: start=0, step=1, limit=4
  $region2: #{deeplab_forward.10} parent=0 // loop_pre_header
    _
  $region3: #{deeplab_forward.10} parent=0 // loop_header
    %s9 = sphi 0, %s13
    %p10 = scmp.ge.s32.totalorder %s9, 4
    %s19 = sphi 0, %s21
    %s22 = sphi 0, %s19
    %s23 = sphi 0, %s22
    %s39 = sphi 0, %s23
    %s43 = sphi 0, %s43
    %s45 = sphi 0, %s43
    %s46 = sphi 0, %s45
    %s60 = sphi 0, %s46
    %s64 = sphi 0, %s64
    %s66 = sphi 0, %s64
    %s67 = sphi 0, %s66
    %s81 = sphi 0, %s67
    %s87 = sphi 0, %s89
    %s90 = sphi 0, %s87
    %s91 = sphi 0, %s90
    %s107 = sphi 0, %s91
  $region4: #{deeplab_forward.10} parent=0 // loop_header_branch
    %12 = sbr.rel (%p10) target = $region8
  $region5: #{deeplab_forward.10} parent=0 // loop_body
    %s14 = ssub.s32 %s9, 1
    %s15 = ssub.s32 %s9, 2
    %s16 = sadd.s32 %s9, 1
    %s17 = ssub.s32 %s9, %s16
    %p18 = scmp.eq.s32.totalorder %s17, 0
    %s20 = sadd.s32 %s19, 1
    %s21 = scalar_select %p18, %s19, %s20
    %p24 = pneg %p18
    %p25 = scmp.eq.s32.totalorder %s9, 1
    %p26 = por %p24, %p25
    %p27 = scmp.ne.s32.totalorder %s19, %s22
    %p28 = scmp.eq.s32.totalorder %s9, 0
    %p29 = por %p27, %p28
    %p30 = scmp.ne.s32.totalorder %s19, %s22
    %p31 = scmp.eq.s32.totalorder %s14, 1
    %p32 = por %p30, %p31
    %p33 = scmp.ne.s32.totalorder %s22, %s23
    %p34 = scmp.eq.s32.totalorder %s14, 0
    %p35 = por %p33, %p34
    %p36 = scmp.ne.s32.totalorder %s22, %s23
    %p37 = scmp.eq.s32.totalorder %s15, 1
    %p38 = por %p36, %p37
    %p40 = scmp.ne.s32.totalorder %s23, %s39
    %p41 = scmp.eq.s32.totalorder %s15, 0
    %p42 = por %p40, %p41
    %s44 = sadd.s32 %s43, 1
    %p47 = scmp.eq.s32.totalorder %s9, 1
    %p48 = scmp.ne.s32.totalorder %s43, %s45
    %p49 = scmp.eq.s32.totalorder %s9, 0
    %p50 = por %p48, %p49
    %p51 = scmp.ne.s32.totalorder %s43, %s45
    %p52 = scmp.eq.s32.totalorder %s14, 1
    %p53 = por %p51, %p52
    %p54 = scmp.ne.s32.totalorder %s45, %s46
    %p55 = scmp.eq.s32.totalorder %s14, 0
    %p56 = por %p54, %p55
    %p57 = scmp.ne.s32.totalorder %s45, %s46
    %p58 = scmp.eq.s32.totalorder %s15, 1
    %p59 = por %p57, %p58
    %p61 = scmp.ne.s32.totalorder %s46, %s60
    %p62 = scmp.eq.s32.totalorder %s15, 0
    %p63 = por %p61, %p62
    %s65 = sadd.s32 %s64, 1
    %p68 = scmp.eq.s32.totalorder %s9, 1
    %p69 = scmp.ne.s32.totalorder %s64, %s66
    %p70 = scmp.eq.s32.totalorder %s9, 0
    %p71 = por %p69, %p70
    %p72 = scmp.ne.s32.totalorder %s64, %s66
    %p73 = scmp.eq.s32.totalorder %s14, 1
    %p74 = por %p72, %p73
    %p75 = scmp.ne.s32.totalorder %s66, %s67
    %p76 = scmp.eq.s32.totalorder %s14, 0
    %p77 = por %p75, %p76
    %p78 = scmp.ne.s32.totalorder %s66, %s67
    %p79 = scmp.eq.s32.totalorder %s15, 1
    %p80 = por %p78, %p79
    %p82 = scmp.ne.s32.totalorder %s67, %s81
    %p83 = scmp.eq.s32.totalorder %s15, 0
    %p84 = por %p82, %p83
    %s85 = ssub.s32 %s9, %s16
    %p86 = scmp.eq.s32.totalorder %s85, 0
    %s88 = sadd.s32 %s87, 1
    %s89 = scalar_select %p86, %s87, %s88
    %p92 = pneg %p86
    %p93 = scmp.eq.s32.totalorder %s9, 1
    %p94 = por %p92, %p93
    %p95 = scmp.ne.s32.totalorder %s87, %s90
    %p96 = scmp.eq.s32.totalorder %s9, 0
    %p97 = por %p95, %p96
    %p98 = scmp.ne.s32.totalorder %s87, %s90
    %p99 = scmp.eq.s32.totalorder %s14, 1
    %p100 = por %p98, %p99
    %p101 = scmp.ne.s32.totalorder %s90, %s91
    %p102 = scmp.eq.s32.totalorder %s14, 0
    %p103 = por %p101, %p102
    %p104 = scmp.ne.s32.totalorder %s90, %s91
    %p105 = scmp.eq.s32.totalorder %s15, 1
    %p106 = por %p104, %p105
    %p108 = scmp.ne.s32.totalorder %s91, %s107
    %p109 = scmp.eq.s32.totalorder %s15, 0
    %p110 = por %p108, %p109
    %p111 = scmp.le.s32.totalorder 1, %s9
    %p112 = scmp.lt.s32.totalorder %s9, 3
    %p113 = pnand %p111, %p112
    %p114 = pneg %p113
    // Predicated region
    $region9: #{deeplab_forward.10} parent=5 // pred_check
      _
    $region10: #{deeplab_forward.10} parent=5 // pred_check_branch
      %116 = sbr.rel (%p113) target = $region12
    $region11: #{deeplab_forward.10} parent=5 // pred_region
      %s117 = ssub.s32 %s9, 1
      // Predicated region
      $region13: #{deeplab_forward.10} parent=11 // pred_check
        %p118 = pneg %p56
      $region14: #{deeplab_forward.10} parent=11 // pred_check_branch
        %120 = sbr.rel (%p118) target = $region16
      $region15: #{deeplab_forward.10} parent=11 // pred_region
        _
      $region16: #{deeplab_forward.10} parent=11 // pred_fallthru
        _
      // Predicated region
      $region17: #{deeplab_forward.10} parent=11 // pred_check
        %p121 = pneg %p77
      $region18: #{deeplab_forward.10} parent=11 // pred_check_branch
        %123 = sbr.rel (%p121) target = $region20
      $region19: #{deeplab_forward.10} parent=11 // pred_region
        _
      $region20: #{deeplab_forward.10} parent=11 // pred_fallthru
        _
    $region12: #{deeplab_forward.10} parent=5 // pred_fallthru
      _
    %p124 = scmp.lt.s32.totalorder %s9, 2
    // Predicated region
    $region21: #{deeplab_forward.10} parent=5 // pred_check
      %p125 = pneg %p124
    $region22: #{deeplab_forward.10} parent=5 // pred_check_branch
      %127 = sbr.rel (%p125) target = $region24
    $region23: #{deeplab_forward.10} parent=5 // pred_region
      // Predicated region
      $region25: #{deeplab_forward.10} parent=23 // pred_check
        %p128 = pneg %p29
      $region26: #{deeplab_forward.10} parent=23 // pred_check_branch
        %130 = sbr.rel (%p128) target = $region28
      $region27: #{deeplab_forward.10} parent=23 // pred_region
        %s131 = smul.u32 8, %s9
        %p132 = scmp.lt.s32.totalorder %s131, 15
        %s133 = scalar_select %p132, %s131, 15
        %s134 = smul.addr %s133, 4
        %s135 = scalar_lea.vmem %s0, %s134
        %s136 = smul.u32 8, %s9
      $region28: #{deeplab_forward.10} parent=23 // pred_fallthru
        _
    $region24: #{deeplab_forward.10} parent=5 // pred_fallthru
      _
    %p137 = scmp.le.s32.totalorder 1, %s9
    %p138 = scmp.lt.s32.totalorder %s9, 3
    %p139 = pnand %p137, %p138
    %p140 = pneg %p139
    // Predicated region
    $region29: #{deeplab_forward.10} parent=5 // pred_check
      _
    $region30: #{deeplab_forward.10} parent=5 // pred_check_branch
      %142 = sbr.rel (%p139) target = $region32
    $region31: #{deeplab_forward.10} parent=5 // pred_region
      %s143 = ssub.s32 %s9, 1
      %s144 = smul.u32 8, %s14
      %p145 = scmp.lt.s32.totalorder %s144, 15
      %s146 = scalar_select %p145, %s144, 15
      %s147 = smul.addr %s146, 4
      %s148 = scalar_lea.vmem %s0, %s147
      %p149 = pneg %p35
      %p150 = pneg %p32
      %p151 = pneg %p56
      %p152 = pneg %p53
      %p153 = pneg %p77
      %p154 = pneg %p74
      %p155 = pneg %p103
      %p156 = pneg %p100
      %s157 = smul.u32 8, %s14
      %p158 = scmp.lt.s32.totalorder %s157, 15
      %s159 = scalar_select %p158, %s157, 15
      %s160 = smul.addr %s159, 4
      %s161 = scalar_lea.vmem %s3, %s160
      %s162 = smul.u32 8, %s14
      %p163 = scmp.lt.s32.totalorder %s162, 15
      %s164 = scalar_select %p163, %s162, 15
      %s165 = smul.addr %s164, 4
      %s166 = scalar_lea.vmem %s0, %s165
      %s167 = smul.u32 8, %s14
      %s168 = smul.u32 8, %s14
      %p169 = scmp.lt.s32.totalorder %s168, 15
      %s170 = scalar_select %p169, %s168, 15
      %s171 = smul.addr %s170, 4
      %s172 = scalar_lea.vmem %s3, %s171
      %s173 = smul.u32 8, %s14
      %v175 = vld [vmem:[%s166] sm:$0xf]
      %v176 = vld [vmem:[%s166 + $0x4] sm:$0xf]
      %v177 = vld [vmem:[%s166 + $0x8] sm:$0xf]
      %v178 = vld [vmem:[%s166 + $0xc] sm:$0xf]
      %v179 = vld [vmem:[%s166 + $0x10] sm:$0xf]
      %v180 = vld [vmem:[%s166 + $0x14] sm:$0xf]
      %v181 = vld [vmem:[%s166 + $0x18] sm:$0xf]
      %v182 = vld [vmem:[%s166 + $0x1c] sm:$0xf]
      %v183 = vld [vmem:[%s1] sm:$0xf]
      %v184 = vld [vmem:[%s1 + $0x4] sm:$0xf]
      %v185 = vld [vmem:[%s1 + $0x8] sm:$0xf]
      %v186 = vld [vmem:[%s2] sm:$0x1]
      %v188 = vlaneseq
      %v189 = vshrl.u32 %v188, 7
      %v190 = vsub.s32 0, %v189
      %v191 = vrot.slane %v186, %v190
      %v201 = vunpack.c.l.b16 %v175
      %v202 = vunpack.c.l.b16 %v176
      %v203 = vunpack.c.l.b16 %v177
      %v204 = vunpack.c.l.b16 %v178
      %v205 = vunpack.c.l.b16 %v179
      %v206 = vunpack.c.l.b16 %v180
      %v207 = vunpack.c.l.b16 %v181
      %v208 = vunpack.c.l.b16 %v182
      %v209 = vpack.c.b16 %v202, %v201
      %v210 = vpack.c.b16 %v204, %v203
      %v211 = vpack.c.b16 %v206, %v205
      %v212 = vpack.c.b16 %v208, %v207
      %v216 = vunpack.c.l.b16 %v183
      %v217 = vunpack.c.l.b16 %v184
      %v218 = vunpack.c.l.b16 %v185
      %v219 = vpack.c.b16 %v217, %v216
      %v220 = vpack.c.b16 %v218, %v218
      %vm222 = vcmask 195584
      %v224 = vsel %vm222, %v209, 0
      %v227 = vsel %vm222, %v210, 0
      %v230 = vsel %vm222, %v211, 0
      %v233 = vsel %vm222, %v212, 0
      %vm235 = vcmask 1043456
      %v237 = vsel %vm235, %v220, 0
      %239 = vmatprep.subr.bf16.mxu0 0
      %240 = vmatpush1.bf16.msra.mxu0 %v219
      %241 = vmatprep.subr.bf16.mxu0 0
      %242 = vmatpush1.bf16.msra.mxu0 %v237
      %243 = vmatprep.subr.bf16.mxu0 0
      %244 = vmatpush1.bf16.msra.mxu0 0
      %245 = vmatprep.subr.bf16.mxu0 0
      %246 = vmatpush1.bf16.msra.mxu0 0
      %247 = vmatprep.subr.bf16.mxu0 0
      %248 = vmatpush1.bf16.msra.mxu0 0
      %249 = vmatprep.subr.bf16.mxu0 0
      %250 = vmatpush1.bf16.msra.mxu0 0
      %251 = vmatprep.subr.bf16.mxu0 0
      %252 = vmatpush1.bf16.msra.mxu0 0
      %253 = vmatprep.subr.bf16.mxu0 0
      %254 = vmatpush1.bf16.msra.mxu0 0
      %255 = vmatprep.subr.bf16.mxu0 0
      %256 = vmatpush1.bf16.msra.mxu0 0
      %257 = vmatprep.subr.bf16.mxu0 0
      %258 = vmatpush1.bf16.msra.mxu0 0
      %259 = vmatprep.subr.bf16.mxu0 0
      %260 = vmatpush1.bf16.msra.mxu0 0
      %261 = vmatprep.subr.bf16.mxu0 0
      %262 = vmatpush1.bf16.msra.mxu0 0
      %263 = vmatprep.subr.bf16.mxu0 0
      %264 = vmatpush1.bf16.msra.mxu0 0
      %265 = vmatprep.subr.bf16.mxu0 0
      %266 = vmatpush1.bf16.msra.mxu0 0
      %267 = vmatprep.subr.bf16.mxu0 0
      %268 = vmatpush1.bf16.msra.mxu0 0
      %269 = vmatprep.subr.bf16.mxu0 0
      %270 = vmatpush1.bf16.msra.mxu0 0
      %271 = vmatprep.mubr.bf16.mxu0 0
      %272 = vmatmul.mubr.bf16.gmra.mrb[0].mxu0 %v224
      %v273 = vpop.f32.mrb[0].mxu0
      %v274 = vadd.f32 %v191, %v273
      %v275 = vpop.f32.mrb[0].mxu0
      %v276 = vpop.f32.mrb[0].mxu0
      %v277 = vadd.f32 %v191, %v276
      %v278 = vpop.f32.mrb[0].mxu0
      %279 = vmatprep.mubr.bf16.mxu0 0
      %280 = vmatmul.mubr.bf16.gmra.mrb[0].mxu0 %v227
      %v281 = vpop.f32.mrb[0].mxu0
      %v282 = vadd.f32 %v191, %v281
      %v283 = vpop.f32.mrb[0].mxu0
      %v284 = vpop.f32.mrb[0].mxu0
      %v285 = vadd.f32 %v191, %v284
      %v286 = vpop.f32.mrb[0].mxu0
      %287 = vmatprep.mubr.bf16.mxu0 0
      %288 = vmatmul.mubr.bf16.gmra.mrb[0].mxu0 %v230
      %v289 = vpop.f32.mrb[0].mxu0
      %v290 = vadd.f32 %v191, %v289
      %v291 = vpop.f32.mrb[0].mxu0
      %v292 = vpop.f32.mrb[0].mxu0
      %v293 = vadd.f32 %v191, %v292
      %v294 = vpop.f32.mrb[0].mxu0
      %295 = vmatprep.mubr.bf16.mxu0 0
      %296 = vmatmul.mubr.bf16.gmra.mrb[0].mxu0 %v233
      %v297 = vpop.f32.mrb[0].mxu0
      %v298 = vadd.f32 %v191, %v297
      %v299 = vpop.f32.mrb[0].mxu0
      %v300 = vpop.f32.mrb[0].mxu0
      %v301 = vadd.f32 %v191, %v300
      %v302 = vpop.f32.mrb[0].mxu0
      %303 = vdwg.mxu0
      %v304 = vmax.f32 %v274, 0.0
      %v305 = vmax.f32 %v277, 0.0
      %v306 = vmax.f32 %v282, 0.0
      %v307 = vmax.f32 %v285, 0.0
      %v308 = vmax.f32 %v290, 0.0
      %v309 = vmax.f32 %v293, 0.0
      %v310 = vmax.f32 %v298, 0.0
      %v311 = vmax.f32 %v301, 0.0
      %v312 = vpack.c.bf16 %v305, %v304
      %v313 = vpack.c.bf16 %v307, %v306
      %v314 = vpack.c.bf16 %v309, %v308
      %v315 = vpack.c.bf16 %v311, %v310
      %v320 = vunpack.c.l.b16 %v312
      %v321 = vunpack.c.h.b16 %v312
      %v322 = vunpack.c.l.b16 %v313
      %v323 = vunpack.c.h.b16 %v313
      %v324 = vunpack.c.l.b16 %v314
      %v325 = vunpack.c.h.b16 %v314
      %v326 = vunpack.c.l.b16 %v315
      %v327 = vunpack.c.h.b16 %v315
      %v328 = vpack.c.b16 %v320, %v320
      %v329 = vpack.c.b16 %v321, %v321
      %v330 = vpack.c.b16 %v322, %v322
      %v331 = vpack.c.b16 %v323, %v323
      %v332 = vpack.c.b16 %v324, %v324
      %v333 = vpack.c.b16 %v325, %v325
      %v334 = vpack.c.b16 %v326, %v326
      %v335 = vpack.c.b16 %v327, %v327
      %vm344 = vcmask 388096
      %345 = vst.msk [vmem:[%s172] sm:$0xf] %vm344, %v328
      %346 = vst.msk [vmem:[%s172 + $0x4] sm:$0xf] %vm344, %v329
      %347 = vst.msk [vmem:[%s172 + $0x8] sm:$0xf] %vm344, %v330
      %348 = vst.msk [vmem:[%s172 + $0xc] sm:$0xf] %vm344, %v331
      %349 = vst.msk [vmem:[%s172 + $0x10] sm:$0xf] %vm344, %v332
      %350 = vst.msk [vmem:[%s172 + $0x14] sm:$0xf] %vm344, %v333
      %351 = vst.msk [vmem:[%s172 + $0x18] sm:$0xf] %vm344, %v334
      %352 = vst.msk [vmem:[%s172 + $0x1c] sm:$0xf] %vm344, %v335
      %s353 = smul.u32 8, %s14
      %p354 = scmp.lt.s32.totalorder %s353, 15
      %s355 = scalar_select %p354, %s353, 15
      %s356 = smul.addr %s355, 4
      %s357 = scalar_lea.vmem %s3, %s356
      // Predicated region
      $region33: #{deeplab_forward.10} parent=31 // pred_check
        %p358 = pneg %p100
      $region34: #{deeplab_forward.10} parent=31 // pred_check_branch
        %360 = sbr.rel (%p358) target = $region36
      $region35: #{deeplab_forward.10} parent=31 // pred_region
        %s361 = smul.u32 8, %s14
      $region36: #{deeplab_forward.10} parent=31 // pred_fallthru
        _
    $region32: #{deeplab_forward.10} parent=5 // pred_fallthru
      _
    %p362 = scmp.le.s32.totalorder 2, %s9
    // Predicated region
    $region37: #{deeplab_forward.10} parent=5 // pred_check
      %p363 = pneg %p362
    $region38: #{deeplab_forward.10} parent=5 // pred_check_branch
      %365 = sbr.rel (%p363) target = $region40
    $region39: #{deeplab_forward.10} parent=5 // pred_region
      %s366 = ssub.s32 %s9, 2
      // Predicated region
      $region41: #{deeplab_forward.10} parent=39 // pred_check
        %p367 = pneg %p106
      $region42: #{deeplab_forward.10} parent=39 // pred_check_branch
        %369 = sbr.rel (%p367) target = $region44
      $region43: #{deeplab_forward.10} parent=39 // pred_region
        %s370 = smul.u32 8, %s15
        %p371 = scmp.lt.s32.totalorder %s370, 15
        %s372 = scalar_select %p371, %s370, 15
        %s373 = smul.addr %s372, 4
        %s374 = scalar_lea.vmem %s3, %s373
      $region44: #{deeplab_forward.10} parent=39 // pred_fallthru
        _
    $region40: #{deeplab_forward.10} parent=5 // pred_fallthru
      _
  $region6: #{deeplab_forward.10} parent=0 // loop_footer
    %s13 = sadd.s32 1, %s9
  $region7: #{deeplab_forward.10} parent=0 // loop_footer_branch
    %8 = sbr.rel target = $region3
  $region8: #{deeplab_forward.10} parent=0 // loop_exit
    _

// kernel: deeplab_forward.13
$region0: #{deeplab_forward.13}
  #allocation0 [shape = 'u32[]', space=smem, size = 0x4, offset = 0x4, fixed_abs, tag = 'smem constant byte address 0x4 - core index']
  #allocation1 [shape = 'u32[144,128]{1,0:T(1,128)}', space=vmem, size = 0x12000, scoped, tag = 'internal scratch']
  #allocation2 [shape = 'f32[8,8,64]{2,1,0:T(8,128)}', space=vmem, size = 0x8000, scoped, tag = 'scratch operand']
  %s0 = inlined_call_operand.vmem [shape: bf16[2,10,10,64], index: 0, kind: input, shape index: {}]
  %s1 = inlined_call_operand.vmem [shape: bf16[9,64,64], index: 1, kind: input, shape index: {}]
  %s2 = inlined_call_operand.vmem [shape: f32[1,1,64], index: 2, kind: input, shape index: {}]
  %s3 = inlined_call_operand.vmem [shape: bf16[2,8,8,64], index: 3, kind: output, shape index: {}]
  %s4 = sld [smem:[#allocation0]]
  $region53: #{deeplab_forward.13} parent=0
    _
  %s6 = ssub.s32 1, %s4
  %s7 = scalar_select 0, %s6, %s4
  loop: start=0, step=1, limit=8
  $region2: #{deeplab_forward.13} parent=0 // loop_pre_header
    _
  $region3: #{deeplab_forward.13} parent=0 // loop_header
    %s9 = sphi 0, %s13
    %p10 = scmp.ge.s32.totalorder %s9, 8
    %s16 = sphi 0, %s35
    %s17 = sphi 0, %s31
    %s18 = sphi 0, %s27
    %s19 = sphi 0, %s16
    %s20 = sphi 0, %s17
    %s21 = sphi 0, %s18
    %s22 = sphi 0, %s19
    %s23 = sphi 0, %s20
    %s24 = sphi 0, %s21
    %s38 = sphi 0, %s40
    %s41 = sphi 0, %s38
    %s42 = sphi 0, %s41
    %s58 = sphi 0, %s42
    %s62 = sphi 0, %s62
    %s64 = sphi 0, %s62
    %s65 = sphi 0, %s64
    %s79 = sphi 0, %s65
    %s83 = sphi 0, %s83
    %s85 = sphi 0, %s83
    %s86 = sphi 0, %s85
    %s100 = sphi 0, %s86
    %s108 = sphi 0, %s110
    %s111 = sphi 0, %s108
    %s112 = sphi 0, %s111
    %s128 = sphi 0, %s112
  $region4: #{deeplab_forward.13} parent=0 // loop_header_branch
    %12 = sbr.rel (%p10) target = $region8
  $region5: #{deeplab_forward.13} parent=0 // loop_body
    %s14 = ssub.s32 %s9, 1
    %s15 = ssub.s32 %s9, 2
    %s25 = sadd.s32 1, %s18
    %p26 = scmp.ge.s32.totalorder %s25, 3
    %s27 = scalar_select %p26, 0, %s25
    %s28 = sadd.s32 1, %s17
    %s29 = scalar_select %p26, %s28, %s17
    %p30 = scmp.ge.s32.totalorder %s29, 1
    %s31 = scalar_select %p30, 0, %s29
    %s32 = sadd.s32 1, %s16
    %s33 = scalar_select %p30, %s32, %s16
    %p34 = scmp.ge.s32.totalorder %s33, 2
    %s35 = scalar_select %p34, 0, %s33
    %s36 = ssub.s32 %s16, %s35
    %p37 = scmp.eq.s32.totalorder %s36, 0
    %s39 = sadd.s32 %s38, 1
    %s40 = scalar_select %p37, %s38, %s39
    %p43 = pneg %p37
    %p44 = scmp.eq.s32.totalorder %s9, 5
    %p45 = por %p43, %p44
    %p46 = scmp.ne.s32.totalorder %s38, %s41
    %p47 = scmp.eq.s32.totalorder %s9, 0
    %p48 = por %p46, %p47
    %p49 = scmp.ne.s32.totalorder %s38, %s41
    %p50 = scmp.eq.s32.totalorder %s14, 5
    %p51 = por %p49, %p50
    %p52 = scmp.ne.s32.totalorder %s41, %s42
    %p53 = scmp.eq.s32.totalorder %s14, 0
    %p54 = por %p52, %p53
    %p55 = scmp.ne.s32.totalorder %s41, %s42
    %p56 = scmp.eq.s32.totalorder %s15, 5
    %p57 = por %p55, %p56
    %p59 = scmp.ne.s32.totalorder %s42, %s58
    %p60 = scmp.eq.s32.totalorder %s15, 0
    %p61 = por %p59, %p60
    %s63 = sadd.s32 %s62, 1
    %p66 = scmp.eq.s32.totalorder %s9, 5
    %p67 = scmp.ne.s32.totalorder %s62, %s64
    %p68 = scmp.eq.s32.totalorder %s9, 0
    %p69 = por %p67, %p68
    %p70 = scmp.ne.s32.totalorder %s62, %s64
    %p71 = scmp.eq.s32.totalorder %s14, 5
    %p72 = por %p70, %p71
    %p73 = scmp.ne.s32.totalorder %s64, %s65
    %p74 = scmp.eq.s32.totalorder %s14, 0
    %p75 = por %p73, %p74
    %p76 = scmp.ne.s32.totalorder %s64, %s65
    %p77 = scmp.eq.s32.totalorder %s15, 5
    %p78 = por %p76, %p77
    %p80 = scmp.ne.s32.totalorder %s65, %s79
    %p81 = scmp.eq.s32.totalorder %s15, 0
    %p82 = por %p80, %p81
    %s84 = sadd.s32 %s83, 1
    %p87 = scmp.eq.s32.totalorder %s9, 5
    %p88 = scmp.ne.s32.totalorder %s83, %s85
    %p89 = scmp.eq.s32.totalorder %s9, 0
    %p90 = por %p88, %p89
    %p91 = scmp.ne.s32.totalorder %s83, %s85
    %p92 = scmp.eq.s32.totalorder %s14, 5
    %p93 = por %p91, %p92
    %p94 = scmp.ne.s32.totalorder %s85, %s86
    %p95 = scmp.eq.s32.totalorder %s14, 0
    %p96 = por %p94, %p95
    %p97 = scmp.ne.s32.totalorder %s85, %s86
    %p98 = scmp.eq.s32.totalorder %s15, 5
    %p99 = por %p97, %p98
    %p101 = scmp.ne.s32.totalorder %s86, %s100
    %p102 = scmp.eq.s32.totalorder %s15, 0
    %p103 = por %p101, %p102
    %s104 = ssub.s32 %s16, %s35
    %s105 = ssub.s32 %s17, %s31
    %s106 = sor.u32 %s104, %s105
    %p107 = scmp.eq.s32.totalorder %s106, 0
    %s109 = sadd.s32 %s108, 1
    %s110 = scalar_select %p107, %s108, %s109
    %p113 = pneg %p107
    %p114 = scmp.eq.s32.totalorder %s9, 5
    %p115 = por %p113, %p114
    %p116 = scmp.ne.s32.totalorder %s108, %s111
    %p117 = scmp.eq.s32.totalorder %s9, 0
    %p118 = por %p116, %p117
    %p119 = scmp.ne.s32.totalorder %s108, %s111
    %p120 = scmp.eq.s32.totalorder %s14, 5
    %p121 = por %p119, %p120
    %p122 = scmp.ne.s32.totalorder %s111, %s112
    %p123 = scmp.eq.s32.totalorder %s14, 0
    %p124 = por %p122, %p123
    %p125 = scmp.ne.s32.totalorder %s111, %s112
    %p126 = scmp.eq.s32.totalorder %s15, 5
    %p127 = por %p125, %p126
    %p129 = scmp.ne.s32.totalorder %s112, %s128
    %p130 = scmp.eq.s32.totalorder %s15, 0
    %p131 = por %p129, %p130
    %p132 = scmp.le.s32.totalorder 1, %s9
    %p133 = scmp.lt.s32.totalorder %s9, 7
    %p134 = pnand %p132, %p133
    %p135 = pneg %p134
    // Predicated region
    $region9: #{deeplab_forward.13} parent=5 // pred_check
      _
    $region10: #{deeplab_forward.13} parent=5 // pred_check_branch
      %137 = sbr.rel (%p134) target = $region12
    $region11: #{deeplab_forward.13} parent=5 // pred_region
      %s138 = ssub.s32 %s9, 1
      // Predicated region
      $region13: #{deeplab_forward.13} parent=11 // pred_check
        %p139 = pneg %p75
      $region14: #{deeplab_forward.13} parent=11 // pred_check_branch
        %141 = sbr.rel (%p139) target = $region16
      $region15: #{deeplab_forward.13} parent=11 // pred_region
        _
      $region16: #{deeplab_forward.13} parent=11 // pred_fallthru
        _
      // Predicated region
      $region17: #{deeplab_forward.13} parent=11 // pred_check
        %p142 = pneg %p96
      $region18: #{deeplab_forward.13} parent=11 // pred_check_branch
        %144 = sbr.rel (%p142) target = $region20
      $region19: #{deeplab_forward.13} parent=11 // pred_region
        _
      $region20: #{deeplab_forward.13} parent=11 // pred_fallthru
        _
    $region12: #{deeplab_forward.13} parent=5 // pred_fallthru
      _
    %p145 = scmp.lt.s32.totalorder %s9, 6
    // Predicated region
    $region21: #{deeplab_forward.13} parent=5 // pred_check
      %p146 = pneg %p145
    $region22: #{deeplab_forward.13} parent=5 // pred_check_branch
      %148 = sbr.rel (%p146) target = $region24
    $region23: #{deeplab_forward.13} parent=5 // pred_region
      // Predicated region
      $region25: #{deeplab_forward.13} parent=23 // pred_check
        %p149 = pneg %p48
      $region26: #{deeplab_forward.13} parent=23 // pred_check_branch
        %151 = sbr.rel (%p149) target = $region28
      $region27: #{deeplab_forward.13} parent=23 // pred_region
        %p152 = scmp.lt.s32.totalorder %s16, 1
        %s153 = scalar_select %p152, %s16, 1
        %s154 = smul.addr %s153, 20
        %s155 = smul.addr %s154, 4
        %s156 = scalar_lea.vmem %s0, %s155
      $region28: #{deeplab_forward.13} parent=23 // pred_fallthru
        _
    $region24: #{deeplab_forward.13} parent=5 // pred_fallthru
      _
    %p157 = scmp.le.s32.totalorder 1, %s9
    %p158 = scmp.lt.s32.totalorder %s9, 7
    %p159 = pnand %p157, %p158
    %p160 = pneg %p159
    // Predicated region
    $region29: #{deeplab_forward.13} parent=5 // pred_check
      _
    $region30: #{deeplab_forward.13} parent=5 // pred_check_branch
      %162 = sbr.rel (%p159) target = $region32
    $region31: #{deeplab_forward.13} parent=5 // pred_region
      %s163 = ssub.s32 %s9, 1
      %p164 = scmp.lt.s32.totalorder %s19, 1
      %s165 = scalar_select %p164, %s19, 1
      %s166 = smul.addr %s165, 20
      %s167 = smul.addr %s166, 4
      %s168 = scalar_lea.vmem %s0, %s167
      %p169 = pneg %p54
      %p170 = pneg %p51
      %p171 = pneg %p75
      %p172 = pneg %p72
      %p173 = pneg %p96
      %p174 = pneg %p93
      %p175 = pneg %p124
      %p176 = pneg %p121
      %s177 = smul.u32 8, %s20
      %p178 = scmp.lt.s32.totalorder %s19, 1
      %s179 = scalar_select %p178, %s19, 1
      %p180 = scmp.lt.s32.totalorder %s177, 7
      %s181 = scalar_select %p180, %s177, 7
      %s182 = smul.addr %s179, 8
      %s183 = sadd.s32 %s181, %s182
      %s184 = smul.addr %s183, 4
      %s185 = scalar_lea.vmem %s3, %s184
      %p186 = scmp.lt.s32.totalorder %s19, 1
      %s187 = scalar_select %p186, %s19, 1
      %s188 = smul.addr %s187, 20
      %s189 = smul.addr %s188, 4
      %s190 = scalar_lea.vmem %s0, %s189
      %s191 = smul.u32 8, %s20
      %p192 = scmp.lt.s32.totalorder %s19, 1
      %s193 = scalar_select %p192, %s19, 1
      %p194 = scmp.lt.s32.totalorder %s191, 7
      %s195 = scalar_select %p194, %s191, 7
      %s196 = smul.addr %s193, 8
      %s197 = sadd.s32 %s195, %s196
      %s198 = smul.addr %s197, 4
      %s199 = scalar_lea.vmem %s3, %s198
      %s200 = smul.u32 8, %s20
      %p202 = scmp.eq.s32.totalorder %s21, 0
      // Predicated region
      $region33: #{deeplab_forward.13} parent=31 // pred_check
        %p203 = pneg %p202
      $region34: #{deeplab_forward.13} parent=31 // pred_check_branch
        %205 = sbr.rel (%p203) target = $region36
      $region35: #{deeplab_forward.13} parent=31 // pred_region
        %vm206 = vcmask 523264
        %207 = vst.msk [vmem:[#allocation2] sm:$0xff] %vm206, 0.0
        %208 = vst.msk [vmem:[#allocation2 + $0x8] sm:$0xff] %vm206, 0.0
        %209 = vst.msk [vmem:[#allocation2 + $0x10] sm:$0xff] %vm206, 0.0
        %210 = vst.msk [vmem:[#allocation2 + $0x18] sm:$0xff] %vm206, 0.0
        %211 = vst.msk [vmem:[#allocation2 + $0x20] sm:$0xff] %vm206, 0.0
        %212 = vst.msk [vmem:[#allocation2 + $0x28] sm:$0xff] %vm206, 0.0
        %213 = vst.msk [vmem:[#allocation2 + $0x30] sm:$0xff] %vm206, 0.0
        %214 = vst.msk [vmem:[#allocation2 + $0x38] sm:$0xff] %vm206, 0.0
      $region36: #{deeplab_forward.13} parent=31 // pred_fallthru
        _
      %s215 = smul.u32 %s20, 8
      %s216 = smul.u32 %s21, 3
      %s217 = smul.u32 %s216, 8
      %s218 = smul.addr %s217, 4
      %s219 = scalar_lea.vmem %s1, %s218
      %v220 = vld [vmem:[%s219] sm:$0xf]
      %v221 = vld [vmem:[%s219 + $0x4] sm:$0xf]
      %v222 = vld [vmem:[%s219 + $0x8] sm:$0xf]
      %v223 = vld [vmem:[%s219 + $0xc] sm:$0xf]
      %v224 = vld [vmem:[%s219 + $0x10] sm:$0xf]
      %v225 = vld [vmem:[%s219 + $0x14] sm:$0xf]
      %v226 = vld [vmem:[%s219 + $0x18] sm:$0xf]
      %v227 = vld [vmem:[%s219 + $0x1c] sm:$0xf]
      %s228 = sadd.s32 %s216, 1
      %s229 = smul.u32 %s228, 8
      %s230 = smul.addr %s229, 4
      %s231 = scalar_lea.vmem %s1, %s230
      %v232 = vld [vmem:[%s231] sm:$0xf]
      %v233 = vld [vmem:[%s231 + $0x4] sm:$0xf]
      %v234 = vld [vmem:[%s231 + $0x8] sm:$0xf]
      %v235 = vld [vmem:[%s231 + $0xc] sm:$0xf]
      %v236 = vld [vmem:[%s231 + $0x10] sm:$0xf]
      %v237 = vld [vmem:[%s231 + $0x14] sm:$0xf]
      %v238 = vld [vmem:[%s231 + $0x18] sm:$0xf]
      %v239 = vld [vmem:[%s231 + $0x1c] sm:$0xf]
      %s240 = sadd.s32 %s216, 2
      %s241 = smul.u32 %s240, 8
      %s242 = smul.addr %s241, 4
      %s243 = scalar_lea.vmem %s1, %s242
      %v244 = vld [vmem:[%s243] sm:$0xf]
      %v245 = vld [vmem:[%s243 + $0x4] sm:$0xf]
      %v246 = vld [vmem:[%s243 + $0x8] sm:$0xf]
      %v247 = vld [vmem:[%s243 + $0xc] sm:$0xf]
      %v248 = vld [vmem:[%s243 + $0x10] sm:$0xf]
      %v249 = vld [vmem:[%s243 + $0x14] sm:$0xf]
      %v250 = vld [vmem:[%s243 + $0x18] sm:$0xf]
      %v251 = vld [vmem:[%s243 + $0x1c] sm:$0xf]
      %s252 = sadd.s32 %s215, %s21
      %s253 = smul.u32 %s252, 2
      %s254 = smul.addr %s253, 4
      %s255 = scalar_lea.vmem %s190, %s254
      %v256 = vld [vmem:[%s255] sm:$0xf]
      %v257 = vld [vmem:[%s255 + $0x4] sm:$0x1]
      %v260 = vunpack.c.l.b16 %v256
      %v261 = vunpack.c.l.b16 %v257
      %v262 = vpack.c.b16 %v261, %v260
      %v264 = vshrl.u32 %v262, 16
      %v266 = vshll.u32 %v262, 16
      %v268 = vrot.slane %v266, 1
      %v269 = vor.u32 %v264, %v268
      %v278 = vunpack.c.l.b16 %v232
      %v279 = vunpack.c.l.b16 %v233
      %v280 = vunpack.c.l.b16 %v234
      %v281 = vunpack.c.l.b16 %v235
      %v282 = vunpack.c.l.b16 %v236
      %v283 = vunpack.c.l.b16 %v237
      %v284 = vunpack.c.l.b16 %v238
      %v285 = vunpack.c.l.b16 %v239
      %v286 = vpack.c.b16 %v279, %v278
      %v287 = vpack.c.b16 %v281, %v280
      %v288 = vpack.c.b16 %v283, %v282
      %v289 = vpack.c.b16 %v285, %v284
      %vm294 = vcmask 523264
      %v296 = vsel %vm294, %v269, 0
      %298 = vmatprep.subr.bf16.mxu0 0
      %299 = vmatpush1.bf16.msra.mxu0 %v286
      %300 = vmatprep.subr.bf16.mxu0 0
      %301 = vmatpush1.bf16.msra.mxu0 %v287
      %302 = vmatprep.subr.bf16.mxu0 0
      %303 = vmatpush1.bf16.msra.mxu0 %v288
      %304 = vmatprep.subr.bf16.mxu0 0
      %305 = vmatpush1.bf16.msra.mxu0 %v289
      %306 = vmatprep.subr.bf16.mxu0 0
      %307 = vmatpush1.bf16.msra.mxu0 0
      %308 = vmatprep.subr.bf16.mxu0 0
      %309 = vmatpush1.bf16.msra.mxu0 0
      %310 = vmatprep.subr.bf16.mxu0 0
      %311 = vmatpush1.bf16.msra.mxu0 0
      %312 = vmatprep.subr.bf16.mxu0 0
      %313 = vmatpush1.bf16.msra.mxu0 0
      %314 = vmatprep.subr.bf16.mxu0 0
      %315 = vmatpush1.bf16.msra.mxu0 0
      %316 = vmatprep.subr.bf16.mxu0 0
      %317 = vmatpush1.bf16.msra.mxu0 0
      %318 = vmatprep.subr.bf16.mxu0 0
      %319 = vmatpush1.bf16.msra.mxu0 0
      %320 = vmatprep.subr.bf16.mxu0 0
      %321 = vmatpush1.bf16.msra.mxu0 0
      %322 = vmatprep.subr.bf16.mxu0 0
      %323 = vmatpush1.bf16.msra.mxu0 0
      %324 = vmatprep.subr.bf16.mxu0 0
      %325 = vmatpush1.bf16.msra.mxu0 0
      %326 = vmatprep.subr.bf16.mxu0 0
      %327 = vmatpush1.bf16.msra.mxu0 0
      %328 = vmatprep.subr.bf16.mxu0 0
      %329 = vmatpush1.bf16.msra.mxu0 0
      %330 = vmatprep.mubr.bf16.mxu0 0
      %331 = vmatmul.mubr.bf16.gmra.mrb[0].mxu0 %v296
      %v332 = vpop.f32.mrb[0].mxu0
      %v333 = vadd.f32 0.0, %v332
      %v334 = vpop.f32.mrb[0].mxu0
      %v335 = vpop.f32.mrb[0].mxu0
      %v336 = vpop.f32.mrb[0].mxu0
      %337 = vdwg.mxu0
      %v346 = vunpack.c.l.b16 %v220
      %v347 = vunpack.c.l.b16 %v221
      %v348 = vunpack.c.l.b16 %v222
      %v349 = vunpack.c.l.b16 %v223
      %v350 = vunpack.c.l.b16 %v224
      %v351 = vunpack.c.l.b16 %v225
      %v352 = vunpack.c.l.b16 %v226
      %v353 = vunpack.c.l.b16 %v227
      %v354 = vpack.c.b16 %v347, %v346
      %v355 = vpack.c.b16 %v349, %v348
      %v356 = vpack.c.b16 %v351, %v350
      %v357 = vpack.c.b16 %v353, %v352
      %v363 = vsel %vm294, %v256, 0
      %365 = vmatprep.subr.bf16.mxu0 0
      %366 = vmatpush1.bf16.msra.mxu0 %v354
      %367 = vmatprep.subr.bf16.mxu0 0
      %368 = vmatpush1.bf16.msra.mxu0 %v355
      %369 = vmatprep.subr.bf16.mxu0 0
      %370 = vmatpush1.bf16.msra.mxu0 %v356
      %371 = vmatprep.subr.bf16.mxu0 0
      %372 = vmatpush1.bf16.msra.mxu0 %v357
      %373 = vmatprep.subr.bf16.mxu0 0
      %374 = vmatpush1.bf16.msra.mxu0 0
      %375 = vmatprep.subr.bf16.mxu0 0
      %376 = vmatpush1.bf16.msra.mxu0 0
      %377 = vmatprep.subr.bf16.mxu0 0
      %378 = vmatpush1.bf16.msra.mxu0 0
      %379 = vmatprep.subr.bf16.mxu0 0
      %380 = vmatpush1.bf16.msra.mxu0 0
      %381 = vmatprep.subr.bf16.mxu0 0
      %382 = vmatpush1.bf16.msra.mxu0 0
      %383 = vmatprep.subr.bf16.mxu0 0
      %384 = vmatpush1.bf16.msra.mxu0 0
      %385 = vmatprep.subr.bf16.mxu0 0
      %386 = vmatpush1.bf16.msra.mxu0 0
      %387 = vmatprep.subr.bf16.mxu0 0
      %388 = vmatpush1.bf16.msra.mxu0 0
      %389 = vmatprep.subr.bf16.mxu0 0
      %390 = vmatpush1.bf16.msra.mxu0 0
      %391 = vmatprep.subr.bf16.mxu0 0
      %392 = vmatpush1.bf16.msra.mxu0 0
      %393 = vmatprep.subr.bf16.mxu0 0
      %394 = vmatpush1.bf16.msra.mxu0 0
      %395 = vmatprep.subr.bf16.mxu0 0
      %396 = vmatpush1.bf16.msra.mxu0 0
      %397 = vmatprep.mubr.bf16.mxu0 0
      %398 = vmatmul.mubr.bf16.gmra.mrb[0].mxu0 %v363
      %v399 = vpop.f32.mrb[0].mxu0
      %v400 = vadd.f32 %v333, %v399
      %v401 = vpop.f32.mrb[0].mxu0
      %v402 = vpop.f32.mrb[0].mxu0
      %v403 = vpop.f32.mrb[0].mxu0
      %404 = vdwg.mxu0
      %v405 = vld [vmem:[%s255] sm:$0xe]
      %v407 = vunpack.c.l.b16 %v405
      %v408 = vpack.c.b16 %v261, %v407
      %v409 = vrot.slane %v408, 1
      %v418 = vunpack.c.l.b16 %v244
      %v419 = vunpack.c.l.b16 %v245
      %v420 = vunpack.c.l.b16 %v246
      %v421 = vunpack.c.l.b16 %v247
      %v422 = vunpack.c.l.b16 %v248
      %v423 = vunpack.c.l.b16 %v249
      %v424 = vunpack.c.l.b16 %v250
      %v425 = vunpack.c.l.b16 %v251
      %v426 = vpack.c.b16 %v419, %v418
      %v427 = vpack.c.b16 %v421, %v420
      %v428 = vpack.c.b16 %v423, %v422
      %v429 = vpack.c.b16 %v425, %v424
      %v435 = vsel %vm294, %v409, 0
      %437 = vmatprep.subr.bf16.mxu0 0
      %438 = vmatpush1.bf16.msra.mxu0 %v426
      %439 = vmatprep.subr.bf16.mxu0 0
      %440 = vmatpush1.bf16.msra.mxu0 %v427
      %441 = vmatprep.subr.bf16.mxu0 0
      %442 = vmatpush1.bf16.msra.mxu0 %v428
      %443 = vmatprep.subr.bf16.mxu0 0
      %444 = vmatpush1.bf16.msra.mxu0 %v429
      %445 = vmatprep.subr.bf16.mxu0 0
      %446 = vmatpush1.bf16.msra.mxu0 0
      %447 = vmatprep.subr.bf16.mxu0 0
      %448 = vmatpush1.bf16.msra.mxu0 0
      %449 = vmatprep.subr.bf16.mxu0 0
      %450 = vmatpush1.bf16.msra.mxu0 0
      %451 = vmatprep.subr.bf16.mxu0 0
      %452 = vmatpush1.bf16.msra.mxu0 0
      %453 = vmatprep.subr.bf16.mxu0 0
      %454 = vmatpush1.bf16.msra.mxu0 0
      %455 = vmatprep.subr.bf16.mxu0 0
      %456 = vmatpush1.bf16.msra.mxu0 0
      %457 = vmatprep.subr.bf16.mxu0 0
      %458 = vmatpush1.bf16.msra.mxu0 0
      %459 = vmatprep.subr.bf16.mxu0 0
      %460 = vmatpush1.bf16.msra.mxu0 0
      %461 = vmatprep.subr.bf16.mxu0 0
      %462 = vmatpush1.bf16.msra.mxu0 0
      %463 = vmatprep.subr.bf16.mxu0 0
      %464 = vmatpush1.bf16.msra.mxu0 0
      %465 = vmatprep.subr.bf16.mxu0 0
      %466 = vmatpush1.bf16.msra.mxu0 0
      %467 = vmatprep.subr.bf16.mxu0 0
      %468 = vmatpush1.bf16.msra.mxu0 0
      %469 = vmatprep.mubr.bf16.mxu0 0
      %470 = vmatmul.mubr.bf16.gmra.mrb[0].mxu0 %v435
      %v471 = vpop.f32.mrb[0].mxu0
      %v472 = vadd.f32 0.0, %v471
      %v473 = vpop.f32.mrb[0].mxu0
      %v474 = vpop.f32.mrb[0].mxu0
      %v475 = vpop.f32.mrb[0].mxu0
      %476 = vdwg.mxu0
      %v477 = vadd.f32 %v400, %v472
      %v478 = vld [vmem:[#allocation2] sm:$0xff]
      %v479 = vadd.f32 %v478, %v477
      %480 = vst.msk [vmem:[#allocation2] sm:$0xff] %vm294, %v479
      %s481 = sadd.s32 %s215, 1
      %s482 = sadd.s32 %s481, %s21
      %s483 = smul.u32 %s482, 2
      %s484 = smul.addr %s483, 4
      %s485 = scalar_lea.vmem %s190, %s484
      %v486 = vld [vmem:[%s485] sm:$0xf]
      %v487 = vld [vmem:[%s485 + $0x4] sm:$0x1]
      %v490 = vunpack.c.l.b16 %v486
      %v491 = vunpack.c.l.b16 %v487
      %v492 = vpack.c.b16 %v491, %v490
      %v494 = vshrl.u32 %v492, 16
      %v496 = vshll.u32 %v492, 16
      %v498 = vrot.slane %v496, 1
      %v499 = vor.u32 %v494, %v498
      %v501 = vsel %vm294, %v499, 0
      %503 = vmatprep.subr.bf16.mxu0 0
      %504 = vmatpush1.bf16.msra.mxu0 %v286
      %505 = vmatprep.subr.bf16.mxu0 0
      %506 = vmatpush1.bf16.msra.mxu0 %v287
      %507 = vmatprep.subr.bf16.mxu0 0
      %508 = vmatpush1.bf16.msra.mxu0 %v288
      %509 = vmatprep.subr.bf16.mxu0 0
      %510 = vmatpush1.bf16.msra.mxu0 %v289
      %511 = vmatprep.subr.bf16.mxu0 0
      %512 = vmatpush1.bf16.msra.mxu0 0
      %513 = vmatprep.subr.bf16.mxu0 0
      %514 = vmatpush1.bf16.msra.mxu0 0
      %515 = vmatprep.subr.bf16.mxu0 0
      %516 = vmatpush1.bf16.msra.mxu0 0
      %517 = vmatprep.subr.bf16.mxu0 0
      %518 = vmatpush1.bf16.msra.mxu0 0
      %519 = vmatprep.subr.bf16.mxu0 0
      %520 = vmatpush1.bf16.msra.mxu0 0
      %521 = vmatprep.subr.bf16.mxu0 0
      %522 = vmatpush1.bf16.msra.mxu0 0
      %523 = vmatprep.subr.bf16.mxu0 0
      %524 = vmatpush1.bf16.msra.mxu0 0
      %525 = vmatprep.subr.bf16.mxu0 0
      %526 = vmatpush1.bf16.msra.mxu0 0
      %527 = vmatprep.subr.bf16.mxu0 0
      %528 = vmatpush1.bf16.msra.mxu0 0
      %529 = vmatprep.subr.bf16.mxu0 0
      %530 = vmatpush1.bf16.msra.mxu0 0
      %531 = vmatprep.subr.bf16.mxu0 0
      %532 = vmatpush1.bf16.msra.mxu0 0
      %533 = vmatprep.subr.bf16.mxu0 0
      %534 = vmatpush1.bf16.msra.mxu0 0
      %535 = vmatprep.mubr.bf16.mxu0 0
      %536 = vmatmul.mubr.bf16.gmra.mrb[0].mxu0 %v501
      %v537 = vpop.f32.mrb[0].mxu0
      %v538 = vadd.f32 0.0, %v537
      %v539 = vpop.f32.mrb[0].mxu0
      %v540 = vpop.f32.mrb[0].mxu0
      %v541 = vpop.f32.mrb[0].mxu0
      %542 = vdwg.mxu0
      %v544 = vsel %vm294, %v486, 0
      %546 = vmatprep.subr.bf16.mxu0 0
      %547 = vmatpush1.bf16.msra.mxu0 %v354
      %548 = vmatprep.subr.bf16.mxu0 0
      %549 = vmatpush1.bf16.msra.mxu0 %v355
      %550 = vmatprep.subr.bf16.mxu0 0
      %551 = vmatpush1.bf16.msra.mxu0 %v356
      %552 = vmatprep.subr.bf16.mxu0 0
      %553 = vmatpush1.bf16.msra.mxu0 %v357
      %554 = vmatprep.subr.bf16.mxu0 0
      %555 = vmatpush1.bf16.msra.mxu0 0
      %556 = vmatprep.subr.bf16.mxu0 0
      %557 = vmatpush1.bf16.msra.mxu0 0
      %558 = vmatprep.subr.bf16.mxu0 0
      %559 = vmatpush1.bf16.msra.mxu0 0
      %560 = vmatprep.subr.bf16.mxu0 0
      %561 = vmatpush1.bf16.msra.mxu0 0
      %562 = vmatprep.subr.bf16.mxu0 0
      %563 = vmatpush1.bf16.msra.mxu0 0
      %564 = vmatprep.subr.bf16.mxu0 0
      %565 = vmatpush1.bf16.msra.mxu0 0
      %566 = vmatprep.subr.bf16.mxu0 0
      %567 = vmatpush1.bf16.msra.mxu0 0
      %568 = vmatprep.subr.bf16.mxu0 0
      %569 = vmatpush1.bf16.msra.mxu0 0
      %570 = vmatprep.subr.bf16.mxu0 0
      %571 = vmatpush1.bf16.msra.mxu0 0
      %572 = vmatprep.subr.bf16.mxu0 0
      %573 = vmatpush1.bf16.msra.mxu0 0
      %574 = vmatprep.subr.bf16.mxu0 0
      %575 = vmatpush1.bf16.msra.mxu0 0
      %576 = vmatprep.subr.bf16.mxu0 0
      %577 = vmatpush1.bf16.msra.mxu0 0
      %578 = vmatprep.mubr.bf16.mxu0 0
      %579 = vmatmul.mubr.bf16.gmra.mrb[0].mxu0 %v544
      %v580 = vpop.f32.mrb[0].mxu0
      %v581 = vadd.f32 %v538, %v580
      %v582 = vpop.f32.mrb[0].mxu0
      %v583 = vpop.f32.mrb[0].mxu0
      %v584 = vpop.f32.mrb[0].mxu0
      %585 = vdwg.mxu0
      %v586 = vld [vmem:[%s485] sm:$0xe]
      %v588 = vunpack.c.l.b16 %v586
      %v589 = vpack.c.b16 %v491, %v588
      %v590 = vrot.slane %v589, 1
      %v592 = vsel %vm294, %v590, 0
      %594 = vmatprep.subr.bf16.mxu0 0
      %595 = vmatpush1.bf16.msra.mxu0 %v426
      %596 = vmatprep.subr.bf16.mxu0 0
      %597 = vmatpush1.bf16.msra.mxu0 %v427
      %598 = vmatprep.subr.bf16.mxu0 0
      %599 = vmatpush1.bf16.msra.mxu0 %v428
      %600 = vmatprep.subr.bf16.mxu0 0
      %601 = vmatpush1.bf16.msra.mxu0 %v429
      %602 = vmatprep.subr.bf16.mxu0 0
      %603 = vmatpush1.bf16.msra.mxu0 0
      %604 = vmatprep.subr.bf16.mxu0 0
      %605 = vmatpush1.bf16.msra.mxu0 0
      %606 = vmatprep.subr.bf16.mxu0 0
      %607 = vmatpush1.bf16.msra.mxu0 0
      %608 = vmatprep.subr.bf16.mxu0 0
      %609 = vmatpush1.bf16.msra.mxu0 0
      %610 = vmatprep.subr.bf16.mxu0 0
      %611 = vmatpush1.bf16.msra.mxu0 0
      %612 = vmatprep.subr.bf16.mxu0 0
      %613 = vmatpush1.bf16.msra.mxu0 0
      %614 = vmatprep.subr.bf16.mxu0 0
      %615 = vmatpush1.bf16.msra.mxu0 0
      %616 = vmatprep.subr.bf16.mxu0 0
      %617 = vmatpush1.bf16.msra.mxu0 0
      %618 = vmatprep.subr.bf16.mxu0 0
      %619 = vmatpush1.bf16.msra.mxu0 0
      %620 = vmatprep.subr.bf16.mxu0 0
      %621 = vmatpush1.bf16.msra.mxu0 0
      %622 = vmatprep.subr.bf16.mxu0 0
      %623 = vmatpush1.bf16.msra.mxu0 0
      %624 = vmatprep.subr.bf16.mxu0 0
      %625 = vmatpush1.bf16.msra.mxu0 0
      %626 = vmatprep.mubr.bf16.mxu0 0
      %627 = vmatmul.mubr.bf16.gmra.mrb[0].mxu0 %v592
      %v628 = vpop.f32.mrb[0].mxu0
      %v629 = vadd.f32 0.0, %v628
      %v630 = vpop.f32.mrb[0].mxu0
      %v631 = vpop.f32.mrb[0].mxu0
      %v632 = vpop.f32.mrb[0].mxu0
      %633 = vdwg.mxu0
      %v634 = vadd.f32 %v581, %v629
      %s635 = scalar_lea.vmem [#allocation2], 8
      %v636 = vld [vmem:[%s635] sm:$0xff]
      %v637 = vadd.f32 %v636, %v634
      %638 = vst.msk [vmem:[%s635] sm:$0xff] %vm294, %v637
      %s639 = sadd.s32 %s215, 2
      %s640 = sadd.s32 %s639, %s21
      %s641 = smul.u32 %s640, 2
      %s642 = smul.addr %s641, 4
      %s643 = scalar_lea.vmem %s190, %s642
      %v644 = vld [vmem:[%s643] sm:$0xf]
      %v645 = vld [vmem:[%s643 + $0x4] sm:$0x1]
      %v648 = vunpack.c.l.b16 %v644
      %v649 = vunpack.c.l.b16 %v645
      %v650 = vpack.c.b16 %v649, %v648
      %v652 = vshrl.u32 %v650, 16
      %v654 = vshll.u32 %v650, 16
      %v656 = vrot.slane %v654, 1
      %v657 = vor.u32 %v652, %v656
      %v659 = vsel %vm294, %v657, 0
      %661 = vmatprep.subr.bf16.mxu0 0
      %662 = vmatpush1.bf16.msra.mxu0 %v286
      %663 = vmatprep.subr.bf16.mxu0 0
      %664 = vmatpush1.bf16.msra.mxu0 %v287
      %665 = vmatprep.subr.bf16.mxu0 0
      %666 = vmatpush1.bf16.msra.mxu0 %v288
      %667 = vmatprep.subr.bf16.mxu0 0
      %668 = vmatpush1.bf16.msra.mxu0 %v289
      %669 = vmatprep.subr.bf16.mxu0 0
      %670 = vmatpush1.bf16.msra.mxu0 0
      %671 = vmatprep.subr.bf16.mxu0 0
      %672 = vmatpush1.bf16.msra.mxu0 0
      %673 = vmatprep.subr.bf16.mxu0 0
      %674 = vmatpush1.bf16.msra.mxu0 0
      %675 = vmatprep.subr.bf16.mxu0 0
      %676 = vmatpush1.bf16.msra.mxu0 0
      %677 = vmatprep.subr.bf16.mxu0 0
      %678 = vmatpush1.bf16.msra.mxu0 0
      %679 = vmatprep.subr.bf16.mxu0 0
      %680 = vmatpush1.bf16.msra.mxu0 0
      %681 = vmatprep.subr.bf16.mxu0 0
      %682 = vmatpush1.bf16.msra.mxu0 0
      %683 = vmatprep.subr.bf16.mxu0 0
      %684 = vmatpush1.bf16.msra.mxu0 0
      %685 = vmatprep.subr.bf16.mxu0 0
      %686 = vmatpush1.bf16.msra.mxu0 0
      %687 = vmatprep.subr.bf16.mxu0 0
      %688 = vmatpush1.bf16.msra.mxu0 0
      %689 = vmatprep.subr.bf16.mxu0 0
      %690 = vmatpush1.bf16.msra.mxu0 0
      %691 = vmatprep.subr.bf16.mxu0 0
      %692 = vmatpush1.bf16.msra.mxu0 0
      %693 = vmatprep.mubr.bf16.mxu0 0
      %694 = vmatmul.mubr.bf16.gmra.mrb[0].mxu0 %v659
      %v695 = vpop.f32.mrb[0].mxu0
      %v696 = vadd.f32 0.0, %v695
      %v697 = vpop.f32.mrb[0].mxu0
      %v698 = vpop.f32.mrb[0].mxu0
      %v699 = vpop.f32.mrb[0].mxu0
      %700 = vdwg.mxu0
      %v702 = vsel %vm294, %v644, 0
      %704 = vmatprep.subr.bf16.mxu0 0
      %705 = vmatpush1.bf16.msra.mxu0 %v354
      %706 = vmatprep.subr.bf16.mxu0 0
      %707 = vmatpush1.bf16.msra.mxu0 %v355
      %708 = vmatprep.subr.bf16.mxu0 0
      %709 = vmatpush1.bf16.msra.mxu0 %v356
      %710 = vmatprep.subr.bf16.mxu0 0
      %711 = vmatpush1.bf16.msra.mxu0 %v357
      %712 = vmatprep.subr.bf16.mxu0 0
      %713 = vmatpush1.bf16.msra.mxu0 0
      %714 = vmatprep.subr.bf16.mxu0 0
      %715 = vmatpush1.bf16.msra.mxu0 0
      %716 = vmatprep.subr.bf16.mxu0 0
      %717 = vmatpush1.bf16.msra.mxu0 0
      %718 = vmatprep.subr.bf16.mxu0 0
      %719 = vmatpush1.bf16.msra.mxu0 0
      %720 = vmatprep.subr.bf16.mxu0 0
      %721 = vmatpush1.bf16.msra.mxu0 0
      %722 = vmatprep.subr.bf16.mxu0 0
      %723 = vmatpush1.bf16.msra.mxu0 0
      %724 = vmatprep.subr.bf16.mxu0 0
      %725 = vmatpush1.bf16.msra.mxu0 0
      %726 = vmatprep.subr.bf16.mxu0 0
      %727 = vmatpush1.bf16.msra.mxu0 0
      %728 = vmatprep.subr.bf16.mxu0 0
      %729 = vmatpush1.bf16.msra.mxu0 0
      %730 = vmatprep.subr.bf16.mxu0 0
      %731 = vmatpush1.bf16.msra.mxu0 0
      %732 = vmatprep.subr.bf16.mxu0 0
      %733 = vmatpush1.bf16.msra.mxu0 0
      %734 = vmatprep.subr.bf16.mxu0 0
      %735 = vmatpush1.bf16.msra.mxu0 0
      %736 = vmatprep.mubr.bf16.mxu0 0
      %737 = vmatmul.mubr.bf16.gmra.mrb[0].mxu0 %v702
      %v738 = vpop.f32.mrb[0].mxu0
      %v739 = vadd.f32 %v696, %v738
      %v740 = vpop.f32.mrb[0].mxu0
      %v741 = vpop.f32.mrb[0].mxu0
      %v742 = vpop.f32.mrb[0].mxu0
      %743 = vdwg.mxu0
      %v744 = vld [vmem:[%s643] sm:$0xe]
      %v746 = vunpack.c.l.b16 %v744
      %v747 = vpack.c.b16 %v649, %v746
      %v748 = vrot.slane %v747, 1
      %v750 = vsel %vm294, %v748, 0
      %752 = vmatprep.subr.bf16.mxu0 0
      %753 = vmatpush1.bf16.msra.mxu0 %v426
      %754 = vmatprep.subr.bf16.mxu0 0
      %755 = vmatpush1.bf16.msra.mxu0 %v427
      %756 = vmatprep.subr.bf16.mxu0 0
      %757 = vmatpush1.bf16.msra.mxu0 %v428
      %758 = vmatprep.subr.bf16.mxu0 0
      %759 = vmatpush1.bf16.msra.mxu0 %v429
      %760 = vmatprep.subr.bf16.mxu0 0
      %761 = vmatpush1.bf16.msra.mxu0 0
      %762 = vmatprep.subr.bf16.mxu0 0
      %763 = vmatpush1.bf16.msra.mxu0 0
      %764 = vmatprep.subr.bf16.mxu0 0
      %765 = vmatpush1.bf16.msra.mxu0 0
      %766 = vmatprep.subr.bf16.mxu0 0
      %767 = vmatpush1.bf16.msra.mxu0 0
      %768 = vmatprep.subr.bf16.mxu0 0
      %769 = vmatpush1.bf16.msra.mxu0 0
      %770 = vmatprep.subr.bf16.mxu0 0
      %771 = vmatpush1.bf16.msra.mxu0 0
      %772 = vmatprep.subr.bf16.mxu0 0
      %773 = vmatpush1.bf16.msra.mxu0 0
      %774 = vmatprep.subr.bf16.mxu0 0
      %775 = vmatpush1.bf16.msra.mxu0 0
      %776 = vmatprep.subr.bf16.mxu0 0
      %777 = vmatpush1.bf16.msra.mxu0 0
      %778 = vmatprep.subr.bf16.mxu0 0
      %779 = vmatpush1.bf16.msra.mxu0 0
      %780 = vmatprep.subr.bf16.mxu0 0
      %781 = vmatpush1.bf16.msra.mxu0 0
      %782 = vmatprep.subr.bf16.mxu0 0
      %783 = vmatpush1.bf16.msra.mxu0 0
      %784 = vmatprep.mubr.bf16.mxu0 0
      %785 = vmatmul.mubr.bf16.gmra.mrb[0].mxu0 %v750
      %v786 = vpop.f32.mrb[0].mxu0
      %v787 = vadd.f32 0.0, %v786
      %v788 = vpop.f32.mrb[0].mxu0
      %v789 = vpop.f32.mrb[0].mxu0
      %v790 = vpop.f32.mrb[0].mxu0
      %791 = vdwg.mxu0
      %v792 = vadd.f32 %v739, %v787
      %s793 = scalar_lea.vmem [#allocation2], 16
      %v794 = vld [vmem:[%s793] sm:$0xff]
      %v795 = vadd.f32 %v794, %v792
      %796 = vst.msk [vmem:[%s793] sm:$0xff] %vm294, %v795
      %s797 = sadd.s32 %s215, 3
      %s798 = sadd.s32 %s797, %s21
      %s799 = smul.u32 %s798, 2
      %s800 = smul.addr %s799, 4
      %s801 = scalar_lea.vmem %s190, %s800
      %v802 = vld [vmem:[%s801] sm:$0xf]
      %v803 = vld [vmem:[%s801 + $0x4] sm:$0x1]
      %v806 = vunpack.c.l.b16 %v802
      %v807 = vunpack.c.l.b16 %v803
      %v808 = vpack.c.b16 %v807, %v806
      %v810 = vshrl.u32 %v808, 16
      %v812 = vshll.u32 %v808, 16
      %v814 = vrot.slane %v812, 1
      %v815 = vor.u32 %v810, %v814
      %v817 = vsel %vm294, %v815, 0
      %819 = vmatprep.subr.bf16.mxu0 0
      %820 = vmatpush1.bf16.msra.mxu0 %v286
      %821 = vmatprep.subr.bf16.mxu0 0
      %822 = vmatpush1.bf16.msra.mxu0 %v287
      %823 = vmatprep.subr.bf16.mxu0 0
      %824 = vmatpush1.bf16.msra.mxu0 %v288
      %825 = vmatprep.subr.bf16.mxu0 0
      %826 = vmatpush1.bf16.msra.mxu0 %v289
      %827 = vmatprep.subr.bf16.mxu0 0
      %828 = vmatpush1.bf16.msra.mxu0 0
      %829 = vmatprep.subr.bf16.mxu0 0
      %830 = vmatpush1.bf16.msra.mxu0 0
      %831 = vmatprep.subr.bf16.mxu0 0
      %832 = vmatpush1.bf16.msra.mxu0 0
      %833 = vmatprep.subr.bf16.mxu0 0
      %834 = vmatpush1.bf16.msra.mxu0 0
      %835 = vmatprep.subr.bf16.mxu0 0
      %836 = vmatpush1.bf16.msra.mxu0 0
      %837 = vmatprep.subr.bf16.mxu0 0
      %838 = vmatpush1.bf16.msra.mxu0 0
      %839 = vmatprep.subr.bf16.mxu0 0
      %840 = vmatpush1.bf16.msra.mxu0 0
      %841 = vmatprep.subr.bf16.mxu0 0
      %842 = vmatpush1.bf16.msra.mxu0 0
      %843 = vmatprep.subr.bf16.mxu0 0
      %844 = vmatpush1.bf16.msra.mxu0 0
      %845 = vmatprep.subr.bf16.mxu0 0
      %846 = vmatpush1.bf16.msra.mxu0 0
      %847 = vmatprep.subr.bf16.mxu0 0
      %848 = vmatpush1.bf16.msra.mxu0 0
      %849 = vmatprep.subr.bf16.mxu0 0
      %850 = vmatpush1.bf16.msra.mxu0 0
      %851 = vmatprep.mubr.bf16.mxu0 0
      %852 = vmatmul.mubr.bf16.gmra.mrb[0].mxu0 %v817
      %v853 = vpop.f32.mrb[0].mxu0
      %v854 = vadd.f32 0.0, %v853
      %v855 = vpop.f32.mrb[0].mxu0
      %v856 = vpop.f32.mrb[0].mxu0
      %v857 = vpop.f32.mrb[0].mxu0
      %858 = vdwg.mxu0
      %v860 = vsel %vm294, %v802, 0
      %862 = vmatprep.subr.bf16.mxu0 0
      %863 = vmatpush1.bf16.msra.mxu0 %v354
      %864 = vmatprep.subr.bf16.mxu0 0
      %865 = vmatpush1.bf16.msra.mxu0 %v355
      %866 = vmatprep.subr.bf16.mxu0 0
      %867 = vmatpush1.bf16.msra.mxu0 %v356
      %868 = vmatprep.subr.bf16.mxu0 0
      %869 = vmatpush1.bf16.msra.mxu0 %v357
      %870 = vmatprep.subr.bf16.mxu0 0
      %871 = vmatpush1.bf16.msra.mxu0 0
      %872 = vmatprep.subr.bf16.mxu0 0
      %873 = vmatpush1.bf16.msra.mxu0 0
      %874 = vmatprep.subr.bf16.mxu0 0
      %875 = vmatpush1.bf16.msra.mxu0 0
      %876 = vmatprep.subr.bf16.mxu0 0
      %877 = vmatpush1.bf16.msra.mxu0 0
      %878 = vmatprep.subr.bf16.mxu0 0
      %879 = vmatpush1.bf16.msra.mxu0 0
      %880 = vmatprep.subr.bf16.mxu0 0
      %881 = vmatpush1.bf16.msra.mxu0 0
      %882 = vmatprep.subr.bf16.mxu0 0
      %883 = vmatpush1.bf16.msra.mxu0 0
      %884 = vmatprep.subr.bf16.mxu0 0
      %885 = vmatpush1.bf16.msra.mxu0 0
      %886 = vmatprep.subr.bf16.mxu0 0
      %887 = vmatpush1.bf16.msra.mxu0 0
      %888 = vmatprep.subr.bf16.mxu0 0
      %889 = vmatpush1.bf16.msra.mxu0 0
      %890 = vmatprep.subr.bf16.mxu0 0
      %891 = vmatpush1.bf16.msra.mxu0 0
      %892 = vmatprep.subr.bf16.mxu0 0
      %893 = vmatpush1.bf16.msra.mxu0 0
      %894 = vmatprep.mubr.bf16.mxu0 0
      %895 = vmatmul.mubr.bf16.gmra.mrb[0].mxu0 %v860
      %v896 = vpop.f32.mrb[0].mxu0
      %v897 = vadd.f32 %v854, %v896
      %v898 = vpop.f32.mrb[0].mxu0
      %v899 = vpop.f32.mrb[0].mxu0
      %v900 = vpop.f32.mrb[0].mxu0
      %901 = vdwg.mxu0
      %v902 = vld [vmem:[%s801] sm:$0xe]
      %v904 = vunpack.c.l.b16 %v902
      %v905 = vpack.c.b16 %v807, %v904
      %v906 = vrot.slane %v905, 1
      %v908 = vsel %vm294, %v906, 0
      %910 = vmatprep.subr.bf16.mxu0 0
      %911 = vmatpush1.bf16.msra.mxu0 %v426
      %912 = vmatprep.subr.bf16.mxu0 0
      %913 = vmatpush1.bf16.msra.mxu0 %v427
      %914 = vmatprep.subr.bf16.mxu0 0
      %915 = vmatpush1.bf16.msra.mxu0 %v428
      %916 = vmatprep.subr.bf16.mxu0 0
      %917 = vmatpush1.bf16.msra.mxu0 %v429
      %918 = vmatprep.subr.bf16.mxu0 0
      %919 = vmatpush1.bf16.msra.mxu0 0
      %920 = vmatprep.subr.bf16.mxu0 0
      %921 = vmatpush1.bf16.msra.mxu0 0
      %922 = vmatprep.subr.bf16.mxu0 0
      %923 = vmatpush1.bf16.msra.mxu0 0
      %924 = vmatprep.subr.bf16.mxu0 0
      %925 = vmatpush1.bf16.msra.mxu0 0
      %926 = vmatprep.subr.bf16.mxu0 0
      %927 = vmatpush1.bf16.msra.mxu0 0
      %928 = vmatprep.subr.bf16.mxu0 0
      %929 = vmatpush1.bf16.msra.mxu0 0
      %930 = vmatprep.subr.bf16.mxu0 0
      %931 = vmatpush1.bf16.msra.mxu0 0
      %932 = vmatprep.subr.bf16.mxu0 0
      %933 = vmatpush1.bf16.msra.mxu0 0
      %934 = vmatprep.subr.bf16.mxu0 0
      %935 = vmatpush1.bf16.msra.mxu0 0
      %936 = vmatprep.subr.bf16.mxu0 0
      %937 = vmatpush1.bf16.msra.mxu0 0
      %938 = vmatprep.subr.bf16.mxu0 0
      %939 = vmatpush1.bf16.msra.mxu0 0
      %940 = vmatprep.subr.bf16.mxu0 0
      %941 = vmatpush1.bf16.msra.mxu0 0
      %942 = vmatprep.mubr.bf16.mxu0 0
      %943 = vmatmul.mubr.bf16.gmra.mrb[0].mxu0 %v908
      %v944 = vpop.f32.mrb[0].mxu0
      %v945 = vadd.f32 0.0, %v944
      %v946 = vpop.f32.mrb[0].mxu0
      %v947 = vpop.f32.mrb[0].mxu0
      %v948 = vpop.f32.mrb[0].mxu0
      %949 = vdwg.mxu0
      %v950 = vadd.f32 %v897, %v945
      %s951 = scalar_lea.vmem [#allocation2], 24
      %v952 = vld [vmem:[%s951] sm:$0xff]
      %v953 = vadd.f32 %v952, %v950
      %954 = vst.msk [vmem:[%s951] sm:$0xff] %vm294, %v953
      %s955 = sadd.s32 %s215, 4
      %s956 = sadd.s32 %s955, %s21
      %s957 = smul.u32 %s956, 2
      %s958 = smul.addr %s957, 4
      %s959 = scalar_lea.vmem %s190, %s958
      %v960 = vld [vmem:[%s959] sm:$0xf]
      %v961 = vld [vmem:[%s959 + $0x4] sm:$0x1]
      %v964 = vunpack.c.l.b16 %v960
      %v965 = vunpack.c.l.b16 %v961
      %v966 = vpack.c.b16 %v965, %v964
      %v968 = vshrl.u32 %v966, 16
      %v970 = vshll.u32 %v966, 16
      %v972 = vrot.slane %v970, 1
      %v973 = vor.u32 %v968, %v972
      %v975 = vsel %vm294, %v973, 0
      %977 = vmatprep.subr.bf16.mxu0 0
      %978 = vmatpush1.bf16.msra.mxu0 %v286
      %979 = vmatprep.subr.bf16.mxu0 0
      %980 = vmatpush1.bf16.msra.mxu0 %v287
      %981 = vmatprep.subr.bf16.mxu0 0
      %982 = vmatpush1.bf16.msra.mxu0 %v288
      %983 = vmatprep.subr.bf16.mxu0 0
      %984 = vmatpush1.bf16.msra.mxu0 %v289
      %985 = vmatprep.subr.bf16.mxu0 0
      %986 = vmatpush1.bf16.msra.mxu0 0
      %987 = vmatprep.subr.bf16.mxu0 0
      %988 = vmatpush1.bf16.msra.mxu0 0
      %989 = vmatprep.subr.bf16.mxu0 0
      %990 = vmatpush1.bf16.msra.mxu0 0
      %991 = vmatprep.subr.bf16.mxu0 0
      %992 = vmatpush1.bf16.msra.mxu0 0
      %993 = vmatprep.subr.bf16.mxu0 0
      %994 = vmatpush1.bf16.msra.mxu0 0
      %995 = vmatprep.subr.bf16.mxu0 0
      %996 = vmatpush1.bf16.msra.mxu0 0
      %997 = vmatprep.subr.bf16.mxu0 0
      %998 = vmatpush1.bf16.msra.mxu0 0
      %999 = vmatprep.subr.bf16.mxu0 0
      %1000 = vmatpush1.bf16.msra.mxu0 0
      %1001 = vmatprep.subr.bf16.mxu0 0
      %1002 = vmatpush1.bf16.msra.mxu0 0
      %1003 = vmatprep.subr.bf16.mxu0 0
      %1004 = vmatpush1.bf16.msra.mxu0 0
      %1005 = vmatprep.subr.bf16.mxu0 0
      %1006 = vmatpush1.bf16.msra.mxu0 0
      %1007 = vmatprep.subr.bf16.mxu0 0
      %1008 = vmatpush1.bf16.msra.mxu0 0
      %1009 = vmatprep.mubr.bf16.mxu0 0
      %1010 = vmatmul.mubr.bf16.gmra.mrb[0].mxu0 %v975
      %v1011 = vpop.f32.mrb[0].mxu0
      %v1012 = vadd.f32 0.0, %v1011
      %v1013 = vpop.f32.mrb[0].mxu0
      %v1014 = vpop.f32.mrb[0].mxu0
      %v1015 = vpop.f32.mrb[0].mxu0
      %1016 = vdwg.mxu0
      %v1018 = vsel %vm294, %v960, 0
      %1020 = vmatprep.subr.bf16.mxu0 0
      %1021 = vmatpush1.bf16.msra.mxu0 %v354
      %1022 = vmatprep.subr.bf16.mxu0 0
      %1023 = vmatpush1.bf16.msra.mxu0 %v355
      %1024 = vmatprep.subr.bf16.mxu0 0
      %1025 = vmatpush1.bf16.msra.mxu0 %v356
      %1026 = vmatprep.subr.bf16.mxu0 0
      %1027 = vmatpush1.bf16.msra.mxu0 %v357
      %1028 = vmatprep.subr.bf16.mxu0 0
      %1029 = vmatpush1.bf16.msra.mxu0 0
      %1030 = vmatprep.subr.bf16.mxu0 0
      %1031 = vmatpush1.bf16.msra.mxu0 0
      %1032 = vmatprep.subr.bf16.mxu0 0
      %1033 = vmatpush1.bf16.msra.mxu0 0
      %1034 = vmatprep.subr.bf16.mxu0 0
      %1035 = vmatpush1.bf16.msra.mxu0 0
      %1036 = vmatprep.subr.bf16.mxu0 0
      %1037 = vmatpush1.bf16.msra.mxu0 0
      %1038 = vmatprep.subr.bf16.mxu0 0
      %1039 = vmatpush1.bf16.msra.mxu0 0
      %1040 = vmatprep.subr.bf16.mxu0 0
      %1041 = vmatpush1.bf16.msra.mxu0 0
      %1042 = vmatprep.subr.bf16.mxu0 0
      %1043 = vmatpush1.bf16.msra.mxu0 0
      %1044 = vmatprep.subr.bf16.mxu0 0
      %1045 = vmatpush1.bf16.msra.mxu0 0
      %1046 = vmatprep.subr.bf16.mxu0 0
      %1047 = vmatpush1.bf16.msra.mxu0 0
      %1048 = vmatprep.subr.bf16.mxu0 0
      %1049 = vmatpush1.bf16.msra.mxu0 0
      %1050 = vmatprep.subr.bf16.mxu0 0
      %1051 = vmatpush1.bf16.msra.mxu0 0
      %1052 = vmatprep.mubr.bf16.mxu0 0
      %1053 = vmatmul.mubr.bf16.gmra.mrb[0].mxu0 %v1018
      %v1054 = vpop.f32.mrb[0].mxu0
      %v1055 = vadd.f32 %v1012, %v1054
      %v1056 = vpop.f32.mrb[0].mxu0
      %v1057 = vpop.f32.mrb[0].mxu0
      %v1058 = vpop.f32.mrb[0].mxu0
      %1059 = vdwg.mxu0
      %v1060 = vld [vmem:[%s959] sm:$0xe]
      %v1062 = vunpack.c.l.b16 %v1060
      %v1063 = vpack.c.b16 %v965, %v1062
      %v1064 = vrot.slane %v1063, 1
      %v1066 = vsel %vm294, %v1064, 0
      %1068 = vmatprep.subr.bf16.mxu0 0
      %1069 = vmatpush1.bf16.msra.mxu0 %v426
      %1070 = vmatprep.subr.bf16.mxu0 0
      %1071 = vmatpush1.bf16.msra.mxu0 %v427
      %1072 = vmatprep.subr.bf16.mxu0 0
      %1073 = vmatpush1.bf16.msra.mxu0 %v428
      %1074 = vmatprep.subr.bf16.mxu0 0
      %1075 = vmatpush1.bf16.msra.mxu0 %v429
      %1076 = vmatprep.subr.bf16.mxu0 0
      %1077 = vmatpush1.bf16.msra.mxu0 0
      %1078 = vmatprep.subr.bf16.mxu0 0
      %1079 = vmatpush1.bf16.msra.mxu0 0
      %1080 = vmatprep.subr.bf16.mxu0 0
      %1081 = vmatpush1.bf16.msra.mxu0 0
      %1082 = vmatprep.subr.bf16.mxu0 0
      %1083 = vmatpush1.bf16.msra.mxu0 0
      %1084 = vmatprep.subr.bf16.mxu0 0
      %1085 = vmatpush1.bf16.msra.mxu0 0
      %1086 = vmatprep.subr.bf16.mxu0 0
      %1087 = vmatpush1.bf16.msra.mxu0 0
      %1088 = vmatprep.subr.bf16.mxu0 0
      %1089 = vmatpush1.bf16.msra.mxu0 0
      %1090 = vmatprep.subr.bf16.mxu0 0
      %1091 = vmatpush1.bf16.msra.mxu0 0
      %1092 = vmatprep.subr.bf16.mxu0 0
      %1093 = vmatpush1.bf16.msra.mxu0 0
      %1094 = vmatprep.subr.bf16.mxu0 0
      %1095 = vmatpush1.bf16.msra.mxu0 0
      %1096 = vmatprep.subr.bf16.mxu0 0
      %1097 = vmatpush1.bf16.msra.mxu0 0
      %1098 = vmatprep.subr.bf16.mxu0 0
      %1099 = vmatpush1.bf16.msra.mxu0 0
      %1100 = vmatprep.mubr.bf16.mxu0 0
      %1101 = vmatmul.mubr.bf16.gmra.mrb[0].mxu0 %v1066
      %v1102 = vpop.f32.mrb[0].mxu0
      %v1103 = vadd.f32 0.0, %v1102
      %v1104 = vpop.f32.mrb[0].mxu0
      %v1105 = vpop.f32.mrb[0].mxu0
      %v1106 = vpop.f32.mrb[0].mxu0
      %1107 = vdwg.mxu0
      %v1108 = vadd.f32 %v1055, %v1103
      %s1109 = scalar_lea.vmem [#allocation2], 32
      %v1110 = vld [vmem:[%s1109] sm:$0xff]
      %v1111 = vadd.f32 %v1110, %v1108
      %1112 = vst.msk [vmem:[%s1109] sm:$0xff] %vm294, %v1111
      %s1113 = sadd.s32 %s215, 5
      %s1114 = sadd.s32 %s1113, %s21
      %s1115 = smul.u32 %s1114, 2
      %s1116 = smul.addr %s1115, 4
      %s1117 = scalar_lea.vmem %s190, %s1116
      %v1118 = vld [vmem:[%s1117] sm:$0xf]
      %v1119 = vld [vmem:[%s1117 + $0x4] sm:$0x1]
      %v1122 = vunpack.c.l.b16 %v1118
      %v1123 = vunpack.c.l.b16 %v1119
      %v1124 = vpack.c.b16 %v1123, %v1122
      %v1126 = vshrl.u32 %v1124, 16
      %v1128 = vshll.u32 %v1124, 16
      %v1130 = vrot.slane %v1128, 1
      %v1131 = vor.u32 %v1126, %v1130
      %v1133 = vsel %vm294, %v1131, 0
      %1135 = vmatprep.subr.bf16.mxu0 0
      %1136 = vmatpush1.bf16.msra.mxu0 %v286
      %1137 = vmatprep.subr.bf16.mxu0 0
      %1138 = vmatpush1.bf16.msra.mxu0 %v287
      %1139 = vmatprep.subr.bf16.mxu0 0
      %1140 = vmatpush1.bf16.msra.mxu0 %v288
      %1141 = vmatprep.subr.bf16.mxu0 0
      %1142 = vmatpush1.bf16.msra.mxu0 %v289
      %1143 = vmatprep.subr.bf16.mxu0 0
      %1144 = vmatpush1.bf16.msra.mxu0 0
      %1145 = vmatprep.subr.bf16.mxu0 0
      %1146 = vmatpush1.bf16.msra.mxu0 0
      %1147 = vmatprep.subr.bf16.mxu0 0
      %1148 = vmatpush1.bf16.msra.mxu0 0
      %1149 = vmatprep.subr.bf16.mxu0 0
      %1150 = vmatpush1.bf16.msra.mxu0 0
      %1151 = vmatprep.subr.bf16.mxu0 0
      %1152 = vmatpush1.bf16.msra.mxu0 0
      %1153 = vmatprep.subr.bf16.mxu0 0
      %1154 = vmatpush1.bf16.msra.mxu0 0
      %1155 = vmatprep.subr.bf16.mxu0 0
      %1156 = vmatpush1.bf16.msra.mxu0 0
      %1157 = vmatprep.subr.bf16.mxu0 0
      %1158 = vmatpush1.bf16.msra.mxu0 0
      %1159 = vmatprep.subr.bf16.mxu0 0
      %1160 = vmatpush1.bf16.msra.mxu0 0
      %1161 = vmatprep.subr.bf16.mxu0 0
      %1162 = vmatpush1.bf16.msra.mxu0 0
      %1163 = vmatprep.subr.bf16.mxu0 0
      %1164 = vmatpush1.bf16.msra.mxu0 0
      %1165 = vmatprep.subr.bf16.mxu0 0
      %1166 = vmatpush1.bf16.msra.mxu0 0
      %1167 = vmatprep.mubr.bf16.mxu0 0
      %1168 = vmatmul.mubr.bf16.gmra.mrb[0].mxu0 %v1133
      %v1169 = vpop.f32.mrb[0].mxu0
      %v1170 = vadd.f32 0.0, %v1169
      %v1171 = vpop.f32.mrb[0].mxu0
      %v1172 = vpop.f32.mrb[0].mxu0
      %v1173 = vpop.f32.mrb[0].mxu0
      %1174 = vdwg.mxu0
      %v1176 = vsel %vm294, %v1118, 0
      %1178 = vmatprep.subr.bf16.mxu0 0
      %1179 = vmatpush1.bf16.msra.mxu0 %v354
      %1180 = vmatprep.subr.bf16.mxu0 0
      %1181 = vmatpush1.bf16.msra.mxu0 %v355
      %1182 = vmatprep.subr.bf16.mxu0 0
      %1183 = vmatpush1.bf16.msra.mxu0 %v356
      %1184 = vmatprep.subr.bf16.mxu0 0
      %1185 = vmatpush1.bf16.msra.mxu0 %v357
      %1186 = vmatprep.subr.bf16.mxu0 0
      %1187 = vmatpush1.bf16.msra.mxu0 0
      %1188 = vmatprep.subr.bf16.mxu0 0
      %1189 = vmatpush1.bf16.msra.mxu0 0
      %1190 = vmatprep.subr.bf16.mxu0 0
      %1191 = vmatpush1.bf16.msra.mxu0 0
      %1192 = vmatprep.subr.bf16.mxu0 0
      %1193 = vmatpush1.bf16.msra.mxu0 0
      %1194 = vmatprep.subr.bf16.mxu0 0
      %1195 = vmatpush1.bf16.msra.mxu0 0
      %1196 = vmatprep.subr.bf16.mxu0 0
      %1197 = vmatpush1.bf16.msra.mxu0 0
      %1198 = vmatprep.subr.bf16.mxu0 0
      %1199 = vmatpush1.bf16.msra.mxu0 0
      %1200 = vmatprep.subr.bf16.mxu0 0
      %1201 = vmatpush1.bf16.msra.mxu0 0
      %1202 = vmatprep.subr.bf16.mxu0 0
      %1203 = vmatpush1.bf16.msra.mxu0 0
      %1204 = vmatprep.subr.bf16.mxu0 0
      %1205 = vmatpush1.bf16.msra.mxu0 0
      %1206 = vmatprep.subr.bf16.mxu0 0
      %1207 = vmatpush1.bf16.msra.mxu0 0
      %1208 = vmatprep.subr.bf16.mxu0 0
      %1209 = vmatpush1.bf16.msra.mxu0 0
      %1210 = vmatprep.mubr.bf16.mxu0 0
      %1211 = vmatmul.mubr.bf16.gmra.mrb[0].mxu0 %v1176
      %v1212 = vpop.f32.mrb[0].mxu0
      %v1213 = vadd.f32 %v1170, %v1212
      %v1214 = vpop.f32.mrb[0].mxu0
      %v1215 = vpop.f32.mrb[0].mxu0
      %v1216 = vpop.f32.mrb[0].mxu0
      %1217 = vdwg.mxu0
      %v1218 = vld [vmem:[%s1117] sm:$0xe]
      %v1220 = vunpack.c.l.b16 %v1218
      %v1221 = vpack.c.b16 %v1123, %v1220
      %v1222 = vrot.slane %v1221, 1
      %v1224 = vsel %vm294, %v1222, 0
      %1226 = vmatprep.subr.bf16.mxu0 0
      %1227 = vmatpush1.bf16.msra.mxu0 %v426
      %1228 = vmatprep.subr.bf16.mxu0 0
      %1229 = vmatpush1.bf16.msra.mxu0 %v427
      %1230 = vmatprep.subr.bf16.mxu0 0
      %1231 = vmatpush1.bf16.msra.mxu0 %v428
      %1232 = vmatprep.subr.bf16.mxu0 0
      %1233 = vmatpush1.bf16.msra.mxu0 %v429
      %1234 = vmatprep.subr.bf16.mxu0 0
      %1235 = vmatpush1.bf16.msra.mxu0 0
      %1236 = vmatprep.subr.bf16.mxu0 0
      %1237 = vmatpush1.bf16.msra.mxu0 0
      %1238 = vmatprep.subr.bf16.mxu0 0
      %1239 = vmatpush1.bf16.msra.mxu0 0
      %1240 = vmatprep.subr.bf16.mxu0 0
      %1241 = vmatpush1.bf16.msra.mxu0 0
      %1242 = vmatprep.subr.bf16.mxu0 0
      %1243 = vmatpush1.bf16.msra.mxu0 0
      %1244 = vmatprep.subr.bf16.mxu0 0
      %1245 = vmatpush1.bf16.msra.mxu0 0
      %1246 = vmatprep.subr.bf16.mxu0 0
      %1247 = vmatpush1.bf16.msra.mxu0 0
      %1248 = vmatprep.subr.bf16.mxu0 0
      %1249 = vmatpush1.bf16.msra.mxu0 0
      %1250 = vmatprep.subr.bf16.mxu0 0
      %1251 = vmatpush1.bf16.msra.mxu0 0
      %1252 = vmatprep.subr.bf16.mxu0 0
      %1253 = vmatpush1.bf16.msra.mxu0 0
      %1254 = vmatprep.subr.bf16.mxu0 0
      %1255 = vmatpush1.bf16.msra.mxu0 0
      %1256 = vmatprep.subr.bf16.mxu0 0
      %1257 = vmatpush1.bf16.msra.mxu0 0
      %1258 = vmatprep.mubr.bf16.mxu0 0
      %1259 = vmatmul.mubr.bf16.gmra.mrb[0].mxu0 %v1224
      %v1260 = vpop.f32.mrb[0].mxu0
      %v1261 = vadd.f32 0.0, %v1260
      %v1262 = vpop.f32.mrb[0].mxu0
      %v1263 = vpop.f32.mrb[0].mxu0
      %v1264 = vpop.f32.mrb[0].mxu0
      %1265 = vdwg.mxu0
      %v1266 = vadd.f32 %v1213, %v1261
      %s1267 = scalar_lea.vmem [#allocation2], 40
      %v1268 = vld [vmem:[%s1267] sm:$0xff]
      %v1269 = vadd.f32 %v1268, %v1266
      %1270 = vst.msk [vmem:[%s1267] sm:$0xff] %vm294, %v1269
      %s1271 = sadd.s32 %s215, 6
      %s1272 = sadd.s32 %s1271, %s21
      %s1273 = smul.u32 %s1272, 2
      %s1274 = smul.addr %s1273, 4
      %s1275 = scalar_lea.vmem %s190, %s1274
      %v1276 = vld [vmem:[%s1275] sm:$0xf]
      %v1277 = vld [vmem:[%s1275 + $0x4] sm:$0x1]
      %v1280 = vunpack.c.l.b16 %v1276
      %v1281 = vunpack.c.l.b16 %v1277
      %v1282 = vpack.c.b16 %v1281, %v1280
      %v1284 = vshrl.u32 %v1282, 16
      %v1286 = vshll.u32 %v1282, 16
      %v1288 = vrot.slane %v1286, 1
      %v1289 = vor.u32 %v1284, %v1288
      %v1291 = vsel %vm294, %v1289, 0
      %1293 = vmatprep.subr.bf16.mxu0 0
      %1294 = vmatpush1.bf16.msra.mxu0 %v286
      %1295 = vmatprep.subr.bf16.mxu0 0
      %1296 = vmatpush1.bf16.msra.mxu0 %v287
      %1297 = vmatprep.subr.bf16.mxu0 0
      %1298 = vmatpush1.bf16.msra.mxu0 %v288
      %1299 = vmatprep.subr.bf16.mxu0 0
      %1300 = vmatpush1.bf16.msra.mxu0 %v289
      %1301 = vmatprep.subr.bf16.mxu0 0
      %1302 = vmatpush1.bf16.msra.mxu0 0
      %1303 = vmatprep.subr.bf16.mxu0 0
      %1304 = vmatpush1.bf16.msra.mxu0 0
      %1305 = vmatprep.subr.bf16.mxu0 0
      %1306 = vmatpush1.bf16.msra.mxu0 0
      %1307 = vmatprep.subr.bf16.mxu0 0
      %1308 = vmatpush1.bf16.msra.mxu0 0
      %1309 = vmatprep.subr.bf16.mxu0 0
      %1310 = vmatpush1.bf16.msra.mxu0 0
      %1311 = vmatprep.subr.bf16.mxu0 0
      %1312 = vmatpush1.bf16.msra.mxu0 0
      %1313 = vmatprep.subr.bf16.mxu0 0
      %1314 = vmatpush1.bf16.msra.mxu0 0
      %1315 = vmatprep.subr.bf16.mxu0 0
      %1316 = vmatpush1.bf16.msra.mxu0 0
      %1317 = vmatprep.subr.bf16.mxu0 0
      %1318 = vmatpush1.bf16.msra.mxu0 0
      %1319 = vmatprep.subr.bf16.mxu0 0
      %1320 = vmatpush1.bf16.msra.mxu0 0
      %1321 = vmatprep.subr.bf16.mxu0 0
      %1322 = vmatpush1.bf16.msra.mxu0 0
      %1323 = vmatprep.subr.bf16.mxu0 0
      %1324 = vmatpush1.bf16.msra.mxu0 0
      %1325 = vmatprep.mubr.bf16.mxu0 0
      %1326 = vmatmul.mubr.bf16.gmra.mrb[0].mxu0 %v1291
      %v1327 = vpop.f32.mrb[0].mxu0
      %v1328 = vadd.f32 0.0, %v1327
      %v1329 = vpop.f32.mrb[0].mxu0
      %v1330 = vpop.f32.mrb[0].mxu0
      %v1331 = vpop.f32.mrb[0].mxu0
      %1332 = vdwg.mxu0
      %v1334 = vsel %vm294, %v1276, 0
      %1336 = vmatprep.subr.bf16.mxu0 0
      %1337 = vmatpush1.bf16.msra.mxu0 %v354
      %1338 = vmatprep.subr.bf16.mxu0 0
      %1339 = vmatpush1.bf16.msra.mxu0 %v355
      %1340 = vmatprep.subr.bf16.mxu0 0
      %1341 = vmatpush1.bf16.msra.mxu0 %v356
      %1342 = vmatprep.subr.bf16.mxu0 0
      %1343 = vmatpush1.bf16.msra.mxu0 %v357
      %1344 = vmatprep.subr.bf16.mxu0 0
      %1345 = vmatpush1.bf16.msra.mxu0 0
      %1346 = vmatprep.subr.bf16.mxu0 0
      %1347 = vmatpush1.bf16.msra.mxu0 0
      %1348 = vmatprep.subr.bf16.mxu0 0
      %1349 = vmatpush1.bf16.msra.mxu0 0
      %1350 = vmatprep.subr.bf16.mxu0 0
      %1351 = vmatpush1.bf16.msra.mxu0 0
      %1352 = vmatprep.subr.bf16.mxu0 0
      %1353 = vmatpush1.bf16.msra.mxu0 0
      %1354 = vmatprep.subr.bf16.mxu0 0
      %1355 = vmatpush1.bf16.msra.mxu0 0
      %1356 = vmatprep.subr.bf16.mxu0 0
      %1357 = vmatpush1.bf16.msra.mxu0 0
      %1358 = vmatprep.subr.bf16.mxu0 0
      %1359 = vmatpush1.bf16.msra.mxu0 0
      %1360 = vmatprep.subr.bf16.mxu0 0
      %1361 = vmatpush1.bf16.msra.mxu0 0
      %1362 = vmatprep.subr.bf16.mxu0 0
      %1363 = vmatpush1.bf16.msra.mxu0 0
      %1364 = vmatprep.subr.bf16.mxu0 0
      %1365 = vmatpush1.bf16.msra.mxu0 0
      %1366 = vmatprep.subr.bf16.mxu0 0
      %1367 = vmatpush1.bf16.msra.mxu0 0
      %1368 = vmatprep.mubr.bf16.mxu0 0
      %1369 = vmatmul.mubr.bf16.gmra.mrb[0].mxu0 %v1334
      %v1370 = vpop.f32.mrb[0].mxu0
      %v1371 = vadd.f32 %v1328, %v1370
      %v1372 = vpop.f32.mrb[0].mxu0
      %v1373 = vpop.f32.mrb[0].mxu0
      %v1374 = vpop.f32.mrb[0].mxu0
      %1375 = vdwg.mxu0
      %v1376 = vld [vmem:[%s1275] sm:$0xe]
      %v1378 = vunpack.c.l.b16 %v1376
      %v1379 = vpack.c.b16 %v1281, %v1378
      %v1380 = vrot.slane %v1379, 1
      %v1382 = vsel %vm294, %v1380, 0
      %1384 = vmatprep.subr.bf16.mxu0 0
      %1385 = vmatpush1.bf16.msra.mxu0 %v426
      %1386 = vmatprep.subr.bf16.mxu0 0
      %1387 = vmatpush1.bf16.msra.mxu0 %v427
      %1388 = vmatprep.subr.bf16.mxu0 0
      %1389 = vmatpush1.bf16.msra.mxu0 %v428
      %1390 = vmatprep.subr.bf16.mxu0 0
      %1391 = vmatpush1.bf16.msra.mxu0 %v429
      %1392 = vmatprep.subr.bf16.mxu0 0
      %1393 = vmatpush1.bf16.msra.mxu0 0
      %1394 = vmatprep.subr.bf16.mxu0 0
      %1395 = vmatpush1.bf16.msra.mxu0 0
      %1396 = vmatprep.subr.bf16.mxu0 0
      %1397 = vmatpush1.bf16.msra.mxu0 0
      %1398 = vmatprep.subr.bf16.mxu0 0
      %1399 = vmatpush1.bf16.msra.mxu0 0
      %1400 = vmatprep.subr.bf16.mxu0 0
      %1401 = vmatpush1.bf16.msra.mxu0 0
      %1402 = vmatprep.subr.bf16.mxu0 0
      %1403 = vmatpush1.bf16.msra.mxu0 0
      %1404 = vmatprep.subr.bf16.mxu0 0
      %1405 = vmatpush1.bf16.msra.mxu0 0
      %1406 = vmatprep.subr.bf16.mxu0 0
      %1407 = vmatpush1.bf16.msra.mxu0 0
      %1408 = vmatprep.subr.bf16.mxu0 0
      %1409 = vmatpush1.bf16.msra.mxu0 0
      %1410 = vmatprep.subr.bf16.mxu0 0
      %1411 = vmatpush1.bf16.msra.mxu0 0
      %1412 = vmatprep.subr.bf16.mxu0 0
      %1413 = vmatpush1.bf16.msra.mxu0 0
      %1414 = vmatprep.subr.bf16.mxu0 0
      %1415 = vmatpush1.bf16.msra.mxu0 0
      %1416 = vmatprep.mubr.bf16.mxu0 0
      %1417 = vmatmul.mubr.bf16.gmra.mrb[0].mxu0 %v1382
      %v1418 = vpop.f32.mrb[0].mxu0
      %v1419 = vadd.f32 0.0, %v1418
      %v1420 = vpop.f32.mrb[0].mxu0
      %v1421 = vpop.f32.mrb[0].mxu0
      %v1422 = vpop.f32.mrb[0].mxu0
      %1423 = vdwg.mxu0
      %v1424 = vadd.f32 %v1371, %v1419
      %s1425 = scalar_lea.vmem [#allocation2], 48
      %v1426 = vld [vmem:[%s1425] sm:$0xff]
      %v1427 = vadd.f32 %v1426, %v1424
      %1428 = vst.msk [vmem:[%s1425] sm:$0xff] %vm294, %v1427
      %s1429 = sadd.s32 %s215, 7
      %s1430 = sadd.s32 %s1429, %s21
      %s1431 = smul.u32 %s1430, 2
      %s1432 = smul.addr %s1431, 4
      %s1433 = scalar_lea.vmem %s190, %s1432
      %v1434 = vld [vmem:[%s1433] sm:$0xf]
      %v1435 = vld [vmem:[%s1433 + $0x4] sm:$0x1]
      %v1438 = vunpack.c.l.b16 %v1434
      %v1439 = vunpack.c.l.b16 %v1435
      %v1440 = vpack.c.b16 %v1439, %v1438
      %v1442 = vshrl.u32 %v1440, 16
      %v1444 = vshll.u32 %v1440, 16
      %v1446 = vrot.slane %v1444, 1
      %v1447 = vor.u32 %v1442, %v1446
      %v1449 = vsel %vm294, %v1447, 0
      %1451 = vmatprep.subr.bf16.mxu0 0
      %1452 = vmatpush1.bf16.msra.mxu0 %v286
      %1453 = vmatprep.subr.bf16.mxu0 0
      %1454 = vmatpush1.bf16.msra.mxu0 %v287
      %1455 = vmatprep.subr.bf16.mxu0 0
      %1456 = vmatpush1.bf16.msra.mxu0 %v288
      %1457 = vmatprep.subr.bf16.mxu0 0
      %1458 = vmatpush1.bf16.msra.mxu0 %v289
      %1459 = vmatprep.subr.bf16.mxu0 0
      %1460 = vmatpush1.bf16.msra.mxu0 0
      %1461 = vmatprep.subr.bf16.mxu0 0
      %1462 = vmatpush1.bf16.msra.mxu0 0
      %1463 = vmatprep.subr.bf16.mxu0 0
      %1464 = vmatpush1.bf16.msra.mxu0 0
      %1465 = vmatprep.subr.bf16.mxu0 0
      %1466 = vmatpush1.bf16.msra.mxu0 0
      %1467 = vmatprep.subr.bf16.mxu0 0
      %1468 = vmatpush1.bf16.msra.mxu0 0
      %1469 = vmatprep.subr.bf16.mxu0 0
      %1470 = vmatpush1.bf16.msra.mxu0 0
      %1471 = vmatprep.subr.bf16.mxu0 0
      %1472 = vmatpush1.bf16.msra.mxu0 0
      %1473 = vmatprep.subr.bf16.mxu0 0
      %1474 = vmatpush1.bf16.msra.mxu0 0
      %1475 = vmatprep.subr.bf16.mxu0 0
      %1476 = vmatpush1.bf16.msra.mxu0 0
      %1477 = vmatprep.subr.bf16.mxu0 0
      %1478 = vmatpush1.bf16.msra.mxu0 0
      %1479 = vmatprep.subr.bf16.mxu0 0
      %1480 = vmatpush1.bf16.msra.mxu0 0
      %1481 = vmatprep.subr.bf16.mxu0 0
      %1482 = vmatpush1.bf16.msra.mxu0 0
      %1483 = vmatprep.mubr.bf16.mxu0 0
      %1484 = vmatmul.mubr.bf16.gmra.mrb[0].mxu0 %v1449
      %v1485 = vpop.f32.mrb[0].mxu0
      %v1486 = vadd.f32 0.0, %v1485
      %v1487 = vpop.f32.mrb[0].mxu0
      %v1488 = vpop.f32.mrb[0].mxu0
      %v1489 = vpop.f32.mrb[0].mxu0
      %1490 = vdwg.mxu0
      %v1492 = vsel %vm294, %v1434, 0
      %1494 = vmatprep.subr.bf16.mxu0 0
      %1495 = vmatpush1.bf16.msra.mxu0 %v354
      %1496 = vmatprep.subr.bf16.mxu0 0
      %1497 = vmatpush1.bf16.msra.mxu0 %v355
      %1498 = vmatprep.subr.bf16.mxu0 0
      %1499 = vmatpush1.bf16.msra.mxu0 %v356
      %1500 = vmatprep.subr.bf16.mxu0 0
      %1501 = vmatpush1.bf16.msra.mxu0 %v357
      %1502 = vmatprep.subr.bf16.mxu0 0
      %1503 = vmatpush1.bf16.msra.mxu0 0
      %1504 = vmatprep.subr.bf16.mxu0 0
      %1505 = vmatpush1.bf16.msra.mxu0 0
      %1506 = vmatprep.subr.bf16.mxu0 0
      %1507 = vmatpush1.bf16.msra.mxu0 0
      %1508 = vmatprep.subr.bf16.mxu0 0
      %1509 = vmatpush1.bf16.msra.mxu0 0
      %1510 = vmatprep.subr.bf16.mxu0 0
      %1511 = vmatpush1.bf16.msra.mxu0 0
      %1512 = vmatprep.subr.bf16.mxu0 0
      %1513 = vmatpush1.bf16.msra.mxu0 0
      %1514 = vmatprep.subr.bf16.mxu0 0
      %1515 = vmatpush1.bf16.msra.mxu0 0
      %1516 = vmatprep.subr.bf16.mxu0 0
      %1517 = vmatpush1.bf16.msra.mxu0 0
      %1518 = vmatprep.subr.bf16.mxu0 0
      %1519 = vmatpush1.bf16.msra.mxu0 0
      %1520 = vmatprep.subr.bf16.mxu0 0
      %1521 = vmatpush1.bf16.msra.mxu0 0
      %1522 = vmatprep.subr.bf16.mxu0 0
      %1523 = vmatpush1.bf16.msra.mxu0 0
      %1524 = vmatprep.subr.bf16.mxu0 0
      %1525 = vmatpush1.bf16.msra.mxu0 0
      %1526 = vmatprep.mubr.bf16.mxu0 0
      %1527 = vmatmul.mubr.bf16.gmra.mrb[0].mxu0 %v1492
      %v1528 = vpop.f32.mrb[0].mxu0
      %v1529 = vadd.f32 %v1486, %v1528
      %v1530 = vpop.f32.mrb[0].mxu0
      %v1531 = vpop.f32.mrb[0].mxu0
      %v1532 = vpop.f32.mrb[0].mxu0
      %1533 = vdwg.mxu0
      %v1534 = vld [vmem:[%s1433] sm:$0xe]
      %v1536 = vunpack.c.l.b16 %v1534
      %v1537 = vpack.c.b16 %v1439, %v1536
      %v1538 = vrot.slane %v1537, 1
      %v1540 = vsel %vm294, %v1538, 0
      %1542 = vmatprep.subr.bf16.mxu0 0
      %1543 = vmatpush1.bf16.msra.mxu0 %v426
      %1544 = vmatprep.subr.bf16.mxu0 0
      %1545 = vmatpush1.bf16.msra.mxu0 %v427
      %1546 = vmatprep.subr.bf16.mxu0 0
      %1547 = vmatpush1.bf16.msra.mxu0 %v428
      %1548 = vmatprep.subr.bf16.mxu0 0
      %1549 = vmatpush1.bf16.msra.mxu0 %v429
      %1550 = vmatprep.subr.bf16.mxu0 0
      %1551 = vmatpush1.bf16.msra.mxu0 0
      %1552 = vmatprep.subr.bf16.mxu0 0
      %1553 = vmatpush1.bf16.msra.mxu0 0
      %1554 = vmatprep.subr.bf16.mxu0 0
      %1555 = vmatpush1.bf16.msra.mxu0 0
      %1556 = vmatprep.subr.bf16.mxu0 0
      %1557 = vmatpush1.bf16.msra.mxu0 0
      %1558 = vmatprep.subr.bf16.mxu0 0
      %1559 = vmatpush1.bf16.msra.mxu0 0
      %1560 = vmatprep.subr.bf16.mxu0 0
      %1561 = vmatpush1.bf16.msra.mxu0 0
      %1562 = vmatprep.subr.bf16.mxu0 0
      %1563 = vmatpush1.bf16.msra.mxu0 0
      %1564 = vmatprep.subr.bf16.mxu0 0
      %1565 = vmatpush1.bf16.msra.mxu0 0
      %1566 = vmatprep.subr.bf16.mxu0 0
      %1567 = vmatpush1.bf16.msra.mxu0 0
      %1568 = vmatprep.subr.bf16.mxu0 0
      %1569 = vmatpush1.bf16.msra.mxu0 0
      %1570 = vmatprep.subr.bf16.mxu0 0
      %1571 = vmatpush1.bf16.msra.mxu0 0
      %1572 = vmatprep.subr.bf16.mxu0 0
      %1573 = vmatpush1.bf16.msra.mxu0 0
      %1574 = vmatprep.mubr.bf16.mxu0 0
      %1575 = vmatmul.mubr.bf16.gmra.mrb[0].mxu0 %v1540
      %v1576 = vpop.f32.mrb[0].mxu0
      %v1577 = vadd.f32 0.0, %v1576
      %v1578 = vpop.f32.mrb[0].mxu0
      %v1579 = vpop.f32.mrb[0].mxu0
      %v1580 = vpop.f32.mrb[0].mxu0
      %1581 = vdwg.mxu0
      %v1582 = vadd.f32 %v1529, %v1577
      %s1583 = scalar_lea.vmem [#allocation2], 56
      %v1584 = vld [vmem:[%s1583] sm:$0xff]
      %v1585 = vadd.f32 %v1584, %v1582
      %1586 = vst.msk [vmem:[%s1583] sm:$0xff] %vm294, %v1585
      %p1587 = scmp.eq.s32.totalorder %s21, 2
      // Predicated region
      $region37: #{deeplab_forward.13} parent=31 // pred_check
        %p1588 = pneg %p1587
      $region38: #{deeplab_forward.13} parent=31 // pred_check_branch
        %1590 = sbr.rel (%p1588) target = $region40
      $region39: #{deeplab_forward.13} parent=31 // pred_region
        %v1591 = vld [vmem:[#allocation2] sm:$0xff]
        %v1592 = vld [vmem:[#allocation2 + $0x8] sm:$0xff]
        %v1593 = vld [vmem:[#allocation2 + $0x10] sm:$0xff]
        %v1594 = vld [vmem:[#allocation2 + $0x18] sm:$0xff]
        %v1595 = vld [vmem:[#allocation2 + $0x20] sm:$0xff]
        %v1596 = vld [vmem:[#allocation2 + $0x28] sm:$0xff]
        %v1597 = vld [vmem:[#allocation2 + $0x30] sm:$0xff]
        %v1598 = vld [vmem:[#allocation2 + $0x38] sm:$0xff]
        %v1599 = vld [vmem:[%s2] sm:$0x1]
        %v1601 = vlaneseq
        %v1602 = vshrl.u32 %v1601, 7
        %v1603 = vsub.s32 0, %v1602
        %v1604 = vrot.slane %v1599, %v1603
        %v1606 = vadd.f32 %v1591, %v1604
        %v1607 = vadd.f32 %v1592, %v1604
        %v1608 = vadd.f32 %v1593, %v1604
        %v1609 = vadd.f32 %v1594, %v1604
        %v1610 = vadd.f32 %v1595, %v1604
        %v1611 = vadd.f32 %v1596, %v1604
        %v1612 = vadd.f32 %v1597, %v1604
        %v1613 = vadd.f32 %v1598, %v1604
        %v1614 = vmax.f32 %v1606, 0.0
        %v1615 = vmax.f32 %v1607, 0.0
        %v1616 = vmax.f32 %v1608, 0.0
        %v1617 = vmax.f32 %v1609, 0.0
        %v1618 = vmax.f32 %v1610, 0.0
        %v1619 = vmax.f32 %v1611, 0.0
        %v1620 = vmax.f32 %v1612, 0.0
        %v1621 = vmax.f32 %v1613, 0.0
        %v1622 = vpack.c.bf16 %v1614, %v1614
        %v1623 = vpack.c.bf16 %v1615, %v1615
        %v1624 = vpack.c.bf16 %v1616, %v1616
        %v1625 = vpack.c.bf16 %v1617, %v1617
        %v1626 = vpack.c.bf16 %v1618, %v1618
        %v1627 = vpack.c.bf16 %v1619, %v1619
        %v1628 = vpack.c.bf16 %v1620, %v1620
        %v1629 = vpack.c.bf16 %v1621, %v1621
        %vm1630 = vcmask 519168
        %1631 = vst.msk [vmem:[%s199] sm:$0xf] %vm1630, %v1622
        %1632 = vst.msk [vmem:[%s199 + $0x4] sm:$0xf] %vm1630, %v1623
        %1633 = vst.msk [vmem:[%s199 + $0x8] sm:$0xf] %vm1630, %v1624
        %1634 = vst.msk [vmem:[%s199 + $0xc] sm:$0xf] %vm1630, %v1625
        %1635 = vst.msk [vmem:[%s199 + $0x10] sm:$0xf] %vm1630, %v1626
        %1636 = vst.msk [vmem:[%s199 + $0x14] sm:$0xf] %vm1630, %v1627
        %1637 = vst.msk [vmem:[%s199 + $0x18] sm:$0xf] %vm1630, %v1628
        %1638 = vst.msk [vmem:[%s199 + $0x1c] sm:$0xf] %vm1630, %v1629
      $region40: #{deeplab_forward.13} parent=31 // pred_fallthru
        _
      %s1639 = smul.u32 8, %s20
      %p1640 = scmp.lt.s32.totalorder %s19, 1
      %s1641 = scalar_select %p1640, %s19, 1
      %p1642 = scmp.lt.s32.totalorder %s1639, 7
      %s1643 = scalar_select %p1642, %s1639, 7
      %s1644 = smul.addr %s1641, 8
      %s1645 = sadd.s32 %s1643, %s1644
      %s1646 = smul.addr %s1645, 4
      %s1647 = scalar_lea.vmem %s3, %s1646
      // Predicated region
      $region41: #{deeplab_forward.13} parent=31 // pred_check
        %p1648 = pneg %p121
      $region42: #{deeplab_forward.13} parent=31 // pred_check_branch
        %1650 = sbr.rel (%p1648) target = $region44
      $region43: #{deeplab_forward.13} parent=31 // pred_region
        %s1651 = smul.u32 8, %s20
      $region44: #{deeplab_forward.13} parent=31 // pred_fallthru
        _
    $region32: #{deeplab_forward.13} parent=5 // pred_fallthru
      _
    %p1652 = scmp.le.s32.totalorder 2, %s9
    // Predicated region
    $region45: #{deeplab_forward.13} parent=5 // pred_check
      %p1653 = pneg %p1652
    $region46: #{deeplab_forward.13} parent=5 // pred_check_branch
      %1655 = sbr.rel (%p1653) target = $region48
    $region47: #{deeplab_forward.13} parent=5 // pred_region
      %s1656 = ssub.s32 %s9, 2
      // Predicated region
      $region49: #{deeplab_forward.13} parent=47 // pred_check
        %p1657 = pneg %p127
      $region50: #{deeplab_forward.13} parent=47 // pred_check_branch
        %1659 = sbr.rel (%p1657) target = $region52
      $region51: #{deeplab_forward.13} parent=47 // pred_region
        %s1660 = smul.u32 8, %s23
        %p1661 = scmp.lt.s32.totalorder %s22, 1
        %s1662 = scalar_select %p1661, %s22, 1
        %p1663 = scmp.lt.s32.totalorder %s1660, 7
        %s1664 = scalar_select %p1663, %s1660, 7
        %s1665 = smul.addr %s1662, 8
        %s1666 = sadd.s32 %s1664, %s1665
        %s1667 = smul.addr %s1666, 4
        %s1668 = scalar_lea.vmem %s3, %s1667
      $region52: #{deeplab_forward.13} parent=47 // pred_fallthru
        _
    $region48: #{deeplab_forward.13} parent=5 // pred_fallthru
      _
  $region6: #{deeplab_forward.13} parent=0 // loop_footer
    %s13 = sadd.s32 1, %s9
  $region7: #{deeplab_forward.13} parent=0 // loop_footer_branch
    %8 = sbr.rel target = $region3
  $region8: #{deeplab_forward.13} parent=0 // loop_exit
    _

// kernel: deeplab_forward.12
$region0: #{deeplab_forward.12}
  #allocation0 [shape = 'u32[]', space=smem, size = 0x4, offset = 0x4, fixed_abs, tag = 'smem constant byte address 0x4 - core index']
  #allocation1 [shape = 'u32[144,128]{1,0:T(1,128)}', space=vmem, size = 0x12000, scoped, tag = 'internal scratch']
  #allocation2 [shape = 'f32[8,8,64]{2,1,0:T(8,128)}', space=vmem, size = 0x8000, scoped, tag = 'scratch operand']
  %s0 = inlined_call_operand.vmem [shape: bf16[2,10,10,112], index: 0, kind: input, shape index: {}]
  %s1 = inlined_call_operand.vmem [shape: bf16[9,112,64], index: 1, kind: input, shape index: {}]
  %s2 = inlined_call_operand.vmem [shape: f32[1,1,64], index: 2, kind: input, shape index: {}]
  %s3 = inlined_call_operand.vmem [shape: bf16[2,8,8,64], index: 3, kind: output, shape index: {}]
  %s4 = sld [smem:[#allocation0]]
  $region53: #{deeplab_forward.12} parent=0
    _
  %s6 = ssub.s32 1, %s4
  %s7 = scalar_select 0, %s6, %s4
  loop: start=0, step=1, limit=8
  $region2: #{deeplab_forward.12} parent=0 // loop_pre_header
    _
  $region3: #{deeplab_forward.12} parent=0 // loop_header
    %s9 = sphi 0, %s13
    %p10 = scmp.ge.s32.totalorder %s9, 8
    %s16 = sphi 0, %s35
    %s17 = sphi 0, %s31
    %s18 = sphi 0, %s27
    %s19 = sphi 0, %s16
    %s20 = sphi 0, %s17
    %s21 = sphi 0, %s18
    %s22 = sphi 0, %s19
    %s23 = sphi 0, %s20
    %s24 = sphi 0, %s21
    %s38 = sphi 0, %s40
    %s41 = sphi 0, %s38
    %s42 = sphi 0, %s41
    %s58 = sphi 0, %s42
    %s62 = sphi 0, %s62
    %s64 = sphi 0, %s62
    %s65 = sphi 0, %s64
    %s79 = sphi 0, %s65
    %s83 = sphi 0, %s83
    %s85 = sphi 0, %s83
    %s86 = sphi 0, %s85
    %s100 = sphi 0, %s86
    %s108 = sphi 0, %s110
    %s111 = sphi 0, %s108
    %s112 = sphi 0, %s111
    %s128 = sphi 0, %s112
  $region4: #{deeplab_forward.12} parent=0 // loop_header_branch
    %12 = sbr.rel (%p10) target = $region8
  $region5: #{deeplab_forward.12} parent=0 // loop_body
    %s14 = ssub.s32 %s9, 1
    %s15 = ssub.s32 %s9, 2
    %s25 = sadd.s32 1, %s18
    %p26 = scmp.ge.s32.totalorder %s25, 3
    %s27 = scalar_select %p26, 0, %s25
    %s28 = sadd.s32 1, %s17
    %s29 = scalar_select %p26, %s28, %s17
    %p30 = scmp.ge.s32.totalorder %s29, 1
    %s31 = scalar_select %p30, 0, %s29
    %s32 = sadd.s32 1, %s16
    %s33 = scalar_select %p30, %s32, %s16
    %p34 = scmp.ge.s32.totalorder %s33, 2
    %s35 = scalar_select %p34, 0, %s33
    %s36 = ssub.s32 %s16, %s35
    %p37 = scmp.eq.s32.totalorder %s36, 0
    %s39 = sadd.s32 %s38, 1
    %s40 = scalar_select %p37, %s38, %s39
    %p43 = pneg %p37
    %p44 = scmp.eq.s32.totalorder %s9, 5
    %p45 = por %p43, %p44
    %p46 = scmp.ne.s32.totalorder %s38, %s41
    %p47 = scmp.eq.s32.totalorder %s9, 0
    %p48 = por %p46, %p47
    %p49 = scmp.ne.s32.totalorder %s38, %s41
    %p50 = scmp.eq.s32.totalorder %s14, 5
    %p51 = por %p49, %p50
    %p52 = scmp.ne.s32.totalorder %s41, %s42
    %p53 = scmp.eq.s32.totalorder %s14, 0
    %p54 = por %p52, %p53
    %p55 = scmp.ne.s32.totalorder %s41, %s42
    %p56 = scmp.eq.s32.totalorder %s15, 5
    %p57 = por %p55, %p56
    %p59 = scmp.ne.s32.totalorder %s42, %s58
    %p60 = scmp.eq.s32.totalorder %s15, 0
    %p61 = por %p59, %p60
    %s63 = sadd.s32 %s62, 1
    %p66 = scmp.eq.s32.totalorder %s9, 5
    %p67 = scmp.ne.s32.totalorder %s62, %s64
    %p68 = scmp.eq.s32.totalorder %s9, 0
    %p69 = por %p67, %p68
    %p70 = scmp.ne.s32.totalorder %s62, %s64
    %p71 = scmp.eq.s32.totalorder %s14, 5
    %p72 = por %p70, %p71
    %p73 = scmp.ne.s32.totalorder %s64, %s65
    %p74 = scmp.eq.s32.totalorder %s14, 0
    %p75 = por %p73, %p74
    %p76 = scmp.ne.s32.totalorder %s64, %s65
    %p77 = scmp.eq.s32.totalorder %s15, 5
    %p78 = por %p76, %p77
    %p80 = scmp.ne.s32.totalorder %s65, %s79
    %p81 = scmp.eq.s32.totalorder %s15, 0
    %p82 = por %p80, %p81
    %s84 = sadd.s32 %s83, 1
    %p87 = scmp.eq.s32.totalorder %s9, 5
    %p88 = scmp.ne.s32.totalorder %s83, %s85
    %p89 = scmp.eq.s32.totalorder %s9, 0
    %p90 = por %p88, %p89
    %p91 = scmp.ne.s32.totalorder %s83, %s85
    %p92 = scmp.eq.s32.totalorder %s14, 5
    %p93 = por %p91, %p92
    %p94 = scmp.ne.s32.totalorder %s85, %s86
    %p95 = scmp.eq.s32.totalorder %s14, 0
    %p96 = por %p94, %p95
    %p97 = scmp.ne.s32.totalorder %s85, %s86
    %p98 = scmp.eq.s32.totalorder %s15, 5
    %p99 = por %p97, %p98
    %p101 = scmp.ne.s32.totalorder %s86, %s100
    %p102 = scmp.eq.s32.totalorder %s15, 0
    %p103 = por %p101, %p102
    %s104 = ssub.s32 %s16, %s35
    %s105 = ssub.s32 %s17, %s31
    %s106 = sor.u32 %s104, %s105
    %p107 = scmp.eq.s32.totalorder %s106, 0
    %s109 = sadd.s32 %s108, 1
    %s110 = scalar_select %p107, %s108, %s109
    %p113 = pneg %p107
    %p114 = scmp.eq.s32.totalorder %s9, 5
    %p115 = por %p113, %p114
    %p116 = scmp.ne.s32.totalorder %s108, %s111
    %p117 = scmp.eq.s32.totalorder %s9, 0
    %p118 = por %p116, %p117
    %p119 = scmp.ne.s32.totalorder %s108, %s111
    %p120 = scmp.eq.s32.totalorder %s14, 5
    %p121 = por %p119, %p120
    %p122 = scmp.ne.s32.totalorder %s111, %s112
    %p123 = scmp.eq.s32.totalorder %s14, 0
    %p124 = por %p122, %p123
    %p125 = scmp.ne.s32.totalorder %s111, %s112
    %p126 = scmp.eq.s32.totalorder %s15, 5
    %p127 = por %p125, %p126
    %p129 = scmp.ne.s32.totalorder %s112, %s128
    %p130 = scmp.eq.s32.totalorder %s15, 0
    %p131 = por %p129, %p130
    %p132 = scmp.le.s32.totalorder 1, %s9
    %p133 = scmp.lt.s32.totalorder %s9, 7
    %p134 = pnand %p132, %p133
    %p135 = pneg %p134
    // Predicated region
    $region9: #{deeplab_forward.12} parent=5 // pred_check
      _
    $region10: #{deeplab_forward.12} parent=5 // pred_check_branch
      %137 = sbr.rel (%p134) target = $region12
    $region11: #{deeplab_forward.12} parent=5 // pred_region
      %s138 = ssub.s32 %s9, 1
      // Predicated region
      $region13: #{deeplab_forward.12} parent=11 // pred_check
        %p139 = pneg %p75
      $region14: #{deeplab_forward.12} parent=11 // pred_check_branch
        %141 = sbr.rel (%p139) target = $region16
      $region15: #{deeplab_forward.12} parent=11 // pred_region
        _
      $region16: #{deeplab_forward.12} parent=11 // pred_fallthru
        _
      // Predicated region
      $region17: #{deeplab_forward.12} parent=11 // pred_check
        %p142 = pneg %p96
      $region18: #{deeplab_forward.12} parent=11 // pred_check_branch
        %144 = sbr.rel (%p142) target = $region20
      $region19: #{deeplab_forward.12} parent=11 // pred_region
        _
      $region20: #{deeplab_forward.12} parent=11 // pred_fallthru
        _
    $region12: #{deeplab_forward.12} parent=5 // pred_fallthru
      _
    %p145 = scmp.lt.s32.totalorder %s9, 6
    // Predicated region
    $region21: #{deeplab_forward.12} parent=5 // pred_check
      %p146 = pneg %p145
    $region22: #{deeplab_forward.12} parent=5 // pred_check_branch
      %148 = sbr.rel (%p146) target = $region24
    $region23: #{deeplab_forward.12} parent=5 // pred_region
      // Predicated region
      $region25: #{deeplab_forward.12} parent=23 // pred_check
        %p149 = pneg %p48
      $region26: #{deeplab_forward.12} parent=23 // pred_check_branch
        %151 = sbr.rel (%p149) target = $region28
      $region27: #{deeplab_forward.12} parent=23 // pred_region
        %p152 = scmp.lt.s32.totalorder %s16, 1
        %s153 = scalar_select %p152, %s16, 1
        %s154 = smul.addr %s153, 20
        %s155 = smul.addr %s154, 4
        %s156 = scalar_lea.vmem %s0, %s155
      $region28: #{deeplab_forward.12} parent=23 // pred_fallthru
        _
    $region24: #{deeplab_forward.12} parent=5 // pred_fallthru
      _
    %p157 = scmp.le.s32.totalorder 1, %s9
    %p158 = scmp.lt.s32.totalorder %s9, 7
    %p159 = pnand %p157, %p158
    %p160 = pneg %p159
    // Predicated region
    $region29: #{deeplab_forward.12} parent=5 // pred_check
      _
    $region30: #{deeplab_forward.12} parent=5 // pred_check_branch
      %162 = sbr.rel (%p159) target = $region32
    $region31: #{deeplab_forward.12} parent=5 // pred_region
      %s163 = ssub.s32 %s9, 1
      %p164 = scmp.lt.s32.totalorder %s19, 1
      %s165 = scalar_select %p164, %s19, 1
      %s166 = smul.addr %s165, 20
      %s167 = smul.addr %s166, 4
      %s168 = scalar_lea.vmem %s0, %s167
      %p169 = pneg %p54
      %p170 = pneg %p51
      %p171 = pneg %p75
      %p172 = pneg %p72
      %p173 = pneg %p96
      %p174 = pneg %p93
      %p175 = pneg %p124
      %p176 = pneg %p121
      %s177 = smul.u32 8, %s20
      %p178 = scmp.lt.s32.totalorder %s19, 1
      %s179 = scalar_select %p178, %s19, 1
      %p180 = scmp.lt.s32.totalorder %s177, 7
      %s181 = scalar_select %p180, %s177, 7
      %s182 = smul.addr %s179, 8
      %s183 = sadd.s32 %s181, %s182
      %s184 = smul.addr %s183, 4
      %s185 = scalar_lea.vmem %s3, %s184
      %p186 = scmp.lt.s32.totalorder %s19, 1
      %s187 = scalar_select %p186, %s19, 1
      %s188 = smul.addr %s187, 20
      %s189 = smul.addr %s188, 4
      %s190 = scalar_lea.vmem %s0, %s189
      %s191 = smul.u32 8, %s20
      %p192 = scmp.lt.s32.totalorder %s19, 1
      %s193 = scalar_select %p192, %s19, 1
      %p194 = scmp.lt.s32.totalorder %s191, 7
      %s195 = scalar_select %p194, %s191, 7
      %s196 = smul.addr %s193, 8
      %s197 = sadd.s32 %s195, %s196
      %s198 = smul.addr %s197, 4
      %s199 = scalar_lea.vmem %s3, %s198
      %s200 = smul.u32 8, %s20
      %p202 = scmp.eq.s32.totalorder %s21, 0
      // Predicated region
      $region33: #{deeplab_forward.12} parent=31 // pred_check
        %p203 = pneg %p202
      $region34: #{deeplab_forward.12} parent=31 // pred_check_branch
        %205 = sbr.rel (%p203) target = $region36
      $region35: #{deeplab_forward.12} parent=31 // pred_region
        %vm206 = vcmask 523264
        %207 = vst.msk [vmem:[#allocation2] sm:$0xff] %vm206, 0.0
        %208 = vst.msk [vmem:[#allocation2 + $0x8] sm:$0xff] %vm206, 0.0
        %209 = vst.msk [vmem:[#allocation2 + $0x10] sm:$0xff] %vm206, 0.0
        %210 = vst.msk [vmem:[#allocation2 + $0x18] sm:$0xff] %vm206, 0.0
        %211 = vst.msk [vmem:[#allocation2 + $0x20] sm:$0xff] %vm206, 0.0
        %212 = vst.msk [vmem:[#allocation2 + $0x28] sm:$0xff] %vm206, 0.0
        %213 = vst.msk [vmem:[#allocation2 + $0x30] sm:$0xff] %vm206, 0.0
        %214 = vst.msk [vmem:[#allocation2 + $0x38] sm:$0xff] %vm206, 0.0
      $region36: #{deeplab_forward.12} parent=31 // pred_fallthru
        _
      %s215 = smul.u32 %s20, 8
      %s216 = smul.u32 %s21, 3
      %s217 = smul.u32 %s216, 14
      %s218 = smul.addr %s217, 4
      %s219 = scalar_lea.vmem %s1, %s218
      %v220 = vld [vmem:[%s219] sm:$0xf]
      %v221 = vld [vmem:[%s219 + $0x4] sm:$0xf]
      %v222 = vld [vmem:[%s219 + $0x8] sm:$0xf]
      %v223 = vld [vmem:[%s219 + $0xc] sm:$0xf]
      %v224 = vld [vmem:[%s219 + $0x10] sm:$0xf]
      %v225 = vld [vmem:[%s219 + $0x14] sm:$0xf]
      %v226 = vld [vmem:[%s219 + $0x18] sm:$0xf]
      %v227 = vld [vmem:[%s219 + $0x1c] sm:$0xf]
      %v228 = vld [vmem:[%s219 + $0x20] sm:$0xf]
      %v229 = vld [vmem:[%s219 + $0x24] sm:$0xf]
      %v230 = vld [vmem:[%s219 + $0x28] sm:$0xf]
      %v231 = vld [vmem:[%s219 + $0x2c] sm:$0xf]
      %v232 = vld [vmem:[%s219 + $0x30] sm:$0xf]
      %v233 = vld [vmem:[%s219 + $0x34] sm:$0xf]
      %s234 = sadd.s32 %s216, 1
      %s235 = smul.u32 %s234, 14
      %s236 = smul.addr %s235, 4
      %s237 = scalar_lea.vmem %s1, %s236
      %v238 = vld [vmem:[%s237] sm:$0xf]
      %v239 = vld [vmem:[%s237 + $0x4] sm:$0xf]
      %v240 = vld [vmem:[%s237 + $0x8] sm:$0xf]
      %v241 = vld [vmem:[%s237 + $0xc] sm:$0xf]
      %v242 = vld [vmem:[%s237 + $0x10] sm:$0xf]
      %v243 = vld [vmem:[%s237 + $0x14] sm:$0xf]
      %v244 = vld [vmem:[%s237 + $0x18] sm:$0xf]
      %v245 = vld [vmem:[%s237 + $0x1c] sm:$0xf]
      %v246 = vld [vmem:[%s237 + $0x20] sm:$0xf]
      %v247 = vld [vmem:[%s237 + $0x24] sm:$0xf]
      %v248 = vld [vmem:[%s237 + $0x28] sm:$0xf]
      %v249 = vld [vmem:[%s237 + $0x2c] sm:$0xf]
      %v250 = vld [vmem:[%s237 + $0x30] sm:$0xf]
      %v251 = vld [vmem:[%s237 + $0x34] sm:$0xf]
      %s252 = sadd.s32 %s216, 2
      %s253 = smul.u32 %s252, 14
      %s254 = smul.addr %s253, 4
      %s255 = scalar_lea.vmem %s1, %s254
      %v256 = vld [vmem:[%s255] sm:$0xf]
      %v257 = vld [vmem:[%s255 + $0x4] sm:$0xf]
      %v258 = vld [vmem:[%s255 + $0x8] sm:$0xf]
      %v259 = vld [vmem:[%s255 + $0xc] sm:$0xf]
      %v260 = vld [vmem:[%s255 + $0x10] sm:$0xf]
      %v261 = vld [vmem:[%s255 + $0x14] sm:$0xf]
      %v262 = vld [vmem:[%s255 + $0x18] sm:$0xf]
      %v263 = vld [vmem:[%s255 + $0x1c] sm:$0xf]
      %v264 = vld [vmem:[%s255 + $0x20] sm:$0xf]
      %v265 = vld [vmem:[%s255 + $0x24] sm:$0xf]
      %v266 = vld [vmem:[%s255 + $0x28] sm:$0xf]
      %v267 = vld [vmem:[%s255 + $0x2c] sm:$0xf]
      %v268 = vld [vmem:[%s255 + $0x30] sm:$0xf]
      %v269 = vld [vmem:[%s255 + $0x34] sm:$0xf]
      %s270 = sadd.s32 %s215, %s21
      %s271 = smul.u32 %s270, 2
      %s272 = smul.addr %s271, 4
      %s273 = scalar_lea.vmem %s190, %s272
      %v274 = vld [vmem:[%s273] sm:$0xf]
      %v275 = vld [vmem:[%s273 + $0x4] sm:$0x1]
      %v278 = vunpack.c.l.b16 %v274
      %v279 = vunpack.c.l.b16 %v275
      %v280 = vpack.c.b16 %v279, %v278
      %v282 = vshrl.u32 %v280, 16
      %v284 = vshll.u32 %v280, 16
      %v286 = vrot.slane %v284, 1
      %v287 = vor.u32 %v282, %v286
      %v302 = vunpack.c.l.b16 %v238
      %v303 = vunpack.c.l.b16 %v239
      %v304 = vunpack.c.l.b16 %v240
      %v305 = vunpack.c.l.b16 %v241
      %v306 = vunpack.c.l.b16 %v242
      %v307 = vunpack.c.l.b16 %v243
      %v308 = vunpack.c.l.b16 %v244
      %v309 = vunpack.c.l.b16 %v245
      %v310 = vunpack.c.l.b16 %v246
      %v311 = vunpack.c.l.b16 %v247
      %v312 = vunpack.c.l.b16 %v248
      %v313 = vunpack.c.l.b16 %v249
      %v314 = vunpack.c.l.b16 %v250
      %v315 = vunpack.c.l.b16 %v251
      %v316 = vpack.c.b16 %v303, %v302
      %v317 = vpack.c.b16 %v305, %v304
      %v318 = vpack.c.b16 %v307, %v306
      %v319 = vpack.c.b16 %v309, %v308
      %v320 = vpack.c.b16 %v311, %v310
      %v321 = vpack.c.b16 %v313, %v312
      %v322 = vpack.c.b16 %v315, %v314
      %vm330 = vcmask 916480
      %v332 = vsel %vm330, %v287, 0
      %334 = vmatprep.subr.bf16.mxu0 0
      %335 = vmatpush1.bf16.msra.mxu0 %v316
      %336 = vmatprep.subr.bf16.mxu0 0
      %337 = vmatpush1.bf16.msra.mxu0 %v317
      %338 = vmatprep.subr.bf16.mxu0 0
      %339 = vmatpush1.bf16.msra.mxu0 %v318
      %340 = vmatprep.subr.bf16.mxu0 0
      %341 = vmatpush1.bf16.msra.mxu0 %v319
      %342 = vmatprep.subr.bf16.mxu0 0
      %343 = vmatpush1.bf16.msra.mxu0 %v320
      %344 = vmatprep.subr.bf16.mxu0 0
      %345 = vmatpush1.bf16.msra.mxu0 %v321
      %346 = vmatprep.subr.bf16.mxu0 0
      %347 = vmatpush1.bf16.msra.mxu0 %v322
      %348 = vmatprep.subr.bf16.mxu0 0
      %349 = vmatpush1.bf16.msra.mxu0 0
      %350 = vmatprep.subr.bf16.mxu0 0
      %351 = vmatpush1.bf16.msra.mxu0 0
      %352 = vmatprep.subr.bf16.mxu0 0
      %353 = vmatpush1.bf16.msra.mxu0 0
      %354 = vmatprep.subr.bf16.mxu0 0
      %355 = vmatpush1.bf16.msra.mxu0 0
      %356 = vmatprep.subr.bf16.mxu0 0
      %357 = vmatpush1.bf16.msra.mxu0 0
      %358 = vmatprep.subr.bf16.mxu0 0
      %359 = vmatpush1.bf16.msra.mxu0 0
      %360 = vmatprep.subr.bf16.mxu0 0
      %361 = vmatpush1.bf16.msra.mxu0 0
      %362 = vmatprep.subr.bf16.mxu0 0
      %363 = vmatpush1.bf16.msra.mxu0 0
      %364 = vmatprep.subr.bf16.mxu0 0
      %365 = vmatpush1.bf16.msra.mxu0 0
      %366 = vmatprep.mubr.bf16.mxu0 0
      %367 = vmatmul.mubr.bf16.gmra.mrb[0].mxu0 %v332
      %v368 = vpop.f32.mrb[0].mxu0
      %v369 = vadd.f32 0.0, %v368
      %v370 = vpop.f32.mrb[0].mxu0
      %v371 = vpop.f32.mrb[0].mxu0
      %v372 = vpop.f32.mrb[0].mxu0
      %373 = vdwg.mxu0
      %v388 = vunpack.c.l.b16 %v220
      %v389 = vunpack.c.l.b16 %v221
      %v390 = vunpack.c.l.b16 %v222
      %v391 = vunpack.c.l.b16 %v223
      %v392 = vunpack.c.l.b16 %v224
      %v393 = vunpack.c.l.b16 %v225
      %v394 = vunpack.c.l.b16 %v226
      %v395 = vunpack.c.l.b16 %v227
      %v396 = vunpack.c.l.b16 %v228
      %v397 = vunpack.c.l.b16 %v229
      %v398 = vunpack.c.l.b16 %v230
      %v399 = vunpack.c.l.b16 %v231
      %v400 = vunpack.c.l.b16 %v232
      %v401 = vunpack.c.l.b16 %v233
      %v402 = vpack.c.b16 %v389, %v388
      %v403 = vpack.c.b16 %v391, %v390
      %v404 = vpack.c.b16 %v393, %v392
      %v405 = vpack.c.b16 %v395, %v394
      %v406 = vpack.c.b16 %v397, %v396
      %v407 = vpack.c.b16 %v399, %v398
      %v408 = vpack.c.b16 %v401, %v400
      %v417 = vsel %vm330, %v274, 0
      %419 = vmatprep.subr.bf16.mxu0 0
      %420 = vmatpush1.bf16.msra.mxu0 %v402
      %421 = vmatprep.subr.bf16.mxu0 0
      %422 = vmatpush1.bf16.msra.mxu0 %v403
      %423 = vmatprep.subr.bf16.mxu0 0
      %424 = vmatpush1.bf16.msra.mxu0 %v404
      %425 = vmatprep.subr.bf16.mxu0 0
      %426 = vmatpush1.bf16.msra.mxu0 %v405
      %427 = vmatprep.subr.bf16.mxu0 0
      %428 = vmatpush1.bf16.msra.mxu0 %v406
      %429 = vmatprep.subr.bf16.mxu0 0
      %430 = vmatpush1.bf16.msra.mxu0 %v407
      %431 = vmatprep.subr.bf16.mxu0 0
      %432 = vmatpush1.bf16.msra.mxu0 %v408
      %433 = vmatprep.subr.bf16.mxu0 0
      %434 = vmatpush1.bf16.msra.mxu0 0
      %435 = vmatprep.subr.bf16.mxu0 0
      %436 = vmatpush1.bf16.msra.mxu0 0
      %437 = vmatprep.subr.bf16.mxu0 0
      %438 = vmatpush1.bf16.msra.mxu0 0
      %439 = vmatprep.subr.bf16.mxu0 0
      %440 = vmatpush1.bf16.msra.mxu0 0
      %441 = vmatprep.subr.bf16.mxu0 0
      %442 = vmatpush1.bf16.msra.mxu0 0
      %443 = vmatprep.subr.bf16.mxu0 0
      %444 = vmatpush1.bf16.msra.mxu0 0
      %445 = vmatprep.subr.bf16.mxu0 0
      %446 = vmatpush1.bf16.msra.mxu0 0
      %447 = vmatprep.subr.bf16.mxu0 0
      %448 = vmatpush1.bf16.msra.mxu0 0
      %449 = vmatprep.subr.bf16.mxu0 0
      %450 = vmatpush1.bf16.msra.mxu0 0
      %451 = vmatprep.mubr.bf16.mxu0 0
      %452 = vmatmul.mubr.bf16.gmra.mrb[0].mxu0 %v417
      %v453 = vpop.f32.mrb[0].mxu0
      %v454 = vadd.f32 %v369, %v453
      %v455 = vpop.f32.mrb[0].mxu0
      %v456 = vpop.f32.mrb[0].mxu0
      %v457 = vpop.f32.mrb[0].mxu0
      %458 = vdwg.mxu0
      %v459 = vld [vmem:[%s273] sm:$0xe]
      %v461 = vunpack.c.l.b16 %v459
      %v462 = vpack.c.b16 %v279, %v461
      %v463 = vrot.slane %v462, 1
      %v478 = vunpack.c.l.b16 %v256
      %v479 = vunpack.c.l.b16 %v257
      %v480 = vunpack.c.l.b16 %v258
      %v481 = vunpack.c.l.b16 %v259
      %v482 = vunpack.c.l.b16 %v260
      %v483 = vunpack.c.l.b16 %v261
      %v484 = vunpack.c.l.b16 %v262
      %v485 = vunpack.c.l.b16 %v263
      %v486 = vunpack.c.l.b16 %v264
      %v487 = vunpack.c.l.b16 %v265
      %v488 = vunpack.c.l.b16 %v266
      %v489 = vunpack.c.l.b16 %v267
      %v490 = vunpack.c.l.b16 %v268
      %v491 = vunpack.c.l.b16 %v269
      %v492 = vpack.c.b16 %v479, %v478
      %v493 = vpack.c.b16 %v481, %v480
      %v494 = vpack.c.b16 %v483, %v482
      %v495 = vpack.c.b16 %v485, %v484
      %v496 = vpack.c.b16 %v487, %v486
      %v497 = vpack.c.b16 %v489, %v488
      %v498 = vpack.c.b16 %v491, %v490
      %v507 = vsel %vm330, %v463, 0
      %509 = vmatprep.subr.bf16.mxu0 0
      %510 = vmatpush1.bf16.msra.mxu0 %v492
      %511 = vmatprep.subr.bf16.mxu0 0
      %512 = vmatpush1.bf16.msra.mxu0 %v493
      %513 = vmatprep.subr.bf16.mxu0 0
      %514 = vmatpush1.bf16.msra.mxu0 %v494
      %515 = vmatprep.subr.bf16.mxu0 0
      %516 = vmatpush1.bf16.msra.mxu0 %v495
      %517 = vmatprep.subr.bf16.mxu0 0
      %518 = vmatpush1.bf16.msra.mxu0 %v496
      %519 = vmatprep.subr.bf16.mxu0 0
      %520 = vmatpush1.bf16.msra.mxu0 %v497
      %521 = vmatprep.subr.bf16.mxu0 0
      %522 = vmatpush1.bf16.msra.mxu0 %v498
      %523 = vmatprep.subr.bf16.mxu0 0
      %524 = vmatpush1.bf16.msra.mxu0 0
      %525 = vmatprep.subr.bf16.mxu0 0
      %526 = vmatpush1.bf16.msra.mxu0 0
      %527 = vmatprep.subr.bf16.mxu0 0
      %528 = vmatpush1.bf16.msra.mxu0 0
      %529 = vmatprep.subr.bf16.mxu0 0
      %530 = vmatpush1.bf16.msra.mxu0 0
      %531 = vmatprep.subr.bf16.mxu0 0
      %532 = vmatpush1.bf16.msra.mxu0 0
      %533 = vmatprep.subr.bf16.mxu0 0
      %534 = vmatpush1.bf16.msra.mxu0 0
      %535 = vmatprep.subr.bf16.mxu0 0
      %536 = vmatpush1.bf16.msra.mxu0 0
      %537 = vmatprep.subr.bf16.mxu0 0
      %538 = vmatpush1.bf16.msra.mxu0 0
      %539 = vmatprep.subr.bf16.mxu0 0
      %540 = vmatpush1.bf16.msra.mxu0 0
      %541 = vmatprep.mubr.bf16.mxu0 0
      %542 = vmatmul.mubr.bf16.gmra.mrb[0].mxu0 %v507
      %v543 = vpop.f32.mrb[0].mxu0
      %v544 = vadd.f32 0.0, %v543
      %v545 = vpop.f32.mrb[0].mxu0
      %v546 = vpop.f32.mrb[0].mxu0
      %v547 = vpop.f32.mrb[0].mxu0
      %548 = vdwg.mxu0
      %v549 = vadd.f32 %v454, %v544
      %v550 = vld [vmem:[#allocation2] sm:$0xff]
      %v551 = vadd.f32 %v550, %v549
      %vm552 = vcmask 523264
      %553 = vst.msk [vmem:[#allocation2] sm:$0xff] %vm552, %v551
      %s554 = sadd.s32 %s215, 1
      %s555 = sadd.s32 %s554, %s21
      %s556 = smul.u32 %s555, 2
      %s557 = smul.addr %s556, 4
      %s558 = scalar_lea.vmem %s190, %s557
      %v559 = vld [vmem:[%s558] sm:$0xf]
      %v560 = vld [vmem:[%s558 + $0x4] sm:$0x1]
      %v563 = vunpack.c.l.b16 %v559
      %v564 = vunpack.c.l.b16 %v560
      %v565 = vpack.c.b16 %v564, %v563
      %v567 = vshrl.u32 %v565, 16
      %v569 = vshll.u32 %v565, 16
      %v571 = vrot.slane %v569, 1
      %v572 = vor.u32 %v567, %v571
      %v574 = vsel %vm330, %v572, 0
      %576 = vmatprep.subr.bf16.mxu0 0
      %577 = vmatpush1.bf16.msra.mxu0 %v316
      %578 = vmatprep.subr.bf16.mxu0 0
      %579 = vmatpush1.bf16.msra.mxu0 %v317
      %580 = vmatprep.subr.bf16.mxu0 0
      %581 = vmatpush1.bf16.msra.mxu0 %v318
      %582 = vmatprep.subr.bf16.mxu0 0
      %583 = vmatpush1.bf16.msra.mxu0 %v319
      %584 = vmatprep.subr.bf16.mxu0 0
      %585 = vmatpush1.bf16.msra.mxu0 %v320
      %586 = vmatprep.subr.bf16.mxu0 0
      %587 = vmatpush1.bf16.msra.mxu0 %v321
      %588 = vmatprep.subr.bf16.mxu0 0
      %589 = vmatpush1.bf16.msra.mxu0 %v322
      %590 = vmatprep.subr.bf16.mxu0 0
      %591 = vmatpush1.bf16.msra.mxu0 0
      %592 = vmatprep.subr.bf16.mxu0 0
      %593 = vmatpush1.bf16.msra.mxu0 0
      %594 = vmatprep.subr.bf16.mxu0 0
      %595 = vmatpush1.bf16.msra.mxu0 0
      %596 = vmatprep.subr.bf16.mxu0 0
      %597 = vmatpush1.bf16.msra.mxu0 0
      %598 = vmatprep.subr.bf16.mxu0 0
      %599 = vmatpush1.bf16.msra.mxu0 0
      %600 = vmatprep.subr.bf16.mxu0 0
      %601 = vmatpush1.bf16.msra.mxu0 0
      %602 = vmatprep.subr.bf16.mxu0 0
      %603 = vmatpush1.bf16.msra.mxu0 0
      %604 = vmatprep.subr.bf16.mxu0 0
      %605 = vmatpush1.bf16.msra.mxu0 0
      %606 = vmatprep.subr.bf16.mxu0 0
      %607 = vmatpush1.bf16.msra.mxu0 0
      %608 = vmatprep.mubr.bf16.mxu0 0
      %609 = vmatmul.mubr.bf16.gmra.mrb[0].mxu0 %v574
      %v610 = vpop.f32.mrb[0].mxu0
      %v611 = vadd.f32 0.0, %v610
      %v612 = vpop.f32.mrb[0].mxu0
      %v613 = vpop.f32.mrb[0].mxu0
      %v614 = vpop.f32.mrb[0].mxu0
      %615 = vdwg.mxu0
      %v617 = vsel %vm330, %v559, 0
      %619 = vmatprep.subr.bf16.mxu0 0
      %620 = vmatpush1.bf16.msra.mxu0 %v402
      %621 = vmatprep.subr.bf16.mxu0 0
      %622 = vmatpush1.bf16.msra.mxu0 %v403
      %623 = vmatprep.subr.bf16.mxu0 0
      %624 = vmatpush1.bf16.msra.mxu0 %v404
      %625 = vmatprep.subr.bf16.mxu0 0
      %626 = vmatpush1.bf16.msra.mxu0 %v405
      %627 = vmatprep.subr.bf16.mxu0 0
      %628 = vmatpush1.bf16.msra.mxu0 %v406
      %629 = vmatprep.subr.bf16.mxu0 0
      %630 = vmatpush1.bf16.msra.mxu0 %v407
      %631 = vmatprep.subr.bf16.mxu0 0
      %632 = vmatpush1.bf16.msra.mxu0 %v408
      %633 = vmatprep.subr.bf16.mxu0 0
      %634 = vmatpush1.bf16.msra.mxu0 0
      %635 = vmatprep.subr.bf16.mxu0 0
      %636 = vmatpush1.bf16.msra.mxu0 0
      %637 = vmatprep.subr.bf16.mxu0 0
      %638 = vmatpush1.bf16.msra.mxu0 0
      %639 = vmatprep.subr.bf16.mxu0 0
      %640 = vmatpush1.bf16.msra.mxu0 0
      %641 = vmatprep.subr.bf16.mxu0 0
      %642 = vmatpush1.bf16.msra.mxu0 0
      %643 = vmatprep.subr.bf16.mxu0 0
      %644 = vmatpush1.bf16.msra.mxu0 0
      %645 = vmatprep.subr.bf16.mxu0 0
      %646 = vmatpush1.bf16.msra.mxu0 0
      %647 = vmatprep.subr.bf16.mxu0 0
      %648 = vmatpush1.bf16.msra.mxu0 0
      %649 = vmatprep.subr.bf16.mxu0 0
      %650 = vmatpush1.bf16.msra.mxu0 0
      %651 = vmatprep.mubr.bf16.mxu0 0
      %652 = vmatmul.mubr.bf16.gmra.mrb[0].mxu0 %v617
      %v653 = vpop.f32.mrb[0].mxu0
      %v654 = vadd.f32 %v611, %v653
      %v655 = vpop.f32.mrb[0].mxu0
      %v656 = vpop.f32.mrb[0].mxu0
      %v657 = vpop.f32.mrb[0].mxu0
      %658 = vdwg.mxu0
      %v659 = vld [vmem:[%s558] sm:$0xe]
      %v661 = vunpack.c.l.b16 %v659
      %v662 = vpack.c.b16 %v564, %v661
      %v663 = vrot.slane %v662, 1
      %v665 = vsel %vm330, %v663, 0
      %667 = vmatprep.subr.bf16.mxu0 0
      %668 = vmatpush1.bf16.msra.mxu0 %v492
      %669 = vmatprep.subr.bf16.mxu0 0
      %670 = vmatpush1.bf16.msra.mxu0 %v493
      %671 = vmatprep.subr.bf16.mxu0 0
      %672 = vmatpush1.bf16.msra.mxu0 %v494
      %673 = vmatprep.subr.bf16.mxu0 0
      %674 = vmatpush1.bf16.msra.mxu0 %v495
      %675 = vmatprep.subr.bf16.mxu0 0
      %676 = vmatpush1.bf16.msra.mxu0 %v496
      %677 = vmatprep.subr.bf16.mxu0 0
      %678 = vmatpush1.bf16.msra.mxu0 %v497
      %679 = vmatprep.subr.bf16.mxu0 0
      %680 = vmatpush1.bf16.msra.mxu0 %v498
      %681 = vmatprep.subr.bf16.mxu0 0
      %682 = vmatpush1.bf16.msra.mxu0 0
      %683 = vmatprep.subr.bf16.mxu0 0
      %684 = vmatpush1.bf16.msra.mxu0 0
      %685 = vmatprep.subr.bf16.mxu0 0
      %686 = vmatpush1.bf16.msra.mxu0 0
      %687 = vmatprep.subr.bf16.mxu0 0
      %688 = vmatpush1.bf16.msra.mxu0 0
      %689 = vmatprep.subr.bf16.mxu0 0
      %690 = vmatpush1.bf16.msra.mxu0 0
      %691 = vmatprep.subr.bf16.mxu0 0
      %692 = vmatpush1.bf16.msra.mxu0 0
      %693 = vmatprep.subr.bf16.mxu0 0
      %694 = vmatpush1.bf16.msra.mxu0 0
      %695 = vmatprep.subr.bf16.mxu0 0
      %696 = vmatpush1.bf16.msra.mxu0 0
      %697 = vmatprep.subr.bf16.mxu0 0
      %698 = vmatpush1.bf16.msra.mxu0 0
      %699 = vmatprep.mubr.bf16.mxu0 0
      %700 = vmatmul.mubr.bf16.gmra.mrb[0].mxu0 %v665
      %v701 = vpop.f32.mrb[0].mxu0
      %v702 = vadd.f32 0.0, %v701
      %v703 = vpop.f32.mrb[0].mxu0
      %v704 = vpop.f32.mrb[0].mxu0
      %v705 = vpop.f32.mrb[0].mxu0
      %706 = vdwg.mxu0
      %v707 = vadd.f32 %v654, %v702
      %s708 = scalar_lea.vmem [#allocation2], 8
      %v709 = vld [vmem:[%s708] sm:$0xff]
      %v710 = vadd.f32 %v709, %v707
      %711 = vst.msk [vmem:[%s708] sm:$0xff] %vm552, %v710
      %s712 = sadd.s32 %s215, 2
      %s713 = sadd.s32 %s712, %s21
      %s714 = smul.u32 %s713, 2
      %s715 = smul.addr %s714, 4
      %s716 = scalar_lea.vmem %s190, %s715
      %v717 = vld [vmem:[%s716] sm:$0xf]
      %v718 = vld [vmem:[%s716 + $0x4] sm:$0x1]
      %v721 = vunpack.c.l.b16 %v717
      %v722 = vunpack.c.l.b16 %v718
      %v723 = vpack.c.b16 %v722, %v721
      %v725 = vshrl.u32 %v723, 16
      %v727 = vshll.u32 %v723, 16
      %v729 = vrot.slane %v727, 1
      %v730 = vor.u32 %v725, %v729
      %v732 = vsel %vm330, %v730, 0
      %734 = vmatprep.subr.bf16.mxu0 0
      %735 = vmatpush1.bf16.msra.mxu0 %v316
      %736 = vmatprep.subr.bf16.mxu0 0
      %737 = vmatpush1.bf16.msra.mxu0 %v317
      %738 = vmatprep.subr.bf16.mxu0 0
      %739 = vmatpush1.bf16.msra.mxu0 %v318
      %740 = vmatprep.subr.bf16.mxu0 0
      %741 = vmatpush1.bf16.msra.mxu0 %v319
      %742 = vmatprep.subr.bf16.mxu0 0
      %743 = vmatpush1.bf16.msra.mxu0 %v320
      %744 = vmatprep.subr.bf16.mxu0 0
      %745 = vmatpush1.bf16.msra.mxu0 %v321
      %746 = vmatprep.subr.bf16.mxu0 0
      %747 = vmatpush1.bf16.msra.mxu0 %v322
      %748 = vmatprep.subr.bf16.mxu0 0
      %749 = vmatpush1.bf16.msra.mxu0 0
      %750 = vmatprep.subr.bf16.mxu0 0
      %751 = vmatpush1.bf16.msra.mxu0 0
      %752 = vmatprep.subr.bf16.mxu0 0
      %753 = vmatpush1.bf16.msra.mxu0 0
      %754 = vmatprep.subr.bf16.mxu0 0
      %755 = vmatpush1.bf16.msra.mxu0 0
      %756 = vmatprep.subr.bf16.mxu0 0
      %757 = vmatpush1.bf16.msra.mxu0 0
      %758 = vmatprep.subr.bf16.mxu0 0
      %759 = vmatpush1.bf16.msra.mxu0 0
      %760 = vmatprep.subr.bf16.mxu0 0
      %761 = vmatpush1.bf16.msra.mxu0 0
      %762 = vmatprep.subr.bf16.mxu0 0
      %763 = vmatpush1.bf16.msra.mxu0 0
      %764 = vmatprep.subr.bf16.mxu0 0
      %765 = vmatpush1.bf16.msra.mxu0 0
      %766 = vmatprep.mubr.bf16.mxu0 0
      %767 = vmatmul.mubr.bf16.gmra.mrb[0].mxu0 %v732
      %v768 = vpop.f32.mrb[0].mxu0
      %v769 = vadd.f32 0.0, %v768
      %v770 = vpop.f32.mrb[0].mxu0
      %v771 = vpop.f32.mrb[0].mxu0
      %v772 = vpop.f32.mrb[0].mxu0
      %773 = vdwg.mxu0
      %v775 = vsel %vm330, %v717, 0
      %777 = vmatprep.subr.bf16.mxu0 0
      %778 = vmatpush1.bf16.msra.mxu0 %v402
      %779 = vmatprep.subr.bf16.mxu0 0
      %780 = vmatpush1.bf16.msra.mxu0 %v403
      %781 = vmatprep.subr.bf16.mxu0 0
      %782 = vmatpush1.bf16.msra.mxu0 %v404
      %783 = vmatprep.subr.bf16.mxu0 0
      %784 = vmatpush1.bf16.msra.mxu0 %v405
      %785 = vmatprep.subr.bf16.mxu0 0
      %786 = vmatpush1.bf16.msra.mxu0 %v406
      %787 = vmatprep.subr.bf16.mxu0 0
      %788 = vmatpush1.bf16.msra.mxu0 %v407
      %789 = vmatprep.subr.bf16.mxu0 0
      %790 = vmatpush1.bf16.msra.mxu0 %v408
      %791 = vmatprep.subr.bf16.mxu0 0
      %792 = vmatpush1.bf16.msra.mxu0 0
      %793 = vmatprep.subr.bf16.mxu0 0
      %794 = vmatpush1.bf16.msra.mxu0 0
      %795 = vmatprep.subr.bf16.mxu0 0
      %796 = vmatpush1.bf16.msra.mxu0 0
      %797 = vmatprep.subr.bf16.mxu0 0
      %798 = vmatpush1.bf16.msra.mxu0 0
      %799 = vmatprep.subr.bf16.mxu0 0
      %800 = vmatpush1.bf16.msra.mxu0 0
      %801 = vmatprep.subr.bf16.mxu0 0
      %802 = vmatpush1.bf16.msra.mxu0 0
      %803 = vmatprep.subr.bf16.mxu0 0
      %804 = vmatpush1.bf16.msra.mxu0 0
      %805 = vmatprep.subr.bf16.mxu0 0
      %806 = vmatpush1.bf16.msra.mxu0 0
      %807 = vmatprep.subr.bf16.mxu0 0
      %808 = vmatpush1.bf16.msra.mxu0 0
      %809 = vmatprep.mubr.bf16.mxu0 0
      %810 = vmatmul.mubr.bf16.gmra.mrb[0].mxu0 %v775
      %v811 = vpop.f32.mrb[0].mxu0
      %v812 = vadd.f32 %v769, %v811
      %v813 = vpop.f32.mrb[0].mxu0
      %v814 = vpop.f32.mrb[0].mxu0
      %v815 = vpop.f32.mrb[0].mxu0
      %816 = vdwg.mxu0
      %v817 = vld [vmem:[%s716] sm:$0xe]
      %v819 = vunpack.c.l.b16 %v817
      %v820 = vpack.c.b16 %v722, %v819
      %v821 = vrot.slane %v820, 1
      %v823 = vsel %vm330, %v821, 0
      %825 = vmatprep.subr.bf16.mxu0 0
      %826 = vmatpush1.bf16.msra.mxu0 %v492
      %827 = vmatprep.subr.bf16.mxu0 0
      %828 = vmatpush1.bf16.msra.mxu0 %v493
      %829 = vmatprep.subr.bf16.mxu0 0
      %830 = vmatpush1.bf16.msra.mxu0 %v494
      %831 = vmatprep.subr.bf16.mxu0 0
      %832 = vmatpush1.bf16.msra.mxu0 %v495
      %833 = vmatprep.subr.bf16.mxu0 0
      %834 = vmatpush1.bf16.msra.mxu0 %v496
      %835 = vmatprep.subr.bf16.mxu0 0
      %836 = vmatpush1.bf16.msra.mxu0 %v497
      %837 = vmatprep.subr.bf16.mxu0 0
      %838 = vmatpush1.bf16.msra.mxu0 %v498
      %839 = vmatprep.subr.bf16.mxu0 0
      %840 = vmatpush1.bf16.msra.mxu0 0
      %841 = vmatprep.subr.bf16.mxu0 0
      %842 = vmatpush1.bf16.msra.mxu0 0
      %843 = vmatprep.subr.bf16.mxu0 0
      %844 = vmatpush1.bf16.msra.mxu0 0
      %845 = vmatprep.subr.bf16.mxu0 0
      %846 = vmatpush1.bf16.msra.mxu0 0
      %847 = vmatprep.subr.bf16.mxu0 0
      %848 = vmatpush1.bf16.msra.mxu0 0
      %849 = vmatprep.subr.bf16.mxu0 0
      %850 = vmatpush1.bf16.msra.mxu0 0
      %851 = vmatprep.subr.bf16.mxu0 0
      %852 = vmatpush1.bf16.msra.mxu0 0
      %853 = vmatprep.subr.bf16.mxu0 0
      %854 = vmatpush1.bf16.msra.mxu0 0
      %855 = vmatprep.subr.bf16.mxu0 0
      %856 = vmatpush1.bf16.msra.mxu0 0
      %857 = vmatprep.mubr.bf16.mxu0 0
      %858 = vmatmul.mubr.bf16.gmra.mrb[0].mxu0 %v823
      %v859 = vpop.f32.mrb[0].mxu0
      %v860 = vadd.f32 0.0, %v859
      %v861 = vpop.f32.mrb[0].mxu0
      %v862 = vpop.f32.mrb[0].mxu0
      %v863 = vpop.f32.mrb[0].mxu0
      %864 = vdwg.mxu0
      %v865 = vadd.f32 %v812, %v860
      %s866 = scalar_lea.vmem [#allocation2], 16
      %v867 = vld [vmem:[%s866] sm:$0xff]
      %v868 = vadd.f32 %v867, %v865
      %869 = vst.msk [vmem:[%s866] sm:$0xff] %vm552, %v868
      %s870 = sadd.s32 %s215, 3
      %s871 = sadd.s32 %s870, %s21
      %s872 = smul.u32 %s871, 2
      %s873 = smul.addr %s872, 4
      %s874 = scalar_lea.vmem %s190, %s873
      %v875 = vld [vmem:[%s874] sm:$0xf]
      %v876 = vld [vmem:[%s874 + $0x4] sm:$0x1]
      %v879 = vunpack.c.l.b16 %v875
      %v880 = vunpack.c.l.b16 %v876
      %v881 = vpack.c.b16 %v880, %v879
      %v883 = vshrl.u32 %v881, 16
      %v885 = vshll.u32 %v881, 16
      %v887 = vrot.slane %v885, 1
      %v888 = vor.u32 %v883, %v887
      %v890 = vsel %vm330, %v888, 0
      %892 = vmatprep.subr.bf16.mxu0 0
      %893 = vmatpush1.bf16.msra.mxu0 %v316
      %894 = vmatprep.subr.bf16.mxu0 0
      %895 = vmatpush1.bf16.msra.mxu0 %v317
      %896 = vmatprep.subr.bf16.mxu0 0
      %897 = vmatpush1.bf16.msra.mxu0 %v318
      %898 = vmatprep.subr.bf16.mxu0 0
      %899 = vmatpush1.bf16.msra.mxu0 %v319
      %900 = vmatprep.subr.bf16.mxu0 0
      %901 = vmatpush1.bf16.msra.mxu0 %v320
      %902 = vmatprep.subr.bf16.mxu0 0
      %903 = vmatpush1.bf16.msra.mxu0 %v321
      %904 = vmatprep.subr.bf16.mxu0 0
      %905 = vmatpush1.bf16.msra.mxu0 %v322
      %906 = vmatprep.subr.bf16.mxu0 0
      %907 = vmatpush1.bf16.msra.mxu0 0
      %908 = vmatprep.subr.bf16.mxu0 0
      %909 = vmatpush1.bf16.msra.mxu0 0
      %910 = vmatprep.subr.bf16.mxu0 0
      %911 = vmatpush1.bf16.msra.mxu0 0
      %912 = vmatprep.subr.bf16.mxu0 0
      %913 = vmatpush1.bf16.msra.mxu0 0
      %914 = vmatprep.subr.bf16.mxu0 0
      %915 = vmatpush1.bf16.msra.mxu0 0
      %916 = vmatprep.subr.bf16.mxu0 0
      %917 = vmatpush1.bf16.msra.mxu0 0
      %918 = vmatprep.subr.bf16.mxu0 0
      %919 = vmatpush1.bf16.msra.mxu0 0
      %920 = vmatprep.subr.bf16.mxu0 0
      %921 = vmatpush1.bf16.msra.mxu0 0
      %922 = vmatprep.subr.bf16.mxu0 0
      %923 = vmatpush1.bf16.msra.mxu0 0
      %924 = vmatprep.mubr.bf16.mxu0 0
      %925 = vmatmul.mubr.bf16.gmra.mrb[0].mxu0 %v890
      %v926 = vpop.f32.mrb[0].mxu0
      %v927 = vadd.f32 0.0, %v926
      %v928 = vpop.f32.mrb[0].mxu0
      %v929 = vpop.f32.mrb[0].mxu0
      %v930 = vpop.f32.mrb[0].mxu0
      %931 = vdwg.mxu0
      %v933 = vsel %vm330, %v875, 0
      %935 = vmatprep.subr.bf16.mxu0 0
      %936 = vmatpush1.bf16.msra.mxu0 %v402
      %937 = vmatprep.subr.bf16.mxu0 0
      %938 = vmatpush1.bf16.msra.mxu0 %v403
      %939 = vmatprep.subr.bf16.mxu0 0
      %940 = vmatpush1.bf16.msra.mxu0 %v404
      %941 = vmatprep.subr.bf16.mxu0 0
      %942 = vmatpush1.bf16.msra.mxu0 %v405
      %943 = vmatprep.subr.bf16.mxu0 0
      %944 = vmatpush1.bf16.msra.mxu0 %v406
      %945 = vmatprep.subr.bf16.mxu0 0
      %946 = vmatpush1.bf16.msra.mxu0 %v407
      %947 = vmatprep.subr.bf16.mxu0 0
      %948 = vmatpush1.bf16.msra.mxu0 %v408
      %949 = vmatprep.subr.bf16.mxu0 0
      %950 = vmatpush1.bf16.msra.mxu0 0
      %951 = vmatprep.subr.bf16.mxu0 0
      %952 = vmatpush1.bf16.msra.mxu0 0
      %953 = vmatprep.subr.bf16.mxu0 0
      %954 = vmatpush1.bf16.msra.mxu0 0
      %955 = vmatprep.subr.bf16.mxu0 0
      %956 = vmatpush1.bf16.msra.mxu0 0
      %957 = vmatprep.subr.bf16.mxu0 0
      %958 = vmatpush1.bf16.msra.mxu0 0
      %959 = vmatprep.subr.bf16.mxu0 0
      %960 = vmatpush1.bf16.msra.mxu0 0
      %961 = vmatprep.subr.bf16.mxu0 0
      %962 = vmatpush1.bf16.msra.mxu0 0
      %963 = vmatprep.subr.bf16.mxu0 0
      %964 = vmatpush1.bf16.msra.mxu0 0
      %965 = vmatprep.subr.bf16.mxu0 0
      %966 = vmatpush1.bf16.msra.mxu0 0
      %967 = vmatprep.mubr.bf16.mxu0 0
      %968 = vmatmul.mubr.bf16.gmra.mrb[0].mxu0 %v933
      %v969 = vpop.f32.mrb[0].mxu0
      %v970 = vadd.f32 %v927, %v969
      %v971 = vpop.f32.mrb[0].mxu0
      %v972 = vpop.f32.mrb[0].mxu0
      %v973 = vpop.f32.mrb[0].mxu0
      %974 = vdwg.mxu0
      %v975 = vld [vmem:[%s874] sm:$0xe]
      %v977 = vunpack.c.l.b16 %v975
      %v978 = vpack.c.b16 %v880, %v977
      %v979 = vrot.slane %v978, 1
      %v981 = vsel %vm330, %v979, 0
      %983 = vmatprep.subr.bf16.mxu0 0
      %984 = vmatpush1.bf16.msra.mxu0 %v492
      %985 = vmatprep.subr.bf16.mxu0 0
      %986 = vmatpush1.bf16.msra.mxu0 %v493
      %987 = vmatprep.subr.bf16.mxu0 0
      %988 = vmatpush1.bf16.msra.mxu0 %v494
      %989 = vmatprep.subr.bf16.mxu0 0
      %990 = vmatpush1.bf16.msra.mxu0 %v495
      %991 = vmatprep.subr.bf16.mxu0 0
      %992 = vmatpush1.bf16.msra.mxu0 %v496
      %993 = vmatprep.subr.bf16.mxu0 0
      %994 = vmatpush1.bf16.msra.mxu0 %v497
      %995 = vmatprep.subr.bf16.mxu0 0
      %996 = vmatpush1.bf16.msra.mxu0 %v498
      %997 = vmatprep.subr.bf16.mxu0 0
      %998 = vmatpush1.bf16.msra.mxu0 0
      %999 = vmatprep.subr.bf16.mxu0 0
      %1000 = vmatpush1.bf16.msra.mxu0 0
      %1001 = vmatprep.subr.bf16.mxu0 0
      %1002 = vmatpush1.bf16.msra.mxu0 0
      %1003 = vmatprep.subr.bf16.mxu0 0
      %1004 = vmatpush1.bf16.msra.mxu0 0
      %1005 = vmatprep.subr.bf16.mxu0 0
      %1006 = vmatpush1.bf16.msra.mxu0 0
      %1007 = vmatprep.subr.bf16.mxu0 0
      %1008 = vmatpush1.bf16.msra.mxu0 0
      %1009 = vmatprep.subr.bf16.mxu0 0
      %1010 = vmatpush1.bf16.msra.mxu0 0
      %1011 = vmatprep.subr.bf16.mxu0 0
      %1012 = vmatpush1.bf16.msra.mxu0 0
      %1013 = vmatprep.subr.bf16.mxu0 0
      %1014 = vmatpush1.bf16.msra.mxu0 0
      %1015 = vmatprep.mubr.bf16.mxu0 0
      %1016 = vmatmul.mubr.bf16.gmra.mrb[0].mxu0 %v981
      %v1017 = vpop.f32.mrb[0].mxu0
      %v1018 = vadd.f32 0.0, %v1017
      %v1019 = vpop.f32.mrb[0].mxu0
      %v1020 = vpop.f32.mrb[0].mxu0
      %v1021 = vpop.f32.mrb[0].mxu0
      %1022 = vdwg.mxu0
      %v1023 = vadd.f32 %v970, %v1018
      %s1024 = scalar_lea.vmem [#allocation2], 24
      %v1025 = vld [vmem:[%s1024] sm:$0xff]
      %v1026 = vadd.f32 %v1025, %v1023
      %1027 = vst.msk [vmem:[%s1024] sm:$0xff] %vm552, %v1026
      %s1028 = sadd.s32 %s215, 4
      %s1029 = sadd.s32 %s1028, %s21
      %s1030 = smul.u32 %s1029, 2
      %s1031 = smul.addr %s1030, 4
      %s1032 = scalar_lea.vmem %s190, %s1031
      %v1033 = vld [vmem:[%s1032] sm:$0xf]
      %v1034 = vld [vmem:[%s1032 + $0x4] sm:$0x1]
      %v1037 = vunpack.c.l.b16 %v1033
      %v1038 = vunpack.c.l.b16 %v1034
      %v1039 = vpack.c.b16 %v1038, %v1037
      %v1041 = vshrl.u32 %v1039, 16
      %v1043 = vshll.u32 %v1039, 16
      %v1045 = vrot.slane %v1043, 1
      %v1046 = vor.u32 %v1041, %v1045
      %v1048 = vsel %vm330, %v1046, 0
      %1050 = vmatprep.subr.bf16.mxu0 0
      %1051 = vmatpush1.bf16.msra.mxu0 %v316
      %1052 = vmatprep.subr.bf16.mxu0 0
      %1053 = vmatpush1.bf16.msra.mxu0 %v317
      %1054 = vmatprep.subr.bf16.mxu0 0
      %1055 = vmatpush1.bf16.msra.mxu0 %v318
      %1056 = vmatprep.subr.bf16.mxu0 0
      %1057 = vmatpush1.bf16.msra.mxu0 %v319
      %1058 = vmatprep.subr.bf16.mxu0 0
      %1059 = vmatpush1.bf16.msra.mxu0 %v320
      %1060 = vmatprep.subr.bf16.mxu0 0
      %1061 = vmatpush1.bf16.msra.mxu0 %v321
      %1062 = vmatprep.subr.bf16.mxu0 0
      %1063 = vmatpush1.bf16.msra.mxu0 %v322
      %1064 = vmatprep.subr.bf16.mxu0 0
      %1065 = vmatpush1.bf16.msra.mxu0 0
      %1066 = vmatprep.subr.bf16.mxu0 0
      %1067 = vmatpush1.bf16.msra.mxu0 0
      %1068 = vmatprep.subr.bf16.mxu0 0
      %1069 = vmatpush1.bf16.msra.mxu0 0
      %1070 = vmatprep.subr.bf16.mxu0 0
      %1071 = vmatpush1.bf16.msra.mxu0 0
      %1072 = vmatprep.subr.bf16.mxu0 0
      %1073 = vmatpush1.bf16.msra.mxu0 0
      %1074 = vmatprep.subr.bf16.mxu0 0
      %1075 = vmatpush1.bf16.msra.mxu0 0
      %1076 = vmatprep.subr.bf16.mxu0 0
      %1077 = vmatpush1.bf16.msra.mxu0 0
      %1078 = vmatprep.subr.bf16.mxu0 0
      %1079 = vmatpush1.bf16.msra.mxu0 0
      %1080 = vmatprep.subr.bf16.mxu0 0
      %1081 = vmatpush1.bf16.msra.mxu0 0
      %1082 = vmatprep.mubr.bf16.mxu0 0
      %1083 = vmatmul.mubr.bf16.gmra.mrb[0].mxu0 %v1048
      %v1084 = vpop.f32.mrb[0].mxu0
      %v1085 = vadd.f32 0.0, %v1084
      %v1086 = vpop.f32.mrb[0].mxu0
      %v1087 = vpop.f32.mrb[0].mxu0
      %v1088 = vpop.f32.mrb[0].mxu0
      %1089 = vdwg.mxu0
      %v1091 = vsel %vm330, %v1033, 0
      %1093 = vmatprep.subr.bf16.mxu0 0
      %1094 = vmatpush1.bf16.msra.mxu0 %v402
      %1095 = vmatprep.subr.bf16.mxu0 0
      %1096 = vmatpush1.bf16.msra.mxu0 %v403
      %1097 = vmatprep.subr.bf16.mxu0 0
      %1098 = vmatpush1.bf16.msra.mxu0 %v404
      %1099 = vmatprep.subr.bf16.mxu0 0
      %1100 = vmatpush1.bf16.msra.mxu0 %v405
      %1101 = vmatprep.subr.bf16.mxu0 0
      %1102 = vmatpush1.bf16.msra.mxu0 %v406
      %1103 = vmatprep.subr.bf16.mxu0 0
      %1104 = vmatpush1.bf16.msra.mxu0 %v407
      %1105 = vmatprep.subr.bf16.mxu0 0
      %1106 = vmatpush1.bf16.msra.mxu0 %v408
      %1107 = vmatprep.subr.bf16.mxu0 0
      %1108 = vmatpush1.bf16.msra.mxu0 0
      %1109 = vmatprep.subr.bf16.mxu0 0
      %1110 = vmatpush1.bf16.msra.mxu0 0
      %1111 = vmatprep.subr.bf16.mxu0 0
      %1112 = vmatpush1.bf16.msra.mxu0 0
      %1113 = vmatprep.subr.bf16.mxu0 0
      %1114 = vmatpush1.bf16.msra.mxu0 0
      %1115 = vmatprep.subr.bf16.mxu0 0
      %1116 = vmatpush1.bf16.msra.mxu0 0
      %1117 = vmatprep.subr.bf16.mxu0 0
      %1118 = vmatpush1.bf16.msra.mxu0 0
      %1119 = vmatprep.subr.bf16.mxu0 0
      %1120 = vmatpush1.bf16.msra.mxu0 0
      %1121 = vmatprep.subr.bf16.mxu0 0
      %1122 = vmatpush1.bf16.msra.mxu0 0
      %1123 = vmatprep.subr.bf16.mxu0 0
      %1124 = vmatpush1.bf16.msra.mxu0 0
      %1125 = vmatprep.mubr.bf16.mxu0 0
      %1126 = vmatmul.mubr.bf16.gmra.mrb[0].mxu0 %v1091
      %v1127 = vpop.f32.mrb[0].mxu0
      %v1128 = vadd.f32 %v1085, %v1127
      %v1129 = vpop.f32.mrb[0].mxu0
      %v1130 = vpop.f32.mrb[0].mxu0
      %v1131 = vpop.f32.mrb[0].mxu0
      %1132 = vdwg.mxu0
      %v1133 = vld [vmem:[%s1032] sm:$0xe]
      %v1135 = vunpack.c.l.b16 %v1133
      %v1136 = vpack.c.b16 %v1038, %v1135
      %v1137 = vrot.slane %v1136, 1
      %v1139 = vsel %vm330, %v1137, 0
      %1141 = vmatprep.subr.bf16.mxu0 0
      %1142 = vmatpush1.bf16.msra.mxu0 %v492
      %1143 = vmatprep.subr.bf16.mxu0 0
      %1144 = vmatpush1.bf16.msra.mxu0 %v493
      %1145 = vmatprep.subr.bf16.mxu0 0
      %1146 = vmatpush1.bf16.msra.mxu0 %v494
      %1147 = vmatprep.subr.bf16.mxu0 0
      %1148 = vmatpush1.bf16.msra.mxu0 %v495
      %1149 = vmatprep.subr.bf16.mxu0 0
      %1150 = vmatpush1.bf16.msra.mxu0 %v496
      %1151 = vmatprep.subr.bf16.mxu0 0
      %1152 = vmatpush1.bf16.msra.mxu0 %v497
      %1153 = vmatprep.subr.bf16.mxu0 0
      %1154 = vmatpush1.bf16.msra.mxu0 %v498
      %1155 = vmatprep.subr.bf16.mxu0 0
      %1156 = vmatpush1.bf16.msra.mxu0 0
      %1157 = vmatprep.subr.bf16.mxu0 0
      %1158 = vmatpush1.bf16.msra.mxu0 0
      %1159 = vmatprep.subr.bf16.mxu0 0
      %1160 = vmatpush1.bf16.msra.mxu0 0
      %1161 = vmatprep.subr.bf16.mxu0 0
      %1162 = vmatpush1.bf16.msra.mxu0 0
      %1163 = vmatprep.subr.bf16.mxu0 0
      %1164 = vmatpush1.bf16.msra.mxu0 0
      %1165 = vmatprep.subr.bf16.mxu0 0
      %1166 = vmatpush1.bf16.msra.mxu0 0
      %1167 = vmatprep.subr.bf16.mxu0 0
      %1168 = vmatpush1.bf16.msra.mxu0 0
      %1169 = vmatprep.subr.bf16.mxu0 0
      %1170 = vmatpush1.bf16.msra.mxu0 0
      %1171 = vmatprep.subr.bf16.mxu0 0
      %1172 = vmatpush1.bf16.msra.mxu0 0
      %1173 = vmatprep.mubr.bf16.mxu0 0
      %1174 = vmatmul.mubr.bf16.gmra.mrb[0].mxu0 %v1139
      %v1175 = vpop.f32.mrb[0].mxu0
      %v1176 = vadd.f32 0.0, %v1175
      %v1177 = vpop.f32.mrb[0].mxu0
      %v1178 = vpop.f32.mrb[0].mxu0
      %v1179 = vpop.f32.mrb[0].mxu0
      %1180 = vdwg.mxu0
      %v1181 = vadd.f32 %v1128, %v1176
      %s1182 = scalar_lea.vmem [#allocation2], 32
      %v1183 = vld [vmem:[%s1182] sm:$0xff]
      %v1184 = vadd.f32 %v1183, %v1181
      %1185 = vst.msk [vmem:[%s1182] sm:$0xff] %vm552, %v1184
      %s1186 = sadd.s32 %s215, 5
      %s1187 = sadd.s32 %s1186, %s21
      %s1188 = smul.u32 %s1187, 2
      %s1189 = smul.addr %s1188, 4
      %s1190 = scalar_lea.vmem %s190, %s1189
      %v1191 = vld [vmem:[%s1190] sm:$0xf]
      %v1192 = vld [vmem:[%s1190 + $0x4] sm:$0x1]
      %v1195 = vunpack.c.l.b16 %v1191
      %v1196 = vunpack.c.l.b16 %v1192
      %v1197 = vpack.c.b16 %v1196, %v1195
      %v1199 = vshrl.u32 %v1197, 16
      %v1201 = vshll.u32 %v1197, 16
      %v1203 = vrot.slane %v1201, 1
      %v1204 = vor.u32 %v1199, %v1203
      %v1206 = vsel %vm330, %v1204, 0
      %1208 = vmatprep.subr.bf16.mxu0 0
      %1209 = vmatpush1.bf16.msra.mxu0 %v316
      %1210 = vmatprep.subr.bf16.mxu0 0
      %1211 = vmatpush1.bf16.msra.mxu0 %v317
      %1212 = vmatprep.subr.bf16.mxu0 0
      %1213 = vmatpush1.bf16.msra.mxu0 %v318
      %1214 = vmatprep.subr.bf16.mxu0 0
      %1215 = vmatpush1.bf16.msra.mxu0 %v319
      %1216 = vmatprep.subr.bf16.mxu0 0
      %1217 = vmatpush1.bf16.msra.mxu0 %v320
      %1218 = vmatprep.subr.bf16.mxu0 0
      %1219 = vmatpush1.bf16.msra.mxu0 %v321
      %1220 = vmatprep.subr.bf16.mxu0 0
      %1221 = vmatpush1.bf16.msra.mxu0 %v322
      %1222 = vmatprep.subr.bf16.mxu0 0
      %1223 = vmatpush1.bf16.msra.mxu0 0
      %1224 = vmatprep.subr.bf16.mxu0 0
      %1225 = vmatpush1.bf16.msra.mxu0 0
      %1226 = vmatprep.subr.bf16.mxu0 0
      %1227 = vmatpush1.bf16.msra.mxu0 0
      %1228 = vmatprep.subr.bf16.mxu0 0
      %1229 = vmatpush1.bf16.msra.mxu0 0
      %1230 = vmatprep.subr.bf16.mxu0 0
      %1231 = vmatpush1.bf16.msra.mxu0 0
      %1232 = vmatprep.subr.bf16.mxu0 0
      %1233 = vmatpush1.bf16.msra.mxu0 0
      %1234 = vmatprep.subr.bf16.mxu0 0
      %1235 = vmatpush1.bf16.msra.mxu0 0
      %1236 = vmatprep.subr.bf16.mxu0 0
      %1237 = vmatpush1.bf16.msra.mxu0 0
      %1238 = vmatprep.subr.bf16.mxu0 0
      %1239 = vmatpush1.bf16.msra.mxu0 0
      %1240 = vmatprep.mubr.bf16.mxu0 0
      %1241 = vmatmul.mubr.bf16.gmra.mrb[0].mxu0 %v1206
      %v1242 = vpop.f32.mrb[0].mxu0
      %v1243 = vadd.f32 0.0, %v1242
      %v1244 = vpop.f32.mrb[0].mxu0
      %v1245 = vpop.f32.mrb[0].mxu0
      %v1246 = vpop.f32.mrb[0].mxu0
      %1247 = vdwg.mxu0
      %v1249 = vsel %vm330, %v1191, 0
      %1251 = vmatprep.subr.bf16.mxu0 0
      %1252 = vmatpush1.bf16.msra.mxu0 %v402
      %1253 = vmatprep.subr.bf16.mxu0 0
      %1254 = vmatpush1.bf16.msra.mxu0 %v403
      %1255 = vmatprep.subr.bf16.mxu0 0
      %1256 = vmatpush1.bf16.msra.mxu0 %v404
      %1257 = vmatprep.subr.bf16.mxu0 0
      %1258 = vmatpush1.bf16.msra.mxu0 %v405
      %1259 = vmatprep.subr.bf16.mxu0 0
      %1260 = vmatpush1.bf16.msra.mxu0 %v406
      %1261 = vmatprep.subr.bf16.mxu0 0
      %1262 = vmatpush1.bf16.msra.mxu0 %v407
      %1263 = vmatprep.subr.bf16.mxu0 0
      %1264 = vmatpush1.bf16.msra.mxu0 %v408
      %1265 = vmatprep.subr.bf16.mxu0 0
      %1266 = vmatpush1.bf16.msra.mxu0 0
      %1267 = vmatprep.subr.bf16.mxu0 0
      %1268 = vmatpush1.bf16.msra.mxu0 0
      %1269 = vmatprep.subr.bf16.mxu0 0
      %1270 = vmatpush1.bf16.msra.mxu0 0
      %1271 = vmatprep.subr.bf16.mxu0 0
      %1272 = vmatpush1.bf16.msra.mxu0 0
      %1273 = vmatprep.subr.bf16.mxu0 0
      %1274 = vmatpush1.bf16.msra.mxu0 0
      %1275 = vmatprep.subr.bf16.mxu0 0
      %1276 = vmatpush1.bf16.msra.mxu0 0
      %1277 = vmatprep.subr.bf16.mxu0 0
      %1278 = vmatpush1.bf16.msra.mxu0 0
      %1279 = vmatprep.subr.bf16.mxu0 0
      %1280 = vmatpush1.bf16.msra.mxu0 0
      %1281 = vmatprep.subr.bf16.mxu0 0
      %1282 = vmatpush1.bf16.msra.mxu0 0
      %1283 = vmatprep.mubr.bf16.mxu0 0
      %1284 = vmatmul.mubr.bf16.gmra.mrb[0].mxu0 %v1249
      %v1285 = vpop.f32.mrb[0].mxu0
      %v1286 = vadd.f32 %v1243, %v1285
      %v1287 = vpop.f32.mrb[0].mxu0
      %v1288 = vpop.f32.mrb[0].mxu0
      %v1289 = vpop.f32.mrb[0].mxu0
      %1290 = vdwg.mxu0
      %v1291 = vld [vmem:[%s1190] sm:$0xe]
      %v1293 = vunpack.c.l.b16 %v1291
      %v1294 = vpack.c.b16 %v1196, %v1293
      %v1295 = vrot.slane %v1294, 1
      %v1297 = vsel %vm330, %v1295, 0
      %1299 = vmatprep.subr.bf16.mxu0 0
      %1300 = vmatpush1.bf16.msra.mxu0 %v492
      %1301 = vmatprep.subr.bf16.mxu0 0
      %1302 = vmatpush1.bf16.msra.mxu0 %v493
      %1303 = vmatprep.subr.bf16.mxu0 0
      %1304 = vmatpush1.bf16.msra.mxu0 %v494
      %1305 = vmatprep.subr.bf16.mxu0 0
      %1306 = vmatpush1.bf16.msra.mxu0 %v495
      %1307 = vmatprep.subr.bf16.mxu0 0
      %1308 = vmatpush1.bf16.msra.mxu0 %v496
      %1309 = vmatprep.subr.bf16.mxu0 0
      %1310 = vmatpush1.bf16.msra.mxu0 %v497
      %1311 = vmatprep.subr.bf16.mxu0 0
      %1312 = vmatpush1.bf16.msra.mxu0 %v498
      %1313 = vmatprep.subr.bf16.mxu0 0
      %1314 = vmatpush1.bf16.msra.mxu0 0
      %1315 = vmatprep.subr.bf16.mxu0 0
      %1316 = vmatpush1.bf16.msra.mxu0 0
      %1317 = vmatprep.subr.bf16.mxu0 0
      %1318 = vmatpush1.bf16.msra.mxu0 0
      %1319 = vmatprep.subr.bf16.mxu0 0
      %1320 = vmatpush1.bf16.msra.mxu0 0
      %1321 = vmatprep.subr.bf16.mxu0 0
      %1322 = vmatpush1.bf16.msra.mxu0 0
      %1323 = vmatprep.subr.bf16.mxu0 0
      %1324 = vmatpush1.bf16.msra.mxu0 0
      %1325 = vmatprep.subr.bf16.mxu0 0
      %1326 = vmatpush1.bf16.msra.mxu0 0
      %1327 = vmatprep.subr.bf16.mxu0 0
      %1328 = vmatpush1.bf16.msra.mxu0 0
      %1329 = vmatprep.subr.bf16.mxu0 0
      %1330 = vmatpush1.bf16.msra.mxu0 0
      %1331 = vmatprep.mubr.bf16.mxu0 0
      %1332 = vmatmul.mubr.bf16.gmra.mrb[0].mxu0 %v1297
      %v1333 = vpop.f32.mrb[0].mxu0
      %v1334 = vadd.f32 0.0, %v1333
      %v1335 = vpop.f32.mrb[0].mxu0
      %v1336 = vpop.f32.mrb[0].mxu0
      %v1337 = vpop.f32.mrb[0].mxu0
      %1338 = vdwg.mxu0
      %v1339 = vadd.f32 %v1286, %v1334
      %s1340 = scalar_lea.vmem [#allocation2], 40
      %v1341 = vld [vmem:[%s1340] sm:$0xff]
      %v1342 = vadd.f32 %v1341, %v1339
      %1343 = vst.msk [vmem:[%s1340] sm:$0xff] %vm552, %v1342
      %s1344 = sadd.s32 %s215, 6
      %s1345 = sadd.s32 %s1344, %s21
      %s1346 = smul.u32 %s1345, 2
      %s1347 = smul.addr %s1346, 4
      %s1348 = scalar_lea.vmem %s190, %s1347
      %v1349 = vld [vmem:[%s1348] sm:$0xf]
      %v1350 = vld [vmem:[%s1348 + $0x4] sm:$0x1]
      %v1353 = vunpack.c.l.b16 %v1349
      %v1354 = vunpack.c.l.b16 %v1350
      %v1355 = vpack.c.b16 %v1354, %v1353
      %v1357 = vshrl.u32 %v1355, 16
      %v1359 = vshll.u32 %v1355, 16
      %v1361 = vrot.slane %v1359, 1
      %v1362 = vor.u32 %v1357, %v1361
      %v1364 = vsel %vm330, %v1362, 0
      %1366 = vmatprep.subr.bf16.mxu0 0
      %1367 = vmatpush1.bf16.msra.mxu0 %v316
      %1368 = vmatprep.subr.bf16.mxu0 0
      %1369 = vmatpush1.bf16.msra.mxu0 %v317
      %1370 = vmatprep.subr.bf16.mxu0 0
      %1371 = vmatpush1.bf16.msra.mxu0 %v318
      %1372 = vmatprep.subr.bf16.mxu0 0
      %1373 = vmatpush1.bf16.msra.mxu0 %v319
      %1374 = vmatprep.subr.bf16.mxu0 0
      %1375 = vmatpush1.bf16.msra.mxu0 %v320
      %1376 = vmatprep.subr.bf16.mxu0 0
      %1377 = vmatpush1.bf16.msra.mxu0 %v321
      %1378 = vmatprep.subr.bf16.mxu0 0
      %1379 = vmatpush1.bf16.msra.mxu0 %v322
      %1380 = vmatprep.subr.bf16.mxu0 0
      %1381 = vmatpush1.bf16.msra.mxu0 0
      %1382 = vmatprep.subr.bf16.mxu0 0
      %1383 = vmatpush1.bf16.msra.mxu0 0
      %1384 = vmatprep.subr.bf16.mxu0 0
      %1385 = vmatpush1.bf16.msra.mxu0 0
      %1386 = vmatprep.subr.bf16.mxu0 0
      %1387 = vmatpush1.bf16.msra.mxu0 0
      %1388 = vmatprep.subr.bf16.mxu0 0
      %1389 = vmatpush1.bf16.msra.mxu0 0
      %1390 = vmatprep.subr.bf16.mxu0 0
      %1391 = vmatpush1.bf16.msra.mxu0 0
      %1392 = vmatprep.subr.bf16.mxu0 0
      %1393 = vmatpush1.bf16.msra.mxu0 0
      %1394 = vmatprep.subr.bf16.mxu0 0
      %1395 = vmatpush1.bf16.msra.mxu0 0
      %1396 = vmatprep.subr.bf16.mxu0 0
      %1397 = vmatpush1.bf16.msra.mxu0 0
      %1398 = vmatprep.mubr.bf16.mxu0 0
      %1399 = vmatmul.mubr.bf16.gmra.mrb[0].mxu0 %v1364
      %v1400 = vpop.f32.mrb[0].mxu0
      %v1401 = vadd.f32 0.0, %v1400
      %v1402 = vpop.f32.mrb[0].mxu0
      %v1403 = vpop.f32.mrb[0].mxu0
      %v1404 = vpop.f32.mrb[0].mxu0
      %1405 = vdwg.mxu0
      %v1407 = vsel %vm330, %v1349, 0
      %1409 = vmatprep.subr.bf16.mxu0 0
      %1410 = vmatpush1.bf16.msra.mxu0 %v402
      %1411 = vmatprep.subr.bf16.mxu0 0
      %1412 = vmatpush1.bf16.msra.mxu0 %v403
      %1413 = vmatprep.subr.bf16.mxu0 0
      %1414 = vmatpush1.bf16.msra.mxu0 %v404
      %1415 = vmatprep.subr.bf16.mxu0 0
      %1416 = vmatpush1.bf16.msra.mxu0 %v405
      %1417 = vmatprep.subr.bf16.mxu0 0
      %1418 = vmatpush1.bf16.msra.mxu0 %v406
      %1419 = vmatprep.subr.bf16.mxu0 0
      %1420 = vmatpush1.bf16.msra.mxu0 %v407
      %1421 = vmatprep.subr.bf16.mxu0 0
      %1422 = vmatpush1.bf16.msra.mxu0 %v408
      %1423 = vmatprep.subr.bf16.mxu0 0
      %1424 = vmatpush1.bf16.msra.mxu0 0
      %1425 = vmatprep.subr.bf16.mxu0 0
      %1426 = vmatpush1.bf16.msra.mxu0 0
      %1427 = vmatprep.subr.bf16.mxu0 0
      %1428 = vmatpush1.bf16.msra.mxu0 0
      %1429 = vmatprep.subr.bf16.mxu0 0
      %1430 = vmatpush1.bf16.msra.mxu0 0
      %1431 = vmatprep.subr.bf16.mxu0 0
      %1432 = vmatpush1.bf16.msra.mxu0 0
      %1433 = vmatprep.subr.bf16.mxu0 0
      %1434 = vmatpush1.bf16.msra.mxu0 0
      %1435 = vmatprep.subr.bf16.mxu0 0
      %1436 = vmatpush1.bf16.msra.mxu0 0
      %1437 = vmatprep.subr.bf16.mxu0 0
      %1438 = vmatpush1.bf16.msra.mxu0 0
      %1439 = vmatprep.subr.bf16.mxu0 0
      %1440 = vmatpush1.bf16.msra.mxu0 0
      %1441 = vmatprep.mubr.bf16.mxu0 0
      %1442 = vmatmul.mubr.bf16.gmra.mrb[0].mxu0 %v1407
      %v1443 = vpop.f32.mrb[0].mxu0
      %v1444 = vadd.f32 %v1401, %v1443
      %v1445 = vpop.f32.mrb[0].mxu0
      %v1446 = vpop.f32.mrb[0].mxu0
      %v1447 = vpop.f32.mrb[0].mxu0
      %1448 = vdwg.mxu0
      %v1449 = vld [vmem:[%s1348] sm:$0xe]
      %v1451 = vunpack.c.l.b16 %v1449
      %v1452 = vpack.c.b16 %v1354, %v1451
      %v1453 = vrot.slane %v1452, 1
      %v1455 = vsel %vm330, %v1453, 0
      %1457 = vmatprep.subr.bf16.mxu0 0
      %1458 = vmatpush1.bf16.msra.mxu0 %v492
      %1459 = vmatprep.subr.bf16.mxu0 0
      %1460 = vmatpush1.bf16.msra.mxu0 %v493
      %1461 = vmatprep.subr.bf16.mxu0 0
      %1462 = vmatpush1.bf16.msra.mxu0 %v494
      %1463 = vmatprep.subr.bf16.mxu0 0
      %1464 = vmatpush1.bf16.msra.mxu0 %v495
      %1465 = vmatprep.subr.bf16.mxu0 0
      %1466 = vmatpush1.bf16.msra.mxu0 %v496
      %1467 = vmatprep.subr.bf16.mxu0 0
      %1468 = vmatpush1.bf16.msra.mxu0 %v497
      %1469 = vmatprep.subr.bf16.mxu0 0
      %1470 = vmatpush1.bf16.msra.mxu0 %v498
      %1471 = vmatprep.subr.bf16.mxu0 0
      %1472 = vmatpush1.bf16.msra.mxu0 0
      %1473 = vmatprep.subr.bf16.mxu0 0
      %1474 = vmatpush1.bf16.msra.mxu0 0
      %1475 = vmatprep.subr.bf16.mxu0 0
      %1476 = vmatpush1.bf16.msra.mxu0 0
      %1477 = vmatprep.subr.bf16.mxu0 0
      %1478 = vmatpush1.bf16.msra.mxu0 0
      %1479 = vmatprep.subr.bf16.mxu0 0
      %1480 = vmatpush1.bf16.msra.mxu0 0
      %1481 = vmatprep.subr.bf16.mxu0 0
      %1482 = vmatpush1.bf16.msra.mxu0 0
      %1483 = vmatprep.subr.bf16.mxu0 0
      %1484 = vmatpush1.bf16.msra.mxu0 0
      %1485 = vmatprep.subr.bf16.mxu0 0
      %1486 = vmatpush1.bf16.msra.mxu0 0
      %1487 = vmatprep.subr.bf16.mxu0 0
      %1488 = vmatpush1.bf16.msra.mxu0 0
      %1489 = vmatprep.mubr.bf16.mxu0 0
      %1490 = vmatmul.mubr.bf16.gmra.mrb[0].mxu0 %v1455
      %v1491 = vpop.f32.mrb[0].mxu0
      %v1492 = vadd.f32 0.0, %v1491
      %v1493 = vpop.f32.mrb[0].mxu0
      %v1494 = vpop.f32.mrb[0].mxu0
      %v1495 = vpop.f32.mrb[0].mxu0
      %1496 = vdwg.mxu0
      %v1497 = vadd.f32 %v1444, %v1492
      %s1498 = scalar_lea.vmem [#allocation2], 48
      %v1499 = vld [vmem:[%s1498] sm:$0xff]
      %v1500 = vadd.f32 %v1499, %v1497
      %1501 = vst.msk [vmem:[%s1498] sm:$0xff] %vm552, %v1500
      %s1502 = sadd.s32 %s215, 7
      %s1503 = sadd.s32 %s1502, %s21
      %s1504 = smul.u32 %s1503, 2
      %s1505 = smul.addr %s1504, 4
      %s1506 = scalar_lea.vmem %s190, %s1505
      %v1507 = vld [vmem:[%s1506] sm:$0xf]
      %v1508 = vld [vmem:[%s1506 + $0x4] sm:$0x1]
      %v1511 = vunpack.c.l.b16 %v1507
      %v1512 = vunpack.c.l.b16 %v1508
      %v1513 = vpack.c.b16 %v1512, %v1511
      %v1515 = vshrl.u32 %v1513, 16
      %v1517 = vshll.u32 %v1513, 16
      %v1519 = vrot.slane %v1517, 1
      %v1520 = vor.u32 %v1515, %v1519
      %v1522 = vsel %vm330, %v1520, 0
      %1524 = vmatprep.subr.bf16.mxu0 0
      %1525 = vmatpush1.bf16.msra.mxu0 %v316
      %1526 = vmatprep.subr.bf16.mxu0 0
      %1527 = vmatpush1.bf16.msra.mxu0 %v317
      %1528 = vmatprep.subr.bf16.mxu0 0
      %1529 = vmatpush1.bf16.msra.mxu0 %v318
      %1530 = vmatprep.subr.bf16.mxu0 0
      %1531 = vmatpush1.bf16.msra.mxu0 %v319
      %1532 = vmatprep.subr.bf16.mxu0 0
      %1533 = vmatpush1.bf16.msra.mxu0 %v320
      %1534 = vmatprep.subr.bf16.mxu0 0
      %1535 = vmatpush1.bf16.msra.mxu0 %v321
      %1536 = vmatprep.subr.bf16.mxu0 0
      %1537 = vmatpush1.bf16.msra.mxu0 %v322
      %1538 = vmatprep.subr.bf16.mxu0 0
      %1539 = vmatpush1.bf16.msra.mxu0 0
      %1540 = vmatprep.subr.bf16.mxu0 0
      %1541 = vmatpush1.bf16.msra.mxu0 0
      %1542 = vmatprep.subr.bf16.mxu0 0
      %1543 = vmatpush1.bf16.msra.mxu0 0
      %1544 = vmatprep.subr.bf16.mxu0 0
      %1545 = vmatpush1.bf16.msra.mxu0 0
      %1546 = vmatprep.subr.bf16.mxu0 0
      %1547 = vmatpush1.bf16.msra.mxu0 0
      %1548 = vmatprep.subr.bf16.mxu0 0
      %1549 = vmatpush1.bf16.msra.mxu0 0
      %1550 = vmatprep.subr.bf16.mxu0 0
      %1551 = vmatpush1.bf16.msra.mxu0 0
      %1552 = vmatprep.subr.bf16.mxu0 0
      %1553 = vmatpush1.bf16.msra.mxu0 0
      %1554 = vmatprep.subr.bf16.mxu0 0
      %1555 = vmatpush1.bf16.msra.mxu0 0
      %1556 = vmatprep.mubr.bf16.mxu0 0
      %1557 = vmatmul.mubr.bf16.gmra.mrb[0].mxu0 %v1522
      %v1558 = vpop.f32.mrb[0].mxu0
      %v1559 = vadd.f32 0.0, %v1558
      %v1560 = vpop.f32.mrb[0].mxu0
      %v1561 = vpop.f32.mrb[0].mxu0
      %v1562 = vpop.f32.mrb[0].mxu0
      %1563 = vdwg.mxu0
      %v1565 = vsel %vm330, %v1507, 0
      %1567 = vmatprep.subr.bf16.mxu0 0
      %1568 = vmatpush1.bf16.msra.mxu0 %v402
      %1569 = vmatprep.subr.bf16.mxu0 0
      %1570 = vmatpush1.bf16.msra.mxu0 %v403
      %1571 = vmatprep.subr.bf16.mxu0 0
      %1572 = vmatpush1.bf16.msra.mxu0 %v404
      %1573 = vmatprep.subr.bf16.mxu0 0
      %1574 = vmatpush1.bf16.msra.mxu0 %v405
      %1575 = vmatprep.subr.bf16.mxu0 0
      %1576 = vmatpush1.bf16.msra.mxu0 %v406
      %1577 = vmatprep.subr.bf16.mxu0 0
      %1578 = vmatpush1.bf16.msra.mxu0 %v407
      %1579 = vmatprep.subr.bf16.mxu0 0
      %1580 = vmatpush1.bf16.msra.mxu0 %v408
      %1581 = vmatprep.subr.bf16.mxu0 0
      %1582 = vmatpush1.bf16.msra.mxu0 0
      %1583 = vmatprep.subr.bf16.mxu0 0
      %1584 = vmatpush1.bf16.msra.mxu0 0
      %1585 = vmatprep.subr.bf16.mxu0 0
      %1586 = vmatpush1.bf16.msra.mxu0 0
      %1587 = vmatprep.subr.bf16.mxu0 0
      %1588 = vmatpush1.bf16.msra.mxu0 0
      %1589 = vmatprep.subr.bf16.mxu0 0
      %1590 = vmatpush1.bf16.msra.mxu0 0
      %1591 = vmatprep.subr.bf16.mxu0 0
      %1592 = vmatpush1.bf16.msra.mxu0 0
      %1593 = vmatprep.subr.bf16.mxu0 0
      %1594 = vmatpush1.bf16.msra.mxu0 0
      %1595 = vmatprep.subr.bf16.mxu0 0
      %1596 = vmatpush1.bf16.msra.mxu0 0
      %1597 = vmatprep.subr.bf16.mxu0 0
      %1598 = vmatpush1.bf16.msra.mxu0 0
      %1599 = vmatprep.mubr.bf16.mxu0 0
      %1600 = vmatmul.mubr.bf16.gmra.mrb[0].mxu0 %v1565
      %v1601 = vpop.f32.mrb[0].mxu0
      %v1602 = vadd.f32 %v1559, %v1601
      %v1603 = vpop.f32.mrb[0].mxu0
      %v1604 = vpop.f32.mrb[0].mxu0
      %v1605 = vpop.f32.mrb[0].mxu0
      %1606 = vdwg.mxu0
      %v1607 = vld [vmem:[%s1506] sm:$0xe]
      %v1609 = vunpack.c.l.b16 %v1607
      %v1610 = vpack.c.b16 %v1512, %v1609
      %v1611 = vrot.slane %v1610, 1
      %v1613 = vsel %vm330, %v1611, 0
      %1615 = vmatprep.subr.bf16.mxu0 0
      %1616 = vmatpush1.bf16.msra.mxu0 %v492
      %1617 = vmatprep.subr.bf16.mxu0 0
      %1618 = vmatpush1.bf16.msra.mxu0 %v493
      %1619 = vmatprep.subr.bf16.mxu0 0
      %1620 = vmatpush1.bf16.msra.mxu0 %v494
      %1621 = vmatprep.subr.bf16.mxu0 0
      %1622 = vmatpush1.bf16.msra.mxu0 %v495
      %1623 = vmatprep.subr.bf16.mxu0 0
      %1624 = vmatpush1.bf16.msra.mxu0 %v496
      %1625 = vmatprep.subr.bf16.mxu0 0
      %1626 = vmatpush1.bf16.msra.mxu0 %v497
      %1627 = vmatprep.subr.bf16.mxu0 0
      %1628 = vmatpush1.bf16.msra.mxu0 %v498
      %1629 = vmatprep.subr.bf16.mxu0 0
      %1630 = vmatpush1.bf16.msra.mxu0 0
      %1631 = vmatprep.subr.bf16.mxu0 0
      %1632 = vmatpush1.bf16.msra.mxu0 0
      %1633 = vmatprep.subr.bf16.mxu0 0
      %1634 = vmatpush1.bf16.msra.mxu0 0
      %1635 = vmatprep.subr.bf16.mxu0 0
      %1636 = vmatpush1.bf16.msra.mxu0 0
      %1637 = vmatprep.subr.bf16.mxu0 0
      %1638 = vmatpush1.bf16.msra.mxu0 0
      %1639 = vmatprep.subr.bf16.mxu0 0
      %1640 = vmatpush1.bf16.msra.mxu0 0
      %1641 = vmatprep.subr.bf16.mxu0 0
      %1642 = vmatpush1.bf16.msra.mxu0 0
      %1643 = vmatprep.subr.bf16.mxu0 0
      %1644 = vmatpush1.bf16.msra.mxu0 0
      %1645 = vmatprep.subr.bf16.mxu0 0
      %1646 = vmatpush1.bf16.msra.mxu0 0
      %1647 = vmatprep.mubr.bf16.mxu0 0
      %1648 = vmatmul.mubr.bf16.gmra.mrb[0].mxu0 %v1613
      %v1649 = vpop.f32.mrb[0].mxu0
      %v1650 = vadd.f32 0.0, %v1649
      %v1651 = vpop.f32.mrb[0].mxu0
      %v1652 = vpop.f32.mrb[0].mxu0
      %v1653 = vpop.f32.mrb[0].mxu0
      %1654 = vdwg.mxu0
      %v1655 = vadd.f32 %v1602, %v1650
      %s1656 = scalar_lea.vmem [#allocation2], 56
      %v1657 = vld [vmem:[%s1656] sm:$0xff]
      %v1658 = vadd.f32 %v1657, %v1655
      %1659 = vst.msk [vmem:[%s1656] sm:$0xff] %vm552, %v1658
      %p1660 = scmp.eq.s32.totalorder %s21, 2
      // Predicated region
      $region37: #{deeplab_forward.12} parent=31 // pred_check
        %p1661 = pneg %p1660
      $region38: #{deeplab_forward.12} parent=31 // pred_check_branch
        %1663 = sbr.rel (%p1661) target = $region40
      $region39: #{deeplab_forward.12} parent=31 // pred_region
        %v1664 = vld [vmem:[#allocation2] sm:$0xff]
        %v1665 = vld [vmem:[#allocation2 + $0x8] sm:$0xff]
        %v1666 = vld [vmem:[#allocation2 + $0x10] sm:$0xff]
        %v1667 = vld [vmem:[#allocation2 + $0x18] sm:$0xff]
        %v1668 = vld [vmem:[#allocation2 + $0x20] sm:$0xff]
        %v1669 = vld [vmem:[#allocation2 + $0x28] sm:$0xff]
        %v1670 = vld [vmem:[#allocation2 + $0x30] sm:$0xff]
        %v1671 = vld [vmem:[#allocation2 + $0x38] sm:$0xff]
        %v1672 = vld [vmem:[%s2] sm:$0x1]
        %v1674 = vlaneseq
        %v1675 = vshrl.u32 %v1674, 7
        %v1676 = vsub.s32 0, %v1675
        %v1677 = vrot.slane %v1672, %v1676
        %v1679 = vadd.f32 %v1664, %v1677
        %v1680 = vadd.f32 %v1665, %v1677
        %v1681 = vadd.f32 %v1666, %v1677
        %v1682 = vadd.f32 %v1667, %v1677
        %v1683 = vadd.f32 %v1668, %v1677
        %v1684 = vadd.f32 %v1669, %v1677
        %v1685 = vadd.f32 %v1670, %v1677
        %v1686 = vadd.f32 %v1671, %v1677
        %v1687 = vmax.f32 %v1679, 0.0
        %v1688 = vmax.f32 %v1680, 0.0
        %v1689 = vmax.f32 %v1681, 0.0
        %v1690 = vmax.f32 %v1682, 0.0
        %v1691 = vmax.f32 %v1683, 0.0
        %v1692 = vmax.f32 %v1684, 0.0
        %v1693 = vmax.f32 %v1685, 0.0
        %v1694 = vmax.f32 %v1686, 0.0
        %v1695 = vpack.c.bf16 %v1687, %v1687
        %v1696 = vpack.c.bf16 %v1688, %v1688
        %v1697 = vpack.c.bf16 %v1689, %v1689
        %v1698 = vpack.c.bf16 %v1690, %v1690
        %v1699 = vpack.c.bf16 %v1691, %v1691
        %v1700 = vpack.c.bf16 %v1692, %v1692
        %v1701 = vpack.c.bf16 %v1693, %v1693
        %v1702 = vpack.c.bf16 %v1694, %v1694
        %vm1703 = vcmask 519168
        %1704 = vst.msk [vmem:[%s199] sm:$0xf] %vm1703, %v1695
        %1705 = vst.msk [vmem:[%s199 + $0x4] sm:$0xf] %vm1703, %v1696
        %1706 = vst.msk [vmem:[%s199 + $0x8] sm:$0xf] %vm1703, %v1697
        %1707 = vst.msk [vmem:[%s199 + $0xc] sm:$0xf] %vm1703, %v1698
        %1708 = vst.msk [vmem:[%s199 + $0x10] sm:$0xf] %vm1703, %v1699
        %1709 = vst.msk [vmem:[%s199 + $0x14] sm:$0xf] %vm1703, %v1700
        %1710 = vst.msk [vmem:[%s199 + $0x18] sm:$0xf] %vm1703, %v1701
        %1711 = vst.msk [vmem:[%s199 + $0x1c] sm:$0xf] %vm1703, %v1702
      $region40: #{deeplab_forward.12} parent=31 // pred_fallthru
        _
      %s1712 = smul.u32 8, %s20
      %p1713 = scmp.lt.s32.totalorder %s19, 1
      %s1714 = scalar_select %p1713, %s19, 1
      %p1715 = scmp.lt.s32.totalorder %s1712, 7
      %s1716 = scalar_select %p1715, %s1712, 7
      %s1717 = smul.addr %s1714, 8
      %s1718 = sadd.s32 %s1716, %s1717
      %s1719 = smul.addr %s1718, 4
      %s1720 = scalar_lea.vmem %s3, %s1719
      // Predicated region
      $region41: #{deeplab_forward.12} parent=31 // pred_check
        %p1721 = pneg %p121
      $region42: #{deeplab_forward.12} parent=31 // pred_check_branch
        %1723 = sbr.rel (%p1721) target = $region44
      $region43: #{deeplab_forward.12} parent=31 // pred_region
        %s1724 = smul.u32 8, %s20
      $region44: #{deeplab_forward.12} parent=31 // pred_fallthru
        _
    $region32: #{deeplab_forward.12} parent=5 // pred_fallthru
      _
    %p1725 = scmp.le.s32.totalorder 2, %s9
    // Predicated region
    $region45: #{deeplab_forward.12} parent=5 // pred_check
      %p1726 = pneg %p1725
    $region46: #{deeplab_forward.12} parent=5 // pred_check_branch
      %1728 = sbr.rel (%p1726) target = $region48
    $region47: #{deeplab_forward.12} parent=5 // pred_region
      %s1729 = ssub.s32 %s9, 2
      // Predicated region
      $region49: #{deeplab_forward.12} parent=47 // pred_check
        %p1730 = pneg %p127
      $region50: #{deeplab_forward.12} parent=47 // pred_check_branch
        %1732 = sbr.rel (%p1730) target = $region52
      $region51: #{deeplab_forward.12} parent=47 // pred_region
        %s1733 = smul.u32 8, %s23
        %p1734 = scmp.lt.s32.totalorder %s22, 1
        %s1735 = scalar_select %p1734, %s22, 1
        %p1736 = scmp.lt.s32.totalorder %s1733, 7
        %s1737 = scalar_select %p1736, %s1733, 7
        %s1738 = smul.addr %s1735, 8
        %s1739 = sadd.s32 %s1737, %s1738
        %s1740 = smul.addr %s1739, 4
        %s1741 = scalar_lea.vmem %s3, %s1740
      $region52: #{deeplab_forward.12} parent=47 // pred_fallthru
        _
    $region48: #{deeplab_forward.12} parent=5 // pred_fallthru
      _
  $region6: #{deeplab_forward.12} parent=0 // loop_footer
    %s13 = sadd.s32 1, %s9
  $region7: #{deeplab_forward.12} parent=0 // loop_footer_branch
    %8 = sbr.rel target = $region3
  $region8: #{deeplab_forward.12} parent=0 // loop_exit
    _

// kernel: deeplab_forward.14
$region0: #{deeplab_forward.14}
  #allocation0 [shape = 'u32[]', space=smem, size = 0x4, offset = 0x4, fixed_abs, tag = 'smem constant byte address 0x4 - core index']
  #allocation1 [shape = 'u32[144,128]{1,0:T(1,128)}', space=vmem, size = 0x12000, scoped, tag = 'internal scratch']
  %s0 = inlined_call_operand.vmem [shape: bf16[128,64], index: 0, kind: input, shape index: {}]
  %s1 = inlined_call_operand.vmem [shape: bf16[64,19], index: 1, kind: input, shape index: {}]
  %s2 = inlined_call_operand.vmem [shape: f32[1,19], index: 2, kind: input, shape index: {}]
  %s3 = inlined_call_operand.vmem [shape: f32[128,19], index: 3, kind: output, shape index: {}]
  %s4 = sld [smem:[#allocation0]]
  $region45: #{deeplab_forward.14} parent=0
    _
  %s6 = ssub.s32 1, %s4
  %s7 = scalar_select 0, %s6, %s4
  loop: start=0, step=1, limit=4
  $region2: #{deeplab_forward.14} parent=0 // loop_pre_header
    _
  $region3: #{deeplab_forward.14} parent=0 // loop_header
    %s9 = sphi 0, %s13
    %p10 = scmp.ge.s32.totalorder %s9, 4
    %s19 = sphi 0, %s21
    %s22 = sphi 0, %s19
    %s23 = sphi 0, %s22
    %s39 = sphi 0, %s23
    %s43 = sphi 0, %s43
    %s45 = sphi 0, %s43
    %s46 = sphi 0, %s45
    %s60 = sphi 0, %s46
    %s64 = sphi 0, %s64
    %s66 = sphi 0, %s64
    %s67 = sphi 0, %s66
    %s81 = sphi 0, %s67
    %s87 = sphi 0, %s89
    %s90 = sphi 0, %s87
    %s91 = sphi 0, %s90
    %s107 = sphi 0, %s91
  $region4: #{deeplab_forward.14} parent=0 // loop_header_branch
    %12 = sbr.rel (%p10) target = $region8
  $region5: #{deeplab_forward.14} parent=0 // loop_body
    %s14 = ssub.s32 %s9, 1
    %s15 = ssub.s32 %s9, 2
    %s16 = sadd.s32 %s9, 1
    %s17 = ssub.s32 %s9, %s16
    %p18 = scmp.eq.s32.totalorder %s17, 0
    %s20 = sadd.s32 %s19, 1
    %s21 = scalar_select %p18, %s19, %s20
    %p24 = pneg %p18
    %p25 = scmp.eq.s32.totalorder %s9, 1
    %p26 = por %p24, %p25
    %p27 = scmp.ne.s32.totalorder %s19, %s22
    %p28 = scmp.eq.s32.totalorder %s9, 0
    %p29 = por %p27, %p28
    %p30 = scmp.ne.s32.totalorder %s19, %s22
    %p31 = scmp.eq.s32.totalorder %s14, 1
    %p32 = por %p30, %p31
    %p33 = scmp.ne.s32.totalorder %s22, %s23
    %p34 = scmp.eq.s32.totalorder %s14, 0
    %p35 = por %p33, %p34
    %p36 = scmp.ne.s32.totalorder %s22, %s23
    %p37 = scmp.eq.s32.totalorder %s15, 1
    %p38 = por %p36, %p37
    %p40 = scmp.ne.s32.totalorder %s23, %s39
    %p41 = scmp.eq.s32.totalorder %s15, 0
    %p42 = por %p40, %p41
    %s44 = sadd.s32 %s43, 1
    %p47 = scmp.eq.s32.totalorder %s9, 1
    %p48 = scmp.ne.s32.totalorder %s43, %s45
    %p49 = scmp.eq.s32.totalorder %s9, 0
    %p50 = por %p48, %p49
    %p51 = scmp.ne.s32.totalorder %s43, %s45
    %p52 = scmp.eq.s32.totalorder %s14, 1
    %p53 = por %p51, %p52
    %p54 = scmp.ne.s32.totalorder %s45, %s46
    %p55 = scmp.eq.s32.totalorder %s14, 0
    %p56 = por %p54, %p55
    %p57 = scmp.ne.s32.totalorder %s45, %s46
    %p58 = scmp.eq.s32.totalorder %s15, 1
    %p59 = por %p57, %p58
    %p61 = scmp.ne.s32.totalorder %s46, %s60
    %p62 = scmp.eq.s32.totalorder %s15, 0
    %p63 = por %p61, %p62
    %s65 = sadd.s32 %s64, 1
    %p68 = scmp.eq.s32.totalorder %s9, 1
    %p69 = scmp.ne.s32.totalorder %s64, %s66
    %p70 = scmp.eq.s32.totalorder %s9, 0
    %p71 = por %p69, %p70
    %p72 = scmp.ne.s32.totalorder %s64, %s66
    %p73 = scmp.eq.s32.totalorder %s14, 1
    %p74 = por %p72, %p73
    %p75 = scmp.ne.s32.totalorder %s66, %s67
    %p76 = scmp.eq.s32.totalorder %s14, 0
    %p77 = por %p75, %p76
    %p78 = scmp.ne.s32.totalorder %s66, %s67
    %p79 = scmp.eq.s32.totalorder %s15, 1
    %p80 = por %p78, %p79
    %p82 = scmp.ne.s32.totalorder %s67, %s81
    %p83 = scmp.eq.s32.totalorder %s15, 0
    %p84 = por %p82, %p83
    %s85 = ssub.s32 %s9, %s16
    %p86 = scmp.eq.s32.totalorder %s85, 0
    %s88 = sadd.s32 %s87, 1
    %s89 = scalar_select %p86, %s87, %s88
    %p92 = pneg %p86
    %p93 = scmp.eq.s32.totalorder %s9, 1
    %p94 = por %p92, %p93
    %p95 = scmp.ne.s32.totalorder %s87, %s90
    %p96 = scmp.eq.s32.totalorder %s9, 0
    %p97 = por %p95, %p96
    %p98 = scmp.ne.s32.totalorder %s87, %s90
    %p99 = scmp.eq.s32.totalorder %s14, 1
    %p100 = por %p98, %p99
    %p101 = scmp.ne.s32.totalorder %s90, %s91
    %p102 = scmp.eq.s32.totalorder %s14, 0
    %p103 = por %p101, %p102
    %p104 = scmp.ne.s32.totalorder %s90, %s91
    %p105 = scmp.eq.s32.totalorder %s15, 1
    %p106 = por %p104, %p105
    %p108 = scmp.ne.s32.totalorder %s91, %s107
    %p109 = scmp.eq.s32.totalorder %s15, 0
    %p110 = por %p108, %p109
    %p111 = scmp.le.s32.totalorder 1, %s9
    %p112 = scmp.lt.s32.totalorder %s9, 3
    %p113 = pnand %p111, %p112
    %p114 = pneg %p113
    // Predicated region
    $region9: #{deeplab_forward.14} parent=5 // pred_check
      _
    $region10: #{deeplab_forward.14} parent=5 // pred_check_branch
      %116 = sbr.rel (%p113) target = $region12
    $region11: #{deeplab_forward.14} parent=5 // pred_region
      %s117 = ssub.s32 %s9, 1
      // Predicated region
      $region13: #{deeplab_forward.14} parent=11 // pred_check
        %p118 = pneg %p56
      $region14: #{deeplab_forward.14} parent=11 // pred_check_branch
        %120 = sbr.rel (%p118) target = $region16
      $region15: #{deeplab_forward.14} parent=11 // pred_region
        _
      $region16: #{deeplab_forward.14} parent=11 // pred_fallthru
        _
      // Predicated region
      $region17: #{deeplab_forward.14} parent=11 // pred_check
        %p121 = pneg %p77
      $region18: #{deeplab_forward.14} parent=11 // pred_check_branch
        %123 = sbr.rel (%p121) target = $region20
      $region19: #{deeplab_forward.14} parent=11 // pred_region
        _
      $region20: #{deeplab_forward.14} parent=11 // pred_fallthru
        _
    $region12: #{deeplab_forward.14} parent=5 // pred_fallthru
      _
    %p124 = scmp.lt.s32.totalorder %s9, 2
    // Predicated region
    $region21: #{deeplab_forward.14} parent=5 // pred_check
      %p125 = pneg %p124
    $region22: #{deeplab_forward.14} parent=5 // pred_check_branch
      %127 = sbr.rel (%p125) target = $region24
    $region23: #{deeplab_forward.14} parent=5 // pred_region
      // Predicated region
      $region25: #{deeplab_forward.14} parent=23 // pred_check
        %p128 = pneg %p29
      $region26: #{deeplab_forward.14} parent=23 // pred_check_branch
        %130 = sbr.rel (%p128) target = $region28
      $region27: #{deeplab_forward.14} parent=23 // pred_region
        %s131 = smul.u32 8, %s9
        %p132 = scmp.lt.s32.totalorder %s131, 15
        %s133 = scalar_select %p132, %s131, 15
        %s134 = smul.addr %s133, 4
        %s135 = scalar_lea.vmem %s0, %s134
        %s136 = smul.u32 8, %s9
      $region28: #{deeplab_forward.14} parent=23 // pred_fallthru
        _
    $region24: #{deeplab_forward.14} parent=5 // pred_fallthru
      _
    %p137 = scmp.le.s32.totalorder 1, %s9
    %p138 = scmp.lt.s32.totalorder %s9, 3
    %p139 = pnand %p137, %p138
    %p140 = pneg %p139
    // Predicated region
    $region29: #{deeplab_forward.14} parent=5 // pred_check
      _
    $region30: #{deeplab_forward.14} parent=5 // pred_check_branch
      %142 = sbr.rel (%p139) target = $region32
    $region31: #{deeplab_forward.14} parent=5 // pred_region
      %s143 = ssub.s32 %s9, 1
      %s144 = smul.u32 8, %s14
      %p145 = scmp.lt.s32.totalorder %s144, 15
      %s146 = scalar_select %p145, %s144, 15
      %s147 = smul.addr %s146, 4
      %s148 = scalar_lea.vmem %s0, %s147
      %p149 = pneg %p35
      %p150 = pneg %p32
      %p151 = pneg %p56
      %p152 = pneg %p53
      %p153 = pneg %p77
      %p154 = pneg %p74
      %p155 = pneg %p103
      %p156 = pneg %p100
      %s157 = smul.u32 8, %s14
      %p158 = scmp.lt.s32.totalorder %s157, 15
      %s159 = scalar_select %p158, %s157, 15
      %s160 = smul.addr %s159, 8
      %s161 = scalar_lea.vmem %s3, %s160
      %s162 = smul.u32 8, %s14
      %p163 = scmp.lt.s32.totalorder %s162, 15
      %s164 = scalar_select %p163, %s162, 15
      %s165 = smul.addr %s164, 4
      %s166 = scalar_lea.vmem %s0, %s165
      %s167 = smul.u32 8, %s14
      %s168 = smul.u32 8, %s14
      %p169 = scmp.lt.s32.totalorder %s168, 15
      %s170 = scalar_select %p169, %s168, 15
      %s171 = smul.addr %s170, 8
      %s172 = scalar_lea.vmem %s3, %s171
      %s173 = smul.u32 8, %s14
      %v175 = vld [vmem:[%s166] sm:$0xf]
      %v176 = vld [vmem:[%s166 + $0x4] sm:$0xf]
      %v177 = vld [vmem:[%s166 + $0x8] sm:$0xf]
      %v178 = vld [vmem:[%s166 + $0xc] sm:$0xf]
      %v179 = vld [vmem:[%s166 + $0x10] sm:$0xf]
      %v180 = vld [vmem:[%s166 + $0x14] sm:$0xf]
      %v181 = vld [vmem:[%s166 + $0x18] sm:$0xf]
      %v182 = vld [vmem:[%s166 + $0x1c] sm:$0xf]
      %v183 = vld [vmem:[%s1] sm:$0xf]
      %v184 = vld [vmem:[%s1 + $0x4] sm:$0xf]
      %v185 = vld [vmem:[%s1 + $0x8] sm:$0xf]
      %v186 = vld [vmem:[%s1 + $0xc] sm:$0xf]
      %v187 = vld [vmem:[%s1 + $0x10] sm:$0xf]
      %v188 = vld [vmem:[%s1 + $0x14] sm:$0xf]
      %v189 = vld [vmem:[%s1 + $0x18] sm:$0xf]
      %v190 = vld [vmem:[%s1 + $0x1c] sm:$0xf]
      %v191 = vld [vmem:[%s2] sm:$0x1]
      %v193 = vlaneseq
      %v194 = vshrl.u32 %v193, 7
      %v195 = vsub.s32 0, %v194
      %v196 = vrot.slane %v191, %v195
      %v206 = vunpack.c.l.b16 %v175
      %v207 = vunpack.c.l.b16 %v176
      %v208 = vunpack.c.l.b16 %v177
      %v209 = vunpack.c.l.b16 %v178
      %v210 = vunpack.c.l.b16 %v179
      %v211 = vunpack.c.l.b16 %v180
      %v212 = vunpack.c.l.b16 %v181
      %v213 = vunpack.c.l.b16 %v182
      %v214 = vpack.c.b16 %v207, %v206
      %v215 = vpack.c.b16 %v209, %v208
      %v216 = vpack.c.b16 %v211, %v210
      %v217 = vpack.c.b16 %v213, %v212
      %v226 = vunpack.c.l.b16 %v183
      %v227 = vunpack.c.l.b16 %v184
      %v228 = vunpack.c.l.b16 %v185
      %v229 = vunpack.c.l.b16 %v186
      %v230 = vunpack.c.l.b16 %v187
      %v231 = vunpack.c.l.b16 %v188
      %v232 = vunpack.c.l.b16 %v189
      %v233 = vunpack.c.l.b16 %v190
      %v234 = vpack.c.b16 %v227, %v226
      %v235 = vpack.c.b16 %v229, %v228
      %v236 = vpack.c.b16 %v231, %v230
      %v237 = vpack.c.b16 %v233, %v232
      %vm242 = vcmask 523264
      %v244 = vsel %vm242, %v214, 0
      %v247 = vsel %vm242, %v215, 0
      %v250 = vsel %vm242, %v216, 0
      %v253 = vsel %vm242, %v217, 0
      %255 = vmatprep.subr.bf16.mxu0 0
      %256 = vmatpush1.bf16.msra.mxu0 %v234
      %257 = vmatprep.subr.bf16.mxu0 0
      %258 = vmatpush1.bf16.msra.mxu0 %v235
      %259 = vmatprep.subr.bf16.mxu0 0
      %260 = vmatpush1.bf16.msra.mxu0 %v236
      %261 = vmatprep.subr.bf16.mxu0 0
      %262 = vmatpush1.bf16.msra.mxu0 %v237
      %263 = vmatprep.subr.bf16.mxu0 0
      %264 = vmatpush1.bf16.msra.mxu0 0
      %265 = vmatprep.subr.bf16.mxu0 0
      %266 = vmatpush1.bf16.msra.mxu0 0
      %267 = vmatprep.subr.bf16.mxu0 0
      %268 = vmatpush1.bf16.msra.mxu0 0
      %269 = vmatprep.subr.bf16.mxu0 0
      %270 = vmatpush1.bf16.msra.mxu0 0
      %271 = vmatprep.subr.bf16.mxu0 0
      %272 = vmatpush1.bf16.msra.mxu0 0
      %273 = vmatprep.subr.bf16.mxu0 0
      %274 = vmatpush1.bf16.msra.mxu0 0
      %275 = vmatprep.subr.bf16.mxu0 0
      %276 = vmatpush1.bf16.msra.mxu0 0
      %277 = vmatprep.subr.bf16.mxu0 0
      %278 = vmatpush1.bf16.msra.mxu0 0
      %279 = vmatprep.subr.bf16.mxu0 0
      %280 = vmatpush1.bf16.msra.mxu0 0
      %281 = vmatprep.subr.bf16.mxu0 0
      %282 = vmatpush1.bf16.msra.mxu0 0
      %283 = vmatprep.subr.bf16.mxu0 0
      %284 = vmatpush1.bf16.msra.mxu0 0
      %285 = vmatprep.subr.bf16.mxu0 0
      %286 = vmatpush1.bf16.msra.mxu0 0
      %287 = vmatprep.mubr.bf16.mxu0 0
      %288 = vmatmul.mubr.bf16.gmra.mrb[0].mxu0 %v244
      %v289 = vpop.f32.mrb[0].mxu0
      %v290 = vadd.f32 %v196, %v289
      %v291 = vpop.f32.mrb[0].mxu0
      %v292 = vpop.f32.mrb[0].mxu0
      %v293 = vadd.f32 %v196, %v292
      %v294 = vpop.f32.mrb[0].mxu0
      %295 = vmatprep.mubr.bf16.mxu0 0
      %296 = vmatmul.mubr.bf16.gmra.mrb[0].mxu0 %v247
      %v297 = vpop.f32.mrb[0].mxu0
      %v298 = vadd.f32 %v196, %v297
      %v299 = vpop.f32.mrb[0].mxu0
      %v300 = vpop.f32.mrb[0].mxu0
      %v301 = vadd.f32 %v196, %v300
      %v302 = vpop.f32.mrb[0].mxu0
      %303 = vmatprep.mubr.bf16.mxu0 0
      %304 = vmatmul.mubr.bf16.gmra.mrb[0].mxu0 %v250
      %v305 = vpop.f32.mrb[0].mxu0
      %v306 = vadd.f32 %v196, %v305
      %v307 = vpop.f32.mrb[0].mxu0
      %v308 = vpop.f32.mrb[0].mxu0
      %v309 = vadd.f32 %v196, %v308
      %v310 = vpop.f32.mrb[0].mxu0
      %311 = vmatprep.mubr.bf16.mxu0 0
      %312 = vmatmul.mubr.bf16.gmra.mrb[0].mxu0 %v253
      %v313 = vpop.f32.mrb[0].mxu0
      %v314 = vadd.f32 %v196, %v313
      %v315 = vpop.f32.mrb[0].mxu0
      %v316 = vpop.f32.mrb[0].mxu0
      %v317 = vadd.f32 %v196, %v316
      %v318 = vpop.f32.mrb[0].mxu0
      %319 = vdwg.mxu0
      %vm320 = vcmask 154624
      %321 = vst.msk [vmem:[%s172] sm:$0xff] %vm320, %v290
      %322 = vst.msk [vmem:[%s172 + $0x8] sm:$0xff] %vm320, %v293
      %323 = vst.msk [vmem:[%s172 + $0x10] sm:$0xff] %vm320, %v298
      %324 = vst.msk [vmem:[%s172 + $0x18] sm:$0xff] %vm320, %v301
      %325 = vst.msk [vmem:[%s172 + $0x20] sm:$0xff] %vm320, %v306
      %326 = vst.msk [vmem:[%s172 + $0x28] sm:$0xff] %vm320, %v309
      %327 = vst.msk [vmem:[%s172 + $0x30] sm:$0xff] %vm320, %v314
      %328 = vst.msk [vmem:[%s172 + $0x38] sm:$0xff] %vm320, %v317
      %s329 = smul.u32 8, %s14
      %p330 = scmp.lt.s32.totalorder %s329, 15
      %s331 = scalar_select %p330, %s329, 15
      %s332 = smul.addr %s331, 8
      %s333 = scalar_lea.vmem %s3, %s332
      // Predicated region
      $region33: #{deeplab_forward.14} parent=31 // pred_check
        %p334 = pneg %p100
      $region34: #{deeplab_forward.14} parent=31 // pred_check_branch
        %336 = sbr.rel (%p334) target = $region36
      $region35: #{deeplab_forward.14} parent=31 // pred_region
        %s337 = smul.u32 8, %s14
      $region36: #{deeplab_forward.14} parent=31 // pred_fallthru
        _
    $region32: #{deeplab_forward.14} parent=5 // pred_fallthru
      _
    %p338 = scmp.le.s32.totalorder 2, %s9
    // Predicated region
    $region37: #{deeplab_forward.14} parent=5 // pred_check
      %p339 = pneg %p338
    $region38: #{deeplab_forward.14} parent=5 // pred_check_branch
      %341 = sbr.rel (%p339) target = $region40
    $region39: #{deeplab_forward.14} parent=5 // pred_region
      %s342 = ssub.s32 %s9, 2
      // Predicated region
      $region41: #{deeplab_forward.14} parent=39 // pred_check
        %p343 = pneg %p106
      $region42: #{deeplab_forward.14} parent=39 // pred_check_branch
        %345 = sbr.rel (%p343) target = $region44
      $region43: #{deeplab_forward.14} parent=39 // pred_region
        %s346 = smul.u32 8, %s15
        %p347 = scmp.lt.s32.totalorder %s346, 15
        %s348 = scalar_select %p347, %s346, 15
        %s349 = smul.addr %s348, 8
        %s350 = scalar_lea.vmem %s3, %s349
      $region44: #{deeplab_forward.14} parent=39 // pred_fallthru
        _
    $region40: #{deeplab_forward.14} parent=5 // pred_fallthru
      _
  $region6: #{deeplab_forward.14} parent=0 // loop_footer
    %s13 = sadd.s32 1, %s9
  $region7: #{deeplab_forward.14} parent=0 // loop_footer_branch
    %8 = sbr.rel target = $region3
  $region8: #{deeplab_forward.14} parent=0 // loop_exit
    _

// kernel: deeplab_forward.15
$region0: #{deeplab_forward.15}
  #allocation0 [shape = 'u32[]', space=smem, size = 0x4, offset = 0x4, fixed_abs, tag = 'smem constant byte address 0x4 - core index']
  #allocation1 [shape = 'u32[144,128]{1,0:T(1,128)}', space=vmem, size = 0x12000, scoped, tag = 'internal scratch']
  %s0 = inlined_call_operand.vmem [shape: f32[32,8], index: 0, kind: input, shape index: {}]
  %s1 = inlined_call_operand.vmem [shape: f32[152,608], index: 1, kind: input, shape index: {}]
  %s2 = inlined_call_operand.vmem [shape: f32[2,8,152], index: 2, kind: input, shape index: {}]
  %s3 = inlined_call_operand.vmem [shape: f32[2,32,608], index: 3, kind: output, shape index: {}]
  %s4 = sld [smem:[#allocation0]]
  $region45: #{deeplab_forward.15} parent=0
    _
  %s6 = ssub.s32 1, %s4
  %s7 = scalar_select 0, %s6, %s4
  loop: start=0, step=1, limit=6
  $region2: #{deeplab_forward.15} parent=0 // loop_pre_header
    _
  $region3: #{deeplab_forward.15} parent=0 // loop_header
    %s9 = sphi 0, %s13
    %p10 = scmp.ge.s32.totalorder %s9, 6
    %s16 = sphi 0, %s28
    %s17 = sphi 0, %s24
    %s18 = sphi 0, %s16
    %s19 = sphi 0, %s17
    %s20 = sphi 0, %s18
    %s21 = sphi 0, %s19
    %s31 = sphi 0, %s33
    %s34 = sphi 0, %s31
    %s35 = sphi 0, %s34
    %s51 = sphi 0, %s35
    %s55 = sphi 0, %s55
    %s57 = sphi 0, %s55
    %s58 = sphi 0, %s57
    %s72 = sphi 0, %s58
    %s78 = sphi 0, %s80
    %s81 = sphi 0, %s78
    %s82 = sphi 0, %s81
    %s98 = sphi 0, %s82
    %s106 = sphi 0, %s108
    %s109 = sphi 0, %s106
    %s110 = sphi 0, %s109
    %s126 = sphi 0, %s110
  $region4: #{deeplab_forward.15} parent=0 // loop_header_branch
    %12 = sbr.rel (%p10) target = $region8
  $region5: #{deeplab_forward.15} parent=0 // loop_body
    %s14 = ssub.s32 %s9, 1
    %s15 = ssub.s32 %s9, 2
    %s22 = sadd.s32 1, %s17
    %p23 = scmp.ge.s32.totalorder %s22, 2
    %s24 = scalar_select %p23, 0, %s22
    %s25 = sadd.s32 1, %s16
    %s26 = scalar_select %p23, %s25, %s16
    %p27 = scmp.ge.s32.totalorder %s26, 2
    %s28 = scalar_select %p27, 0, %s26
    %s29 = ssub.s32 %s17, %s24
    %p30 = scmp.eq.s32.totalorder %s29, 0
    %s32 = sadd.s32 %s31, 1
    %s33 = scalar_select %p30, %s31, %s32
    %p36 = pneg %p30
    %p37 = scmp.eq.s32.totalorder %s9, 3
    %p38 = por %p36, %p37
    %p39 = scmp.ne.s32.totalorder %s31, %s34
    %p40 = scmp.eq.s32.totalorder %s9, 0
    %p41 = por %p39, %p40
    %p42 = scmp.ne.s32.totalorder %s31, %s34
    %p43 = scmp.eq.s32.totalorder %s14, 3
    %p44 = por %p42, %p43
    %p45 = scmp.ne.s32.totalorder %s34, %s35
    %p46 = scmp.eq.s32.totalorder %s14, 0
    %p47 = por %p45, %p46
    %p48 = scmp.ne.s32.totalorder %s34, %s35
    %p49 = scmp.eq.s32.totalorder %s15, 3
    %p50 = por %p48, %p49
    %p52 = scmp.ne.s32.totalorder %s35, %s51
    %p53 = scmp.eq.s32.totalorder %s15, 0
    %p54 = por %p52, %p53
    %s56 = sadd.s32 %s55, 1
    %p59 = scmp.eq.s32.totalorder %s9, 3
    %p60 = scmp.ne.s32.totalorder %s55, %s57
    %p61 = scmp.eq.s32.totalorder %s9, 0
    %p62 = por %p60, %p61
    %p63 = scmp.ne.s32.totalorder %s55, %s57
    %p64 = scmp.eq.s32.totalorder %s14, 3
    %p65 = por %p63, %p64
    %p66 = scmp.ne.s32.totalorder %s57, %s58
    %p67 = scmp.eq.s32.totalorder %s14, 0
    %p68 = por %p66, %p67
    %p69 = scmp.ne.s32.totalorder %s57, %s58
    %p70 = scmp.eq.s32.totalorder %s15, 3
    %p71 = por %p69, %p70
    %p73 = scmp.ne.s32.totalorder %s58, %s72
    %p74 = scmp.eq.s32.totalorder %s15, 0
    %p75 = por %p73, %p74
    %s76 = ssub.s32 %s16, %s28
    %p77 = scmp.eq.s32.totalorder %s76, 0
    %s79 = sadd.s32 %s78, 1
    %s80 = scalar_select %p77, %s78, %s79
    %p83 = pneg %p77
    %p84 = scmp.eq.s32.totalorder %s9, 3
    %p85 = por %p83, %p84
    %p86 = scmp.ne.s32.totalorder %s78, %s81
    %p87 = scmp.eq.s32.totalorder %s9, 0
    %p88 = por %p86, %p87
    %p89 = scmp.ne.s32.totalorder %s78, %s81
    %p90 = scmp.eq.s32.totalorder %s14, 3
    %p91 = por %p89, %p90
    %p92 = scmp.ne.s32.totalorder %s81, %s82
    %p93 = scmp.eq.s32.totalorder %s14, 0
    %p94 = por %p92, %p93
    %p95 = scmp.ne.s32.totalorder %s81, %s82
    %p96 = scmp.eq.s32.totalorder %s15, 3
    %p97 = por %p95, %p96
    %p99 = scmp.ne.s32.totalorder %s82, %s98
    %p100 = scmp.eq.s32.totalorder %s15, 0
    %p101 = por %p99, %p100
    %s102 = ssub.s32 %s16, %s28
    %s103 = ssub.s32 %s17, %s24
    %s104 = sor.u32 %s102, %s103
    %p105 = scmp.eq.s32.totalorder %s104, 0
    %s107 = sadd.s32 %s106, 1
    %s108 = scalar_select %p105, %s106, %s107
    %p111 = pneg %p105
    %p112 = scmp.eq.s32.totalorder %s9, 3
    %p113 = por %p111, %p112
    %p114 = scmp.ne.s32.totalorder %s106, %s109
    %p115 = scmp.eq.s32.totalorder %s9, 0
    %p116 = por %p114, %p115
    %p117 = scmp.ne.s32.totalorder %s106, %s109
    %p118 = scmp.eq.s32.totalorder %s14, 3
    %p119 = por %p117, %p118
    %p120 = scmp.ne.s32.totalorder %s109, %s110
    %p121 = scmp.eq.s32.totalorder %s14, 0
    %p122 = por %p120, %p121
    %p123 = scmp.ne.s32.totalorder %s109, %s110
    %p124 = scmp.eq.s32.totalorder %s15, 3
    %p125 = por %p123, %p124
    %p127 = scmp.ne.s32.totalorder %s110, %s126
    %p128 = scmp.eq.s32.totalorder %s15, 0
    %p129 = por %p127, %p128
    %p130 = scmp.le.s32.totalorder 1, %s9
    %p131 = scmp.lt.s32.totalorder %s9, 5
    %p132 = pnand %p130, %p131
    %p133 = pneg %p132
    // Predicated region
    $region9: #{deeplab_forward.15} parent=5 // pred_check
      _
    $region10: #{deeplab_forward.15} parent=5 // pred_check_branch
      %135 = sbr.rel (%p132) target = $region12
    $region11: #{deeplab_forward.15} parent=5 // pred_region
      %s136 = ssub.s32 %s9, 1
      // Predicated region
      $region13: #{deeplab_forward.15} parent=11 // pred_check
        %p137 = pneg %p68
      $region14: #{deeplab_forward.15} parent=11 // pred_check_branch
        %139 = sbr.rel (%p137) target = $region16
      $region15: #{deeplab_forward.15} parent=11 // pred_region
        _
      $region16: #{deeplab_forward.15} parent=11 // pred_fallthru
        _
    $region12: #{deeplab_forward.15} parent=5 // pred_fallthru
      _
    %p140 = scmp.lt.s32.totalorder %s9, 4
    // Predicated region
    $region17: #{deeplab_forward.15} parent=5 // pred_check
      %p141 = pneg %p140
    $region18: #{deeplab_forward.15} parent=5 // pred_check_branch
      %143 = sbr.rel (%p141) target = $region20
    $region19: #{deeplab_forward.15} parent=5 // pred_region
      // Predicated region
      $region21: #{deeplab_forward.15} parent=19 // pred_check
        %p144 = pneg %p41
      $region22: #{deeplab_forward.15} parent=19 // pred_check_branch
        %146 = sbr.rel (%p144) target = $region24
      $region23: #{deeplab_forward.15} parent=19 // pred_region
        %s147 = smul.u32 2, %s17
        %p148 = scmp.lt.s32.totalorder %s147, 3
        %s149 = scalar_select %p148, %s147, 3
        %s150 = smul.addr %s149, 8
        %s151 = scalar_lea.vmem %s0, %s150
        %s152 = smul.u32 2, %s17
      $region24: #{deeplab_forward.15} parent=19 // pred_fallthru
        _
      // Predicated region
      $region25: #{deeplab_forward.15} parent=19 // pred_check
        %p153 = pneg %p88
      $region26: #{deeplab_forward.15} parent=19 // pred_check_branch
        %155 = sbr.rel (%p153) target = $region28
      $region27: #{deeplab_forward.15} parent=19 // pred_region
        %p156 = scmp.lt.s32.totalorder %s16, 1
        %s157 = scalar_select %p156, %s16, 1
        %s158 = smul.addr %s157, 2
        %s159 = smul.addr %s158, 8
        %s160 = scalar_lea.vmem %s2, %s159
      $region28: #{deeplab_forward.15} parent=19 // pred_fallthru
        _
    $region20: #{deeplab_forward.15} parent=5 // pred_fallthru
      _
    %p161 = scmp.le.s32.totalorder 1, %s9
    %p162 = scmp.lt.s32.totalorder %s9, 5
    %p163 = pnand %p161, %p162
    %p164 = pneg %p163
    // Predicated region
    $region29: #{deeplab_forward.15} parent=5 // pred_check
      _
    $region30: #{deeplab_forward.15} parent=5 // pred_check_branch
      %166 = sbr.rel (%p163) target = $region32
    $region31: #{deeplab_forward.15} parent=5 // pred_region
      %s167 = ssub.s32 %s9, 1
      %s168 = smul.u32 2, %s19
      %p169 = scmp.lt.s32.totalorder %s168, 3
      %s170 = scalar_select %p169, %s168, 3
      %s171 = smul.addr %s170, 8
      %s172 = scalar_lea.vmem %s0, %s171
      %p173 = pneg %p47
      %p174 = pneg %p44
      %p175 = pneg %p68
      %p176 = pneg %p65
      %p177 = scmp.lt.s32.totalorder %s18, 1
      %s178 = scalar_select %p177, %s18, 1
      %s179 = smul.addr %s178, 2
      %s180 = smul.addr %s179, 8
      %s181 = scalar_lea.vmem %s2, %s180
      %p182 = pneg %p94
      %p183 = pneg %p91
      %p184 = pneg %p122
      %p185 = pneg %p119
      %s186 = smul.u32 2, %s19
      %p187 = scmp.lt.s32.totalorder %s18, 1
      %s188 = scalar_select %p187, %s18, 1
      %p189 = scmp.lt.s32.totalorder %s186, 3
      %s190 = scalar_select %p189, %s186, 3
      %s191 = smul.addr %s190, 5
      %s192 = smul.addr %s188, 20
      %s193 = sadd.s32 %s191, %s192
      %s194 = smul.addr %s193, 8
      %s195 = scalar_lea.vmem %s3, %s194
      %s196 = smul.u32 2, %s19
      %p197 = scmp.lt.s32.totalorder %s196, 3
      %s198 = scalar_select %p197, %s196, 3
      %s199 = smul.addr %s198, 8
      %s200 = scalar_lea.vmem %s0, %s199
      %s201 = smul.u32 2, %s19
      %p202 = scmp.lt.s32.totalorder %s18, 1
      %s203 = scalar_select %p202, %s18, 1
      %s204 = smul.addr %s203, 2
      %s205 = smul.addr %s204, 8
      %s206 = scalar_lea.vmem %s2, %s205
      %s207 = smul.u32 2, %s19
      %p208 = scmp.lt.s32.totalorder %s18, 1
      %s209 = scalar_select %p208, %s18, 1
      %p210 = scmp.lt.s32.totalorder %s207, 3
      %s211 = scalar_select %p210, %s207, 3
      %s212 = smul.addr %s211, 5
      %s213 = smul.addr %s209, 20
      %s214 = sadd.s32 %s212, %s213
      %s215 = smul.addr %s214, 8
      %s216 = scalar_lea.vmem %s3, %s215
      %s217 = smul.u32 2, %s19
      %v218 = vld [vmem:[%s206] sm:$0xff]
      %v219 = vld [vmem:[%s206 + $0x8] sm:$0xff]
      %v220 = vld [vmem:[%s200] sm:$0xff]
      %v221 = vld [vmem:[%s200 + $0x8] sm:$0xff]
      %vm222 = vcmask 64512
      %v224 = vsel %vm222, %v220, 0
      %v227 = vsel %vm222, %v221, 0
      %229 = vmatprep.subr.mxu0 %v219
      %230 = vmatpush1.msra.mxu0 %v218
      %231 = vmatprep.subr.mxu0 0.0
      %232 = vmatpush1.msra.mxu0 0.0
      %233 = vmatprep.subr.mxu0 0.0
      %234 = vmatpush1.msra.mxu0 0.0
      %235 = vmatprep.subr.mxu0 0.0
      %236 = vmatpush1.msra.mxu0 0.0
      %237 = vmatprep.subr.mxu0 0.0
      %238 = vmatpush1.msra.mxu0 0.0
      %239 = vmatprep.subr.mxu0 0.0
      %240 = vmatpush1.msra.mxu0 0.0
      %241 = vmatprep.subr.mxu0 0.0
      %242 = vmatpush1.msra.mxu0 0.0
      %243 = vmatprep.subr.mxu0 0.0
      %244 = vmatpush1.msra.mxu0 0.0
      %245 = vmatprep.subr.mxu0 0.0
      %246 = vmatpush1.msra.mxu0 0.0
      %247 = vmatprep.subr.mxu0 0.0
      %248 = vmatpush1.msra.mxu0 0.0
      %249 = vmatprep.subr.mxu0 0.0
      %250 = vmatpush1.msra.mxu0 0.0
      %251 = vmatprep.subr.mxu0 0.0
      %252 = vmatpush1.msra.mxu0 0.0
      %253 = vmatprep.subr.mxu0 0.0
      %254 = vmatpush1.msra.mxu0 0.0
      %255 = vmatprep.subr.mxu0 0.0
      %256 = vmatpush1.msra.mxu0 0.0
      %257 = vmatprep.subr.mxu0 0.0
      %258 = vmatpush1.msra.mxu0 0.0
      %259 = vmatprep.subr.mxu0 0.0
      %260 = vmatpush1.msra.mxu0 0.0
      %261 = vmatprep.subr.mxu0 0.0
      %262 = vmatpush1.msra.mxu0 0.0
      %263 = vmatprep.subr.mxu0 0.0
      %264 = vmatpush1.msra.mxu0 0.0
      %265 = vmatprep.subr.mxu0 0.0
      %266 = vmatpush1.msra.mxu0 0.0
      %267 = vmatprep.subr.mxu0 0.0
      %268 = vmatpush1.msra.mxu0 0.0
      %269 = vmatprep.subr.mxu0 0.0
      %270 = vmatpush1.msra.mxu0 0.0
      %271 = vmatprep.subr.mxu0 0.0
      %272 = vmatpush1.msra.mxu0 0.0
      %273 = vmatprep.subr.mxu0 0.0
      %274 = vmatpush1.msra.mxu0 0.0
      %275 = vmatprep.subr.mxu0 0.0
      %276 = vmatpush1.msra.mxu0 0.0
      %277 = vmatprep.subr.mxu0 0.0
      %278 = vmatpush1.msra.mxu0 0.0
      %279 = vmatprep.subr.mxu0 0.0
      %280 = vmatpush1.msra.mxu0 0.0
      %281 = vmatprep.subr.mxu0 0.0
      %282 = vmatpush1.msra.mxu0 0.0
      %283 = vmatprep.subr.mxu0 0.0
      %284 = vmatpush1.msra.mxu0 0.0
      %285 = vmatprep.subr.mxu0 0.0
      %286 = vmatpush1.msra.mxu0 0.0
      %287 = vmatprep.subr.mxu0 0.0
      %288 = vmatpush1.msra.mxu0 0.0
      %289 = vmatprep.subr.mxu0 0.0
      %290 = vmatpush1.msra.mxu0 0.0
      %291 = vmatprep.subr.mxu0 0.0
      %292 = vmatpush1.msra.mxu0 0.0
      %293 = vmatprep.mubr.f32.mxu0 0.0
      %294 = vmatmul.mubr.f32.gmra.mrb[0].mxu0 %v224
      %v295 = vpop.f32.mrb[0].mxu0
      %v296 = vadd.f32 0.0, %v295
      %v297 = vpop.f32.mrb[0].mxu0
      %v298 = vadd.f32 0.0, %v297
      %299 = vmatprep.mubr.f32.mxu0 0.0
      %300 = vmatmul.mubr.f32.gmra.mrb[0].mxu0 %v227
      %v301 = vpop.f32.mrb[0].mxu0
      %v302 = vadd.f32 0.0, %v301
      %v303 = vpop.f32.mrb[0].mxu0
      %v304 = vadd.f32 0.0, %v303
      %305 = vdwg.mxu0
      %v306 = vld [vmem:[%s1] sm:$0xff]
      %v307 = vld [vmem:[%s1 + $0x8] sm:$0xff]
      %v308 = vld [vmem:[%s1 + $0x10] sm:$0xff]
      %v309 = vld [vmem:[%s1 + $0x18] sm:$0xff]
      %v310 = vld [vmem:[%s1 + $0x20] sm:$0xff]
      %v311 = vld [vmem:[%s1 + $0x28] sm:$0xff]
      %v312 = vld [vmem:[%s1 + $0x30] sm:$0xff]
      %v313 = vld [vmem:[%s1 + $0x38] sm:$0xff]
      %v314 = vld [vmem:[%s1 + $0x40] sm:$0xff]
      %v315 = vld [vmem:[%s1 + $0x48] sm:$0xff]
      %v316 = vld [vmem:[%s1 + $0x50] sm:$0xff]
      %v317 = vld [vmem:[%s1 + $0x58] sm:$0xff]
      %v318 = vld [vmem:[%s1 + $0x60] sm:$0xff]
      %v319 = vld [vmem:[%s1 + $0x68] sm:$0xff]
      %v320 = vld [vmem:[%s1 + $0x70] sm:$0xff]
      %v321 = vld [vmem:[%s1 + $0x78] sm:$0xff]
      %v322 = vld [vmem:[%s1 + $0x80] sm:$0xff]
      %v323 = vld [vmem:[%s1 + $0x88] sm:$0xff]
      %v324 = vld [vmem:[%s1 + $0x90] sm:$0xff]
      %v325 = vld [vmem:[%s1 + $0x98] sm:$0xff]
      %v326 = vld [vmem:[%s1 + $0xa0] sm:$0xff]
      %v327 = vld [vmem:[%s1 + $0xa8] sm:$0xff]
      %v328 = vld [vmem:[%s1 + $0xb0] sm:$0xff]
      %v329 = vld [vmem:[%s1 + $0xb8] sm:$0xff]
      %v330 = vld [vmem:[%s1 + $0xc0] sm:$0xff]
      %v331 = vld [vmem:[%s1 + $0xc8] sm:$0xff]
      %v332 = vld [vmem:[%s1 + $0xd0] sm:$0xff]
      %v333 = vld [vmem:[%s1 + $0xd8] sm:$0xff]
      %v334 = vld [vmem:[%s1 + $0xe0] sm:$0xff]
      %v335 = vld [vmem:[%s1 + $0xe8] sm:$0xff]
      %v336 = vld [vmem:[%s1 + $0xf0] sm:$0xff]
      %v337 = vld [vmem:[%s1 + $0xf8] sm:$0xff]
      %v338 = vld [vmem:[%s1 + $0x100] sm:$0xff]
      %v339 = vld [vmem:[%s1 + $0x108] sm:$0xff]
      %v340 = vld [vmem:[%s1 + $0x110] sm:$0xff]
      %v341 = vld [vmem:[%s1 + $0x118] sm:$0xff]
      %v342 = vld [vmem:[%s1 + $0x120] sm:$0xff]
      %v343 = vld [vmem:[%s1 + $0x128] sm:$0xff]
      %v344 = vld [vmem:[%s1 + $0x130] sm:$0xff]
      %v345 = vld [vmem:[%s1 + $0x138] sm:$0xff]
      %v346 = vld [vmem:[%s1 + $0x140] sm:$0xff]
      %v347 = vld [vmem:[%s1 + $0x148] sm:$0xff]
      %v348 = vld [vmem:[%s1 + $0x150] sm:$0xff]
      %v349 = vld [vmem:[%s1 + $0x158] sm:$0xff]
      %v350 = vld [vmem:[%s1 + $0x160] sm:$0xff]
      %v351 = vld [vmem:[%s1 + $0x168] sm:$0xff]
      %v352 = vld [vmem:[%s1 + $0x170] sm:$0xff]
      %v353 = vld [vmem:[%s1 + $0x178] sm:$0xff]
      %v354 = vld [vmem:[%s1 + $0x180] sm:$0xff]
      %v355 = vld [vmem:[%s1 + $0x188] sm:$0xff]
      %v356 = vld [vmem:[%s1 + $0x190] sm:$0xff]
      %v357 = vld [vmem:[%s1 + $0x198] sm:$0xff]
      %v358 = vld [vmem:[%s1 + $0x1a0] sm:$0xff]
      %v359 = vld [vmem:[%s1 + $0x1a8] sm:$0xff]
      %v360 = vld [vmem:[%s1 + $0x1b0] sm:$0xff]
      %v361 = vld [vmem:[%s1 + $0x1b8] sm:$0xff]
      %v362 = vld [vmem:[%s1 + $0x1c0] sm:$0xff]
      %v363 = vld [vmem:[%s1 + $0x1c8] sm:$0xff]
      %v364 = vld [vmem:[%s1 + $0x1d0] sm:$0xff]
      %v365 = vld [vmem:[%s1 + $0x1d8] sm:$0xff]
      %v366 = vld [vmem:[%s1 + $0x1e0] sm:$0xff]
      %v367 = vld [vmem:[%s1 + $0x1e8] sm:$0xff]
      %v368 = vld [vmem:[%s1 + $0x1f0] sm:$0xff]
      %v369 = vld [vmem:[%s1 + $0x1f8] sm:$0xff]
      %v370 = vld [vmem:[%s1 + $0x200] sm:$0xff]
      %v371 = vld [vmem:[%s1 + $0x208] sm:$0xff]
      %v372 = vld [vmem:[%s1 + $0x210] sm:$0xff]
      %v373 = vld [vmem:[%s1 + $0x218] sm:$0xff]
      %v374 = vld [vmem:[%s1 + $0x220] sm:$0xff]
      %v375 = vld [vmem:[%s1 + $0x228] sm:$0xff]
      %v376 = vld [vmem:[%s1 + $0x230] sm:$0xff]
      %v377 = vld [vmem:[%s1 + $0x238] sm:$0xff]
      %v378 = vld [vmem:[%s1 + $0x240] sm:$0xff]
      %v379 = vld [vmem:[%s1 + $0x248] sm:$0xff]
      %v380 = vld [vmem:[%s1 + $0x250] sm:$0xff]
      %v381 = vld [vmem:[%s1 + $0x258] sm:$0xff]
      %v382 = vld [vmem:[%s1 + $0x260] sm:$0xff]
      %v383 = vld [vmem:[%s1 + $0x268] sm:$0xff]
      %v384 = vld [vmem:[%s1 + $0x270] sm:$0xff]
      %v385 = vld [vmem:[%s1 + $0x278] sm:$0xff]
      %v386 = vld [vmem:[%s1 + $0x280] sm:$0xff]
      %v387 = vld [vmem:[%s1 + $0x288] sm:$0xff]
      %v388 = vld [vmem:[%s1 + $0x290] sm:$0xff]
      %v389 = vld [vmem:[%s1 + $0x298] sm:$0xff]
      %v390 = vld [vmem:[%s1 + $0x2a0] sm:$0xff]
      %v391 = vld [vmem:[%s1 + $0x2a8] sm:$0xff]
      %v392 = vld [vmem:[%s1 + $0x2b0] sm:$0xff]
      %v393 = vld [vmem:[%s1 + $0x2b8] sm:$0xff]
      %v394 = vld [vmem:[%s1 + $0x2c0] sm:$0xff]
      %v395 = vld [vmem:[%s1 + $0x2c8] sm:$0xff]
      %v396 = vld [vmem:[%s1 + $0x2d0] sm:$0xff]
      %v397 = vld [vmem:[%s1 + $0x2d8] sm:$0xff]
      %v398 = vld [vmem:[%s1 + $0x2e0] sm:$0xff]
      %v399 = vld [vmem:[%s1 + $0x2e8] sm:$0xff]
      %v400 = vld [vmem:[%s1 + $0x2f0] sm:$0xff]
      %vm401 = vcmask 195584
      %v403 = vsel %vm401, %v298, 0
      %v406 = vsel %vm401, %v304, 0
      %408 = vmatprep.subr.mxu0 %v307
      %409 = vmatpush1.msra.mxu0 %v306
      %410 = vmatprep.subr.mxu0 %v312
      %411 = vmatpush1.msra.mxu0 %v311
      %412 = vmatprep.subr.mxu0 %v317
      %413 = vmatpush1.msra.mxu0 %v316
      %414 = vmatprep.subr.mxu0 %v322
      %415 = vmatpush1.msra.mxu0 %v321
      %416 = vmatprep.subr.mxu0 %v327
      %417 = vmatpush1.msra.mxu0 %v326
      %418 = vmatprep.subr.mxu0 %v332
      %419 = vmatpush1.msra.mxu0 %v331
      %420 = vmatprep.subr.mxu0 %v337
      %421 = vmatpush1.msra.mxu0 %v336
      %422 = vmatprep.subr.mxu0 %v342
      %423 = vmatpush1.msra.mxu0 %v341
      %424 = vmatprep.subr.mxu0 %v347
      %425 = vmatpush1.msra.mxu0 %v346
      %426 = vmatprep.subr.mxu0 %v352
      %427 = vmatpush1.msra.mxu0 %v351
      %428 = vmatprep.subr.mxu0 %v357
      %429 = vmatpush1.msra.mxu0 %v356
      %430 = vmatprep.subr.mxu0 %v362
      %431 = vmatpush1.msra.mxu0 %v361
      %432 = vmatprep.subr.mxu0 %v367
      %433 = vmatpush1.msra.mxu0 %v366
      %434 = vmatprep.subr.mxu0 %v372
      %435 = vmatpush1.msra.mxu0 %v371
      %436 = vmatprep.subr.mxu0 %v377
      %437 = vmatpush1.msra.mxu0 %v376
      %438 = vmatprep.subr.mxu0 %v382
      %439 = vmatpush1.msra.mxu0 %v381
      %440 = vmatprep.subr.mxu0 %v387
      %441 = vmatpush1.msra.mxu0 %v386
      %442 = vmatprep.subr.mxu0 %v392
      %443 = vmatpush1.msra.mxu0 %v391
      %444 = vmatprep.subr.mxu0 %v397
      %445 = vmatpush1.msra.mxu0 %v396
      %446 = vmatprep.subr.mxu0 0.0
      %447 = vmatpush1.msra.mxu0 0.0
      %448 = vmatprep.subr.mxu0 0.0
      %449 = vmatpush1.msra.mxu0 0.0
      %450 = vmatprep.subr.mxu0 0.0
      %451 = vmatpush1.msra.mxu0 0.0
      %452 = vmatprep.subr.mxu0 0.0
      %453 = vmatpush1.msra.mxu0 0.0
      %454 = vmatprep.subr.mxu0 0.0
      %455 = vmatpush1.msra.mxu0 0.0
      %456 = vmatprep.subr.mxu0 0.0
      %457 = vmatpush1.msra.mxu0 0.0
      %458 = vmatprep.subr.mxu0 0.0
      %459 = vmatpush1.msra.mxu0 0.0
      %460 = vmatprep.subr.mxu0 0.0
      %461 = vmatpush1.msra.mxu0 0.0
      %462 = vmatprep.subr.mxu0 0.0
      %463 = vmatpush1.msra.mxu0 0.0
      %464 = vmatprep.subr.mxu0 0.0
      %465 = vmatpush1.msra.mxu0 0.0
      %466 = vmatprep.subr.mxu0 0.0
      %467 = vmatpush1.msra.mxu0 0.0
      %468 = vmatprep.subr.mxu0 0.0
      %469 = vmatpush1.msra.mxu0 0.0
      %470 = vmatprep.subr.mxu0 0.0
      %471 = vmatpush1.msra.mxu0 0.0
      %472 = vmatprep.mubr.f32.mxu0 %v403
      %473 = vmatmul.mubr.f32.gmra.mrb[0].mxu0 %v296
      %v474 = vpop.f32.mrb[0].mxu0
      %v475 = vadd.f32 0.0, %v474
      %v476 = vpop.f32.mrb[0].mxu0
      %v477 = vadd.f32 0.0, %v476
      %478 = vmatprep.mubr.f32.mxu0 %v406
      %479 = vmatmul.mubr.f32.gmra.mrb[0].mxu0 %v302
      %v480 = vpop.f32.mrb[0].mxu0
      %v481 = vadd.f32 0.0, %v480
      %v482 = vpop.f32.mrb[0].mxu0
      %v483 = vadd.f32 0.0, %v482
      %484 = vdwg.mxu0
      %485 = vmatprep.subr.mxu0 %v309
      %486 = vmatpush1.msra.mxu0 %v308
      %487 = vmatprep.subr.mxu0 %v314
      %488 = vmatpush1.msra.mxu0 %v313
      %489 = vmatprep.subr.mxu0 %v319
      %490 = vmatpush1.msra.mxu0 %v318
      %491 = vmatprep.subr.mxu0 %v324
      %492 = vmatpush1.msra.mxu0 %v323
      %493 = vmatprep.subr.mxu0 %v329
      %494 = vmatpush1.msra.mxu0 %v328
      %495 = vmatprep.subr.mxu0 %v334
      %496 = vmatpush1.msra.mxu0 %v333
      %497 = vmatprep.subr.mxu0 %v339
      %498 = vmatpush1.msra.mxu0 %v338
      %499 = vmatprep.subr.mxu0 %v344
      %500 = vmatpush1.msra.mxu0 %v343
      %501 = vmatprep.subr.mxu0 %v349
      %502 = vmatpush1.msra.mxu0 %v348
      %503 = vmatprep.subr.mxu0 %v354
      %504 = vmatpush1.msra.mxu0 %v353
      %505 = vmatprep.subr.mxu0 %v359
      %506 = vmatpush1.msra.mxu0 %v358
      %507 = vmatprep.subr.mxu0 %v364
      %508 = vmatpush1.msra.mxu0 %v363
      %509 = vmatprep.subr.mxu0 %v369
      %510 = vmatpush1.msra.mxu0 %v368
      %511 = vmatprep.subr.mxu0 %v374
      %512 = vmatpush1.msra.mxu0 %v373
      %513 = vmatprep.subr.mxu0 %v379
      %514 = vmatpush1.msra.mxu0 %v378
      %515 = vmatprep.subr.mxu0 %v384
      %516 = vmatpush1.msra.mxu0 %v383
      %517 = vmatprep.subr.mxu0 %v389
      %518 = vmatpush1.msra.mxu0 %v388
      %519 = vmatprep.subr.mxu0 %v394
      %520 = vmatpush1.msra.mxu0 %v393
      %521 = vmatprep.subr.mxu0 %v399
      %522 = vmatpush1.msra.mxu0 %v398
      %523 = vmatprep.subr.mxu0 0.0
      %524 = vmatpush1.msra.mxu0 0.0
      %525 = vmatprep.subr.mxu0 0.0
      %526 = vmatpush1.msra.mxu0 0.0
      %527 = vmatprep.subr.mxu0 0.0
      %528 = vmatpush1.msra.mxu0 0.0
      %529 = vmatprep.subr.mxu0 0.0
      %530 = vmatpush1.msra.mxu0 0.0
      %531 = vmatprep.subr.mxu0 0.0
      %532 = vmatpush1.msra.mxu0 0.0
      %533 = vmatprep.subr.mxu0 0.0
      %534 = vmatpush1.msra.mxu0 0.0
      %535 = vmatprep.subr.mxu0 0.0
      %536 = vmatpush1.msra.mxu0 0.0
      %537 = vmatprep.subr.mxu0 0.0
      %538 = vmatpush1.msra.mxu0 0.0
      %539 = vmatprep.subr.mxu0 0.0
      %540 = vmatpush1.msra.mxu0 0.0
      %541 = vmatprep.subr.mxu0 0.0
      %542 = vmatpush1.msra.mxu0 0.0
      %543 = vmatprep.subr.mxu0 0.0
      %544 = vmatpush1.msra.mxu0 0.0
      %545 = vmatprep.subr.mxu0 0.0
      %546 = vmatpush1.msra.mxu0 0.0
      %547 = vmatprep.subr.mxu0 0.0
      %548 = vmatpush1.msra.mxu0 0.0
      %549 = vmatprep.mubr.f32.mxu0 %v403
      %550 = vmatmul.mubr.f32.gmra.mrb[0].mxu0 %v296
      %v551 = vpop.f32.mrb[0].mxu0
      %v552 = vadd.f32 0.0, %v551
      %v553 = vpop.f32.mrb[0].mxu0
      %v554 = vadd.f32 0.0, %v553
      %555 = vmatprep.mubr.f32.mxu0 %v406
      %556 = vmatmul.mubr.f32.gmra.mrb[0].mxu0 %v302
      %v557 = vpop.f32.mrb[0].mxu0
      %v558 = vadd.f32 0.0, %v557
      %v559 = vpop.f32.mrb[0].mxu0
      %v560 = vadd.f32 0.0, %v559
      %561 = vdwg.mxu0
      %562 = vmatprep.subr.mxu0 0.0
      %563 = vmatpush1.msra.mxu0 %v310
      %564 = vmatprep.subr.mxu0 0.0
      %565 = vmatpush1.msra.mxu0 %v315
      %566 = vmatprep.subr.mxu0 0.0
      %567 = vmatpush1.msra.mxu0 %v320
      %568 = vmatprep.subr.mxu0 0.0
      %569 = vmatpush1.msra.mxu0 %v325
      %570 = vmatprep.subr.mxu0 0.0
      %571 = vmatpush1.msra.mxu0 %v330
      %572 = vmatprep.subr.mxu0 0.0
      %573 = vmatpush1.msra.mxu0 %v335
      %574 = vmatprep.subr.mxu0 0.0
      %575 = vmatpush1.msra.mxu0 %v340
      %576 = vmatprep.subr.mxu0 0.0
      %577 = vmatpush1.msra.mxu0 %v345
      %578 = vmatprep.subr.mxu0 0.0
      %579 = vmatpush1.msra.mxu0 %v350
      %580 = vmatprep.subr.mxu0 0.0
      %581 = vmatpush1.msra.mxu0 %v355
      %582 = vmatprep.subr.mxu0 0.0
      %583 = vmatpush1.msra.mxu0 %v360
      %584 = vmatprep.subr.mxu0 0.0
      %585 = vmatpush1.msra.mxu0 %v365
      %586 = vmatprep.subr.mxu0 0.0
      %587 = vmatpush1.msra.mxu0 %v370
      %588 = vmatprep.subr.mxu0 0.0
      %589 = vmatpush1.msra.mxu0 %v375
      %590 = vmatprep.subr.mxu0 0.0
      %591 = vmatpush1.msra.mxu0 %v380
      %592 = vmatprep.subr.mxu0 0.0
      %593 = vmatpush1.msra.mxu0 %v385
      %594 = vmatprep.subr.mxu0 0.0
      %595 = vmatpush1.msra.mxu0 %v390
      %596 = vmatprep.subr.mxu0 0.0
      %597 = vmatpush1.msra.mxu0 %v395
      %598 = vmatprep.subr.mxu0 0.0
      %599 = vmatpush1.msra.mxu0 %v400
      %600 = vmatprep.subr.mxu0 0.0
      %601 = vmatpush1.msra.mxu0 0.0
      %602 = vmatprep.subr.mxu0 0.0
      %603 = vmatpush1.msra.mxu0 0.0
      %604 = vmatprep.subr.mxu0 0.0
      %605 = vmatpush1.msra.mxu0 0.0
      %606 = vmatprep.subr.mxu0 0.0
      %607 = vmatpush1.msra.mxu0 0.0
      %608 = vmatprep.subr.mxu0 0.0
      %609 = vmatpush1.msra.mxu0 0.0
      %610 = vmatprep.subr.mxu0 0.0
      %611 = vmatpush1.msra.mxu0 0.0
      %612 = vmatprep.subr.mxu0 0.0
      %613 = vmatpush1.msra.mxu0 0.0
      %614 = vmatprep.subr.mxu0 0.0
      %615 = vmatpush1.msra.mxu0 0.0
      %616 = vmatprep.subr.mxu0 0.0
      %617 = vmatpush1.msra.mxu0 0.0
      %618 = vmatprep.subr.mxu0 0.0
      %619 = vmatpush1.msra.mxu0 0.0
      %620 = vmatprep.subr.mxu0 0.0
      %621 = vmatpush1.msra.mxu0 0.0
      %622 = vmatprep.subr.mxu0 0.0
      %623 = vmatpush1.msra.mxu0 0.0
      %624 = vmatprep.subr.mxu0 0.0
      %625 = vmatpush1.msra.mxu0 0.0
      %626 = vmatprep.mubr.f32.mxu0 %v403
      %627 = vmatmul.mubr.f32.gmra.mrb[0].mxu0 %v296
      %v628 = vpop.f32.mrb[0].mxu0
      %v629 = vadd.f32 0.0, %v628
      %v630 = vpop.f32.mrb[0].mxu0
      %631 = vmatprep.mubr.f32.mxu0 %v406
      %632 = vmatmul.mubr.f32.gmra.mrb[0].mxu0 %v302
      %v633 = vpop.f32.mrb[0].mxu0
      %v634 = vadd.f32 0.0, %v633
      %v635 = vpop.f32.mrb[0].mxu0
      %636 = vdwg.mxu0
      %637 = vst [vmem:[%s216] sm:$0xff] %v475
      %638 = vst [vmem:[%s216 + $0x8] sm:$0xff] %v477
      %639 = vst [vmem:[%s216 + $0x10] sm:$0xff] %v552
      %640 = vst [vmem:[%s216 + $0x18] sm:$0xff] %v554
      %vm641 = vcmask 785408
      %642 = vst.msk [vmem:[%s216 + $0x20] sm:$0xff] %vm641, %v629
      %643 = vst [vmem:[%s216 + $0x28] sm:$0xff] %v481
      %644 = vst [vmem:[%s216 + $0x30] sm:$0xff] %v483
      %645 = vst [vmem:[%s216 + $0x38] sm:$0xff] %v558
      %646 = vst [vmem:[%s216 + $0x40] sm:$0xff] %v560
      %647 = vst.msk [vmem:[%s216 + $0x48] sm:$0xff] %vm641, %v634
      %s648 = smul.u32 2, %s19
      %p649 = scmp.lt.s32.totalorder %s18, 1
      %s650 = scalar_select %p649, %s18, 1
      %p651 = scmp.lt.s32.totalorder %s648, 3
      %s652 = scalar_select %p651, %s648, 3
      %s653 = smul.addr %s652, 5
      %s654 = smul.addr %s650, 20
      %s655 = sadd.s32 %s653, %s654
      %s656 = smul.addr %s655, 8
      %s657 = scalar_lea.vmem %s3, %s656
      // Predicated region
      $region33: #{deeplab_forward.15} parent=31 // pred_check
        %p658 = pneg %p119
      $region34: #{deeplab_forward.15} parent=31 // pred_check_branch
        %660 = sbr.rel (%p658) target = $region36
      $region35: #{deeplab_forward.15} parent=31 // pred_region
        %s661 = smul.u32 2, %s19
      $region36: #{deeplab_forward.15} parent=31 // pred_fallthru
        _
    $region32: #{deeplab_forward.15} parent=5 // pred_fallthru
      _
    %p662 = scmp.le.s32.totalorder 2, %s9
    // Predicated region
    $region37: #{deeplab_forward.15} parent=5 // pred_check
      %p663 = pneg %p662
    $region38: #{deeplab_forward.15} parent=5 // pred_check_branch
      %665 = sbr.rel (%p663) target = $region40
    $region39: #{deeplab_forward.15} parent=5 // pred_region
      %s666 = ssub.s32 %s9, 2
      // Predicated region
      $region41: #{deeplab_forward.15} parent=39 // pred_check
        %p667 = pneg %p125
      $region42: #{deeplab_forward.15} parent=39 // pred_check_branch
        %669 = sbr.rel (%p667) target = $region44
      $region43: #{deeplab_forward.15} parent=39 // pred_region
        %s670 = smul.u32 2, %s21
        %p671 = scmp.lt.s32.totalorder %s20, 1
        %s672 = scalar_select %p671, %s20, 1
        %p673 = scmp.lt.s32.totalorder %s670, 3
        %s674 = scalar_select %p673, %s670, 3
        %s675 = smul.addr %s674, 5
        %s676 = smul.addr %s672, 20
        %s677 = sadd.s32 %s675, %s676
        %s678 = smul.addr %s677, 8
        %s679 = scalar_lea.vmem %s3, %s678
      $region44: #{deeplab_forward.15} parent=39 // pred_fallthru
        _
    $region40: #{deeplab_forward.15} parent=5 // pred_fallthru
      _
  $region6: #{deeplab_forward.15} parent=0 // loop_footer
    %s13 = sadd.s32 1, %s9
  $region7: #{deeplab_forward.15} parent=0 // loop_footer_branch
    %8 = sbr.rel target = $region3
  $region8: #{deeplab_forward.15} parent=0 // loop_exit
    _

</llo_original>
